<compile_context>
chip_gen: v6e
topology: v6e:2x2x1
jax: 0.10.0
libtpu: 0.0.40
codegen_flags: <defaults>
</compile_context>

<pallas_src>
import jax
import jax.numpy as jnp
from jax.experimental import pallas as pl
from jax.experimental.pallas import tpu as pltpu

CP = 128  # lane width == single packed channel slab


# --------------------------------------------------------------------------- #
# Fused DenseBlock kernel: for each layer, BN(batch stats) -> ReLU -> 3x3 conv #
# (9 tap matmuls) -> add new channels into their packed lanes of the slab.     #
# --------------------------------------------------------------------------- #
def dense_block_kernel(x_ref, gamma_ref, beta_ref, w_ref, b_ref, out_ref):
    """
    x_ref     : [N, H, W, CP]    f32   input channels packed in lanes [0, in_c), rest 0
    gamma_ref : [L, CP]          f32   BN gamma per layer (0 on lanes the layer ignores)
    beta_ref  : [L, CP]          f32   BN beta per layer  (0 on ignored lanes)
    w_ref     : [L, 9, CP, CP]   bf16  conv weights, tap-major (t = 3*ky + kx);
                                       rows = packed input lanes, cols = packed output lanes
    b_ref     : [L, CP]          f32   conv bias at the layer's output lanes, 0 elsewhere
    out_ref   : [N, H, W, CP]    f32   final dense slab
    """
    N, H, W, C = x_ref.shape
    L = gamma_ref.shape[0]

    buf = x_ref[...]            # dense slab, stays a VMEM-resident value across layers
    gammas = gamma_ref[...]     # [L, C]
    betas = beta_ref[...]
    biases = b_ref[...]

    # Column index along W (sublane axis) for the W-halo boundary masks.
    col = jax.lax.broadcasted_iota(jnp.int32, (1, 1, W, 1), 2)

    for layer in range(L):      # static unroll over num_convs
        # ---- BatchNorm: batch statistics over (N,H,W), folded to scale/shift ----
        # Per-lane stats of already-written channels are unchanged between layers,
        # but the slab is VMEM-resident so recomputing them costs no HBM traffic.
        flat = buf.reshape(N * H * W, C)
        mean = jnp.mean(flat, axis=0, keepdims=True)                      # [1, C]
        var = jnp.mean(jnp.square(flat - mean), axis=0, keepdims=True)    # [1, C]
        inv = jax.lax.rsqrt(var + 1e-5)
        g = gammas[layer:layer + 1]                                       # [1, C]
        scale = (g * inv).reshape(1, 1, 1, C)
        shift = (betas[layer:layer + 1] - g * inv * mean).reshape(1, 1, 1, C)

        # ---- BN + ReLU (f32, VPU) ----
        act = jnp.maximum(buf * scale + shift, 0.0)                       # [N, H, W, C]

        # ---- 1-pixel zero halo along H: cheap concat on a leading axis ----
        zrow = jnp.zeros((N, 1, W, C), jnp.float32)
        act_h = jnp.concatenate([zrow, act, zrow], axis=1)                # [N, H+2, W, C]

        # ---- 1-pixel halo along W: XLU roll + boundary mask (no padded scratch);
        #      each shifted copy is cast to bf16 ONCE for the matmul path. ----
        shifted = []
        for dx in range(3):
            if dx == 1:
                shifted.append(act_h.astype(jnp.bfloat16))
            else:
                rolled = pltpu.roll(act_h, shift=(1 - dx) % W, axis=2)
                keep = (col != (0 if dx == 0 else W - 1)).astype(jnp.float32)
                shifted.append((rolled * keep).astype(jnp.bfloat16))

        # ---- 3x3 conv as 9 tap matmuls, f32 accumulation (no materialized im2col) ----
        w_l = w_ref[layer]                                                # [9, C, C] bf16
        acc = jnp.zeros((N * H * W, C), jnp.float32)
        for dy in range(3):
            for dx in range(3):
                tap = shifted[dx][:, dy:dy + H].reshape(N * H * W, C)     # bf16
                acc = acc + jnp.dot(tap, w_l[3 * dy + dx],
                                    preferred_element_type=jnp.float32)

        # ---- dense concat: new channels land in their (currently zero) lanes ----
        buf = buf + acc.reshape(N, H, W, C) + biases[layer:layer + 1].reshape(1, 1, 1, C)

    out_ref[...] = buf


# --------------------------------------------------------------------------- #
# Parameter construction / packing into the single 128-lane slab layout.       #
# --------------------------------------------------------------------------- #
def init_dense_block_params(key, num_convs, in_channels, out_channels):
    """Per-layer (gamma, beta, w[HWIO], b) in the original (unpadded) shapes."""
    params = []
    for i in range(num_convs):
        in_c = in_channels + i * out_channels
        key, kw, kb, kg, kbt = jax.random.split(key, 5)
        gamma = 1.0 + 0.1 * jax.random.normal(kg, (in_c,), jnp.float32)
        beta = 0.1 * jax.random.normal(kbt, (in_c,), jnp.float32)
        w = 0.1 * jax.random.normal(kw, (3, 3, in_c, out_channels), jnp.float32)
        b = 0.1 * jax.random.normal(kb, (out_channels,), jnp.float32)
        params.append((gamma, beta, w, b))
    return params


def pack_dense_block_params(params, in_channels, out_channels):
    """Pack per-layer params into the contiguous 128-lane slab layout."""
    L = len(params)
    assert in_channels + L * out_channels <= CP, (
        "single-slab packed layout requires <= 128 total channels")
    gammas, betas, ws, bs = [], [], [], []
    for i, (gamma, beta, w, b) in enumerate(params):
        in_c_i = in_channels + i * out_channels   # this layer's real input channels
        out_start = in_c_i                        # its outputs go right after them
        g = jnp.zeros((CP,), jnp.float32).at[:in_c_i].set(gamma)
        bt = jnp.zeros((CP,), jnp.float32).at[:in_c_i].set(beta)
        w_p = jnp.zeros((3, 3, CP, CP), jnp.float32)
        w_p = w_p.at[:, :, :in_c_i, out_start:out_start + out_channels].set(w)
        bias = jnp.zeros((CP,), jnp.float32).at[out_start:out_start + out_channels].set(b)
        gammas.append(g)
        betas.append(bt)
        ws.append(w_p.reshape(9, CP, CP).astype(jnp.bfloat16))   # tap-major, bf16
        bs.append(bias)
    return (jnp.stack(gammas), jnp.stack(betas), jnp.stack(ws), jnp.stack(bs))


# --------------------------------------------------------------------------- #
# DenseBlock forward (NCHW in / NCHW out).                                      #
# --------------------------------------------------------------------------- #
def dense_block_forward(x_nchw, packed, in_channels, out_channels):
    gammas, betas, ws, bs = packed
    L = gammas.shape[0]
    x = jnp.transpose(x_nchw, (0, 2, 3, 1)).astype(jnp.float32)   # NCHW -> NHWC
    N, H, W, _ = x.shape

    # Single packed slab: real channels at lanes [0, in_c + L*out_c), rest zero.
    x_buf = jnp.pad(x, ((0, 0), (0, 0), (0, 0), (0, CP - in_channels)))

    flops = 2 * L * N * H * W * 9 * CP * CP
    bytes_accessed = (2 * N * H * W * CP * 4          # slab in + out
                      + int(ws.size) * 2              # bf16 weights
                      + int(gammas.size + betas.size + bs.size) * 4)

    out_buf = pl.pallas_call(
        dense_block_kernel,
        out_shape=jax.ShapeDtypeStruct((N, H, W, CP), jnp.float32),
        grid=(1,),   # whole block fits VMEM at this size; fully fused, one launch
        in_specs=[
            pl.BlockSpec((N, H, W, CP), lambda i: (0, 0, 0, 0)),
            pl.BlockSpec((L, CP), lambda i: (0, 0)),
            pl.BlockSpec((L, CP), lambda i: (0, 0)),
            pl.BlockSpec((L, 9, CP, CP), lambda i: (0, 0, 0, 0)),
            pl.BlockSpec((L, CP), lambda i: (0, 0)),
        ],
        out_specs=pl.BlockSpec((N, H, W, CP), lambda i: (0, 0, 0, 0)),
        compiler_params=pltpu.CompilerParams(
            dimension_semantics=("arbitrary",),
            # Right-sized: actual working set is a few MiB; do not request
            # v7x's entire 64 MiB physical VMEM.
            vmem_limit_bytes=16 * 1024 * 1024,
        ),
        cost_estimate=pl.CostEstimate(
            flops=flops, transcendentals=0, bytes_accessed=bytes_accessed),
    )(x_buf, gammas, betas, ws, bs)

    # Packed layout is already in PyTorch concat order: [X | Y0 | Y1 | ...].
    c_total = in_channels + L * out_channels
    return jnp.transpose(out_buf[..., :c_total], (0, 3, 1, 2))    # NHWC -> NCHW


# --------------------------------------------------------------------------- #
# Pure-JAX reference (true f32 semantics; optional bf16 matmul operands).       #
# --------------------------------------------------------------------------- #
def _ref_dense_block(x_nchw, params, matmul_dtype=jnp.float32):
    x = jnp.transpose(x_nchw, (0, 2, 3, 1)).astype(jnp.float32)
    for (gamma, beta, w, b) in params:
        mean = jnp.mean(x, axis=(0, 1, 2), keepdims=True)
        var = jnp.mean(jnp.square(x - mean), axis=(0, 1, 2), keepdims=True)
        act = (x - mean) * jax.lax.rsqrt(var + 1e-5)
        act = act * gamma.reshape(1, 1, 1, -1) + beta.reshape(1, 1, 1, -1)
        act = jnp.maximum(act, 0.0)
        y = jax.lax.conv_general_dilated(
            act.astype(matmul_dtype), w.astype(matmul_dtype),
            window_strides=(1, 1), padding="SAME",
            dimension_numbers=("NHWC", "HWIO", "NHWC"),
            preferred_element_type=jnp.float32)
        x = jnp.concatenate([x, y + b.reshape(1, 1, 1, -1)], axis=-1)
    return jnp.transpose(x, (0, 3, 1, 2))


if __name__ == "__main__":
    key = jax.random.PRNGKey(0)
    k_x, k_p = jax.random.split(key)

    # DenseBlock(num_convs=2, in_channels=3, out_channels=10), small spatial size.
    num_convs, in_channels, out_channels = 2, 3, 10
    N, H, W = 2, 16, 16
    x = jax.random.uniform(k_x, (N, in_channels, H, W), jnp.float32)   # NCHW input

    params = init_dense_block_params(k_p, num_convs, in_channels, out_channels)
    packed = pack_dense_block_params(params, in_channels, out_channels)

    fwd = jax.jit(dense_block_forward, static_argnums=(2, 3))
    out = jax.block_until_ready(fwd(x, packed, in_channels, out_channels))

    expected_channels = in_channels + num_convs * out_channels
    assert out.shape == (N, expected_channels, H, W), out.shape

    # Check 1 (tight): reference using the same bf16 matmul operands -> isolates
    # any layout / packing / halo bug from bf16 quantization.
    ref_bf16 = jax.block_until_ready(
        _ref_dense_block(x, params, matmul_dtype=jnp.bfloat16))
    err_matched = float(jnp.max(jnp.abs(out - ref_bf16)))
    assert jnp.allclose(out, ref_bf16, atol=1e-2, rtol=1e-2), err_matched

    # Check 2 (loose): full-f32 reference -> bounds the bf16 quantization error.
    ref_f32 = jax.block_until_ready(
        _ref_dense_block(x, params, matmul_dtype=jnp.float32))
    err_f32 = float(jnp.max(jnp.abs(out - ref_f32)))
    assert jnp.allclose(out, ref_f32, atol=5e-2, rtol=5e-2), err_f32

    print("KERNEL_OK")
</pallas_src>

<mosaic_0001>
module attributes {stable_mosaic.version = 11 : i64} {
  func.func @dense_block_kernel(%arg0: i32, %arg1: memref<2x16x16x128xf32, #tpu.memory_space<vmem>>, %arg2: memref<2x128xf32, #tpu.memory_space<vmem>>, %arg3: memref<2x128xf32, #tpu.memory_space<vmem>>, %arg4: memref<2x9x128x128xbf16, #tpu.memory_space<vmem>>, %arg5: memref<2x128xf32, #tpu.memory_space<vmem>>, %arg6: memref<2x16x16x128xf32, #tpu.memory_space<vmem>>) attributes {dimension_semantics = [#tpu.dimension_semantics<arbitrary>], iteration_bounds = array<i64: 1>, scalar_prefetch = 0 : i64, scratch_operands = 0 : i64, tpu.core_type = #tpu.core_type<tc>, window_params = [{pipeline_mode = #tpu.pipeline_mode<synchronous>, transform_indices = @transform_0, window_bounds = array<i64: 2, 16, 16, 128>}, {pipeline_mode = #tpu.pipeline_mode<synchronous>, transform_indices = @transform_1, window_bounds = array<i64: 2, 128>}, {pipeline_mode = #tpu.pipeline_mode<synchronous>, transform_indices = @transform_2, window_bounds = array<i64: 2, 128>}, {pipeline_mode = #tpu.pipeline_mode<synchronous>, transform_indices = @transform_3, window_bounds = array<i64: 2, 9, 128, 128>}, {pipeline_mode = #tpu.pipeline_mode<synchronous>, transform_indices = @transform_4, window_bounds = array<i64: 2, 128>}, {pipeline_mode = #tpu.pipeline_mode<synchronous>, transform_indices = @transform_5, window_bounds = array<i64: 2, 16, 16, 128>}]} {
    %c0 = arith.constant 0 : index
    %c0_0 = arith.constant 0 : index
    %c0_1 = arith.constant 0 : index
    %c0_2 = arith.constant 0 : index
    %0 = vector.load %arg1[%c0, %c0_0, %c0_1, %c0_2] : memref<2x16x16x128xf32, #tpu.memory_space<vmem>>, vector<2x16x16x128xf32>
    %c0_3 = arith.constant 0 : index
    %c0_4 = arith.constant 0 : index
    %1 = vector.load %arg2[%c0_3, %c0_4] : memref<2x128xf32, #tpu.memory_space<vmem>>, vector<2x128xf32>
    %c0_5 = arith.constant 0 : index
    %c0_6 = arith.constant 0 : index
    %2 = vector.load %arg3[%c0_5, %c0_6] : memref<2x128xf32, #tpu.memory_space<vmem>>, vector<2x128xf32>
    %c0_7 = arith.constant 0 : index
    %c0_8 = arith.constant 0 : index
    %3 = vector.load %arg5[%c0_7, %c0_8] : memref<2x128xf32, #tpu.memory_space<vmem>>, vector<2x128xf32>
    %4 = tpu.iota {dimensions = array<i32: 2>} : vector<1x1x16x1xi32>
    %5 = vector.shape_cast %0 : vector<2x16x16x128xf32> to vector<512x128xf32>
    %cst = arith.constant dense<0.000000e+00> : vector<128xf32>
    %6 = vector.multi_reduction <add>, %5, %cst [0] : vector<512x128xf32> to vector<128xf32>
    %7 = vector.shape_cast %6 : vector<128xf32> to vector<1x128xf32>
    %cst_9 = arith.constant 5.120000e+02 : f32
    %8 = vector.broadcast %cst_9 : f32 to vector<1x128xf32>
    %9 = arith.divf %7, %8 : vector<1x128xf32>
    %10 = vector.broadcast %9 : vector<1x128xf32> to vector<512x128xf32>
    %11 = arith.subf %5, %10 : vector<512x128xf32>
    %12 = arith.mulf %11, %11 : vector<512x128xf32>
    %cst_10 = arith.constant dense<0.000000e+00> : vector<128xf32>
    %13 = vector.multi_reduction <add>, %12, %cst_10 [0] : vector<512x128xf32> to vector<128xf32>
    %14 = vector.shape_cast %13 : vector<128xf32> to vector<1x128xf32>
    %cst_11 = arith.constant 5.120000e+02 : f32
    %15 = vector.broadcast %cst_11 : f32 to vector<1x128xf32>
    %16 = arith.divf %14, %15 : vector<1x128xf32>
    %cst_12 = arith.constant 9.99999974E-6 : f32
    %17 = vector.broadcast %cst_12 : f32 to vector<1x128xf32>
    %18 = arith.addf %16, %17 : vector<1x128xf32>
    %19 = math.rsqrt %18 : vector<1x128xf32>
    %20 = vector.extract_strided_slice %1 {offsets = [0, 0], sizes = [1, 128], strides = [1, 1]} : vector<2x128xf32> to vector<1x128xf32>
    %21 = arith.mulf %20, %19 : vector<1x128xf32>
    %22 = vector.shape_cast %21 : vector<1x128xf32> to vector<1x1x1x128xf32>
    %23 = vector.extract_strided_slice %2 {offsets = [0, 0], sizes = [1, 128], strides = [1, 1]} : vector<2x128xf32> to vector<1x128xf32>
    %24 = arith.mulf %20, %19 : vector<1x128xf32>
    %25 = arith.mulf %24, %9 : vector<1x128xf32>
    %26 = arith.subf %23, %25 : vector<1x128xf32>
    %27 = vector.shape_cast %26 : vector<1x128xf32> to vector<1x1x1x128xf32>
    %28 = vector.broadcast %22 : vector<1x1x1x128xf32> to vector<2x16x16x128xf32>
    %29 = arith.mulf %0, %28 : vector<2x16x16x128xf32>
    %30 = vector.broadcast %27 : vector<1x1x1x128xf32> to vector<2x16x16x128xf32>
    %31 = arith.addf %29, %30 : vector<2x16x16x128xf32>
    %cst_13 = arith.constant 0.000000e+00 : f32
    %32 = vector.broadcast %cst_13 : f32 to vector<2x16x16x128xf32>
    %33 = arith.maximumf %31, %32 : vector<2x16x16x128xf32>
    %cst_14 = arith.constant 0.000000e+00 : f32
    %34 = vector.broadcast %cst_14 : f32 to vector<2x1x16x128xf32>
    %35 = tpu.concatenate %34, %33, %34 in 1 : vector<2x1x16x128xf32>, vector<2x16x16x128xf32>, vector<2x1x16x128xf32> -> vector<2x18x16x128xf32>
    %c1_i32 = arith.constant 1 : i32
    %36 = tpu.dynamic_rotate %35 by %c1_i32 dim 2 : vector<2x18x16x128xf32>, i32 -> vector<2x18x16x128xf32>
    %c0_i32 = arith.constant 0 : i32
    %37 = vector.broadcast %c0_i32 : i32 to vector<1x1x16x1xi32>
    %38 = arith.cmpi ne, %4, %37 : vector<1x1x16x1xi32>
    %39 = arith.extui %38 : vector<1x1x16x1xi1> to vector<1x1x16x1xi32>
    %40 = arith.sitofp %39 : vector<1x1x16x1xi32> to vector<1x1x16x1xf32>
    %41 = vector.broadcast %40 : vector<1x1x16x1xf32> to vector<2x18x16x128xf32>
    %42 = arith.mulf %36, %41 : vector<2x18x16x128xf32>
    %43 = arith.truncf %42 : vector<2x18x16x128xf32> to vector<2x18x16x128xbf16>
    %44 = arith.truncf %35 : vector<2x18x16x128xf32> to vector<2x18x16x128xbf16>
    %c15_i32 = arith.constant 15 : i32
    %45 = tpu.dynamic_rotate %35 by %c15_i32 dim 2 : vector<2x18x16x128xf32>, i32 -> vector<2x18x16x128xf32>
    %c15_i32_15 = arith.constant 15 : i32
    %46 = vector.broadcast %c15_i32_15 : i32 to vector<1x1x16x1xi32>
    %47 = arith.cmpi ne, %4, %46 : vector<1x1x16x1xi32>
    %48 = arith.extui %47 : vector<1x1x16x1xi1> to vector<1x1x16x1xi32>
    %49 = arith.sitofp %48 : vector<1x1x16x1xi32> to vector<1x1x16x1xf32>
    %50 = vector.broadcast %49 : vector<1x1x16x1xf32> to vector<2x18x16x128xf32>
    %51 = arith.mulf %45, %50 : vector<2x18x16x128xf32>
    %52 = arith.truncf %51 : vector<2x18x16x128xf32> to vector<2x18x16x128xbf16>
    %c0_16 = arith.constant 0 : index
    %c0_17 = arith.constant 0 : index
    %c0_18 = arith.constant 0 : index
    %c0_19 = arith.constant 0 : index
    %53 = vector.load %arg4[%c0_16, %c0_17, %c0_18, %c0_19] : memref<2x9x128x128xbf16, #tpu.memory_space<vmem>>, vector<1x9x128x128xbf16>
    %54 = vector.shape_cast %53 : vector<1x9x128x128xbf16> to vector<9x128x128xbf16>
    %cst_20 = arith.constant 0.000000e+00 : f32
    %55 = vector.broadcast %cst_20 : f32 to vector<512x128xf32>
    %56 = vector.extract_strided_slice %43 {offsets = [0, 0, 0, 0], sizes = [2, 16, 16, 128], strides = [1, 1, 1, 1]} : vector<2x18x16x128xbf16> to vector<2x16x16x128xbf16>
    %57 = vector.shape_cast %56 : vector<2x16x16x128xbf16> to vector<512x128xbf16>
    %58 = vector.extract_strided_slice %54 {offsets = [0, 0, 0], sizes = [1, 128, 128], strides = [1, 1, 1]} : vector<9x128x128xbf16> to vector<1x128x128xbf16>
    %59 = vector.shape_cast %58 : vector<1x128x128xbf16> to vector<128x128xbf16>
    %cst_21 = arith.constant dense<0.000000e+00> : vector<512x128xf32>
    %60 = tpu.matmul %57, %59, %cst_21 {dimension_numbers = #tpu.dot_dimension_numbers<[1], [0], [0], [1], [0, 0, 1, 1], [], []>} : vector<512x128xbf16>, vector<128x128xbf16>, vector<512x128xf32> -> vector<512x128xf32>
    %61 = arith.addf %55, %60 : vector<512x128xf32>
    %62 = vector.extract_strided_slice %44 {offsets = [0, 0, 0, 0], sizes = [2, 16, 16, 128], strides = [1, 1, 1, 1]} : vector<2x18x16x128xbf16> to vector<2x16x16x128xbf16>
    %63 = vector.shape_cast %62 : vector<2x16x16x128xbf16> to vector<512x128xbf16>
    %64 = vector.extract_strided_slice %54 {offsets = [1, 0, 0], sizes = [1, 128, 128], strides = [1, 1, 1]} : vector<9x128x128xbf16> to vector<1x128x128xbf16>
    %65 = vector.shape_cast %64 : vector<1x128x128xbf16> to vector<128x128xbf16>
    %cst_22 = arith.constant dense<0.000000e+00> : vector<512x128xf32>
    %66 = tpu.matmul %63, %65, %cst_22 {dimension_numbers = #tpu.dot_dimension_numbers<[1], [0], [0], [1], [0, 0, 1, 1], [], []>} : vector<512x128xbf16>, vector<128x128xbf16>, vector<512x128xf32> -> vector<512x128xf32>
    %67 = arith.addf %61, %66 : vector<512x128xf32>
    %68 = vector.extract_strided_slice %52 {offsets = [0, 0, 0, 0], sizes = [2, 16, 16, 128], strides = [1, 1, 1, 1]} : vector<2x18x16x128xbf16> to vector<2x16x16x128xbf16>
    %69 = vector.shape_cast %68 : vector<2x16x16x128xbf16> to vector<512x128xbf16>
    %70 = vector.extract_strided_slice %54 {offsets = [2, 0, 0], sizes = [1, 128, 128], strides = [1, 1, 1]} : vector<9x128x128xbf16> to vector<1x128x128xbf16>
    %71 = vector.shape_cast %70 : vector<1x128x128xbf16> to vector<128x128xbf16>
    %cst_23 = arith.constant dense<0.000000e+00> : vector<512x128xf32>
    %72 = tpu.matmul %69, %71, %cst_23 {dimension_numbers = #tpu.dot_dimension_numbers<[1], [0], [0], [1], [0, 0, 1, 1], [], []>} : vector<512x128xbf16>, vector<128x128xbf16>, vector<512x128xf32> -> vector<512x128xf32>
    %73 = arith.addf %67, %72 : vector<512x128xf32>
    %74 = vector.extract_strided_slice %43 {offsets = [0, 1, 0, 0], sizes = [2, 16, 16, 128], strides = [1, 1, 1, 1]} : vector<2x18x16x128xbf16> to vector<2x16x16x128xbf16>
    %75 = vector.shape_cast %74 : vector<2x16x16x128xbf16> to vector<512x128xbf16>
    %76 = vector.extract_strided_slice %54 {offsets = [3, 0, 0], sizes = [1, 128, 128], strides = [1, 1, 1]} : vector<9x128x128xbf16> to vector<1x128x128xbf16>
    %77 = vector.shape_cast %76 : vector<1x128x128xbf16> to vector<128x128xbf16>
    %cst_24 = arith.constant dense<0.000000e+00> : vector<512x128xf32>
    %78 = tpu.matmul %75, %77, %cst_24 {dimension_numbers = #tpu.dot_dimension_numbers<[1], [0], [0], [1], [0, 0, 1, 1], [], []>} : vector<512x128xbf16>, vector<128x128xbf16>, vector<512x128xf32> -> vector<512x128xf32>
    %79 = arith.addf %73, %78 : vector<512x128xf32>
    %80 = vector.extract_strided_slice %44 {offsets = [0, 1, 0, 0], sizes = [2, 16, 16, 128], strides = [1, 1, 1, 1]} : vector<2x18x16x128xbf16> to vector<2x16x16x128xbf16>
    %81 = vector.shape_cast %80 : vector<2x16x16x128xbf16> to vector<512x128xbf16>
    %82 = vector.extract_strided_slice %54 {offsets = [4, 0, 0], sizes = [1, 128, 128], strides = [1, 1, 1]} : vector<9x128x128xbf16> to vector<1x128x128xbf16>
    %83 = vector.shape_cast %82 : vector<1x128x128xbf16> to vector<128x128xbf16>
    %cst_25 = arith.constant dense<0.000000e+00> : vector<512x128xf32>
    %84 = tpu.matmul %81, %83, %cst_25 {dimension_numbers = #tpu.dot_dimension_numbers<[1], [0], [0], [1], [0, 0, 1, 1], [], []>} : vector<512x128xbf16>, vector<128x128xbf16>, vector<512x128xf32> -> vector<512x128xf32>
    %85 = arith.addf %79, %84 : vector<512x128xf32>
    %86 = vector.extract_strided_slice %52 {offsets = [0, 1, 0, 0], sizes = [2, 16, 16, 128], strides = [1, 1, 1, 1]} : vector<2x18x16x128xbf16> to vector<2x16x16x128xbf16>
    %87 = vector.shape_cast %86 : vector<2x16x16x128xbf16> to vector<512x128xbf16>
    %88 = vector.extract_strided_slice %54 {offsets = [5, 0, 0], sizes = [1, 128, 128], strides = [1, 1, 1]} : vector<9x128x128xbf16> to vector<1x128x128xbf16>
    %89 = vector.shape_cast %88 : vector<1x128x128xbf16> to vector<128x128xbf16>
    %cst_26 = arith.constant dense<0.000000e+00> : vector<512x128xf32>
    %90 = tpu.matmul %87, %89, %cst_26 {dimension_numbers = #tpu.dot_dimension_numbers<[1], [0], [0], [1], [0, 0, 1, 1], [], []>} : vector<512x128xbf16>, vector<128x128xbf16>, vector<512x128xf32> -> vector<512x128xf32>
    %91 = arith.addf %85, %90 : vector<512x128xf32>
    %92 = vector.extract_strided_slice %43 {offsets = [0, 2, 0, 0], sizes = [2, 16, 16, 128], strides = [1, 1, 1, 1]} : vector<2x18x16x128xbf16> to vector<2x16x16x128xbf16>
    %93 = vector.shape_cast %92 : vector<2x16x16x128xbf16> to vector<512x128xbf16>
    %94 = vector.extract_strided_slice %54 {offsets = [6, 0, 0], sizes = [1, 128, 128], strides = [1, 1, 1]} : vector<9x128x128xbf16> to vector<1x128x128xbf16>
    %95 = vector.shape_cast %94 : vector<1x128x128xbf16> to vector<128x128xbf16>
    %cst_27 = arith.constant dense<0.000000e+00> : vector<512x128xf32>
    %96 = tpu.matmul %93, %95, %cst_27 {dimension_numbers = #tpu.dot_dimension_numbers<[1], [0], [0], [1], [0, 0, 1, 1], [], []>} : vector<512x128xbf16>, vector<128x128xbf16>, vector<512x128xf32> -> vector<512x128xf32>
    %97 = arith.addf %91, %96 : vector<512x128xf32>
    %98 = vector.extract_strided_slice %44 {offsets = [0, 2, 0, 0], sizes = [2, 16, 16, 128], strides = [1, 1, 1, 1]} : vector<2x18x16x128xbf16> to vector<2x16x16x128xbf16>
    %99 = vector.shape_cast %98 : vector<2x16x16x128xbf16> to vector<512x128xbf16>
    %100 = vector.extract_strided_slice %54 {offsets = [7, 0, 0], sizes = [1, 128, 128], strides = [1, 1, 1]} : vector<9x128x128xbf16> to vector<1x128x128xbf16>
    %101 = vector.shape_cast %100 : vector<1x128x128xbf16> to vector<128x128xbf16>
    %cst_28 = arith.constant dense<0.000000e+00> : vector<512x128xf32>
    %102 = tpu.matmul %99, %101, %cst_28 {dimension_numbers = #tpu.dot_dimension_numbers<[1], [0], [0], [1], [0, 0, 1, 1], [], []>} : vector<512x128xbf16>, vector<128x128xbf16>, vector<512x128xf32> -> vector<512x128xf32>
    %103 = arith.addf %97, %102 : vector<512x128xf32>
    %104 = vector.extract_strided_slice %52 {offsets = [0, 2, 0, 0], sizes = [2, 16, 16, 128], strides = [1, 1, 1, 1]} : vector<2x18x16x128xbf16> to vector<2x16x16x128xbf16>
    %105 = vector.shape_cast %104 : vector<2x16x16x128xbf16> to vector<512x128xbf16>
    %106 = vector.extract_strided_slice %54 {offsets = [8, 0, 0], sizes = [1, 128, 128], strides = [1, 1, 1]} : vector<9x128x128xbf16> to vector<1x128x128xbf16>
    %107 = vector.shape_cast %106 : vector<1x128x128xbf16> to vector<128x128xbf16>
    %cst_29 = arith.constant dense<0.000000e+00> : vector<512x128xf32>
    %108 = tpu.matmul %105, %107, %cst_29 {dimension_numbers = #tpu.dot_dimension_numbers<[1], [0], [0], [1], [0, 0, 1, 1], [], []>} : vector<512x128xbf16>, vector<128x128xbf16>, vector<512x128xf32> -> vector<512x128xf32>
    %109 = arith.addf %103, %108 : vector<512x128xf32>
    %110 = vector.shape_cast %109 : vector<512x128xf32> to vector<2x16x16x128xf32>
    %111 = arith.addf %0, %110 : vector<2x16x16x128xf32>
    %112 = vector.extract_strided_slice %3 {offsets = [0, 0], sizes = [1, 128], strides = [1, 1]} : vector<2x128xf32> to vector<1x128xf32>
    %113 = vector.shape_cast %112 : vector<1x128xf32> to vector<1x1x1x128xf32>
    %114 = vector.broadcast %113 : vector<1x1x1x128xf32> to vector<2x16x16x128xf32>
    %115 = arith.addf %111, %114 : vector<2x16x16x128xf32>
    %116 = vector.shape_cast %115 : vector<2x16x16x128xf32> to vector<512x128xf32>
    %cst_30 = arith.constant dense<0.000000e+00> : vector<128xf32>
    %117 = vector.multi_reduction <add>, %116, %cst_30 [0] : vector<512x128xf32> to vector<128xf32>
    %118 = vector.shape_cast %117 : vector<128xf32> to vector<1x128xf32>
    %cst_31 = arith.constant 5.120000e+02 : f32
    %119 = vector.broadcast %cst_31 : f32 to vector<1x128xf32>
    %120 = arith.divf %118, %119 : vector<1x128xf32>
    %121 = vector.broadcast %120 : vector<1x128xf32> to vector<512x128xf32>
    %122 = arith.subf %116, %121 : vector<512x128xf32>
    %123 = arith.mulf %122, %122 : vector<512x128xf32>
    %cst_32 = arith.constant dense<0.000000e+00> : vector<128xf32>
    %124 = vector.multi_reduction <add>, %123, %cst_32 [0] : vector<512x128xf32> to vector<128xf32>
    %125 = vector.shape_cast %124 : vector<128xf32> to vector<1x128xf32>
    %cst_33 = arith.constant 5.120000e+02 : f32
    %126 = vector.broadcast %cst_33 : f32 to vector<1x128xf32>
    %127 = arith.divf %125, %126 : vector<1x128xf32>
    %cst_34 = arith.constant 9.99999974E-6 : f32
    %128 = vector.broadcast %cst_34 : f32 to vector<1x128xf32>
    %129 = arith.addf %127, %128 : vector<1x128xf32>
    %130 = math.rsqrt %129 : vector<1x128xf32>
    %131 = vector.extract_strided_slice %1 {offsets = [1, 0], sizes = [1, 128], strides = [1, 1]} : vector<2x128xf32> to vector<1x128xf32>
    %132 = arith.mulf %131, %130 : vector<1x128xf32>
    %133 = vector.shape_cast %132 : vector<1x128xf32> to vector<1x1x1x128xf32>
    %134 = vector.extract_strided_slice %2 {offsets = [1, 0], sizes = [1, 128], strides = [1, 1]} : vector<2x128xf32> to vector<1x128xf32>
    %135 = arith.mulf %131, %130 : vector<1x128xf32>
    %136 = arith.mulf %135, %120 : vector<1x128xf32>
    %137 = arith.subf %134, %136 : vector<1x128xf32>
    %138 = vector.shape_cast %137 : vector<1x128xf32> to vector<1x1x1x128xf32>
    %139 = vector.broadcast %133 : vector<1x1x1x128xf32> to vector<2x16x16x128xf32>
    %140 = arith.mulf %115, %139 : vector<2x16x16x128xf32>
    %141 = vector.broadcast %138 : vector<1x1x1x128xf32> to vector<2x16x16x128xf32>
    %142 = arith.addf %140, %141 : vector<2x16x16x128xf32>
    %cst_35 = arith.constant 0.000000e+00 : f32
    %143 = vector.broadcast %cst_35 : f32 to vector<2x16x16x128xf32>
    %144 = arith.maximumf %142, %143 : vector<2x16x16x128xf32>
    %cst_36 = arith.constant 0.000000e+00 : f32
    %145 = vector.broadcast %cst_36 : f32 to vector<2x1x16x128xf32>
    %146 = tpu.concatenate %145, %144, %145 in 1 : vector<2x1x16x128xf32>, vector<2x16x16x128xf32>, vector<2x1x16x128xf32> -> vector<2x18x16x128xf32>
    %c1_i32_37 = arith.constant 1 : i32
    %147 = tpu.dynamic_rotate %146 by %c1_i32_37 dim 2 : vector<2x18x16x128xf32>, i32 -> vector<2x18x16x128xf32>
    %c0_i32_38 = arith.constant 0 : i32
    %148 = vector.broadcast %c0_i32_38 : i32 to vector<1x1x16x1xi32>
    %149 = arith.cmpi ne, %4, %148 : vector<1x1x16x1xi32>
    %150 = arith.extui %149 : vector<1x1x16x1xi1> to vector<1x1x16x1xi32>
    %151 = arith.sitofp %150 : vector<1x1x16x1xi32> to vector<1x1x16x1xf32>
    %152 = vector.broadcast %151 : vector<1x1x16x1xf32> to vector<2x18x16x128xf32>
    %153 = arith.mulf %147, %152 : vector<2x18x16x128xf32>
    %154 = arith.truncf %153 : vector<2x18x16x128xf32> to vector<2x18x16x128xbf16>
    %155 = arith.truncf %146 : vector<2x18x16x128xf32> to vector<2x18x16x128xbf16>
    %c15_i32_39 = arith.constant 15 : i32
    %156 = tpu.dynamic_rotate %146 by %c15_i32_39 dim 2 : vector<2x18x16x128xf32>, i32 -> vector<2x18x16x128xf32>
    %c15_i32_40 = arith.constant 15 : i32
    %157 = vector.broadcast %c15_i32_40 : i32 to vector<1x1x16x1xi32>
    %158 = arith.cmpi ne, %4, %157 : vector<1x1x16x1xi32>
    %159 = arith.extui %158 : vector<1x1x16x1xi1> to vector<1x1x16x1xi32>
    %160 = arith.sitofp %159 : vector<1x1x16x1xi32> to vector<1x1x16x1xf32>
    %161 = vector.broadcast %160 : vector<1x1x16x1xf32> to vector<2x18x16x128xf32>
    %162 = arith.mulf %156, %161 : vector<2x18x16x128xf32>
    %163 = arith.truncf %162 : vector<2x18x16x128xf32> to vector<2x18x16x128xbf16>
    %c1 = arith.constant 1 : index
    %c0_41 = arith.constant 0 : index
    %c0_42 = arith.constant 0 : index
    %c0_43 = arith.constant 0 : index
    %164 = vector.load %arg4[%c1, %c0_41, %c0_42, %c0_43] : memref<2x9x128x128xbf16, #tpu.memory_space<vmem>>, vector<1x9x128x128xbf16>
    %165 = vector.shape_cast %164 : vector<1x9x128x128xbf16> to vector<9x128x128xbf16>
    %cst_44 = arith.constant 0.000000e+00 : f32
    %166 = vector.broadcast %cst_44 : f32 to vector<512x128xf32>
    %167 = vector.extract_strided_slice %154 {offsets = [0, 0, 0, 0], sizes = [2, 16, 16, 128], strides = [1, 1, 1, 1]} : vector<2x18x16x128xbf16> to vector<2x16x16x128xbf16>
    %168 = vector.shape_cast %167 : vector<2x16x16x128xbf16> to vector<512x128xbf16>
    %169 = vector.extract_strided_slice %165 {offsets = [0, 0, 0], sizes = [1, 128, 128], strides = [1, 1, 1]} : vector<9x128x128xbf16> to vector<1x128x128xbf16>
    %170 = vector.shape_cast %169 : vector<1x128x128xbf16> to vector<128x128xbf16>
    %cst_45 = arith.constant dense<0.000000e+00> : vector<512x128xf32>
    %171 = tpu.matmul %168, %170, %cst_45 {dimension_numbers = #tpu.dot_dimension_numbers<[1], [0], [0], [1], [0, 0, 1, 1], [], []>} : vector<512x128xbf16>, vector<128x128xbf16>, vector<512x128xf32> -> vector<512x128xf32>
    %172 = arith.addf %166, %171 : vector<512x128xf32>
    %173 = vector.extract_strided_slice %155 {offsets = [0, 0, 0, 0], sizes = [2, 16, 16, 128], strides = [1, 1, 1, 1]} : vector<2x18x16x128xbf16> to vector<2x16x16x128xbf16>
    %174 = vector.shape_cast %173 : vector<2x16x16x128xbf16> to vector<512x128xbf16>
    %175 = vector.extract_strided_slice %165 {offsets = [1, 0, 0], sizes = [1, 128, 128], strides = [1, 1, 1]} : vector<9x128x128xbf16> to vector<1x128x128xbf16>
    %176 = vector.shape_cast %175 : vector<1x128x128xbf16> to vector<128x128xbf16>
    %cst_46 = arith.constant dense<0.000000e+00> : vector<512x128xf32>
    %177 = tpu.matmul %174, %176, %cst_46 {dimension_numbers = #tpu.dot_dimension_numbers<[1], [0], [0], [1], [0, 0, 1, 1], [], []>} : vector<512x128xbf16>, vector<128x128xbf16>, vector<512x128xf32> -> vector<512x128xf32>
    %178 = arith.addf %172, %177 : vector<512x128xf32>
    %179 = vector.extract_strided_slice %163 {offsets = [0, 0, 0, 0], sizes = [2, 16, 16, 128], strides = [1, 1, 1, 1]} : vector<2x18x16x128xbf16> to vector<2x16x16x128xbf16>
    %180 = vector.shape_cast %179 : vector<2x16x16x128xbf16> to vector<512x128xbf16>
    %181 = vector.extract_strided_slice %165 {offsets = [2, 0, 0], sizes = [1, 128, 128], strides = [1, 1, 1]} : vector<9x128x128xbf16> to vector<1x128x128xbf16>
    %182 = vector.shape_cast %181 : vector<1x128x128xbf16> to vector<128x128xbf16>
    %cst_47 = arith.constant dense<0.000000e+00> : vector<512x128xf32>
    %183 = tpu.matmul %180, %182, %cst_47 {dimension_numbers = #tpu.dot_dimension_numbers<[1], [0], [0], [1], [0, 0, 1, 1], [], []>} : vector<512x128xbf16>, vector<128x128xbf16>, vector<512x128xf32> -> vector<512x128xf32>
    %184 = arith.addf %178, %183 : vector<512x128xf32>
    %185 = vector.extract_strided_slice %154 {offsets = [0, 1, 0, 0], sizes = [2, 16, 16, 128], strides = [1, 1, 1, 1]} : vector<2x18x16x128xbf16> to vector<2x16x16x128xbf16>
    %186 = vector.shape_cast %185 : vector<2x16x16x128xbf16> to vector<512x128xbf16>
    %187 = vector.extract_strided_slice %165 {offsets = [3, 0, 0], sizes = [1, 128, 128], strides = [1, 1, 1]} : vector<9x128x128xbf16> to vector<1x128x128xbf16>
    %188 = vector.shape_cast %187 : vector<1x128x128xbf16> to vector<128x128xbf16>
    %cst_48 = arith.constant dense<0.000000e+00> : vector<512x128xf32>
    %189 = tpu.matmul %186, %188, %cst_48 {dimension_numbers = #tpu.dot_dimension_numbers<[1], [0], [0], [1], [0, 0, 1, 1], [], []>} : vector<512x128xbf16>, vector<128x128xbf16>, vector<512x128xf32> -> vector<512x128xf32>
    %190 = arith.addf %184, %189 : vector<512x128xf32>
    %191 = vector.extract_strided_slice %155 {offsets = [0, 1, 0, 0], sizes = [2, 16, 16, 128], strides = [1, 1, 1, 1]} : vector<2x18x16x128xbf16> to vector<2x16x16x128xbf16>
    %192 = vector.shape_cast %191 : vector<2x16x16x128xbf16> to vector<512x128xbf16>
    %193 = vector.extract_strided_slice %165 {offsets = [4, 0, 0], sizes = [1, 128, 128], strides = [1, 1, 1]} : vector<9x128x128xbf16> to vector<1x128x128xbf16>
    %194 = vector.shape_cast %193 : vector<1x128x128xbf16> to vector<128x128xbf16>
    %cst_49 = arith.constant dense<0.000000e+00> : vector<512x128xf32>
    %195 = tpu.matmul %192, %194, %cst_49 {dimension_numbers = #tpu.dot_dimension_numbers<[1], [0], [0], [1], [0, 0, 1, 1], [], []>} : vector<512x128xbf16>, vector<128x128xbf16>, vector<512x128xf32> -> vector<512x128xf32>
    %196 = arith.addf %190, %195 : vector<512x128xf32>
    %197 = vector.extract_strided_slice %163 {offsets = [0, 1, 0, 0], sizes = [2, 16, 16, 128], strides = [1, 1, 1, 1]} : vector<2x18x16x128xbf16> to vector<2x16x16x128xbf16>
    %198 = vector.shape_cast %197 : vector<2x16x16x128xbf16> to vector<512x128xbf16>
    %199 = vector.extract_strided_slice %165 {offsets = [5, 0, 0], sizes = [1, 128, 128], strides = [1, 1, 1]} : vector<9x128x128xbf16> to vector<1x128x128xbf16>
    %200 = vector.shape_cast %199 : vector<1x128x128xbf16> to vector<128x128xbf16>
    %cst_50 = arith.constant dense<0.000000e+00> : vector<512x128xf32>
    %201 = tpu.matmul %198, %200, %cst_50 {dimension_numbers = #tpu.dot_dimension_numbers<[1], [0], [0], [1], [0, 0, 1, 1], [], []>} : vector<512x128xbf16>, vector<128x128xbf16>, vector<512x128xf32> -> vector<512x128xf32>
    %202 = arith.addf %196, %201 : vector<512x128xf32>
    %203 = vector.extract_strided_slice %154 {offsets = [0, 2, 0, 0], sizes = [2, 16, 16, 128], strides = [1, 1, 1, 1]} : vector<2x18x16x128xbf16> to vector<2x16x16x128xbf16>
    %204 = vector.shape_cast %203 : vector<2x16x16x128xbf16> to vector<512x128xbf16>
    %205 = vector.extract_strided_slice %165 {offsets = [6, 0, 0], sizes = [1, 128, 128], strides = [1, 1, 1]} : vector<9x128x128xbf16> to vector<1x128x128xbf16>
    %206 = vector.shape_cast %205 : vector<1x128x128xbf16> to vector<128x128xbf16>
    %cst_51 = arith.constant dense<0.000000e+00> : vector<512x128xf32>
    %207 = tpu.matmul %204, %206, %cst_51 {dimension_numbers = #tpu.dot_dimension_numbers<[1], [0], [0], [1], [0, 0, 1, 1], [], []>} : vector<512x128xbf16>, vector<128x128xbf16>, vector<512x128xf32> -> vector<512x128xf32>
    %208 = arith.addf %202, %207 : vector<512x128xf32>
    %209 = vector.extract_strided_slice %155 {offsets = [0, 2, 0, 0], sizes = [2, 16, 16, 128], strides = [1, 1, 1, 1]} : vector<2x18x16x128xbf16> to vector<2x16x16x128xbf16>
    %210 = vector.shape_cast %209 : vector<2x16x16x128xbf16> to vector<512x128xbf16>
    %211 = vector.extract_strided_slice %165 {offsets = [7, 0, 0], sizes = [1, 128, 128], strides = [1, 1, 1]} : vector<9x128x128xbf16> to vector<1x128x128xbf16>
    %212 = vector.shape_cast %211 : vector<1x128x128xbf16> to vector<128x128xbf16>
    %cst_52 = arith.constant dense<0.000000e+00> : vector<512x128xf32>
    %213 = tpu.matmul %210, %212, %cst_52 {dimension_numbers = #tpu.dot_dimension_numbers<[1], [0], [0], [1], [0, 0, 1, 1], [], []>} : vector<512x128xbf16>, vector<128x128xbf16>, vector<512x128xf32> -> vector<512x128xf32>
    %214 = arith.addf %208, %213 : vector<512x128xf32>
    %215 = vector.extract_strided_slice %163 {offsets = [0, 2, 0, 0], sizes = [2, 16, 16, 128], strides = [1, 1, 1, 1]} : vector<2x18x16x128xbf16> to vector<2x16x16x128xbf16>
    %216 = vector.shape_cast %215 : vector<2x16x16x128xbf16> to vector<512x128xbf16>
    %217 = vector.extract_strided_slice %165 {offsets = [8, 0, 0], sizes = [1, 128, 128], strides = [1, 1, 1]} : vector<9x128x128xbf16> to vector<1x128x128xbf16>
    %218 = vector.shape_cast %217 : vector<1x128x128xbf16> to vector<128x128xbf16>
    %cst_53 = arith.constant dense<0.000000e+00> : vector<512x128xf32>
    %219 = tpu.matmul %216, %218, %cst_53 {dimension_numbers = #tpu.dot_dimension_numbers<[1], [0], [0], [1], [0, 0, 1, 1], [], []>} : vector<512x128xbf16>, vector<128x128xbf16>, vector<512x128xf32> -> vector<512x128xf32>
    %220 = arith.addf %214, %219 : vector<512x128xf32>
    %221 = vector.shape_cast %220 : vector<512x128xf32> to vector<2x16x16x128xf32>
    %222 = arith.addf %115, %221 : vector<2x16x16x128xf32>
    %223 = vector.extract_strided_slice %3 {offsets = [1, 0], sizes = [1, 128], strides = [1, 1]} : vector<2x128xf32> to vector<1x128xf32>
    %224 = vector.shape_cast %223 : vector<1x128xf32> to vector<1x1x1x128xf32>
    %225 = vector.broadcast %224 : vector<1x1x1x128xf32> to vector<2x16x16x128xf32>
    %226 = arith.addf %222, %225 : vector<2x16x16x128xf32>
    %c0_54 = arith.constant 0 : index
    %c0_55 = arith.constant 0 : index
    %c0_56 = arith.constant 0 : index
    %c0_57 = arith.constant 0 : index
    %227 = vector.load %arg6[%c0_54, %c0_55, %c0_56, %c0_57] : memref<2x16x16x128xf32, #tpu.memory_space<vmem>>, vector<2x16x16x128xf32>
    tpu.vector_store %arg6[%c0_54, %c0_55, %c0_56, %c0_57], %226 {strides = array<i32>} : memref<2x16x16x128xf32, #tpu.memory_space<vmem>>, vector<2x16x16x128xf32>,
    return
  }
  func.func @transform_0(%arg0: i32) -> (i32, i32, i32, i32) {
    %c0_i32 = arith.constant 0 : i32
    %c0_i32_0 = arith.constant 0 : i32
    %c0_i32_1 = arith.constant 0 : i32
    %c0_i32_2 = arith.constant 0 : i32
    %c0_i32_3 = arith.constant 0 : i32
    return %c0_i32, %c0_i32_0, %c0_i32_1, %c0_i32_2 : i32, i32, i32, i32
  }
  func.func @transform_1(%arg0: i32) -> (i32, i32) {
    %c0_i32 = arith.constant 0 : i32
    %c0_i32_0 = arith.constant 0 : i32
    %c0_i32_1 = arith.constant 0 : i32
    return %c0_i32, %c0_i32_0 : i32, i32
  }
  func.func @transform_2(%arg0: i32) -> (i32, i32) {
    %c0_i32 = arith.constant 0 : i32
    %c0_i32_0 = arith.constant 0 : i32
    %c0_i32_1 = arith.constant 0 : i32
    return %c0_i32, %c0_i32_0 : i32, i32
  }
  func.func @transform_3(%arg0: i32) -> (i32, i32, i32, i32) {
    %c0_i32 = arith.constant 0 : i32
    %c0_i32_0 = arith.constant 0 : i32
    %c0_i32_1 = arith.constant 0 : i32
    %c0_i32_2 = arith.constant 0 : i32
    %c0_i32_3 = arith.constant 0 : i32
    return %c0_i32, %c0_i32_0, %c0_i32_1, %c0_i32_2 : i32, i32, i32, i32
  }
  func.func @transform_4(%arg0: i32) -> (i32, i32) {
    %c0_i32 = arith.constant 0 : i32
    %c0_i32_0 = arith.constant 0 : i32
    %c0_i32_1 = arith.constant 0 : i32
    return %c0_i32, %c0_i32_0 : i32, i32
  }
  func.func @transform_5(%arg0: i32) -> (i32, i32, i32, i32) {
    %c0_i32 = arith.constant 0 : i32
    %c0_i32_0 = arith.constant 0 : i32
    %c0_i32_1 = arith.constant 0 : i32
    %c0_i32_2 = arith.constant 0 : i32
    %c0_i32_3 = arith.constant 0 : i32
    return %c0_i32, %c0_i32_0, %c0_i32_1, %c0_i32_2 : i32, i32, i32, i32
  }
}

</mosaic_0001>

<llo_original>
// kernel: dense_block_forward.1
$region0: #{dense_block_forward.1}
  #allocation0 [shape = 'u32[]', space=smem, size = 0x4, offset = 0x4, fixed_abs, tag = 'smem constant byte address 0x4 - core index']
  #allocation1 [shape = 'u32[144,128]{1,0:T(1,128)}', space=vmem, size = 0x12000, scoped, tag = 'internal scratch']
  %s0 = inlined_call_operand.vmem [shape: f32[2,16,16,128], index: 0, kind: input, shape index: {}]
  %s1 = inlined_call_operand.vmem [shape: f32[2,128], index: 1, kind: input, shape index: {}]
  %s2 = inlined_call_operand.vmem [shape: f32[2,128], index: 2, kind: input, shape index: {}]
  %s3 = inlined_call_operand.vmem [shape: bf16[2,9,128,128], index: 3, kind: input, shape index: {}]
  %s4 = inlined_call_operand.vmem [shape: f32[2,128], index: 4, kind: input, shape index: {}]
  %s5 = inlined_call_operand.vmem [shape: f32[2,16,16,128], index: 5, kind: output, shape index: {}]
  %s6 = sld [smem:[#allocation0]]
  $region30: #{dense_block_forward.1} parent=0
    _
  %s8 = ssub.s32 1, %s6
  %s9 = scalar_select 0, %s8, %s6
  // Predicated region
  $region2: #{dense_block_forward.1} parent=0 // pred_check
    _
  $region3: #{dense_block_forward.1} parent=0 // pred_check_branch
    %11 = sbr.rel (0) target = $region5
  $region4: #{dense_block_forward.1} parent=0 // pred_region
    _
  $region5: #{dense_block_forward.1} parent=0 // pred_fallthru
    _
  // Predicated region
  $region6: #{dense_block_forward.1} parent=0 // pred_check
    _
  $region7: #{dense_block_forward.1} parent=0 // pred_check_branch
    %13 = sbr.rel (0) target = $region9
  $region8: #{dense_block_forward.1} parent=0 // pred_region
    _
  $region9: #{dense_block_forward.1} parent=0 // pred_fallthru
    _
  // Predicated region
  $region10: #{dense_block_forward.1} parent=0 // pred_check
    _
  $region11: #{dense_block_forward.1} parent=0 // pred_check_branch
    %15 = sbr.rel (0) target = $region13
  $region12: #{dense_block_forward.1} parent=0 // pred_region
    _
  $region13: #{dense_block_forward.1} parent=0 // pred_fallthru
    _
  // Predicated region
  $region14: #{dense_block_forward.1} parent=0 // pred_check
    _
  $region15: #{dense_block_forward.1} parent=0 // pred_check_branch
    %17 = sbr.rel (0) target = $region17
  $region16: #{dense_block_forward.1} parent=0 // pred_region
    _
  $region17: #{dense_block_forward.1} parent=0 // pred_fallthru
    _
  // Predicated region
  $region18: #{dense_block_forward.1} parent=0 // pred_check
    _
  $region19: #{dense_block_forward.1} parent=0 // pred_check_branch
    %19 = sbr.rel (0) target = $region21
  $region20: #{dense_block_forward.1} parent=0 // pred_region
    _
  $region21: #{dense_block_forward.1} parent=0 // pred_fallthru
    _
  %v21 = vld [vmem:[%s0] sm:$0xff]
  %v22 = vld [vmem:[%s0 + $0x8] sm:$0xff]
  %v23 = vld [vmem:[%s0 + $0x10] sm:$0xff]
  %v24 = vld [vmem:[%s0 + $0x18] sm:$0xff]
  %v25 = vld [vmem:[%s0 + $0x20] sm:$0xff]
  %v26 = vld [vmem:[%s0 + $0x28] sm:$0xff]
  %v27 = vld [vmem:[%s0 + $0x30] sm:$0xff]
  %v28 = vld [vmem:[%s0 + $0x38] sm:$0xff]
  %v29 = vld [vmem:[%s0 + $0x40] sm:$0xff]
  %v30 = vld [vmem:[%s0 + $0x48] sm:$0xff]
  %v31 = vld [vmem:[%s0 + $0x50] sm:$0xff]
  %v32 = vld [vmem:[%s0 + $0x58] sm:$0xff]
  %v33 = vld [vmem:[%s0 + $0x60] sm:$0xff]
  %v34 = vld [vmem:[%s0 + $0x68] sm:$0xff]
  %v35 = vld [vmem:[%s0 + $0x70] sm:$0xff]
  %v36 = vld [vmem:[%s0 + $0x78] sm:$0xff]
  %v37 = vld [vmem:[%s0 + $0x80] sm:$0xff]
  %v38 = vld [vmem:[%s0 + $0x88] sm:$0xff]
  %v39 = vld [vmem:[%s0 + $0x90] sm:$0xff]
  %v40 = vld [vmem:[%s0 + $0x98] sm:$0xff]
  %v41 = vld [vmem:[%s0 + $0xa0] sm:$0xff]
  %v42 = vld [vmem:[%s0 + $0xa8] sm:$0xff]
  %v43 = vld [vmem:[%s0 + $0xb0] sm:$0xff]
  %v44 = vld [vmem:[%s0 + $0xb8] sm:$0xff]
  %v45 = vld [vmem:[%s0 + $0xc0] sm:$0xff]
  %v46 = vld [vmem:[%s0 + $0xc8] sm:$0xff]
  %v47 = vld [vmem:[%s0 + $0xd0] sm:$0xff]
  %v48 = vld [vmem:[%s0 + $0xd8] sm:$0xff]
  %v49 = vld [vmem:[%s0 + $0xe0] sm:$0xff]
  %v50 = vld [vmem:[%s0 + $0xe8] sm:$0xff]
  %v51 = vld [vmem:[%s0 + $0xf0] sm:$0xff]
  %v52 = vld [vmem:[%s0 + $0xf8] sm:$0xff]
  %v53 = vld [vmem:[%s0 + $0x100] sm:$0xff]
  %v54 = vld [vmem:[%s0 + $0x108] sm:$0xff]
  %v55 = vld [vmem:[%s0 + $0x110] sm:$0xff]
  %v56 = vld [vmem:[%s0 + $0x118] sm:$0xff]
  %v57 = vld [vmem:[%s0 + $0x120] sm:$0xff]
  %v58 = vld [vmem:[%s0 + $0x128] sm:$0xff]
  %v59 = vld [vmem:[%s0 + $0x130] sm:$0xff]
  %v60 = vld [vmem:[%s0 + $0x138] sm:$0xff]
  %v61 = vld [vmem:[%s0 + $0x140] sm:$0xff]
  %v62 = vld [vmem:[%s0 + $0x148] sm:$0xff]
  %v63 = vld [vmem:[%s0 + $0x150] sm:$0xff]
  %v64 = vld [vmem:[%s0 + $0x158] sm:$0xff]
  %v65 = vld [vmem:[%s0 + $0x160] sm:$0xff]
  %v66 = vld [vmem:[%s0 + $0x168] sm:$0xff]
  %v67 = vld [vmem:[%s0 + $0x170] sm:$0xff]
  %v68 = vld [vmem:[%s0 + $0x178] sm:$0xff]
  %v69 = vld [vmem:[%s0 + $0x180] sm:$0xff]
  %v70 = vld [vmem:[%s0 + $0x188] sm:$0xff]
  %v71 = vld [vmem:[%s0 + $0x190] sm:$0xff]
  %v72 = vld [vmem:[%s0 + $0x198] sm:$0xff]
  %v73 = vld [vmem:[%s0 + $0x1a0] sm:$0xff]
  %v74 = vld [vmem:[%s0 + $0x1a8] sm:$0xff]
  %v75 = vld [vmem:[%s0 + $0x1b0] sm:$0xff]
  %v76 = vld [vmem:[%s0 + $0x1b8] sm:$0xff]
  %v77 = vld [vmem:[%s0 + $0x1c0] sm:$0xff]
  %v78 = vld [vmem:[%s0 + $0x1c8] sm:$0xff]
  %v79 = vld [vmem:[%s0 + $0x1d0] sm:$0xff]
  %v80 = vld [vmem:[%s0 + $0x1d8] sm:$0xff]
  %v81 = vld [vmem:[%s0 + $0x1e0] sm:$0xff]
  %v82 = vld [vmem:[%s0 + $0x1e8] sm:$0xff]
  %v83 = vld [vmem:[%s0 + $0x1f0] sm:$0xff]
  %v84 = vld [vmem:[%s0 + $0x1f8] sm:$0xff]
  %v85 = vld [vmem:[%s1] sm:$0x3]
  %v86 = vld [vmem:[%s2] sm:$0x3]
  %v87 = vld [vmem:[%s4] sm:$0x3]
  %v88 = vlaneseq
  %v89 = vshrl.u32 %v88, 7
  %v90 = vadd.s32 %v89, 8
  %v91 = vadd.f32 %v21, %v22
  %v92 = vadd.f32 %v91, %v23
  %v93 = vadd.f32 %v92, %v24
  %v94 = vadd.f32 %v93, %v25
  %v95 = vadd.f32 %v94, %v26
  %v96 = vadd.f32 %v95, %v27
  %v97 = vadd.f32 %v96, %v28
  %v98 = vadd.f32 %v97, %v29
  %v99 = vadd.f32 %v98, %v30
  %v100 = vadd.f32 %v99, %v31
  %v101 = vadd.f32 %v100, %v32
  %v102 = vadd.f32 %v101, %v33
  %v103 = vadd.f32 %v102, %v34
  %v104 = vadd.f32 %v103, %v35
  %v105 = vadd.f32 %v104, %v36
  %v106 = vadd.f32 %v105, %v37
  %v107 = vadd.f32 %v106, %v38
  %v108 = vadd.f32 %v107, %v39
  %v109 = vadd.f32 %v108, %v40
  %v110 = vadd.f32 %v109, %v41
  %v111 = vadd.f32 %v110, %v42
  %v112 = vadd.f32 %v111, %v43
  %v113 = vadd.f32 %v112, %v44
  %v114 = vadd.f32 %v113, %v45
  %v115 = vadd.f32 %v114, %v46
  %v116 = vadd.f32 %v115, %v47
  %v117 = vadd.f32 %v116, %v48
  %v118 = vadd.f32 %v117, %v49
  %v119 = vadd.f32 %v118, %v50
  %v120 = vadd.f32 %v119, %v51
  %v121 = vadd.f32 %v120, %v52
  %v122 = vadd.f32 %v121, %v53
  %v123 = vadd.f32 %v122, %v54
  %v124 = vadd.f32 %v123, %v55
  %v125 = vadd.f32 %v124, %v56
  %v126 = vadd.f32 %v125, %v57
  %v127 = vadd.f32 %v126, %v58
  %v128 = vadd.f32 %v127, %v59
  %v129 = vadd.f32 %v128, %v60
  %v130 = vadd.f32 %v129, %v61
  %v131 = vadd.f32 %v130, %v62
  %v132 = vadd.f32 %v131, %v63
  %v133 = vadd.f32 %v132, %v64
  %v134 = vadd.f32 %v133, %v65
  %v135 = vadd.f32 %v134, %v66
  %v136 = vadd.f32 %v135, %v67
  %v137 = vadd.f32 %v136, %v68
  %v138 = vadd.f32 %v137, %v69
  %v139 = vadd.f32 %v138, %v70
  %v140 = vadd.f32 %v139, %v71
  %v141 = vadd.f32 %v140, %v72
  %v142 = vadd.f32 %v141, %v73
  %v143 = vadd.f32 %v142, %v74
  %v144 = vadd.f32 %v143, %v75
  %v145 = vadd.f32 %v144, %v76
  %v146 = vadd.f32 %v145, %v77
  %v147 = vadd.f32 %v146, %v78
  %v148 = vadd.f32 %v147, %v79
  %v149 = vadd.f32 %v148, %v80
  %v150 = vadd.f32 %v149, %v81
  %v151 = vadd.f32 %v150, %v82
  %v152 = vadd.f32 %v151, %v83
  %v153 = vadd.f32 %v152, %v84
  %v154 = vrot.slane %v153, 4
  %v155 = vadd.f32 %v153, %v154
  %v156 = vrot.slane %v155, 2
  %v157 = vadd.f32 %v155, %v156
  %v158 = vrot.slane %v157, 1
  %v159 = vadd.f32 %v157, %v158
  %v160 = vrcp.pop 512.0
  %v161 = vmul.f32 %v159, %v160
  %v162 = vsub.f32 %v21, %v161
  %v163 = vsub.f32 %v22, %v161
  %v164 = vsub.f32 %v23, %v161
  %v165 = vsub.f32 %v24, %v161
  %v166 = vsub.f32 %v25, %v161
  %v167 = vsub.f32 %v26, %v161
  %v168 = vsub.f32 %v27, %v161
  %v169 = vsub.f32 %v28, %v161
  %v170 = vsub.f32 %v29, %v161
  %v171 = vsub.f32 %v30, %v161
  %v172 = vsub.f32 %v31, %v161
  %v173 = vsub.f32 %v32, %v161
  %v174 = vsub.f32 %v33, %v161
  %v175 = vsub.f32 %v34, %v161
  %v176 = vsub.f32 %v35, %v161
  %v177 = vsub.f32 %v36, %v161
  %v178 = vsub.f32 %v37, %v161
  %v179 = vsub.f32 %v38, %v161
  %v180 = vsub.f32 %v39, %v161
  %v181 = vsub.f32 %v40, %v161
  %v182 = vsub.f32 %v41, %v161
  %v183 = vsub.f32 %v42, %v161
  %v184 = vsub.f32 %v43, %v161
  %v185 = vsub.f32 %v44, %v161
  %v186 = vsub.f32 %v45, %v161
  %v187 = vsub.f32 %v46, %v161
  %v188 = vsub.f32 %v47, %v161
  %v189 = vsub.f32 %v48, %v161
  %v190 = vsub.f32 %v49, %v161
  %v191 = vsub.f32 %v50, %v161
  %v192 = vsub.f32 %v51, %v161
  %v193 = vsub.f32 %v52, %v161
  %v194 = vsub.f32 %v53, %v161
  %v195 = vsub.f32 %v54, %v161
  %v196 = vsub.f32 %v55, %v161
  %v197 = vsub.f32 %v56, %v161
  %v198 = vsub.f32 %v57, %v161
  %v199 = vsub.f32 %v58, %v161
  %v200 = vsub.f32 %v59, %v161
  %v201 = vsub.f32 %v60, %v161
  %v202 = vsub.f32 %v61, %v161
  %v203 = vsub.f32 %v62, %v161
  %v204 = vsub.f32 %v63, %v161
  %v205 = vsub.f32 %v64, %v161
  %v206 = vsub.f32 %v65, %v161
  %v207 = vsub.f32 %v66, %v161
  %v208 = vsub.f32 %v67, %v161
  %v209 = vsub.f32 %v68, %v161
  %v210 = vsub.f32 %v69, %v161
  %v211 = vsub.f32 %v70, %v161
  %v212 = vsub.f32 %v71, %v161
  %v213 = vsub.f32 %v72, %v161
  %v214 = vsub.f32 %v73, %v161
  %v215 = vsub.f32 %v74, %v161
  %v216 = vsub.f32 %v75, %v161
  %v217 = vsub.f32 %v76, %v161
  %v218 = vsub.f32 %v77, %v161
  %v219 = vsub.f32 %v78, %v161
  %v220 = vsub.f32 %v79, %v161
  %v221 = vsub.f32 %v80, %v161
  %v222 = vsub.f32 %v81, %v161
  %v223 = vsub.f32 %v82, %v161
  %v224 = vsub.f32 %v83, %v161
  %v225 = vsub.f32 %v84, %v161
  %v226 = vmul.f32 %v162, %v162
  %v227 = vmul.f32 %v163, %v163
  %v228 = vmul.f32 %v164, %v164
  %v229 = vmul.f32 %v165, %v165
  %v230 = vmul.f32 %v166, %v166
  %v231 = vmul.f32 %v167, %v167
  %v232 = vmul.f32 %v168, %v168
  %v233 = vmul.f32 %v169, %v169
  %v234 = vmul.f32 %v170, %v170
  %v235 = vmul.f32 %v171, %v171
  %v236 = vmul.f32 %v172, %v172
  %v237 = vmul.f32 %v173, %v173
  %v238 = vmul.f32 %v174, %v174
  %v239 = vmul.f32 %v175, %v175
  %v240 = vmul.f32 %v176, %v176
  %v241 = vmul.f32 %v177, %v177
  %v242 = vmul.f32 %v178, %v178
  %v243 = vmul.f32 %v179, %v179
  %v244 = vmul.f32 %v180, %v180
  %v245 = vmul.f32 %v181, %v181
  %v246 = vmul.f32 %v182, %v182
  %v247 = vmul.f32 %v183, %v183
  %v248 = vmul.f32 %v184, %v184
  %v249 = vmul.f32 %v185, %v185
  %v250 = vmul.f32 %v186, %v186
  %v251 = vmul.f32 %v187, %v187
  %v252 = vmul.f32 %v188, %v188
  %v253 = vmul.f32 %v189, %v189
  %v254 = vmul.f32 %v190, %v190
  %v255 = vmul.f32 %v191, %v191
  %v256 = vmul.f32 %v192, %v192
  %v257 = vmul.f32 %v193, %v193
  %v258 = vmul.f32 %v194, %v194
  %v259 = vmul.f32 %v195, %v195
  %v260 = vmul.f32 %v196, %v196
  %v261 = vmul.f32 %v197, %v197
  %v262 = vmul.f32 %v198, %v198
  %v263 = vmul.f32 %v199, %v199
  %v264 = vmul.f32 %v200, %v200
  %v265 = vmul.f32 %v201, %v201
  %v266 = vmul.f32 %v202, %v202
  %v267 = vmul.f32 %v203, %v203
  %v268 = vmul.f32 %v204, %v204
  %v269 = vmul.f32 %v205, %v205
  %v270 = vmul.f32 %v206, %v206
  %v271 = vmul.f32 %v207, %v207
  %v272 = vmul.f32 %v208, %v208
  %v273 = vmul.f32 %v209, %v209
  %v274 = vmul.f32 %v210, %v210
  %v275 = vmul.f32 %v211, %v211
  %v276 = vmul.f32 %v212, %v212
  %v277 = vmul.f32 %v213, %v213
  %v278 = vmul.f32 %v214, %v214
  %v279 = vmul.f32 %v215, %v215
  %v280 = vmul.f32 %v216, %v216
  %v281 = vmul.f32 %v217, %v217
  %v282 = vmul.f32 %v218, %v218
  %v283 = vmul.f32 %v219, %v219
  %v284 = vmul.f32 %v220, %v220
  %v285 = vmul.f32 %v221, %v221
  %v286 = vmul.f32 %v222, %v222
  %v287 = vmul.f32 %v223, %v223
  %v288 = vmul.f32 %v224, %v224
  %v289 = vmul.f32 %v225, %v225
  %v290 = vadd.f32 %v226, %v227
  %v291 = vadd.f32 %v290, %v228
  %v292 = vadd.f32 %v291, %v229
  %v293 = vadd.f32 %v292, %v230
  %v294 = vadd.f32 %v293, %v231
  %v295 = vadd.f32 %v294, %v232
  %v296 = vadd.f32 %v295, %v233
  %v297 = vadd.f32 %v296, %v234
  %v298 = vadd.f32 %v297, %v235
  %v299 = vadd.f32 %v298, %v236
  %v300 = vadd.f32 %v299, %v237
  %v301 = vadd.f32 %v300, %v238
  %v302 = vadd.f32 %v301, %v239
  %v303 = vadd.f32 %v302, %v240
  %v304 = vadd.f32 %v303, %v241
  %v305 = vadd.f32 %v304, %v242
  %v306 = vadd.f32 %v305, %v243
  %v307 = vadd.f32 %v306, %v244
  %v308 = vadd.f32 %v307, %v245
  %v309 = vadd.f32 %v308, %v246
  %v310 = vadd.f32 %v309, %v247
  %v311 = vadd.f32 %v310, %v248
  %v312 = vadd.f32 %v311, %v249
  %v313 = vadd.f32 %v312, %v250
  %v314 = vadd.f32 %v313, %v251
  %v315 = vadd.f32 %v314, %v252
  %v316 = vadd.f32 %v315, %v253
  %v317 = vadd.f32 %v316, %v254
  %v318 = vadd.f32 %v317, %v255
  %v319 = vadd.f32 %v318, %v256
  %v320 = vadd.f32 %v319, %v257
  %v321 = vadd.f32 %v320, %v258
  %v322 = vadd.f32 %v321, %v259
  %v323 = vadd.f32 %v322, %v260
  %v324 = vadd.f32 %v323, %v261
  %v325 = vadd.f32 %v324, %v262
  %v326 = vadd.f32 %v325, %v263
  %v327 = vadd.f32 %v326, %v264
  %v328 = vadd.f32 %v327, %v265
  %v329 = vadd.f32 %v328, %v266
  %v330 = vadd.f32 %v329, %v267
  %v331 = vadd.f32 %v330, %v268
  %v332 = vadd.f32 %v331, %v269
  %v333 = vadd.f32 %v332, %v270
  %v334 = vadd.f32 %v333, %v271
  %v335 = vadd.f32 %v334, %v272
  %v336 = vadd.f32 %v335, %v273
  %v337 = vadd.f32 %v336, %v274
  %v338 = vadd.f32 %v337, %v275
  %v339 = vadd.f32 %v338, %v276
  %v340 = vadd.f32 %v339, %v277
  %v341 = vadd.f32 %v340, %v278
  %v342 = vadd.f32 %v341, %v279
  %v343 = vadd.f32 %v342, %v280
  %v344 = vadd.f32 %v343, %v281
  %v345 = vadd.f32 %v344, %v282
  %v346 = vadd.f32 %v345, %v283
  %v347 = vadd.f32 %v346, %v284
  %v348 = vadd.f32 %v347, %v285
  %v349 = vadd.f32 %v348, %v286
  %v350 = vadd.f32 %v349, %v287
  %v351 = vadd.f32 %v350, %v288
  %v352 = vadd.f32 %v351, %v289
  %v353 = vrot.slane %v352, 4
  %v354 = vadd.f32 %v352, %v353
  %v355 = vrot.slane %v354, 2
  %v356 = vadd.f32 %v354, %v355
  %v357 = vrot.slane %v356, 1
  %v358 = vadd.f32 %v356, %v357
  %v359 = vmul.f32 %v358, %v160
  %v360 = vadd.f32 %v359, 1e-05
  %v361 = vrsqrt.pop %v360
  %v362 = vmul.f32 %v85, %v361
  %v363 = vmul.f32 %v362, %v161
  %v364 = vsub.f32 %v86, %v363
  %v365 = vlaneseq
  %v366 = vshrl.u32 %v365, 7
  %v367 = vsub.s32 0, %v366
  %v368 = vrot.slane %v362, %v367
  %v369 = vmul.f32 %v21, %v368
  %v370 = vmul.f32 %v22, %v368
  %v371 = vmul.f32 %v23, %v368
  %v372 = vmul.f32 %v24, %v368
  %v373 = vmul.f32 %v25, %v368
  %v374 = vmul.f32 %v26, %v368
  %v375 = vmul.f32 %v27, %v368
  %v376 = vmul.f32 %v28, %v368
  %v377 = vmul.f32 %v29, %v368
  %v378 = vmul.f32 %v30, %v368
  %v379 = vmul.f32 %v31, %v368
  %v380 = vmul.f32 %v32, %v368
  %v381 = vmul.f32 %v33, %v368
  %v382 = vmul.f32 %v34, %v368
  %v383 = vmul.f32 %v35, %v368
  %v384 = vmul.f32 %v36, %v368
  %v385 = vmul.f32 %v37, %v368
  %v386 = vmul.f32 %v38, %v368
  %v387 = vmul.f32 %v39, %v368
  %v388 = vmul.f32 %v40, %v368
  %v389 = vmul.f32 %v41, %v368
  %v390 = vmul.f32 %v42, %v368
  %v391 = vmul.f32 %v43, %v368
  %v392 = vmul.f32 %v44, %v368
  %v393 = vmul.f32 %v45, %v368
  %v394 = vmul.f32 %v46, %v368
  %v395 = vmul.f32 %v47, %v368
  %v396 = vmul.f32 %v48, %v368
  %v397 = vmul.f32 %v49, %v368
  %v398 = vmul.f32 %v50, %v368
  %v399 = vmul.f32 %v51, %v368
  %v400 = vmul.f32 %v52, %v368
  %v401 = vmul.f32 %v53, %v368
  %v402 = vmul.f32 %v54, %v368
  %v403 = vmul.f32 %v55, %v368
  %v404 = vmul.f32 %v56, %v368
  %v405 = vmul.f32 %v57, %v368
  %v406 = vmul.f32 %v58, %v368
  %v407 = vmul.f32 %v59, %v368
  %v408 = vmul.f32 %v60, %v368
  %v409 = vmul.f32 %v61, %v368
  %v410 = vmul.f32 %v62, %v368
  %v411 = vmul.f32 %v63, %v368
  %v412 = vmul.f32 %v64, %v368
  %v413 = vmul.f32 %v65, %v368
  %v414 = vmul.f32 %v66, %v368
  %v415 = vmul.f32 %v67, %v368
  %v416 = vmul.f32 %v68, %v368
  %v417 = vmul.f32 %v69, %v368
  %v418 = vmul.f32 %v70, %v368
  %v419 = vmul.f32 %v71, %v368
  %v420 = vmul.f32 %v72, %v368
  %v421 = vmul.f32 %v73, %v368
  %v422 = vmul.f32 %v74, %v368
  %v423 = vmul.f32 %v75, %v368
  %v424 = vmul.f32 %v76, %v368
  %v425 = vmul.f32 %v77, %v368
  %v426 = vmul.f32 %v78, %v368
  %v427 = vmul.f32 %v79, %v368
  %v428 = vmul.f32 %v80, %v368
  %v429 = vmul.f32 %v81, %v368
  %v430 = vmul.f32 %v82, %v368
  %v431 = vmul.f32 %v83, %v368
  %v432 = vmul.f32 %v84, %v368
  %v433 = vlaneseq
  %v434 = vshrl.u32 %v433, 7
  %v435 = vsub.s32 0, %v434
  %v436 = vrot.slane %v364, %v435
  %v437 = vadd.f32 %v369, %v436
  %v438 = vadd.f32 %v370, %v436
  %v439 = vadd.f32 %v371, %v436
  %v440 = vadd.f32 %v372, %v436
  %v441 = vadd.f32 %v373, %v436
  %v442 = vadd.f32 %v374, %v436
  %v443 = vadd.f32 %v375, %v436
  %v444 = vadd.f32 %v376, %v436
  %v445 = vadd.f32 %v377, %v436
  %v446 = vadd.f32 %v378, %v436
  %v447 = vadd.f32 %v379, %v436
  %v448 = vadd.f32 %v380, %v436
  %v449 = vadd.f32 %v381, %v436
  %v450 = vadd.f32 %v382, %v436
  %v451 = vadd.f32 %v383, %v436
  %v452 = vadd.f32 %v384, %v436
  %v453 = vadd.f32 %v385, %v436
  %v454 = vadd.f32 %v386, %v436
  %v455 = vadd.f32 %v387, %v436
  %v456 = vadd.f32 %v388, %v436
  %v457 = vadd.f32 %v389, %v436
  %v458 = vadd.f32 %v390, %v436
  %v459 = vadd.f32 %v391, %v436
  %v460 = vadd.f32 %v392, %v436
  %v461 = vadd.f32 %v393, %v436
  %v462 = vadd.f32 %v394, %v436
  %v463 = vadd.f32 %v395, %v436
  %v464 = vadd.f32 %v396, %v436
  %v465 = vadd.f32 %v397, %v436
  %v466 = vadd.f32 %v398, %v436
  %v467 = vadd.f32 %v399, %v436
  %v468 = vadd.f32 %v400, %v436
  %v469 = vadd.f32 %v401, %v436
  %v470 = vadd.f32 %v402, %v436
  %v471 = vadd.f32 %v403, %v436
  %v472 = vadd.f32 %v404, %v436
  %v473 = vadd.f32 %v405, %v436
  %v474 = vadd.f32 %v406, %v436
  %v475 = vadd.f32 %v407, %v436
  %v476 = vadd.f32 %v408, %v436
  %v477 = vadd.f32 %v409, %v436
  %v478 = vadd.f32 %v410, %v436
  %v479 = vadd.f32 %v411, %v436
  %v480 = vadd.f32 %v412, %v436
  %v481 = vadd.f32 %v413, %v436
  %v482 = vadd.f32 %v414, %v436
  %v483 = vadd.f32 %v415, %v436
  %v484 = vadd.f32 %v416, %v436
  %v485 = vadd.f32 %v417, %v436
  %v486 = vadd.f32 %v418, %v436
  %v487 = vadd.f32 %v419, %v436
  %v488 = vadd.f32 %v420, %v436
  %v489 = vadd.f32 %v421, %v436
  %v490 = vadd.f32 %v422, %v436
  %v491 = vadd.f32 %v423, %v436
  %v492 = vadd.f32 %v424, %v436
  %v493 = vadd.f32 %v425, %v436
  %v494 = vadd.f32 %v426, %v436
  %v495 = vadd.f32 %v427, %v436
  %v496 = vadd.f32 %v428, %v436
  %v497 = vadd.f32 %v429, %v436
  %v498 = vadd.f32 %v430, %v436
  %v499 = vadd.f32 %v431, %v436
  %v500 = vadd.f32 %v432, %v436
  %v501 = vmax.f32 %v437, 0.0
  %v502 = vmax.f32 %v438, 0.0
  %v503 = vmax.f32 %v439, 0.0
  %v504 = vmax.f32 %v440, 0.0
  %v505 = vmax.f32 %v441, 0.0
  %v506 = vmax.f32 %v442, 0.0
  %v507 = vmax.f32 %v443, 0.0
  %v508 = vmax.f32 %v444, 0.0
  %v509 = vmax.f32 %v445, 0.0
  %v510 = vmax.f32 %v446, 0.0
  %v511 = vmax.f32 %v447, 0.0
  %v512 = vmax.f32 %v448, 0.0
  %v513 = vmax.f32 %v449, 0.0
  %v514 = vmax.f32 %v450, 0.0
  %v515 = vmax.f32 %v451, 0.0
  %v516 = vmax.f32 %v452, 0.0
  %v517 = vmax.f32 %v453, 0.0
  %v518 = vmax.f32 %v454, 0.0
  %v519 = vmax.f32 %v455, 0.0
  %v520 = vmax.f32 %v456, 0.0
  %v521 = vmax.f32 %v457, 0.0
  %v522 = vmax.f32 %v458, 0.0
  %v523 = vmax.f32 %v459, 0.0
  %v524 = vmax.f32 %v460, 0.0
  %v525 = vmax.f32 %v461, 0.0
  %v526 = vmax.f32 %v462, 0.0
  %v527 = vmax.f32 %v463, 0.0
  %v528 = vmax.f32 %v464, 0.0
  %v529 = vmax.f32 %v465, 0.0
  %v530 = vmax.f32 %v466, 0.0
  %v531 = vmax.f32 %v467, 0.0
  %v532 = vmax.f32 %v468, 0.0
  %v533 = vmax.f32 %v469, 0.0
  %v534 = vmax.f32 %v470, 0.0
  %v535 = vmax.f32 %v471, 0.0
  %v536 = vmax.f32 %v472, 0.0
  %v537 = vmax.f32 %v473, 0.0
  %v538 = vmax.f32 %v474, 0.0
  %v539 = vmax.f32 %v475, 0.0
  %v540 = vmax.f32 %v476, 0.0
  %v541 = vmax.f32 %v477, 0.0
  %v542 = vmax.f32 %v478, 0.0
  %v543 = vmax.f32 %v479, 0.0
  %v544 = vmax.f32 %v480, 0.0
  %v545 = vmax.f32 %v481, 0.0
  %v546 = vmax.f32 %v482, 0.0
  %v547 = vmax.f32 %v483, 0.0
  %v548 = vmax.f32 %v484, 0.0
  %v549 = vmax.f32 %v485, 0.0
  %v550 = vmax.f32 %v486, 0.0
  %v551 = vmax.f32 %v487, 0.0
  %v552 = vmax.f32 %v488, 0.0
  %v553 = vmax.f32 %v489, 0.0
  %v554 = vmax.f32 %v490, 0.0
  %v555 = vmax.f32 %v491, 0.0
  %v556 = vmax.f32 %v492, 0.0
  %v557 = vmax.f32 %v493, 0.0
  %v558 = vmax.f32 %v494, 0.0
  %v559 = vmax.f32 %v495, 0.0
  %v560 = vmax.f32 %v496, 0.0
  %v561 = vmax.f32 %v497, 0.0
  %v562 = vmax.f32 %v498, 0.0
  %v563 = vmax.f32 %v499, 0.0
  %v564 = vmax.f32 %v500, 0.0
  %v565 = vrot.slane %v501, 7
  %v566 = vrot.slane %v503, 7
  %v567 = vrot.slane %v505, 7
  %v568 = vrot.slane %v507, 7
  %v569 = vrot.slane %v509, 7
  %v570 = vrot.slane %v511, 7
  %v571 = vrot.slane %v513, 7
  %v572 = vrot.slane %v515, 7
  %v573 = vrot.slane %v517, 7
  %v574 = vrot.slane %v519, 7
  %v575 = vrot.slane %v521, 7
  %v576 = vrot.slane %v523, 7
  %v577 = vrot.slane %v525, 7
  %v578 = vrot.slane %v527, 7
  %v579 = vrot.slane %v529, 7
  %v580 = vrot.slane %v531, 7
  %v581 = vrot.slane %v533, 7
  %v582 = vrot.slane %v535, 7
  %v583 = vrot.slane %v537, 7
  %v584 = vrot.slane %v539, 7
  %v585 = vrot.slane %v541, 7
  %v586 = vrot.slane %v543, 7
  %v587 = vrot.slane %v545, 7
  %v588 = vrot.slane %v547, 7
  %v589 = vrot.slane %v549, 7
  %v590 = vrot.slane %v551, 7
  %v591 = vrot.slane %v553, 7
  %v592 = vrot.slane %v555, 7
  %v593 = vrot.slane %v557, 7
  %v594 = vrot.slane %v559, 7
  %v595 = vrot.slane %v561, 7
  %v596 = vrot.slane %v563, 7
  %v597 = vrot.slane %v502, 7
  %v598 = vrot.slane %v504, 7
  %v599 = vrot.slane %v506, 7
  %v600 = vrot.slane %v508, 7
  %v601 = vrot.slane %v510, 7
  %v602 = vrot.slane %v512, 7
  %v603 = vrot.slane %v514, 7
  %v604 = vrot.slane %v516, 7
  %v605 = vrot.slane %v518, 7
  %v606 = vrot.slane %v520, 7
  %v607 = vrot.slane %v522, 7
  %v608 = vrot.slane %v524, 7
  %v609 = vrot.slane %v526, 7
  %v610 = vrot.slane %v528, 7
  %v611 = vrot.slane %v530, 7
  %v612 = vrot.slane %v532, 7
  %v613 = vrot.slane %v534, 7
  %v614 = vrot.slane %v536, 7
  %v615 = vrot.slane %v538, 7
  %v616 = vrot.slane %v540, 7
  %v617 = vrot.slane %v542, 7
  %v618 = vrot.slane %v544, 7
  %v619 = vrot.slane %v546, 7
  %v620 = vrot.slane %v548, 7
  %v621 = vrot.slane %v550, 7
  %v622 = vrot.slane %v552, 7
  %v623 = vrot.slane %v554, 7
  %v624 = vrot.slane %v556, 7
  %v625 = vrot.slane %v558, 7
  %v626 = vrot.slane %v560, 7
  %v627 = vrot.slane %v562, 7
  %v628 = vrot.slane %v564, 7
  %vm629 = vcmp.lt.s32.totalorder %v89, 1
  %v630 = vsel %vm629, %v565, %v597
  %v631 = vsel %vm629, %v566, %v598
  %v632 = vsel %vm629, %v567, %v599
  %v633 = vsel %vm629, %v568, %v600
  %v634 = vsel %vm629, %v569, %v601
  %v635 = vsel %vm629, %v570, %v602
  %v636 = vsel %vm629, %v571, %v603
  %v637 = vsel %vm629, %v572, %v604
  %v638 = vsel %vm629, %v573, %v605
  %v639 = vsel %vm629, %v574, %v606
  %v640 = vsel %vm629, %v575, %v607
  %v641 = vsel %vm629, %v576, %v608
  %v642 = vsel %vm629, %v577, %v609
  %v643 = vsel %vm629, %v578, %v610
  %v644 = vsel %vm629, %v579, %v611
  %v645 = vsel %vm629, %v580, %v612
  %v646 = vsel %vm629, %v581, %v613
  %v647 = vsel %vm629, %v582, %v614
  %v648 = vsel %vm629, %v583, %v615
  %v649 = vsel %vm629, %v584, %v616
  %v650 = vsel %vm629, %v585, %v617
  %v651 = vsel %vm629, %v586, %v618
  %v652 = vsel %vm629, %v587, %v619
  %v653 = vsel %vm629, %v588, %v620
  %v654 = vsel %vm629, %v589, %v621
  %v655 = vsel %vm629, %v590, %v622
  %v656 = vsel %vm629, %v591, %v623
  %v657 = vsel %vm629, %v592, %v624
  %v658 = vsel %vm629, %v593, %v625
  %v659 = vsel %vm629, %v594, %v626
  %v660 = vsel %vm629, %v595, %v627
  %v661 = vsel %vm629, %v596, %v628
  %v662 = vsel %vm629, %v597, %v565
  %v663 = vsel %vm629, %v598, %v566
  %v664 = vsel %vm629, %v599, %v567
  %v665 = vsel %vm629, %v600, %v568
  %v666 = vsel %vm629, %v601, %v569
  %v667 = vsel %vm629, %v602, %v570
  %v668 = vsel %vm629, %v603, %v571
  %v669 = vsel %vm629, %v604, %v572
  %v670 = vsel %vm629, %v605, %v573
  %v671 = vsel %vm629, %v606, %v574
  %v672 = vsel %vm629, %v607, %v575
  %v673 = vsel %vm629, %v608, %v576
  %v674 = vsel %vm629, %v609, %v577
  %v675 = vsel %vm629, %v610, %v578
  %v676 = vsel %vm629, %v611, %v579
  %v677 = vsel %vm629, %v612, %v580
  %v678 = vsel %vm629, %v613, %v581
  %v679 = vsel %vm629, %v614, %v582
  %v680 = vsel %vm629, %v615, %v583
  %v681 = vsel %vm629, %v616, %v584
  %v682 = vsel %vm629, %v617, %v585
  %v683 = vsel %vm629, %v618, %v586
  %v684 = vsel %vm629, %v619, %v587
  %v685 = vsel %vm629, %v620, %v588
  %v686 = vsel %vm629, %v621, %v589
  %v687 = vsel %vm629, %v622, %v590
  %v688 = vsel %vm629, %v623, %v591
  %v689 = vsel %vm629, %v624, %v592
  %v690 = vsel %vm629, %v625, %v593
  %v691 = vsel %vm629, %v626, %v594
  %v692 = vsel %vm629, %v627, %v595
  %v693 = vsel %vm629, %v628, %v596
  %vm694 = vcmp.ne.s32.totalorder %v89, 0
  %vm695 = vcmp.ne.s32.totalorder %v90, 0
  %v696 = vsel %vm694, 1, 0
  %v697 = vsel %vm695, 1, 0
  %v698 = vcvt.s32.f32 %v696
  %v699 = vcvt.s32.f32 %v697
  %v700 = vmul.f32 0.0, %v698
  %v701 = vmul.f32 0.0, %v699
  %v702 = vmul.f32 %v662, %v698
  %v703 = vmul.f32 %v630, %v699
  %v704 = vmul.f32 %v663, %v698
  %v705 = vmul.f32 %v631, %v699
  %v706 = vmul.f32 %v664, %v698
  %v707 = vmul.f32 %v632, %v699
  %v708 = vmul.f32 %v665, %v698
  %v709 = vmul.f32 %v633, %v699
  %v710 = vmul.f32 %v666, %v698
  %v711 = vmul.f32 %v634, %v699
  %v712 = vmul.f32 %v667, %v698
  %v713 = vmul.f32 %v635, %v699
  %v714 = vmul.f32 %v668, %v698
  %v715 = vmul.f32 %v636, %v699
  %v716 = vmul.f32 %v669, %v698
  %v717 = vmul.f32 %v637, %v699
  %v718 = vmul.f32 %v670, %v698
  %v719 = vmul.f32 %v638, %v699
  %v720 = vmul.f32 %v671, %v698
  %v721 = vmul.f32 %v639, %v699
  %v722 = vmul.f32 %v672, %v698
  %v723 = vmul.f32 %v640, %v699
  %v724 = vmul.f32 %v673, %v698
  %v725 = vmul.f32 %v641, %v699
  %v726 = vmul.f32 %v674, %v698
  %v727 = vmul.f32 %v642, %v699
  %v728 = vmul.f32 %v675, %v698
  %v729 = vmul.f32 %v643, %v699
  %v730 = vmul.f32 %v676, %v698
  %v731 = vmul.f32 %v644, %v699
  %v732 = vmul.f32 %v677, %v698
  %v733 = vmul.f32 %v645, %v699
  %v734 = vmul.f32 %v678, %v698
  %v735 = vmul.f32 %v646, %v699
  %v736 = vmul.f32 %v679, %v698
  %v737 = vmul.f32 %v647, %v699
  %v738 = vmul.f32 %v680, %v698
  %v739 = vmul.f32 %v648, %v699
  %v740 = vmul.f32 %v681, %v698
  %v741 = vmul.f32 %v649, %v699
  %v742 = vmul.f32 %v682, %v698
  %v743 = vmul.f32 %v650, %v699
  %v744 = vmul.f32 %v683, %v698
  %v745 = vmul.f32 %v651, %v699
  %v746 = vmul.f32 %v684, %v698
  %v747 = vmul.f32 %v652, %v699
  %v748 = vmul.f32 %v685, %v698
  %v749 = vmul.f32 %v653, %v699
  %v750 = vmul.f32 %v686, %v698
  %v751 = vmul.f32 %v654, %v699
  %v752 = vmul.f32 %v687, %v698
  %v753 = vmul.f32 %v655, %v699
  %v754 = vmul.f32 %v688, %v698
  %v755 = vmul.f32 %v656, %v699
  %v756 = vmul.f32 %v689, %v698
  %v757 = vmul.f32 %v657, %v699
  %v758 = vmul.f32 %v690, %v698
  %v759 = vmul.f32 %v658, %v699
  %v760 = vmul.f32 %v691, %v698
  %v761 = vmul.f32 %v659, %v699
  %v762 = vmul.f32 %v692, %v698
  %v763 = vmul.f32 %v660, %v699
  %v764 = vmul.f32 %v693, %v698
  %v765 = vmul.f32 %v661, %v699
  %v766 = vpack.c.bf16 %v701, %v700
  %v767 = vpack.c.bf16 %v703, %v702
  %v768 = vpack.c.bf16 %v705, %v704
  %v769 = vpack.c.bf16 %v707, %v706
  %v770 = vpack.c.bf16 %v709, %v708
  %v771 = vpack.c.bf16 %v711, %v710
  %v772 = vpack.c.bf16 %v713, %v712
  %v773 = vpack.c.bf16 %v715, %v714
  %v774 = vpack.c.bf16 %v717, %v716
  %v775 = vpack.c.bf16 %v719, %v718
  %v776 = vpack.c.bf16 %v721, %v720
  %v777 = vpack.c.bf16 %v723, %v722
  %v778 = vpack.c.bf16 %v725, %v724
  %v779 = vpack.c.bf16 %v727, %v726
  %v780 = vpack.c.bf16 %v729, %v728
  %v781 = vpack.c.bf16 %v731, %v730
  %v782 = vpack.c.bf16 %v733, %v732
  %v783 = vpack.c.bf16 %v735, %v734
  %v784 = vpack.c.bf16 %v737, %v736
  %v785 = vpack.c.bf16 %v739, %v738
  %v786 = vpack.c.bf16 %v741, %v740
  %v787 = vpack.c.bf16 %v743, %v742
  %v788 = vpack.c.bf16 %v745, %v744
  %v789 = vpack.c.bf16 %v747, %v746
  %v790 = vpack.c.bf16 %v749, %v748
  %v791 = vpack.c.bf16 %v751, %v750
  %v792 = vpack.c.bf16 %v753, %v752
  %v793 = vpack.c.bf16 %v755, %v754
  %v794 = vpack.c.bf16 %v757, %v756
  %v795 = vpack.c.bf16 %v759, %v758
  %v796 = vpack.c.bf16 %v761, %v760
  %v797 = vpack.c.bf16 %v763, %v762
  %v798 = vpack.c.bf16 %v765, %v764
  %v799 = vpack.c.bf16 0.0, 0.0
  %v800 = vpack.c.bf16 %v502, %v501
  %v801 = vpack.c.bf16 %v504, %v503
  %v802 = vpack.c.bf16 %v506, %v505
  %v803 = vpack.c.bf16 %v508, %v507
  %v804 = vpack.c.bf16 %v510, %v509
  %v805 = vpack.c.bf16 %v512, %v511
  %v806 = vpack.c.bf16 %v514, %v513
  %v807 = vpack.c.bf16 %v516, %v515
  %v808 = vpack.c.bf16 %v518, %v517
  %v809 = vpack.c.bf16 %v520, %v519
  %v810 = vpack.c.bf16 %v522, %v521
  %v811 = vpack.c.bf16 %v524, %v523
  %v812 = vpack.c.bf16 %v526, %v525
  %v813 = vpack.c.bf16 %v528, %v527
  %v814 = vpack.c.bf16 %v530, %v529
  %v815 = vpack.c.bf16 %v532, %v531
  %v816 = vpack.c.bf16 %v534, %v533
  %v817 = vpack.c.bf16 %v536, %v535
  %v818 = vpack.c.bf16 %v538, %v537
  %v819 = vpack.c.bf16 %v540, %v539
  %v820 = vpack.c.bf16 %v542, %v541
  %v821 = vpack.c.bf16 %v544, %v543
  %v822 = vpack.c.bf16 %v546, %v545
  %v823 = vpack.c.bf16 %v548, %v547
  %v824 = vpack.c.bf16 %v550, %v549
  %v825 = vpack.c.bf16 %v552, %v551
  %v826 = vpack.c.bf16 %v554, %v553
  %v827 = vpack.c.bf16 %v556, %v555
  %v828 = vpack.c.bf16 %v558, %v557
  %v829 = vpack.c.bf16 %v560, %v559
  %v830 = vpack.c.bf16 %v562, %v561
  %v831 = vpack.c.bf16 %v564, %v563
  %v832 = vrot.slane %v501, 1
  %v833 = vrot.slane %v503, 1
  %v834 = vrot.slane %v505, 1
  %v835 = vrot.slane %v507, 1
  %v836 = vrot.slane %v509, 1
  %v837 = vrot.slane %v511, 1
  %v838 = vrot.slane %v513, 1
  %v839 = vrot.slane %v515, 1
  %v840 = vrot.slane %v517, 1
  %v841 = vrot.slane %v519, 1
  %v842 = vrot.slane %v521, 1
  %v843 = vrot.slane %v523, 1
  %v844 = vrot.slane %v525, 1
  %v845 = vrot.slane %v527, 1
  %v846 = vrot.slane %v529, 1
  %v847 = vrot.slane %v531, 1
  %v848 = vrot.slane %v533, 1
  %v849 = vrot.slane %v535, 1
  %v850 = vrot.slane %v537, 1
  %v851 = vrot.slane %v539, 1
  %v852 = vrot.slane %v541, 1
  %v853 = vrot.slane %v543, 1
  %v854 = vrot.slane %v545, 1
  %v855 = vrot.slane %v547, 1
  %v856 = vrot.slane %v549, 1
  %v857 = vrot.slane %v551, 1
  %v858 = vrot.slane %v553, 1
  %v859 = vrot.slane %v555, 1
  %v860 = vrot.slane %v557, 1
  %v861 = vrot.slane %v559, 1
  %v862 = vrot.slane %v561, 1
  %v863 = vrot.slane %v563, 1
  %v864 = vrot.slane %v502, 1
  %v865 = vrot.slane %v504, 1
  %v866 = vrot.slane %v506, 1
  %v867 = vrot.slane %v508, 1
  %v868 = vrot.slane %v510, 1
  %v869 = vrot.slane %v512, 1
  %v870 = vrot.slane %v514, 1
  %v871 = vrot.slane %v516, 1
  %v872 = vrot.slane %v518, 1
  %v873 = vrot.slane %v520, 1
  %v874 = vrot.slane %v522, 1
  %v875 = vrot.slane %v524, 1
  %v876 = vrot.slane %v526, 1
  %v877 = vrot.slane %v528, 1
  %v878 = vrot.slane %v530, 1
  %v879 = vrot.slane %v532, 1
  %v880 = vrot.slane %v534, 1
  %v881 = vrot.slane %v536, 1
  %v882 = vrot.slane %v538, 1
  %v883 = vrot.slane %v540, 1
  %v884 = vrot.slane %v542, 1
  %v885 = vrot.slane %v544, 1
  %v886 = vrot.slane %v546, 1
  %v887 = vrot.slane %v548, 1
  %v888 = vrot.slane %v550, 1
  %v889 = vrot.slane %v552, 1
  %v890 = vrot.slane %v554, 1
  %v891 = vrot.slane %v556, 1
  %v892 = vrot.slane %v558, 1
  %v893 = vrot.slane %v560, 1
  %v894 = vrot.slane %v562, 1
  %v895 = vrot.slane %v564, 1
  %vm896 = vcmp.lt.s32.totalorder %v89, 7
  %v897 = vsel %vm896, %v832, %v864
  %v898 = vsel %vm896, %v833, %v865
  %v899 = vsel %vm896, %v834, %v866
  %v900 = vsel %vm896, %v835, %v867
  %v901 = vsel %vm896, %v836, %v868
  %v902 = vsel %vm896, %v837, %v869
  %v903 = vsel %vm896, %v838, %v870
  %v904 = vsel %vm896, %v839, %v871
  %v905 = vsel %vm896, %v840, %v872
  %v906 = vsel %vm896, %v841, %v873
  %v907 = vsel %vm896, %v842, %v874
  %v908 = vsel %vm896, %v843, %v875
  %v909 = vsel %vm896, %v844, %v876
  %v910 = vsel %vm896, %v845, %v877
  %v911 = vsel %vm896, %v846, %v878
  %v912 = vsel %vm896, %v847, %v879
  %v913 = vsel %vm896, %v848, %v880
  %v914 = vsel %vm896, %v849, %v881
  %v915 = vsel %vm896, %v850, %v882
  %v916 = vsel %vm896, %v851, %v883
  %v917 = vsel %vm896, %v852, %v884
  %v918 = vsel %vm896, %v853, %v885
  %v919 = vsel %vm896, %v854, %v886
  %v920 = vsel %vm896, %v855, %v887
  %v921 = vsel %vm896, %v856, %v888
  %v922 = vsel %vm896, %v857, %v889
  %v923 = vsel %vm896, %v858, %v890
  %v924 = vsel %vm896, %v859, %v891
  %v925 = vsel %vm896, %v860, %v892
  %v926 = vsel %vm896, %v861, %v893
  %v927 = vsel %vm896, %v862, %v894
  %v928 = vsel %vm896, %v863, %v895
  %v929 = vsel %vm896, %v864, %v832
  %v930 = vsel %vm896, %v865, %v833
  %v931 = vsel %vm896, %v866, %v834
  %v932 = vsel %vm896, %v867, %v835
  %v933 = vsel %vm896, %v868, %v836
  %v934 = vsel %vm896, %v869, %v837
  %v935 = vsel %vm896, %v870, %v838
  %v936 = vsel %vm896, %v871, %v839
  %v937 = vsel %vm896, %v872, %v840
  %v938 = vsel %vm896, %v873, %v841
  %v939 = vsel %vm896, %v874, %v842
  %v940 = vsel %vm896, %v875, %v843
  %v941 = vsel %vm896, %v876, %v844
  %v942 = vsel %vm896, %v877, %v845
  %v943 = vsel %vm896, %v878, %v846
  %v944 = vsel %vm896, %v879, %v847
  %v945 = vsel %vm896, %v880, %v848
  %v946 = vsel %vm896, %v881, %v849
  %v947 = vsel %vm896, %v882, %v850
  %v948 = vsel %vm896, %v883, %v851
  %v949 = vsel %vm896, %v884, %v852
  %v950 = vsel %vm896, %v885, %v853
  %v951 = vsel %vm896, %v886, %v854
  %v952 = vsel %vm896, %v887, %v855
  %v953 = vsel %vm896, %v888, %v856
  %v954 = vsel %vm896, %v889, %v857
  %v955 = vsel %vm896, %v890, %v858
  %v956 = vsel %vm896, %v891, %v859
  %v957 = vsel %vm896, %v892, %v860
  %v958 = vsel %vm896, %v893, %v861
  %v959 = vsel %vm896, %v894, %v862
  %v960 = vsel %vm896, %v895, %v863
  %vm961 = vcmp.ne.s32.totalorder %v89, 15
  %vm962 = vcmp.ne.s32.totalorder %v90, 15
  %v963 = vsel %vm961, 1, 0
  %v964 = vsel %vm962, 1, 0
  %v965 = vcvt.s32.f32 %v963
  %v966 = vcvt.s32.f32 %v964
  %v967 = vmul.f32 0.0, %v965
  %v968 = vmul.f32 0.0, %v966
  %v969 = vmul.f32 %v897, %v965
  %v970 = vmul.f32 %v929, %v966
  %v971 = vmul.f32 %v898, %v965
  %v972 = vmul.f32 %v930, %v966
  %v973 = vmul.f32 %v899, %v965
  %v974 = vmul.f32 %v931, %v966
  %v975 = vmul.f32 %v900, %v965
  %v976 = vmul.f32 %v932, %v966
  %v977 = vmul.f32 %v901, %v965
  %v978 = vmul.f32 %v933, %v966
  %v979 = vmul.f32 %v902, %v965
  %v980 = vmul.f32 %v934, %v966
  %v981 = vmul.f32 %v903, %v965
  %v982 = vmul.f32 %v935, %v966
  %v983 = vmul.f32 %v904, %v965
  %v984 = vmul.f32 %v936, %v966
  %v985 = vmul.f32 %v905, %v965
  %v986 = vmul.f32 %v937, %v966
  %v987 = vmul.f32 %v906, %v965
  %v988 = vmul.f32 %v938, %v966
  %v989 = vmul.f32 %v907, %v965
  %v990 = vmul.f32 %v939, %v966
  %v991 = vmul.f32 %v908, %v965
  %v992 = vmul.f32 %v940, %v966
  %v993 = vmul.f32 %v909, %v965
  %v994 = vmul.f32 %v941, %v966
  %v995 = vmul.f32 %v910, %v965
  %v996 = vmul.f32 %v942, %v966
  %v997 = vmul.f32 %v911, %v965
  %v998 = vmul.f32 %v943, %v966
  %v999 = vmul.f32 %v912, %v965
  %v1000 = vmul.f32 %v944, %v966
  %v1001 = vmul.f32 %v913, %v965
  %v1002 = vmul.f32 %v945, %v966
  %v1003 = vmul.f32 %v914, %v965
  %v1004 = vmul.f32 %v946, %v966
  %v1005 = vmul.f32 %v915, %v965
  %v1006 = vmul.f32 %v947, %v966
  %v1007 = vmul.f32 %v916, %v965
  %v1008 = vmul.f32 %v948, %v966
  %v1009 = vmul.f32 %v917, %v965
  %v1010 = vmul.f32 %v949, %v966
  %v1011 = vmul.f32 %v918, %v965
  %v1012 = vmul.f32 %v950, %v966
  %v1013 = vmul.f32 %v919, %v965
  %v1014 = vmul.f32 %v951, %v966
  %v1015 = vmul.f32 %v920, %v965
  %v1016 = vmul.f32 %v952, %v966
  %v1017 = vmul.f32 %v921, %v965
  %v1018 = vmul.f32 %v953, %v966
  %v1019 = vmul.f32 %v922, %v965
  %v1020 = vmul.f32 %v954, %v966
  %v1021 = vmul.f32 %v923, %v965
  %v1022 = vmul.f32 %v955, %v966
  %v1023 = vmul.f32 %v924, %v965
  %v1024 = vmul.f32 %v956, %v966
  %v1025 = vmul.f32 %v925, %v965
  %v1026 = vmul.f32 %v957, %v966
  %v1027 = vmul.f32 %v926, %v965
  %v1028 = vmul.f32 %v958, %v966
  %v1029 = vmul.f32 %v927, %v965
  %v1030 = vmul.f32 %v959, %v966
  %v1031 = vmul.f32 %v928, %v965
  %v1032 = vmul.f32 %v960, %v966
  %v1033 = vpack.c.bf16 %v968, %v967
  %v1034 = vpack.c.bf16 %v970, %v969
  %v1035 = vpack.c.bf16 %v972, %v971
  %v1036 = vpack.c.bf16 %v974, %v973
  %v1037 = vpack.c.bf16 %v976, %v975
  %v1038 = vpack.c.bf16 %v978, %v977
  %v1039 = vpack.c.bf16 %v980, %v979
  %v1040 = vpack.c.bf16 %v982, %v981
  %v1041 = vpack.c.bf16 %v984, %v983
  %v1042 = vpack.c.bf16 %v986, %v985
  %v1043 = vpack.c.bf16 %v988, %v987
  %v1044 = vpack.c.bf16 %v990, %v989
  %v1045 = vpack.c.bf16 %v992, %v991
  %v1046 = vpack.c.bf16 %v994, %v993
  %v1047 = vpack.c.bf16 %v996, %v995
  %v1048 = vpack.c.bf16 %v998, %v997
  %v1049 = vpack.c.bf16 %v1000, %v999
  %v1050 = vpack.c.bf16 %v1002, %v1001
  %v1051 = vpack.c.bf16 %v1004, %v1003
  %v1052 = vpack.c.bf16 %v1006, %v1005
  %v1053 = vpack.c.bf16 %v1008, %v1007
  %v1054 = vpack.c.bf16 %v1010, %v1009
  %v1055 = vpack.c.bf16 %v1012, %v1011
  %v1056 = vpack.c.bf16 %v1014, %v1013
  %v1057 = vpack.c.bf16 %v1016, %v1015
  %v1058 = vpack.c.bf16 %v1018, %v1017
  %v1059 = vpack.c.bf16 %v1020, %v1019
  %v1060 = vpack.c.bf16 %v1022, %v1021
  %v1061 = vpack.c.bf16 %v1024, %v1023
  %v1062 = vpack.c.bf16 %v1026, %v1025
  %v1063 = vpack.c.bf16 %v1028, %v1027
  %v1064 = vpack.c.bf16 %v1030, %v1029
  %v1065 = vpack.c.bf16 %v1032, %v1031
  %v1066 = vld [vmem:[%s3] sm:$0xf]
  %v1067 = vld [vmem:[%s3 + $0x4] sm:$0xf]
  %v1068 = vld [vmem:[%s3 + $0x8] sm:$0xf]
  %v1069 = vld [vmem:[%s3 + $0xc] sm:$0xf]
  %v1070 = vld [vmem:[%s3 + $0x10] sm:$0xf]
  %v1071 = vld [vmem:[%s3 + $0x14] sm:$0xf]
  %v1072 = vld [vmem:[%s3 + $0x18] sm:$0xf]
  %v1073 = vld [vmem:[%s3 + $0x1c] sm:$0xf]
  %v1074 = vld [vmem:[%s3 + $0x20] sm:$0xf]
  %v1075 = vld [vmem:[%s3 + $0x24] sm:$0xf]
  %v1076 = vld [vmem:[%s3 + $0x28] sm:$0xf]
  %v1077 = vld [vmem:[%s3 + $0x2c] sm:$0xf]
  %v1078 = vld [vmem:[%s3 + $0x30] sm:$0xf]
  %v1079 = vld [vmem:[%s3 + $0x34] sm:$0xf]
  %v1080 = vld [vmem:[%s3 + $0x38] sm:$0xf]
  %v1081 = vld [vmem:[%s3 + $0x3c] sm:$0xf]
  %v1082 = vld [vmem:[%s3 + $0x40] sm:$0xf]
  %v1083 = vld [vmem:[%s3 + $0x44] sm:$0xf]
  %v1084 = vld [vmem:[%s3 + $0x48] sm:$0xf]
  %v1085 = vld [vmem:[%s3 + $0x4c] sm:$0xf]
  %v1086 = vld [vmem:[%s3 + $0x50] sm:$0xf]
  %v1087 = vld [vmem:[%s3 + $0x54] sm:$0xf]
  %v1088 = vld [vmem:[%s3 + $0x58] sm:$0xf]
  %v1089 = vld [vmem:[%s3 + $0x5c] sm:$0xf]
  %v1090 = vld [vmem:[%s3 + $0x60] sm:$0xf]
  %v1091 = vld [vmem:[%s3 + $0x64] sm:$0xf]
  %v1092 = vld [vmem:[%s3 + $0x68] sm:$0xf]
  %v1093 = vld [vmem:[%s3 + $0x6c] sm:$0xf]
  %v1094 = vld [vmem:[%s3 + $0x70] sm:$0xf]
  %v1095 = vld [vmem:[%s3 + $0x74] sm:$0xf]
  %v1096 = vld [vmem:[%s3 + $0x78] sm:$0xf]
  %v1097 = vld [vmem:[%s3 + $0x7c] sm:$0xf]
  %v1098 = vld [vmem:[%s3 + $0x80] sm:$0xf]
  %v1099 = vld [vmem:[%s3 + $0x84] sm:$0xf]
  %v1100 = vld [vmem:[%s3 + $0x88] sm:$0xf]
  %v1101 = vld [vmem:[%s3 + $0x8c] sm:$0xf]
  %v1102 = vld [vmem:[%s3 + $0x90] sm:$0xf]
  %v1103 = vld [vmem:[%s3 + $0x94] sm:$0xf]
  %v1104 = vld [vmem:[%s3 + $0x98] sm:$0xf]
  %v1105 = vld [vmem:[%s3 + $0x9c] sm:$0xf]
  %v1106 = vld [vmem:[%s3 + $0xa0] sm:$0xf]
  %v1107 = vld [vmem:[%s3 + $0xa4] sm:$0xf]
  %v1108 = vld [vmem:[%s3 + $0xa8] sm:$0xf]
  %v1109 = vld [vmem:[%s3 + $0xac] sm:$0xf]
  %v1110 = vld [vmem:[%s3 + $0xb0] sm:$0xf]
  %v1111 = vld [vmem:[%s3 + $0xb4] sm:$0xf]
  %v1112 = vld [vmem:[%s3 + $0xb8] sm:$0xf]
  %v1113 = vld [vmem:[%s3 + $0xbc] sm:$0xf]
  %v1114 = vld [vmem:[%s3 + $0xc0] sm:$0xf]
  %v1115 = vld [vmem:[%s3 + $0xc4] sm:$0xf]
  %v1116 = vld [vmem:[%s3 + $0xc8] sm:$0xf]
  %v1117 = vld [vmem:[%s3 + $0xcc] sm:$0xf]
  %v1118 = vld [vmem:[%s3 + $0xd0] sm:$0xf]
  %v1119 = vld [vmem:[%s3 + $0xd4] sm:$0xf]
  %v1120 = vld [vmem:[%s3 + $0xd8] sm:$0xf]
  %v1121 = vld [vmem:[%s3 + $0xdc] sm:$0xf]
  %v1122 = vld [vmem:[%s3 + $0xe0] sm:$0xf]
  %v1123 = vld [vmem:[%s3 + $0xe4] sm:$0xf]
  %v1124 = vld [vmem:[%s3 + $0xe8] sm:$0xf]
  %v1125 = vld [vmem:[%s3 + $0xec] sm:$0xf]
  %v1126 = vld [vmem:[%s3 + $0xf0] sm:$0xf]
  %v1127 = vld [vmem:[%s3 + $0xf4] sm:$0xf]
  %v1128 = vld [vmem:[%s3 + $0xf8] sm:$0xf]
  %v1129 = vld [vmem:[%s3 + $0xfc] sm:$0xf]
  %v1130 = vld [vmem:[%s3 + $0x100] sm:$0xf]
  %v1131 = vld [vmem:[%s3 + $0x104] sm:$0xf]
  %v1132 = vld [vmem:[%s3 + $0x108] sm:$0xf]
  %v1133 = vld [vmem:[%s3 + $0x10c] sm:$0xf]
  %v1134 = vld [vmem:[%s3 + $0x110] sm:$0xf]
  %v1135 = vld [vmem:[%s3 + $0x114] sm:$0xf]
  %v1136 = vld [vmem:[%s3 + $0x118] sm:$0xf]
  %v1137 = vld [vmem:[%s3 + $0x11c] sm:$0xf]
  %v1138 = vld [vmem:[%s3 + $0x120] sm:$0xf]
  %v1139 = vld [vmem:[%s3 + $0x124] sm:$0xf]
  %v1140 = vld [vmem:[%s3 + $0x128] sm:$0xf]
  %v1141 = vld [vmem:[%s3 + $0x12c] sm:$0xf]
  %v1142 = vld [vmem:[%s3 + $0x130] sm:$0xf]
  %v1143 = vld [vmem:[%s3 + $0x134] sm:$0xf]
  %v1144 = vld [vmem:[%s3 + $0x138] sm:$0xf]
  %v1145 = vld [vmem:[%s3 + $0x13c] sm:$0xf]
  %v1146 = vld [vmem:[%s3 + $0x140] sm:$0xf]
  %v1147 = vld [vmem:[%s3 + $0x144] sm:$0xf]
  %v1148 = vld [vmem:[%s3 + $0x148] sm:$0xf]
  %v1149 = vld [vmem:[%s3 + $0x14c] sm:$0xf]
  %v1150 = vld [vmem:[%s3 + $0x150] sm:$0xf]
  %v1151 = vld [vmem:[%s3 + $0x154] sm:$0xf]
  %v1152 = vld [vmem:[%s3 + $0x158] sm:$0xf]
  %v1153 = vld [vmem:[%s3 + $0x15c] sm:$0xf]
  %v1154 = vld [vmem:[%s3 + $0x160] sm:$0xf]
  %v1155 = vld [vmem:[%s3 + $0x164] sm:$0xf]
  %v1156 = vld [vmem:[%s3 + $0x168] sm:$0xf]
  %v1157 = vld [vmem:[%s3 + $0x16c] sm:$0xf]
  %v1158 = vld [vmem:[%s3 + $0x170] sm:$0xf]
  %v1159 = vld [vmem:[%s3 + $0x174] sm:$0xf]
  %v1160 = vld [vmem:[%s3 + $0x178] sm:$0xf]
  %v1161 = vld [vmem:[%s3 + $0x17c] sm:$0xf]
  %v1162 = vld [vmem:[%s3 + $0x180] sm:$0xf]
  %v1163 = vld [vmem:[%s3 + $0x184] sm:$0xf]
  %v1164 = vld [vmem:[%s3 + $0x188] sm:$0xf]
  %v1165 = vld [vmem:[%s3 + $0x18c] sm:$0xf]
  %v1166 = vld [vmem:[%s3 + $0x190] sm:$0xf]
  %v1167 = vld [vmem:[%s3 + $0x194] sm:$0xf]
  %v1168 = vld [vmem:[%s3 + $0x198] sm:$0xf]
  %v1169 = vld [vmem:[%s3 + $0x19c] sm:$0xf]
  %v1170 = vld [vmem:[%s3 + $0x1a0] sm:$0xf]
  %v1171 = vld [vmem:[%s3 + $0x1a4] sm:$0xf]
  %v1172 = vld [vmem:[%s3 + $0x1a8] sm:$0xf]
  %v1173 = vld [vmem:[%s3 + $0x1ac] sm:$0xf]
  %v1174 = vld [vmem:[%s3 + $0x1b0] sm:$0xf]
  %v1175 = vld [vmem:[%s3 + $0x1b4] sm:$0xf]
  %v1176 = vld [vmem:[%s3 + $0x1b8] sm:$0xf]
  %v1177 = vld [vmem:[%s3 + $0x1bc] sm:$0xf]
  %v1178 = vld [vmem:[%s3 + $0x1c0] sm:$0xf]
  %v1179 = vld [vmem:[%s3 + $0x1c4] sm:$0xf]
  %v1180 = vld [vmem:[%s3 + $0x1c8] sm:$0xf]
  %v1181 = vld [vmem:[%s3 + $0x1cc] sm:$0xf]
  %v1182 = vld [vmem:[%s3 + $0x1d0] sm:$0xf]
  %v1183 = vld [vmem:[%s3 + $0x1d4] sm:$0xf]
  %v1184 = vld [vmem:[%s3 + $0x1d8] sm:$0xf]
  %v1185 = vld [vmem:[%s3 + $0x1dc] sm:$0xf]
  %v1186 = vld [vmem:[%s3 + $0x1e0] sm:$0xf]
  %v1187 = vld [vmem:[%s3 + $0x1e4] sm:$0xf]
  %v1188 = vld [vmem:[%s3 + $0x1e8] sm:$0xf]
  %v1189 = vld [vmem:[%s3 + $0x1ec] sm:$0xf]
  %v1190 = vld [vmem:[%s3 + $0x1f0] sm:$0xf]
  %v1191 = vld [vmem:[%s3 + $0x1f4] sm:$0xf]
  %v1192 = vld [vmem:[%s3 + $0x1f8] sm:$0xf]
  %v1193 = vld [vmem:[%s3 + $0x1fc] sm:$0xf]
  %v1194 = vld [vmem:[%s3 + $0x200] sm:$0xf]
  %v1195 = vld [vmem:[%s3 + $0x204] sm:$0xf]
  %v1196 = vld [vmem:[%s3 + $0x208] sm:$0xf]
  %v1197 = vld [vmem:[%s3 + $0x20c] sm:$0xf]
  %v1198 = vld [vmem:[%s3 + $0x210] sm:$0xf]
  %v1199 = vld [vmem:[%s3 + $0x214] sm:$0xf]
  %v1200 = vld [vmem:[%s3 + $0x218] sm:$0xf]
  %v1201 = vld [vmem:[%s3 + $0x21c] sm:$0xf]
  %v1202 = vld [vmem:[%s3 + $0x220] sm:$0xf]
  %v1203 = vld [vmem:[%s3 + $0x224] sm:$0xf]
  %v1204 = vld [vmem:[%s3 + $0x228] sm:$0xf]
  %v1205 = vld [vmem:[%s3 + $0x22c] sm:$0xf]
  %v1206 = vld [vmem:[%s3 + $0x230] sm:$0xf]
  %v1207 = vld [vmem:[%s3 + $0x234] sm:$0xf]
  %v1208 = vld [vmem:[%s3 + $0x238] sm:$0xf]
  %v1209 = vld [vmem:[%s3 + $0x23c] sm:$0xf]
  %v1226 = vunpack.c.l.b16 %v1082
  %v1227 = vunpack.c.l.b16 %v1083
  %v1228 = vunpack.c.l.b16 %v1084
  %v1229 = vunpack.c.l.b16 %v1085
  %v1230 = vunpack.c.l.b16 %v1086
  %v1231 = vunpack.c.l.b16 %v1087
  %v1232 = vunpack.c.l.b16 %v1088
  %v1233 = vunpack.c.l.b16 %v1089
  %v1234 = vunpack.c.l.b16 %v1090
  %v1235 = vunpack.c.l.b16 %v1091
  %v1236 = vunpack.c.l.b16 %v1092
  %v1237 = vunpack.c.l.b16 %v1093
  %v1238 = vunpack.c.l.b16 %v1094
  %v1239 = vunpack.c.l.b16 %v1095
  %v1240 = vunpack.c.l.b16 %v1096
  %v1241 = vunpack.c.l.b16 %v1097
  %v1242 = vpack.c.b16 %v1227, %v1226
  %v1243 = vpack.c.b16 %v1229, %v1228
  %v1244 = vpack.c.b16 %v1231, %v1230
  %v1245 = vpack.c.b16 %v1233, %v1232
  %v1246 = vpack.c.b16 %v1235, %v1234
  %v1247 = vpack.c.b16 %v1237, %v1236
  %v1248 = vpack.c.b16 %v1239, %v1238
  %v1249 = vpack.c.b16 %v1241, %v1240
  %1258 = vmatprep.subr.bf16.mxu0 0
  %1259 = vmatpush1.bf16.msra.mxu0 %v1249
  %1260 = vmatprep.subr.bf16.mxu0 0
  %1261 = vmatpush1.bf16.msra.mxu0 %v1248
  %1262 = vmatprep.subr.bf16.mxu0 0
  %1263 = vmatpush1.bf16.msra.mxu0 %v1247
  %1264 = vmatprep.subr.bf16.mxu0 0
  %1265 = vmatpush1.bf16.msra.mxu0 %v1246
  %1266 = vmatprep.subr.bf16.mxu0 0
  %1267 = vmatpush1.bf16.msra.mxu0 %v1245
  %1268 = vmatprep.subr.bf16.mxu0 0
  %1269 = vmatpush1.bf16.msra.mxu0 %v1244
  %1270 = vmatprep.subr.bf16.mxu0 0
  %1271 = vmatpush1.bf16.msra.mxu0 %v1243
  %1272 = vmatprep.subr.bf16.mxu0 0
  %1273 = vmatpush1.bf16.msra.mxu0 %v1242
  %1274 = vmatprep.subr.bf16.mxu0 0
  %1275 = vmatpush2.bf16.msra.mxu0 0
  %1276 = vmatprep.subr.bf16.mxu0 0
  %1277 = vmatpush2.bf16.msra.mxu0 0
  %1278 = vmatprep.subr.bf16.mxu0 0
  %1279 = vmatpush2.bf16.msra.mxu0 0
  %1280 = vmatprep.subr.bf16.mxu0 0
  %1281 = vmatpush2.bf16.msra.mxu0 0
  %1282 = vmatprep.subr.bf16.mxu0 0
  %1283 = vmatpush2.bf16.msra.mxu0 0
  %1284 = vmatprep.subr.bf16.mxu0 0
  %1285 = vmatpush2.bf16.msra.mxu0 0
  %1286 = vmatprep.subr.bf16.mxu0 0
  %1287 = vmatpush2.bf16.msra.mxu0 0
  %1288 = vmatprep.subr.bf16.mxu0 0
  %1289 = vmatpush2.bf16.msra.mxu0 0
  %1290 = vmatprep.mubr.bf16.mxu0 0
  %1291 = vmatmul.mubr.bf16.gmra.mxu0 %v799
  %v1292 = vpop.f32.mrf.mxu0
  %v1293 = vadd.f32 0.0, %v1292
  %v1294 = vpop.f32.mrf.mxu0
  %v1295 = vpop.f32.mrf.mxu0
  %v1296 = vadd.f32 0.0, %v1295
  %v1297 = vpop.f32.mrf.mxu0
  %1298 = vmatprep.mubr.bf16.mxu0 0
  %1299 = vmatmul.mubr.bf16.gmra.mxu0 %v800
  %v1300 = vpop.f32.mrf.mxu0
  %v1301 = vadd.f32 0.0, %v1300
  %v1302 = vpop.f32.mrf.mxu0
  %v1303 = vpop.f32.mrf.mxu0
  %v1304 = vadd.f32 0.0, %v1303
  %v1305 = vpop.f32.mrf.mxu0
  %1306 = vmatprep.mubr.bf16.mxu0 0
  %1307 = vmatmul.mubr.bf16.gmra.mxu0 %v801
  %v1308 = vpop.f32.mrf.mxu0
  %v1309 = vadd.f32 0.0, %v1308
  %v1310 = vpop.f32.mrf.mxu0
  %v1311 = vpop.f32.mrf.mxu0
  %v1312 = vadd.f32 0.0, %v1311
  %v1313 = vpop.f32.mrf.mxu0
  %1314 = vmatprep.mubr.bf16.mxu0 0
  %1315 = vmatmul.mubr.bf16.gmra.mxu0 %v802
  %v1316 = vpop.f32.mrf.mxu0
  %v1317 = vadd.f32 0.0, %v1316
  %v1318 = vpop.f32.mrf.mxu0
  %v1319 = vpop.f32.mrf.mxu0
  %v1320 = vadd.f32 0.0, %v1319
  %v1321 = vpop.f32.mrf.mxu0
  %1322 = vmatprep.mubr.bf16.mxu0 0
  %1323 = vmatmul.mubr.bf16.gmra.mxu0 %v803
  %v1324 = vpop.f32.mrf.mxu0
  %v1325 = vadd.f32 0.0, %v1324
  %v1326 = vpop.f32.mrf.mxu0
  %v1327 = vpop.f32.mrf.mxu0
  %v1328 = vadd.f32 0.0, %v1327
  %v1329 = vpop.f32.mrf.mxu0
  %1330 = vmatprep.mubr.bf16.mxu0 0
  %1331 = vmatmul.mubr.bf16.gmra.mxu0 %v804
  %v1332 = vpop.f32.mrf.mxu0
  %v1333 = vadd.f32 0.0, %v1332
  %v1334 = vpop.f32.mrf.mxu0
  %v1335 = vpop.f32.mrf.mxu0
  %v1336 = vadd.f32 0.0, %v1335
  %v1337 = vpop.f32.mrf.mxu0
  %1338 = vmatprep.mubr.bf16.mxu0 0
  %1339 = vmatmul.mubr.bf16.gmra.mxu0 %v805
  %v1340 = vpop.f32.mrf.mxu0
  %v1341 = vadd.f32 0.0, %v1340
  %v1342 = vpop.f32.mrf.mxu0
  %v1343 = vpop.f32.mrf.mxu0
  %v1344 = vadd.f32 0.0, %v1343
  %v1345 = vpop.f32.mrf.mxu0
  %1346 = vmatprep.mubr.bf16.mxu0 0
  %1347 = vmatmul.mubr.bf16.gmra.mxu0 %v806
  %v1348 = vpop.f32.mrf.mxu0
  %v1349 = vadd.f32 0.0, %v1348
  %v1350 = vpop.f32.mrf.mxu0
  %v1351 = vpop.f32.mrf.mxu0
  %v1352 = vadd.f32 0.0, %v1351
  %v1353 = vpop.f32.mrf.mxu0
  %1354 = vmatprep.mubr.bf16.mxu0 0
  %1355 = vmatmul.mubr.bf16.gmra.mxu0 %v807
  %v1356 = vpop.f32.mrf.mxu0
  %v1357 = vadd.f32 0.0, %v1356
  %v1358 = vpop.f32.mrf.mxu0
  %v1359 = vpop.f32.mrf.mxu0
  %v1360 = vadd.f32 0.0, %v1359
  %v1361 = vpop.f32.mrf.mxu0
  %1362 = vmatprep.mubr.bf16.mxu0 0
  %1363 = vmatmul.mubr.bf16.gmra.mxu0 %v808
  %v1364 = vpop.f32.mrf.mxu0
  %v1365 = vadd.f32 0.0, %v1364
  %v1366 = vpop.f32.mrf.mxu0
  %v1367 = vpop.f32.mrf.mxu0
  %v1368 = vadd.f32 0.0, %v1367
  %v1369 = vpop.f32.mrf.mxu0
  %1370 = vmatprep.mubr.bf16.mxu0 0
  %1371 = vmatmul.mubr.bf16.gmra.mxu0 %v809
  %v1372 = vpop.f32.mrf.mxu0
  %v1373 = vadd.f32 0.0, %v1372
  %v1374 = vpop.f32.mrf.mxu0
  %v1375 = vpop.f32.mrf.mxu0
  %v1376 = vadd.f32 0.0, %v1375
  %v1377 = vpop.f32.mrf.mxu0
  %1378 = vmatprep.mubr.bf16.mxu0 0
  %1379 = vmatmul.mubr.bf16.gmra.mxu0 %v810
  %v1380 = vpop.f32.mrf.mxu0
  %v1381 = vadd.f32 0.0, %v1380
  %v1382 = vpop.f32.mrf.mxu0
  %v1383 = vpop.f32.mrf.mxu0
  %v1384 = vadd.f32 0.0, %v1383
  %v1385 = vpop.f32.mrf.mxu0
  %1386 = vmatprep.mubr.bf16.mxu0 0
  %1387 = vmatmul.mubr.bf16.gmra.mxu0 %v811
  %v1388 = vpop.f32.mrf.mxu0
  %v1389 = vadd.f32 0.0, %v1388
  %v1390 = vpop.f32.mrf.mxu0
  %v1391 = vpop.f32.mrf.mxu0
  %v1392 = vadd.f32 0.0, %v1391
  %v1393 = vpop.f32.mrf.mxu0
  %1394 = vmatprep.mubr.bf16.mxu0 0
  %1395 = vmatmul.mubr.bf16.gmra.mxu0 %v812
  %v1396 = vpop.f32.mrf.mxu0
  %v1397 = vadd.f32 0.0, %v1396
  %v1398 = vpop.f32.mrf.mxu0
  %v1399 = vpop.f32.mrf.mxu0
  %v1400 = vadd.f32 0.0, %v1399
  %v1401 = vpop.f32.mrf.mxu0
  %1402 = vmatprep.mubr.bf16.mxu0 0
  %1403 = vmatmul.mubr.bf16.gmra.mxu0 %v813
  %v1404 = vpop.f32.mrf.mxu0
  %v1405 = vadd.f32 0.0, %v1404
  %v1406 = vpop.f32.mrf.mxu0
  %v1407 = vpop.f32.mrf.mxu0
  %v1408 = vadd.f32 0.0, %v1407
  %v1409 = vpop.f32.mrf.mxu0
  %1410 = vmatprep.mubr.bf16.mxu0 0
  %1411 = vmatmul.mubr.bf16.gmra.mxu0 %v814
  %v1412 = vpop.f32.mrf.mxu0
  %v1413 = vadd.f32 0.0, %v1412
  %v1414 = vpop.f32.mrf.mxu0
  %v1415 = vpop.f32.mrf.mxu0
  %v1416 = vadd.f32 0.0, %v1415
  %v1417 = vpop.f32.mrf.mxu0
  %1418 = vmatprep.mubr.bf16.mxu0 0
  %1419 = vmatmul.mubr.bf16.gmra.mxu0 %v799
  %v1420 = vpop.f32.mrf.mxu0
  %v1421 = vadd.f32 0.0, %v1420
  %v1422 = vpop.f32.mrf.mxu0
  %v1423 = vpop.f32.mrf.mxu0
  %v1424 = vadd.f32 0.0, %v1423
  %v1425 = vpop.f32.mrf.mxu0
  %1426 = vmatprep.mubr.bf16.mxu0 0
  %1427 = vmatmul.mubr.bf16.gmra.mxu0 %v816
  %v1428 = vpop.f32.mrf.mxu0
  %v1429 = vadd.f32 0.0, %v1428
  %v1430 = vpop.f32.mrf.mxu0
  %v1431 = vpop.f32.mrf.mxu0
  %v1432 = vadd.f32 0.0, %v1431
  %v1433 = vpop.f32.mrf.mxu0
  %1434 = vmatprep.mubr.bf16.mxu0 0
  %1435 = vmatmul.mubr.bf16.gmra.mxu0 %v817
  %v1436 = vpop.f32.mrf.mxu0
  %v1437 = vadd.f32 0.0, %v1436
  %v1438 = vpop.f32.mrf.mxu0
  %v1439 = vpop.f32.mrf.mxu0
  %v1440 = vadd.f32 0.0, %v1439
  %v1441 = vpop.f32.mrf.mxu0
  %1442 = vmatprep.mubr.bf16.mxu0 0
  %1443 = vmatmul.mubr.bf16.gmra.mxu0 %v818
  %v1444 = vpop.f32.mrf.mxu0
  %v1445 = vadd.f32 0.0, %v1444
  %v1446 = vpop.f32.mrf.mxu0
  %v1447 = vpop.f32.mrf.mxu0
  %v1448 = vadd.f32 0.0, %v1447
  %v1449 = vpop.f32.mrf.mxu0
  %1450 = vmatprep.mubr.bf16.mxu0 0
  %1451 = vmatmul.mubr.bf16.gmra.mxu0 %v819
  %v1452 = vpop.f32.mrf.mxu0
  %v1453 = vadd.f32 0.0, %v1452
  %v1454 = vpop.f32.mrf.mxu0
  %v1455 = vpop.f32.mrf.mxu0
  %v1456 = vadd.f32 0.0, %v1455
  %v1457 = vpop.f32.mrf.mxu0
  %1458 = vmatprep.mubr.bf16.mxu0 0
  %1459 = vmatmul.mubr.bf16.gmra.mxu0 %v820
  %v1460 = vpop.f32.mrf.mxu0
  %v1461 = vadd.f32 0.0, %v1460
  %v1462 = vpop.f32.mrf.mxu0
  %v1463 = vpop.f32.mrf.mxu0
  %v1464 = vadd.f32 0.0, %v1463
  %v1465 = vpop.f32.mrf.mxu0
  %1466 = vmatprep.mubr.bf16.mxu0 0
  %1467 = vmatmul.mubr.bf16.gmra.mxu0 %v821
  %v1468 = vpop.f32.mrf.mxu0
  %v1469 = vadd.f32 0.0, %v1468
  %v1470 = vpop.f32.mrf.mxu0
  %v1471 = vpop.f32.mrf.mxu0
  %v1472 = vadd.f32 0.0, %v1471
  %v1473 = vpop.f32.mrf.mxu0
  %1474 = vmatprep.mubr.bf16.mxu0 0
  %1475 = vmatmul.mubr.bf16.gmra.mxu0 %v822
  %v1476 = vpop.f32.mrf.mxu0
  %v1477 = vadd.f32 0.0, %v1476
  %v1478 = vpop.f32.mrf.mxu0
  %v1479 = vpop.f32.mrf.mxu0
  %v1480 = vadd.f32 0.0, %v1479
  %v1481 = vpop.f32.mrf.mxu0
  %1482 = vmatprep.mubr.bf16.mxu0 0
  %1483 = vmatmul.mubr.bf16.gmra.mxu0 %v823
  %v1484 = vpop.f32.mrf.mxu0
  %v1485 = vadd.f32 0.0, %v1484
  %v1486 = vpop.f32.mrf.mxu0
  %v1487 = vpop.f32.mrf.mxu0
  %v1488 = vadd.f32 0.0, %v1487
  %v1489 = vpop.f32.mrf.mxu0
  %1490 = vmatprep.mubr.bf16.mxu0 0
  %1491 = vmatmul.mubr.bf16.gmra.mxu0 %v824
  %v1492 = vpop.f32.mrf.mxu0
  %v1493 = vadd.f32 0.0, %v1492
  %v1494 = vpop.f32.mrf.mxu0
  %v1495 = vpop.f32.mrf.mxu0
  %v1496 = vadd.f32 0.0, %v1495
  %v1497 = vpop.f32.mrf.mxu0
  %1498 = vmatprep.mubr.bf16.mxu0 0
  %1499 = vmatmul.mubr.bf16.gmra.mxu0 %v825
  %v1500 = vpop.f32.mrf.mxu0
  %v1501 = vadd.f32 0.0, %v1500
  %v1502 = vpop.f32.mrf.mxu0
  %v1503 = vpop.f32.mrf.mxu0
  %v1504 = vadd.f32 0.0, %v1503
  %v1505 = vpop.f32.mrf.mxu0
  %1506 = vmatprep.mubr.bf16.mxu0 0
  %1507 = vmatmul.mubr.bf16.gmra.mxu0 %v826
  %v1508 = vpop.f32.mrf.mxu0
  %v1509 = vadd.f32 0.0, %v1508
  %v1510 = vpop.f32.mrf.mxu0
  %v1511 = vpop.f32.mrf.mxu0
  %v1512 = vadd.f32 0.0, %v1511
  %v1513 = vpop.f32.mrf.mxu0
  %1514 = vmatprep.mubr.bf16.mxu0 0
  %1515 = vmatmul.mubr.bf16.gmra.mxu0 %v827
  %v1516 = vpop.f32.mrf.mxu0
  %v1517 = vadd.f32 0.0, %v1516
  %v1518 = vpop.f32.mrf.mxu0
  %v1519 = vpop.f32.mrf.mxu0
  %v1520 = vadd.f32 0.0, %v1519
  %v1521 = vpop.f32.mrf.mxu0
  %1522 = vmatprep.mubr.bf16.mxu0 0
  %1523 = vmatmul.mubr.bf16.gmra.mxu0 %v828
  %v1524 = vpop.f32.mrf.mxu0
  %v1525 = vadd.f32 0.0, %v1524
  %v1526 = vpop.f32.mrf.mxu0
  %v1527 = vpop.f32.mrf.mxu0
  %v1528 = vadd.f32 0.0, %v1527
  %v1529 = vpop.f32.mrf.mxu0
  %1530 = vmatprep.mubr.bf16.mxu0 0
  %1531 = vmatmul.mubr.bf16.gmra.mxu0 %v829
  %v1532 = vpop.f32.mrf.mxu0
  %v1533 = vadd.f32 0.0, %v1532
  %v1534 = vpop.f32.mrf.mxu0
  %v1535 = vpop.f32.mrf.mxu0
  %v1536 = vadd.f32 0.0, %v1535
  %v1537 = vpop.f32.mrf.mxu0
  %1538 = vmatprep.mubr.bf16.mxu0 0
  %1539 = vmatmul.mubr.bf16.gmra.mxu0 %v830
  %v1540 = vpop.f32.mrf.mxu0
  %v1541 = vadd.f32 0.0, %v1540
  %v1542 = vpop.f32.mrf.mxu0
  %v1543 = vpop.f32.mrf.mxu0
  %v1544 = vadd.f32 0.0, %v1543
  %v1545 = vpop.f32.mrf.mxu0
  %1546 = vdwg.mxu0
  %v1563 = vunpack.c.l.b16 %v1066
  %v1564 = vunpack.c.l.b16 %v1067
  %v1565 = vunpack.c.l.b16 %v1068
  %v1566 = vunpack.c.l.b16 %v1069
  %v1567 = vunpack.c.l.b16 %v1070
  %v1568 = vunpack.c.l.b16 %v1071
  %v1569 = vunpack.c.l.b16 %v1072
  %v1570 = vunpack.c.l.b16 %v1073
  %v1571 = vunpack.c.l.b16 %v1074
  %v1572 = vunpack.c.l.b16 %v1075
  %v1573 = vunpack.c.l.b16 %v1076
  %v1574 = vunpack.c.l.b16 %v1077
  %v1575 = vunpack.c.l.b16 %v1078
  %v1576 = vunpack.c.l.b16 %v1079
  %v1577 = vunpack.c.l.b16 %v1080
  %v1578 = vunpack.c.l.b16 %v1081
  %v1579 = vpack.c.b16 %v1564, %v1563
  %v1580 = vpack.c.b16 %v1566, %v1565
  %v1581 = vpack.c.b16 %v1568, %v1567
  %v1582 = vpack.c.b16 %v1570, %v1569
  %v1583 = vpack.c.b16 %v1572, %v1571
  %v1584 = vpack.c.b16 %v1574, %v1573
  %v1585 = vpack.c.b16 %v1576, %v1575
  %v1586 = vpack.c.b16 %v1578, %v1577
  %1595 = vmatprep.subr.bf16.mxu0 0
  %1596 = vmatpush1.bf16.msra.mxu0 %v1586
  %1597 = vmatprep.subr.bf16.mxu0 0
  %1598 = vmatpush1.bf16.msra.mxu0 %v1585
  %1599 = vmatprep.subr.bf16.mxu0 0
  %1600 = vmatpush1.bf16.msra.mxu0 %v1584
  %1601 = vmatprep.subr.bf16.mxu0 0
  %1602 = vmatpush1.bf16.msra.mxu0 %v1583
  %1603 = vmatprep.subr.bf16.mxu0 0
  %1604 = vmatpush1.bf16.msra.mxu0 %v1582
  %1605 = vmatprep.subr.bf16.mxu0 0
  %1606 = vmatpush1.bf16.msra.mxu0 %v1581
  %1607 = vmatprep.subr.bf16.mxu0 0
  %1608 = vmatpush1.bf16.msra.mxu0 %v1580
  %1609 = vmatprep.subr.bf16.mxu0 0
  %1610 = vmatpush1.bf16.msra.mxu0 %v1579
  %1611 = vmatprep.subr.bf16.mxu0 0
  %1612 = vmatpush2.bf16.msra.mxu0 0
  %1613 = vmatprep.subr.bf16.mxu0 0
  %1614 = vmatpush2.bf16.msra.mxu0 0
  %1615 = vmatprep.subr.bf16.mxu0 0
  %1616 = vmatpush2.bf16.msra.mxu0 0
  %1617 = vmatprep.subr.bf16.mxu0 0
  %1618 = vmatpush2.bf16.msra.mxu0 0
  %1619 = vmatprep.subr.bf16.mxu0 0
  %1620 = vmatpush2.bf16.msra.mxu0 0
  %1621 = vmatprep.subr.bf16.mxu0 0
  %1622 = vmatpush2.bf16.msra.mxu0 0
  %1623 = vmatprep.subr.bf16.mxu0 0
  %1624 = vmatpush2.bf16.msra.mxu0 0
  %1625 = vmatprep.subr.bf16.mxu0 0
  %1626 = vmatpush2.bf16.msra.mxu0 0
  %1627 = vmatprep.mubr.bf16.mxu0 0
  %1628 = vmatmul.mubr.bf16.gmra.mxu0 %v766
  %v1629 = vpop.f32.mrf.mxu0
  %v1630 = vadd.f32 %v1293, %v1629
  %v1631 = vpop.f32.mrf.mxu0
  %v1632 = vpop.f32.mrf.mxu0
  %v1633 = vadd.f32 %v1296, %v1632
  %v1634 = vpop.f32.mrf.mxu0
  %1635 = vmatprep.mubr.bf16.mxu0 0
  %1636 = vmatmul.mubr.bf16.gmra.mxu0 %v767
  %v1637 = vpop.f32.mrf.mxu0
  %v1638 = vadd.f32 %v1301, %v1637
  %v1639 = vpop.f32.mrf.mxu0
  %v1640 = vpop.f32.mrf.mxu0
  %v1641 = vadd.f32 %v1304, %v1640
  %v1642 = vpop.f32.mrf.mxu0
  %1643 = vmatprep.mubr.bf16.mxu0 0
  %1644 = vmatmul.mubr.bf16.gmra.mxu0 %v768
  %v1645 = vpop.f32.mrf.mxu0
  %v1646 = vadd.f32 %v1309, %v1645
  %v1647 = vpop.f32.mrf.mxu0
  %v1648 = vpop.f32.mrf.mxu0
  %v1649 = vadd.f32 %v1312, %v1648
  %v1650 = vpop.f32.mrf.mxu0
  %1651 = vmatprep.mubr.bf16.mxu0 0
  %1652 = vmatmul.mubr.bf16.gmra.mxu0 %v769
  %v1653 = vpop.f32.mrf.mxu0
  %v1654 = vadd.f32 %v1317, %v1653
  %v1655 = vpop.f32.mrf.mxu0
  %v1656 = vpop.f32.mrf.mxu0
  %v1657 = vadd.f32 %v1320, %v1656
  %v1658 = vpop.f32.mrf.mxu0
  %1659 = vmatprep.mubr.bf16.mxu0 0
  %1660 = vmatmul.mubr.bf16.gmra.mxu0 %v770
  %v1661 = vpop.f32.mrf.mxu0
  %v1662 = vadd.f32 %v1325, %v1661
  %v1663 = vpop.f32.mrf.mxu0
  %v1664 = vpop.f32.mrf.mxu0
  %v1665 = vadd.f32 %v1328, %v1664
  %v1666 = vpop.f32.mrf.mxu0
  %1667 = vmatprep.mubr.bf16.mxu0 0
  %1668 = vmatmul.mubr.bf16.gmra.mxu0 %v771
  %v1669 = vpop.f32.mrf.mxu0
  %v1670 = vadd.f32 %v1333, %v1669
  %v1671 = vpop.f32.mrf.mxu0
  %v1672 = vpop.f32.mrf.mxu0
  %v1673 = vadd.f32 %v1336, %v1672
  %v1674 = vpop.f32.mrf.mxu0
  %1675 = vmatprep.mubr.bf16.mxu0 0
  %1676 = vmatmul.mubr.bf16.gmra.mxu0 %v772
  %v1677 = vpop.f32.mrf.mxu0
  %v1678 = vadd.f32 %v1341, %v1677
  %v1679 = vpop.f32.mrf.mxu0
  %v1680 = vpop.f32.mrf.mxu0
  %v1681 = vadd.f32 %v1344, %v1680
  %v1682 = vpop.f32.mrf.mxu0
  %1683 = vmatprep.mubr.bf16.mxu0 0
  %1684 = vmatmul.mubr.bf16.gmra.mxu0 %v773
  %v1685 = vpop.f32.mrf.mxu0
  %v1686 = vadd.f32 %v1349, %v1685
  %v1687 = vpop.f32.mrf.mxu0
  %v1688 = vpop.f32.mrf.mxu0
  %v1689 = vadd.f32 %v1352, %v1688
  %v1690 = vpop.f32.mrf.mxu0
  %1691 = vmatprep.mubr.bf16.mxu0 0
  %1692 = vmatmul.mubr.bf16.gmra.mxu0 %v774
  %v1693 = vpop.f32.mrf.mxu0
  %v1694 = vadd.f32 %v1357, %v1693
  %v1695 = vpop.f32.mrf.mxu0
  %v1696 = vpop.f32.mrf.mxu0
  %v1697 = vadd.f32 %v1360, %v1696
  %v1698 = vpop.f32.mrf.mxu0
  %1699 = vmatprep.mubr.bf16.mxu0 0
  %1700 = vmatmul.mubr.bf16.gmra.mxu0 %v775
  %v1701 = vpop.f32.mrf.mxu0
  %v1702 = vadd.f32 %v1365, %v1701
  %v1703 = vpop.f32.mrf.mxu0
  %v1704 = vpop.f32.mrf.mxu0
  %v1705 = vadd.f32 %v1368, %v1704
  %v1706 = vpop.f32.mrf.mxu0
  %1707 = vmatprep.mubr.bf16.mxu0 0
  %1708 = vmatmul.mubr.bf16.gmra.mxu0 %v776
  %v1709 = vpop.f32.mrf.mxu0
  %v1710 = vadd.f32 %v1373, %v1709
  %v1711 = vpop.f32.mrf.mxu0
  %v1712 = vpop.f32.mrf.mxu0
  %v1713 = vadd.f32 %v1376, %v1712
  %v1714 = vpop.f32.mrf.mxu0
  %1715 = vmatprep.mubr.bf16.mxu0 0
  %1716 = vmatmul.mubr.bf16.gmra.mxu0 %v777
  %v1717 = vpop.f32.mrf.mxu0
  %v1718 = vadd.f32 %v1381, %v1717
  %v1719 = vpop.f32.mrf.mxu0
  %v1720 = vpop.f32.mrf.mxu0
  %v1721 = vadd.f32 %v1384, %v1720
  %v1722 = vpop.f32.mrf.mxu0
  %1723 = vmatprep.mubr.bf16.mxu0 0
  %1724 = vmatmul.mubr.bf16.gmra.mxu0 %v778
  %v1725 = vpop.f32.mrf.mxu0
  %v1726 = vadd.f32 %v1389, %v1725
  %v1727 = vpop.f32.mrf.mxu0
  %v1728 = vpop.f32.mrf.mxu0
  %v1729 = vadd.f32 %v1392, %v1728
  %v1730 = vpop.f32.mrf.mxu0
  %1731 = vmatprep.mubr.bf16.mxu0 0
  %1732 = vmatmul.mubr.bf16.gmra.mxu0 %v779
  %v1733 = vpop.f32.mrf.mxu0
  %v1734 = vadd.f32 %v1397, %v1733
  %v1735 = vpop.f32.mrf.mxu0
  %v1736 = vpop.f32.mrf.mxu0
  %v1737 = vadd.f32 %v1400, %v1736
  %v1738 = vpop.f32.mrf.mxu0
  %1739 = vmatprep.mubr.bf16.mxu0 0
  %1740 = vmatmul.mubr.bf16.gmra.mxu0 %v780
  %v1741 = vpop.f32.mrf.mxu0
  %v1742 = vadd.f32 %v1405, %v1741
  %v1743 = vpop.f32.mrf.mxu0
  %v1744 = vpop.f32.mrf.mxu0
  %v1745 = vadd.f32 %v1408, %v1744
  %v1746 = vpop.f32.mrf.mxu0
  %1747 = vmatprep.mubr.bf16.mxu0 0
  %1748 = vmatmul.mubr.bf16.gmra.mxu0 %v781
  %v1749 = vpop.f32.mrf.mxu0
  %v1750 = vadd.f32 %v1413, %v1749
  %v1751 = vpop.f32.mrf.mxu0
  %v1752 = vpop.f32.mrf.mxu0
  %v1753 = vadd.f32 %v1416, %v1752
  %v1754 = vpop.f32.mrf.mxu0
  %1755 = vmatprep.mubr.bf16.mxu0 0
  %1756 = vmatmul.mubr.bf16.gmra.mxu0 %v766
  %v1757 = vpop.f32.mrf.mxu0
  %v1758 = vadd.f32 %v1421, %v1757
  %v1759 = vpop.f32.mrf.mxu0
  %v1760 = vpop.f32.mrf.mxu0
  %v1761 = vadd.f32 %v1424, %v1760
  %v1762 = vpop.f32.mrf.mxu0
  %1763 = vmatprep.mubr.bf16.mxu0 0
  %1764 = vmatmul.mubr.bf16.gmra.mxu0 %v783
  %v1765 = vpop.f32.mrf.mxu0
  %v1766 = vadd.f32 %v1429, %v1765
  %v1767 = vpop.f32.mrf.mxu0
  %v1768 = vpop.f32.mrf.mxu0
  %v1769 = vadd.f32 %v1432, %v1768
  %v1770 = vpop.f32.mrf.mxu0
  %1771 = vmatprep.mubr.bf16.mxu0 0
  %1772 = vmatmul.mubr.bf16.gmra.mxu0 %v784
  %v1773 = vpop.f32.mrf.mxu0
  %v1774 = vadd.f32 %v1437, %v1773
  %v1775 = vpop.f32.mrf.mxu0
  %v1776 = vpop.f32.mrf.mxu0
  %v1777 = vadd.f32 %v1440, %v1776
  %v1778 = vpop.f32.mrf.mxu0
  %1779 = vmatprep.mubr.bf16.mxu0 0
  %1780 = vmatmul.mubr.bf16.gmra.mxu0 %v785
  %v1781 = vpop.f32.mrf.mxu0
  %v1782 = vadd.f32 %v1445, %v1781
  %v1783 = vpop.f32.mrf.mxu0
  %v1784 = vpop.f32.mrf.mxu0
  %v1785 = vadd.f32 %v1448, %v1784
  %v1786 = vpop.f32.mrf.mxu0
  %1787 = vmatprep.mubr.bf16.mxu0 0
  %1788 = vmatmul.mubr.bf16.gmra.mxu0 %v786
  %v1789 = vpop.f32.mrf.mxu0
  %v1790 = vadd.f32 %v1453, %v1789
  %v1791 = vpop.f32.mrf.mxu0
  %v1792 = vpop.f32.mrf.mxu0
  %v1793 = vadd.f32 %v1456, %v1792
  %v1794 = vpop.f32.mrf.mxu0
  %1795 = vmatprep.mubr.bf16.mxu0 0
  %1796 = vmatmul.mubr.bf16.gmra.mxu0 %v787
  %v1797 = vpop.f32.mrf.mxu0
  %v1798 = vadd.f32 %v1461, %v1797
  %v1799 = vpop.f32.mrf.mxu0
  %v1800 = vpop.f32.mrf.mxu0
  %v1801 = vadd.f32 %v1464, %v1800
  %v1802 = vpop.f32.mrf.mxu0
  %1803 = vmatprep.mubr.bf16.mxu0 0
  %1804 = vmatmul.mubr.bf16.gmra.mxu0 %v788
  %v1805 = vpop.f32.mrf.mxu0
  %v1806 = vadd.f32 %v1469, %v1805
  %v1807 = vpop.f32.mrf.mxu0
  %v1808 = vpop.f32.mrf.mxu0
  %v1809 = vadd.f32 %v1472, %v1808
  %v1810 = vpop.f32.mrf.mxu0
  %1811 = vmatprep.mubr.bf16.mxu0 0
  %1812 = vmatmul.mubr.bf16.gmra.mxu0 %v789
  %v1813 = vpop.f32.mrf.mxu0
  %v1814 = vadd.f32 %v1477, %v1813
  %v1815 = vpop.f32.mrf.mxu0
  %v1816 = vpop.f32.mrf.mxu0
  %v1817 = vadd.f32 %v1480, %v1816
  %v1818 = vpop.f32.mrf.mxu0
  %1819 = vmatprep.mubr.bf16.mxu0 0
  %1820 = vmatmul.mubr.bf16.gmra.mxu0 %v790
  %v1821 = vpop.f32.mrf.mxu0
  %v1822 = vadd.f32 %v1485, %v1821
  %v1823 = vpop.f32.mrf.mxu0
  %v1824 = vpop.f32.mrf.mxu0
  %v1825 = vadd.f32 %v1488, %v1824
  %v1826 = vpop.f32.mrf.mxu0
  %1827 = vmatprep.mubr.bf16.mxu0 0
  %1828 = vmatmul.mubr.bf16.gmra.mxu0 %v791
  %v1829 = vpop.f32.mrf.mxu0
  %v1830 = vadd.f32 %v1493, %v1829
  %v1831 = vpop.f32.mrf.mxu0
  %v1832 = vpop.f32.mrf.mxu0
  %v1833 = vadd.f32 %v1496, %v1832
  %v1834 = vpop.f32.mrf.mxu0
  %1835 = vmatprep.mubr.bf16.mxu0 0
  %1836 = vmatmul.mubr.bf16.gmra.mxu0 %v792
  %v1837 = vpop.f32.mrf.mxu0
  %v1838 = vadd.f32 %v1501, %v1837
  %v1839 = vpop.f32.mrf.mxu0
  %v1840 = vpop.f32.mrf.mxu0
  %v1841 = vadd.f32 %v1504, %v1840
  %v1842 = vpop.f32.mrf.mxu0
  %1843 = vmatprep.mubr.bf16.mxu0 0
  %1844 = vmatmul.mubr.bf16.gmra.mxu0 %v793
  %v1845 = vpop.f32.mrf.mxu0
  %v1846 = vadd.f32 %v1509, %v1845
  %v1847 = vpop.f32.mrf.mxu0
  %v1848 = vpop.f32.mrf.mxu0
  %v1849 = vadd.f32 %v1512, %v1848
  %v1850 = vpop.f32.mrf.mxu0
  %1851 = vmatprep.mubr.bf16.mxu0 0
  %1852 = vmatmul.mubr.bf16.gmra.mxu0 %v794
  %v1853 = vpop.f32.mrf.mxu0
  %v1854 = vadd.f32 %v1517, %v1853
  %v1855 = vpop.f32.mrf.mxu0
  %v1856 = vpop.f32.mrf.mxu0
  %v1857 = vadd.f32 %v1520, %v1856
  %v1858 = vpop.f32.mrf.mxu0
  %1859 = vmatprep.mubr.bf16.mxu0 0
  %1860 = vmatmul.mubr.bf16.gmra.mxu0 %v795
  %v1861 = vpop.f32.mrf.mxu0
  %v1862 = vadd.f32 %v1525, %v1861
  %v1863 = vpop.f32.mrf.mxu0
  %v1864 = vpop.f32.mrf.mxu0
  %v1865 = vadd.f32 %v1528, %v1864
  %v1866 = vpop.f32.mrf.mxu0
  %1867 = vmatprep.mubr.bf16.mxu0 0
  %1868 = vmatmul.mubr.bf16.gmra.mxu0 %v796
  %v1869 = vpop.f32.mrf.mxu0
  %v1870 = vadd.f32 %v1533, %v1869
  %v1871 = vpop.f32.mrf.mxu0
  %v1872 = vpop.f32.mrf.mxu0
  %v1873 = vadd.f32 %v1536, %v1872
  %v1874 = vpop.f32.mrf.mxu0
  %1875 = vmatprep.mubr.bf16.mxu0 0
  %1876 = vmatmul.mubr.bf16.gmra.mxu0 %v797
  %v1877 = vpop.f32.mrf.mxu0
  %v1878 = vadd.f32 %v1541, %v1877
  %v1879 = vpop.f32.mrf.mxu0
  %v1880 = vpop.f32.mrf.mxu0
  %v1881 = vadd.f32 %v1544, %v1880
  %v1882 = vpop.f32.mrf.mxu0
  %1883 = vdwg.mxu0
  %v1900 = vunpack.c.l.b16 %v1098
  %v1901 = vunpack.c.l.b16 %v1099
  %v1902 = vunpack.c.l.b16 %v1100
  %v1903 = vunpack.c.l.b16 %v1101
  %v1904 = vunpack.c.l.b16 %v1102
  %v1905 = vunpack.c.l.b16 %v1103
  %v1906 = vunpack.c.l.b16 %v1104
  %v1907 = vunpack.c.l.b16 %v1105
  %v1908 = vunpack.c.l.b16 %v1106
  %v1909 = vunpack.c.l.b16 %v1107
  %v1910 = vunpack.c.l.b16 %v1108
  %v1911 = vunpack.c.l.b16 %v1109
  %v1912 = vunpack.c.l.b16 %v1110
  %v1913 = vunpack.c.l.b16 %v1111
  %v1914 = vunpack.c.l.b16 %v1112
  %v1915 = vunpack.c.l.b16 %v1113
  %v1916 = vpack.c.b16 %v1901, %v1900
  %v1917 = vpack.c.b16 %v1903, %v1902
  %v1918 = vpack.c.b16 %v1905, %v1904
  %v1919 = vpack.c.b16 %v1907, %v1906
  %v1920 = vpack.c.b16 %v1909, %v1908
  %v1921 = vpack.c.b16 %v1911, %v1910
  %v1922 = vpack.c.b16 %v1913, %v1912
  %v1923 = vpack.c.b16 %v1915, %v1914
  %1932 = vmatprep.subr.bf16.mxu0 0
  %1933 = vmatpush1.bf16.msra.mxu0 %v1923
  %1934 = vmatprep.subr.bf16.mxu0 0
  %1935 = vmatpush1.bf16.msra.mxu0 %v1922
  %1936 = vmatprep.subr.bf16.mxu0 0
  %1937 = vmatpush1.bf16.msra.mxu0 %v1921
  %1938 = vmatprep.subr.bf16.mxu0 0
  %1939 = vmatpush1.bf16.msra.mxu0 %v1920
  %1940 = vmatprep.subr.bf16.mxu0 0
  %1941 = vmatpush1.bf16.msra.mxu0 %v1919
  %1942 = vmatprep.subr.bf16.mxu0 0
  %1943 = vmatpush1.bf16.msra.mxu0 %v1918
  %1944 = vmatprep.subr.bf16.mxu0 0
  %1945 = vmatpush1.bf16.msra.mxu0 %v1917
  %1946 = vmatprep.subr.bf16.mxu0 0
  %1947 = vmatpush1.bf16.msra.mxu0 %v1916
  %1948 = vmatprep.subr.bf16.mxu0 0
  %1949 = vmatpush2.bf16.msra.mxu0 0
  %1950 = vmatprep.subr.bf16.mxu0 0
  %1951 = vmatpush2.bf16.msra.mxu0 0
  %1952 = vmatprep.subr.bf16.mxu0 0
  %1953 = vmatpush2.bf16.msra.mxu0 0
  %1954 = vmatprep.subr.bf16.mxu0 0
  %1955 = vmatpush2.bf16.msra.mxu0 0
  %1956 = vmatprep.subr.bf16.mxu0 0
  %1957 = vmatpush2.bf16.msra.mxu0 0
  %1958 = vmatprep.subr.bf16.mxu0 0
  %1959 = vmatpush2.bf16.msra.mxu0 0
  %1960 = vmatprep.subr.bf16.mxu0 0
  %1961 = vmatpush2.bf16.msra.mxu0 0
  %1962 = vmatprep.subr.bf16.mxu0 0
  %1963 = vmatpush2.bf16.msra.mxu0 0
  %1964 = vmatprep.mubr.bf16.mxu0 0
  %1965 = vmatmul.mubr.bf16.gmra.mxu0 %v1033
  %v1966 = vpop.f32.mrf.mxu0
  %v1967 = vadd.f32 0.0, %v1966
  %v1968 = vpop.f32.mrf.mxu0
  %v1969 = vpop.f32.mrf.mxu0
  %v1970 = vadd.f32 0.0, %v1969
  %v1971 = vpop.f32.mrf.mxu0
  %1972 = vmatprep.mubr.bf16.mxu0 0
  %1973 = vmatmul.mubr.bf16.gmra.mxu0 %v1034
  %v1974 = vpop.f32.mrf.mxu0
  %v1975 = vadd.f32 0.0, %v1974
  %v1976 = vpop.f32.mrf.mxu0
  %v1977 = vpop.f32.mrf.mxu0
  %v1978 = vadd.f32 0.0, %v1977
  %v1979 = vpop.f32.mrf.mxu0
  %1980 = vmatprep.mubr.bf16.mxu0 0
  %1981 = vmatmul.mubr.bf16.gmra.mxu0 %v1035
  %v1982 = vpop.f32.mrf.mxu0
  %v1983 = vadd.f32 0.0, %v1982
  %v1984 = vpop.f32.mrf.mxu0
  %v1985 = vpop.f32.mrf.mxu0
  %v1986 = vadd.f32 0.0, %v1985
  %v1987 = vpop.f32.mrf.mxu0
  %1988 = vmatprep.mubr.bf16.mxu0 0
  %1989 = vmatmul.mubr.bf16.gmra.mxu0 %v1036
  %v1990 = vpop.f32.mrf.mxu0
  %v1991 = vadd.f32 0.0, %v1990
  %v1992 = vpop.f32.mrf.mxu0
  %v1993 = vpop.f32.mrf.mxu0
  %v1994 = vadd.f32 0.0, %v1993
  %v1995 = vpop.f32.mrf.mxu0
  %1996 = vmatprep.mubr.bf16.mxu0 0
  %1997 = vmatmul.mubr.bf16.gmra.mxu0 %v1037
  %v1998 = vpop.f32.mrf.mxu0
  %v1999 = vadd.f32 0.0, %v1998
  %v2000 = vpop.f32.mrf.mxu0
  %v2001 = vpop.f32.mrf.mxu0
  %v2002 = vadd.f32 0.0, %v2001
  %v2003 = vpop.f32.mrf.mxu0
  %2004 = vmatprep.mubr.bf16.mxu0 0
  %2005 = vmatmul.mubr.bf16.gmra.mxu0 %v1038
  %v2006 = vpop.f32.mrf.mxu0
  %v2007 = vadd.f32 0.0, %v2006
  %v2008 = vpop.f32.mrf.mxu0
  %v2009 = vpop.f32.mrf.mxu0
  %v2010 = vadd.f32 0.0, %v2009
  %v2011 = vpop.f32.mrf.mxu0
  %2012 = vmatprep.mubr.bf16.mxu0 0
  %2013 = vmatmul.mubr.bf16.gmra.mxu0 %v1039
  %v2014 = vpop.f32.mrf.mxu0
  %v2015 = vadd.f32 0.0, %v2014
  %v2016 = vpop.f32.mrf.mxu0
  %v2017 = vpop.f32.mrf.mxu0
  %v2018 = vadd.f32 0.0, %v2017
  %v2019 = vpop.f32.mrf.mxu0
  %2020 = vmatprep.mubr.bf16.mxu0 0
  %2021 = vmatmul.mubr.bf16.gmra.mxu0 %v1040
  %v2022 = vpop.f32.mrf.mxu0
  %v2023 = vadd.f32 0.0, %v2022
  %v2024 = vpop.f32.mrf.mxu0
  %v2025 = vpop.f32.mrf.mxu0
  %v2026 = vadd.f32 0.0, %v2025
  %v2027 = vpop.f32.mrf.mxu0
  %2028 = vmatprep.mubr.bf16.mxu0 0
  %2029 = vmatmul.mubr.bf16.gmra.mxu0 %v1041
  %v2030 = vpop.f32.mrf.mxu0
  %v2031 = vadd.f32 0.0, %v2030
  %v2032 = vpop.f32.mrf.mxu0
  %v2033 = vpop.f32.mrf.mxu0
  %v2034 = vadd.f32 0.0, %v2033
  %v2035 = vpop.f32.mrf.mxu0
  %2036 = vmatprep.mubr.bf16.mxu0 0
  %2037 = vmatmul.mubr.bf16.gmra.mxu0 %v1042
  %v2038 = vpop.f32.mrf.mxu0
  %v2039 = vadd.f32 0.0, %v2038
  %v2040 = vpop.f32.mrf.mxu0
  %v2041 = vpop.f32.mrf.mxu0
  %v2042 = vadd.f32 0.0, %v2041
  %v2043 = vpop.f32.mrf.mxu0
  %2044 = vmatprep.mubr.bf16.mxu0 0
  %2045 = vmatmul.mubr.bf16.gmra.mxu0 %v1043
  %v2046 = vpop.f32.mrf.mxu0
  %v2047 = vadd.f32 0.0, %v2046
  %v2048 = vpop.f32.mrf.mxu0
  %v2049 = vpop.f32.mrf.mxu0
  %v2050 = vadd.f32 0.0, %v2049
  %v2051 = vpop.f32.mrf.mxu0
  %2052 = vmatprep.mubr.bf16.mxu0 0
  %2053 = vmatmul.mubr.bf16.gmra.mxu0 %v1044
  %v2054 = vpop.f32.mrf.mxu0
  %v2055 = vadd.f32 0.0, %v2054
  %v2056 = vpop.f32.mrf.mxu0
  %v2057 = vpop.f32.mrf.mxu0
  %v2058 = vadd.f32 0.0, %v2057
  %v2059 = vpop.f32.mrf.mxu0
  %2060 = vmatprep.mubr.bf16.mxu0 0
  %2061 = vmatmul.mubr.bf16.gmra.mxu0 %v1045
  %v2062 = vpop.f32.mrf.mxu0
  %v2063 = vadd.f32 0.0, %v2062
  %v2064 = vpop.f32.mrf.mxu0
  %v2065 = vpop.f32.mrf.mxu0
  %v2066 = vadd.f32 0.0, %v2065
  %v2067 = vpop.f32.mrf.mxu0
  %2068 = vmatprep.mubr.bf16.mxu0 0
  %2069 = vmatmul.mubr.bf16.gmra.mxu0 %v1046
  %v2070 = vpop.f32.mrf.mxu0
  %v2071 = vadd.f32 0.0, %v2070
  %v2072 = vpop.f32.mrf.mxu0
  %v2073 = vpop.f32.mrf.mxu0
  %v2074 = vadd.f32 0.0, %v2073
  %v2075 = vpop.f32.mrf.mxu0
  %2076 = vmatprep.mubr.bf16.mxu0 0
  %2077 = vmatmul.mubr.bf16.gmra.mxu0 %v1047
  %v2078 = vpop.f32.mrf.mxu0
  %v2079 = vadd.f32 0.0, %v2078
  %v2080 = vpop.f32.mrf.mxu0
  %v2081 = vpop.f32.mrf.mxu0
  %v2082 = vadd.f32 0.0, %v2081
  %v2083 = vpop.f32.mrf.mxu0
  %2084 = vmatprep.mubr.bf16.mxu0 0
  %2085 = vmatmul.mubr.bf16.gmra.mxu0 %v1048
  %v2086 = vpop.f32.mrf.mxu0
  %v2087 = vadd.f32 0.0, %v2086
  %v2088 = vpop.f32.mrf.mxu0
  %v2089 = vpop.f32.mrf.mxu0
  %v2090 = vadd.f32 0.0, %v2089
  %v2091 = vpop.f32.mrf.mxu0
  %2092 = vmatprep.mubr.bf16.mxu0 0
  %2093 = vmatmul.mubr.bf16.gmra.mxu0 %v1033
  %v2094 = vpop.f32.mrf.mxu0
  %v2095 = vadd.f32 0.0, %v2094
  %v2096 = vpop.f32.mrf.mxu0
  %v2097 = vpop.f32.mrf.mxu0
  %v2098 = vadd.f32 0.0, %v2097
  %v2099 = vpop.f32.mrf.mxu0
  %2100 = vmatprep.mubr.bf16.mxu0 0
  %2101 = vmatmul.mubr.bf16.gmra.mxu0 %v1050
  %v2102 = vpop.f32.mrf.mxu0
  %v2103 = vadd.f32 0.0, %v2102
  %v2104 = vpop.f32.mrf.mxu0
  %v2105 = vpop.f32.mrf.mxu0
  %v2106 = vadd.f32 0.0, %v2105
  %v2107 = vpop.f32.mrf.mxu0
  %2108 = vmatprep.mubr.bf16.mxu0 0
  %2109 = vmatmul.mubr.bf16.gmra.mxu0 %v1051
  %v2110 = vpop.f32.mrf.mxu0
  %v2111 = vadd.f32 0.0, %v2110
  %v2112 = vpop.f32.mrf.mxu0
  %v2113 = vpop.f32.mrf.mxu0
  %v2114 = vadd.f32 0.0, %v2113
  %v2115 = vpop.f32.mrf.mxu0
  %2116 = vmatprep.mubr.bf16.mxu0 0
  %2117 = vmatmul.mubr.bf16.gmra.mxu0 %v1052
  %v2118 = vpop.f32.mrf.mxu0
  %v2119 = vadd.f32 0.0, %v2118
  %v2120 = vpop.f32.mrf.mxu0
  %v2121 = vpop.f32.mrf.mxu0
  %v2122 = vadd.f32 0.0, %v2121
  %v2123 = vpop.f32.mrf.mxu0
  %2124 = vmatprep.mubr.bf16.mxu0 0
  %2125 = vmatmul.mubr.bf16.gmra.mxu0 %v1053
  %v2126 = vpop.f32.mrf.mxu0
  %v2127 = vadd.f32 0.0, %v2126
  %v2128 = vpop.f32.mrf.mxu0
  %v2129 = vpop.f32.mrf.mxu0
  %v2130 = vadd.f32 0.0, %v2129
  %v2131 = vpop.f32.mrf.mxu0
  %2132 = vmatprep.mubr.bf16.mxu0 0
  %2133 = vmatmul.mubr.bf16.gmra.mxu0 %v1054
  %v2134 = vpop.f32.mrf.mxu0
  %v2135 = vadd.f32 0.0, %v2134
  %v2136 = vpop.f32.mrf.mxu0
  %v2137 = vpop.f32.mrf.mxu0
  %v2138 = vadd.f32 0.0, %v2137
  %v2139 = vpop.f32.mrf.mxu0
  %2140 = vmatprep.mubr.bf16.mxu0 0
  %2141 = vmatmul.mubr.bf16.gmra.mxu0 %v1055
  %v2142 = vpop.f32.mrf.mxu0
  %v2143 = vadd.f32 0.0, %v2142
  %v2144 = vpop.f32.mrf.mxu0
  %v2145 = vpop.f32.mrf.mxu0
  %v2146 = vadd.f32 0.0, %v2145
  %v2147 = vpop.f32.mrf.mxu0
  %2148 = vmatprep.mubr.bf16.mxu0 0
  %2149 = vmatmul.mubr.bf16.gmra.mxu0 %v1056
  %v2150 = vpop.f32.mrf.mxu0
  %v2151 = vadd.f32 0.0, %v2150
  %v2152 = vpop.f32.mrf.mxu0
  %v2153 = vpop.f32.mrf.mxu0
  %v2154 = vadd.f32 0.0, %v2153
  %v2155 = vpop.f32.mrf.mxu0
  %2156 = vmatprep.mubr.bf16.mxu0 0
  %2157 = vmatmul.mubr.bf16.gmra.mxu0 %v1057
  %v2158 = vpop.f32.mrf.mxu0
  %v2159 = vadd.f32 0.0, %v2158
  %v2160 = vpop.f32.mrf.mxu0
  %v2161 = vpop.f32.mrf.mxu0
  %v2162 = vadd.f32 0.0, %v2161
  %v2163 = vpop.f32.mrf.mxu0
  %2164 = vmatprep.mubr.bf16.mxu0 0
  %2165 = vmatmul.mubr.bf16.gmra.mxu0 %v1058
  %v2166 = vpop.f32.mrf.mxu0
  %v2167 = vadd.f32 0.0, %v2166
  %v2168 = vpop.f32.mrf.mxu0
  %v2169 = vpop.f32.mrf.mxu0
  %v2170 = vadd.f32 0.0, %v2169
  %v2171 = vpop.f32.mrf.mxu0
  %2172 = vmatprep.mubr.bf16.mxu0 0
  %2173 = vmatmul.mubr.bf16.gmra.mxu0 %v1059
  %v2174 = vpop.f32.mrf.mxu0
  %v2175 = vadd.f32 0.0, %v2174
  %v2176 = vpop.f32.mrf.mxu0
  %v2177 = vpop.f32.mrf.mxu0
  %v2178 = vadd.f32 0.0, %v2177
  %v2179 = vpop.f32.mrf.mxu0
  %2180 = vmatprep.mubr.bf16.mxu0 0
  %2181 = vmatmul.mubr.bf16.gmra.mxu0 %v1060
  %v2182 = vpop.f32.mrf.mxu0
  %v2183 = vadd.f32 0.0, %v2182
  %v2184 = vpop.f32.mrf.mxu0
  %v2185 = vpop.f32.mrf.mxu0
  %v2186 = vadd.f32 0.0, %v2185
  %v2187 = vpop.f32.mrf.mxu0
  %2188 = vmatprep.mubr.bf16.mxu0 0
  %2189 = vmatmul.mubr.bf16.gmra.mxu0 %v1061
  %v2190 = vpop.f32.mrf.mxu0
  %v2191 = vadd.f32 0.0, %v2190
  %v2192 = vpop.f32.mrf.mxu0
  %v2193 = vpop.f32.mrf.mxu0
  %v2194 = vadd.f32 0.0, %v2193
  %v2195 = vpop.f32.mrf.mxu0
  %2196 = vmatprep.mubr.bf16.mxu0 0
  %2197 = vmatmul.mubr.bf16.gmra.mxu0 %v1062
  %v2198 = vpop.f32.mrf.mxu0
  %v2199 = vadd.f32 0.0, %v2198
  %v2200 = vpop.f32.mrf.mxu0
  %v2201 = vpop.f32.mrf.mxu0
  %v2202 = vadd.f32 0.0, %v2201
  %v2203 = vpop.f32.mrf.mxu0
  %2204 = vmatprep.mubr.bf16.mxu0 0
  %2205 = vmatmul.mubr.bf16.gmra.mxu0 %v1063
  %v2206 = vpop.f32.mrf.mxu0
  %v2207 = vadd.f32 0.0, %v2206
  %v2208 = vpop.f32.mrf.mxu0
  %v2209 = vpop.f32.mrf.mxu0
  %v2210 = vadd.f32 0.0, %v2209
  %v2211 = vpop.f32.mrf.mxu0
  %2212 = vmatprep.mubr.bf16.mxu0 0
  %2213 = vmatmul.mubr.bf16.gmra.mxu0 %v1064
  %v2214 = vpop.f32.mrf.mxu0
  %v2215 = vadd.f32 0.0, %v2214
  %v2216 = vpop.f32.mrf.mxu0
  %v2217 = vpop.f32.mrf.mxu0
  %v2218 = vadd.f32 0.0, %v2217
  %v2219 = vpop.f32.mrf.mxu0
  %2220 = vdwg.mxu0
  %v2221 = vadd.f32 %v1630, %v1967
  %v2222 = vadd.f32 %v1633, %v1970
  %v2223 = vadd.f32 %v1638, %v1975
  %v2224 = vadd.f32 %v1641, %v1978
  %v2225 = vadd.f32 %v1646, %v1983
  %v2226 = vadd.f32 %v1649, %v1986
  %v2227 = vadd.f32 %v1654, %v1991
  %v2228 = vadd.f32 %v1657, %v1994
  %v2229 = vadd.f32 %v1662, %v1999
  %v2230 = vadd.f32 %v1665, %v2002
  %v2231 = vadd.f32 %v1670, %v2007
  %v2232 = vadd.f32 %v1673, %v2010
  %v2233 = vadd.f32 %v1678, %v2015
  %v2234 = vadd.f32 %v1681, %v2018
  %v2235 = vadd.f32 %v1686, %v2023
  %v2236 = vadd.f32 %v1689, %v2026
  %v2237 = vadd.f32 %v1694, %v2031
  %v2238 = vadd.f32 %v1697, %v2034
  %v2239 = vadd.f32 %v1702, %v2039
  %v2240 = vadd.f32 %v1705, %v2042
  %v2241 = vadd.f32 %v1710, %v2047
  %v2242 = vadd.f32 %v1713, %v2050
  %v2243 = vadd.f32 %v1718, %v2055
  %v2244 = vadd.f32 %v1721, %v2058
  %v2245 = vadd.f32 %v1726, %v2063
  %v2246 = vadd.f32 %v1729, %v2066
  %v2247 = vadd.f32 %v1734, %v2071
  %v2248 = vadd.f32 %v1737, %v2074
  %v2249 = vadd.f32 %v1742, %v2079
  %v2250 = vadd.f32 %v1745, %v2082
  %v2251 = vadd.f32 %v1750, %v2087
  %v2252 = vadd.f32 %v1753, %v2090
  %v2253 = vadd.f32 %v1758, %v2095
  %v2254 = vadd.f32 %v1761, %v2098
  %v2255 = vadd.f32 %v1766, %v2103
  %v2256 = vadd.f32 %v1769, %v2106
  %v2257 = vadd.f32 %v1774, %v2111
  %v2258 = vadd.f32 %v1777, %v2114
  %v2259 = vadd.f32 %v1782, %v2119
  %v2260 = vadd.f32 %v1785, %v2122
  %v2261 = vadd.f32 %v1790, %v2127
  %v2262 = vadd.f32 %v1793, %v2130
  %v2263 = vadd.f32 %v1798, %v2135
  %v2264 = vadd.f32 %v1801, %v2138
  %v2265 = vadd.f32 %v1806, %v2143
  %v2266 = vadd.f32 %v1809, %v2146
  %v2267 = vadd.f32 %v1814, %v2151
  %v2268 = vadd.f32 %v1817, %v2154
  %v2269 = vadd.f32 %v1822, %v2159
  %v2270 = vadd.f32 %v1825, %v2162
  %v2271 = vadd.f32 %v1830, %v2167
  %v2272 = vadd.f32 %v1833, %v2170
  %v2273 = vadd.f32 %v1838, %v2175
  %v2274 = vadd.f32 %v1841, %v2178
  %v2275 = vadd.f32 %v1846, %v2183
  %v2276 = vadd.f32 %v1849, %v2186
  %v2277 = vadd.f32 %v1854, %v2191
  %v2278 = vadd.f32 %v1857, %v2194
  %v2279 = vadd.f32 %v1862, %v2199
  %v2280 = vadd.f32 %v1865, %v2202
  %v2281 = vadd.f32 %v1870, %v2207
  %v2282 = vadd.f32 %v1873, %v2210
  %v2283 = vadd.f32 %v1878, %v2215
  %v2284 = vadd.f32 %v1881, %v2218
  %v2301 = vunpack.c.l.b16 %v1114
  %v2302 = vunpack.c.l.b16 %v1115
  %v2303 = vunpack.c.l.b16 %v1116
  %v2304 = vunpack.c.l.b16 %v1117
  %v2305 = vunpack.c.l.b16 %v1118
  %v2306 = vunpack.c.l.b16 %v1119
  %v2307 = vunpack.c.l.b16 %v1120
  %v2308 = vunpack.c.l.b16 %v1121
  %v2309 = vunpack.c.l.b16 %v1122
  %v2310 = vunpack.c.l.b16 %v1123
  %v2311 = vunpack.c.l.b16 %v1124
  %v2312 = vunpack.c.l.b16 %v1125
  %v2313 = vunpack.c.l.b16 %v1126
  %v2314 = vunpack.c.l.b16 %v1127
  %v2315 = vunpack.c.l.b16 %v1128
  %v2316 = vunpack.c.l.b16 %v1129
  %v2317 = vpack.c.b16 %v2302, %v2301
  %v2318 = vpack.c.b16 %v2304, %v2303
  %v2319 = vpack.c.b16 %v2306, %v2305
  %v2320 = vpack.c.b16 %v2308, %v2307
  %v2321 = vpack.c.b16 %v2310, %v2309
  %v2322 = vpack.c.b16 %v2312, %v2311
  %v2323 = vpack.c.b16 %v2314, %v2313
  %v2324 = vpack.c.b16 %v2316, %v2315
  %2333 = vmatprep.subr.bf16.mxu0 0
  %2334 = vmatpush1.bf16.msra.mxu0 %v2324
  %2335 = vmatprep.subr.bf16.mxu0 0
  %2336 = vmatpush1.bf16.msra.mxu0 %v2323
  %2337 = vmatprep.subr.bf16.mxu0 0
  %2338 = vmatpush1.bf16.msra.mxu0 %v2322
  %2339 = vmatprep.subr.bf16.mxu0 0
  %2340 = vmatpush1.bf16.msra.mxu0 %v2321
  %2341 = vmatprep.subr.bf16.mxu0 0
  %2342 = vmatpush1.bf16.msra.mxu0 %v2320
  %2343 = vmatprep.subr.bf16.mxu0 0
  %2344 = vmatpush1.bf16.msra.mxu0 %v2319
  %2345 = vmatprep.subr.bf16.mxu0 0
  %2346 = vmatpush1.bf16.msra.mxu0 %v2318
  %2347 = vmatprep.subr.bf16.mxu0 0
  %2348 = vmatpush1.bf16.msra.mxu0 %v2317
  %2349 = vmatprep.subr.bf16.mxu0 0
  %2350 = vmatpush2.bf16.msra.mxu0 0
  %2351 = vmatprep.subr.bf16.mxu0 0
  %2352 = vmatpush2.bf16.msra.mxu0 0
  %2353 = vmatprep.subr.bf16.mxu0 0
  %2354 = vmatpush2.bf16.msra.mxu0 0
  %2355 = vmatprep.subr.bf16.mxu0 0
  %2356 = vmatpush2.bf16.msra.mxu0 0
  %2357 = vmatprep.subr.bf16.mxu0 0
  %2358 = vmatpush2.bf16.msra.mxu0 0
  %2359 = vmatprep.subr.bf16.mxu0 0
  %2360 = vmatpush2.bf16.msra.mxu0 0
  %2361 = vmatprep.subr.bf16.mxu0 0
  %2362 = vmatpush2.bf16.msra.mxu0 0
  %2363 = vmatprep.subr.bf16.mxu0 0
  %2364 = vmatpush2.bf16.msra.mxu0 0
  %2365 = vmatprep.mubr.bf16.mxu0 0
  %2366 = vmatmul.mubr.bf16.gmra.mxu0 %v767
  %v2367 = vpop.f32.mrf.mxu0
  %v2368 = vadd.f32 0.0, %v2367
  %v2369 = vpop.f32.mrf.mxu0
  %v2370 = vpop.f32.mrf.mxu0
  %v2371 = vadd.f32 0.0, %v2370
  %v2372 = vpop.f32.mrf.mxu0
  %2373 = vmatprep.mubr.bf16.mxu0 0
  %2374 = vmatmul.mubr.bf16.gmra.mxu0 %v768
  %v2375 = vpop.f32.mrf.mxu0
  %v2376 = vadd.f32 0.0, %v2375
  %v2377 = vpop.f32.mrf.mxu0
  %v2378 = vpop.f32.mrf.mxu0
  %v2379 = vadd.f32 0.0, %v2378
  %v2380 = vpop.f32.mrf.mxu0
  %2381 = vmatprep.mubr.bf16.mxu0 0
  %2382 = vmatmul.mubr.bf16.gmra.mxu0 %v769
  %v2383 = vpop.f32.mrf.mxu0
  %v2384 = vadd.f32 0.0, %v2383
  %v2385 = vpop.f32.mrf.mxu0
  %v2386 = vpop.f32.mrf.mxu0
  %v2387 = vadd.f32 0.0, %v2386
  %v2388 = vpop.f32.mrf.mxu0
  %2389 = vmatprep.mubr.bf16.mxu0 0
  %2390 = vmatmul.mubr.bf16.gmra.mxu0 %v770
  %v2391 = vpop.f32.mrf.mxu0
  %v2392 = vadd.f32 0.0, %v2391
  %v2393 = vpop.f32.mrf.mxu0
  %v2394 = vpop.f32.mrf.mxu0
  %v2395 = vadd.f32 0.0, %v2394
  %v2396 = vpop.f32.mrf.mxu0
  %2397 = vmatprep.mubr.bf16.mxu0 0
  %2398 = vmatmul.mubr.bf16.gmra.mxu0 %v771
  %v2399 = vpop.f32.mrf.mxu0
  %v2400 = vadd.f32 0.0, %v2399
  %v2401 = vpop.f32.mrf.mxu0
  %v2402 = vpop.f32.mrf.mxu0
  %v2403 = vadd.f32 0.0, %v2402
  %v2404 = vpop.f32.mrf.mxu0
  %2405 = vmatprep.mubr.bf16.mxu0 0
  %2406 = vmatmul.mubr.bf16.gmra.mxu0 %v772
  %v2407 = vpop.f32.mrf.mxu0
  %v2408 = vadd.f32 0.0, %v2407
  %v2409 = vpop.f32.mrf.mxu0
  %v2410 = vpop.f32.mrf.mxu0
  %v2411 = vadd.f32 0.0, %v2410
  %v2412 = vpop.f32.mrf.mxu0
  %2413 = vmatprep.mubr.bf16.mxu0 0
  %2414 = vmatmul.mubr.bf16.gmra.mxu0 %v773
  %v2415 = vpop.f32.mrf.mxu0
  %v2416 = vadd.f32 0.0, %v2415
  %v2417 = vpop.f32.mrf.mxu0
  %v2418 = vpop.f32.mrf.mxu0
  %v2419 = vadd.f32 0.0, %v2418
  %v2420 = vpop.f32.mrf.mxu0
  %2421 = vmatprep.mubr.bf16.mxu0 0
  %2422 = vmatmul.mubr.bf16.gmra.mxu0 %v774
  %v2423 = vpop.f32.mrf.mxu0
  %v2424 = vadd.f32 0.0, %v2423
  %v2425 = vpop.f32.mrf.mxu0
  %v2426 = vpop.f32.mrf.mxu0
  %v2427 = vadd.f32 0.0, %v2426
  %v2428 = vpop.f32.mrf.mxu0
  %2429 = vmatprep.mubr.bf16.mxu0 0
  %2430 = vmatmul.mubr.bf16.gmra.mxu0 %v775
  %v2431 = vpop.f32.mrf.mxu0
  %v2432 = vadd.f32 0.0, %v2431
  %v2433 = vpop.f32.mrf.mxu0
  %v2434 = vpop.f32.mrf.mxu0
  %v2435 = vadd.f32 0.0, %v2434
  %v2436 = vpop.f32.mrf.mxu0
  %2437 = vmatprep.mubr.bf16.mxu0 0
  %2438 = vmatmul.mubr.bf16.gmra.mxu0 %v776
  %v2439 = vpop.f32.mrf.mxu0
  %v2440 = vadd.f32 0.0, %v2439
  %v2441 = vpop.f32.mrf.mxu0
  %v2442 = vpop.f32.mrf.mxu0
  %v2443 = vadd.f32 0.0, %v2442
  %v2444 = vpop.f32.mrf.mxu0
  %2445 = vmatprep.mubr.bf16.mxu0 0
  %2446 = vmatmul.mubr.bf16.gmra.mxu0 %v777
  %v2447 = vpop.f32.mrf.mxu0
  %v2448 = vadd.f32 0.0, %v2447
  %v2449 = vpop.f32.mrf.mxu0
  %v2450 = vpop.f32.mrf.mxu0
  %v2451 = vadd.f32 0.0, %v2450
  %v2452 = vpop.f32.mrf.mxu0
  %2453 = vmatprep.mubr.bf16.mxu0 0
  %2454 = vmatmul.mubr.bf16.gmra.mxu0 %v778
  %v2455 = vpop.f32.mrf.mxu0
  %v2456 = vadd.f32 0.0, %v2455
  %v2457 = vpop.f32.mrf.mxu0
  %v2458 = vpop.f32.mrf.mxu0
  %v2459 = vadd.f32 0.0, %v2458
  %v2460 = vpop.f32.mrf.mxu0
  %2461 = vmatprep.mubr.bf16.mxu0 0
  %2462 = vmatmul.mubr.bf16.gmra.mxu0 %v779
  %v2463 = vpop.f32.mrf.mxu0
  %v2464 = vadd.f32 0.0, %v2463
  %v2465 = vpop.f32.mrf.mxu0
  %v2466 = vpop.f32.mrf.mxu0
  %v2467 = vadd.f32 0.0, %v2466
  %v2468 = vpop.f32.mrf.mxu0
  %2469 = vmatprep.mubr.bf16.mxu0 0
  %2470 = vmatmul.mubr.bf16.gmra.mxu0 %v780
  %v2471 = vpop.f32.mrf.mxu0
  %v2472 = vadd.f32 0.0, %v2471
  %v2473 = vpop.f32.mrf.mxu0
  %v2474 = vpop.f32.mrf.mxu0
  %v2475 = vadd.f32 0.0, %v2474
  %v2476 = vpop.f32.mrf.mxu0
  %2477 = vmatprep.mubr.bf16.mxu0 0
  %2478 = vmatmul.mubr.bf16.gmra.mxu0 %v781
  %v2479 = vpop.f32.mrf.mxu0
  %v2480 = vadd.f32 0.0, %v2479
  %v2481 = vpop.f32.mrf.mxu0
  %v2482 = vpop.f32.mrf.mxu0
  %v2483 = vadd.f32 0.0, %v2482
  %v2484 = vpop.f32.mrf.mxu0
  %2485 = vmatprep.mubr.bf16.mxu0 0
  %2486 = vmatmul.mubr.bf16.gmra.mxu0 %v782
  %v2487 = vpop.f32.mrf.mxu0
  %v2488 = vadd.f32 0.0, %v2487
  %v2489 = vpop.f32.mrf.mxu0
  %v2490 = vpop.f32.mrf.mxu0
  %v2491 = vadd.f32 0.0, %v2490
  %v2492 = vpop.f32.mrf.mxu0
  %2493 = vmatprep.mubr.bf16.mxu0 0
  %2494 = vmatmul.mubr.bf16.gmra.mxu0 %v783
  %v2495 = vpop.f32.mrf.mxu0
  %v2496 = vadd.f32 0.0, %v2495
  %v2497 = vpop.f32.mrf.mxu0
  %v2498 = vpop.f32.mrf.mxu0
  %v2499 = vadd.f32 0.0, %v2498
  %v2500 = vpop.f32.mrf.mxu0
  %2501 = vmatprep.mubr.bf16.mxu0 0
  %2502 = vmatmul.mubr.bf16.gmra.mxu0 %v784
  %v2503 = vpop.f32.mrf.mxu0
  %v2504 = vadd.f32 0.0, %v2503
  %v2505 = vpop.f32.mrf.mxu0
  %v2506 = vpop.f32.mrf.mxu0
  %v2507 = vadd.f32 0.0, %v2506
  %v2508 = vpop.f32.mrf.mxu0
  %2509 = vmatprep.mubr.bf16.mxu0 0
  %2510 = vmatmul.mubr.bf16.gmra.mxu0 %v785
  %v2511 = vpop.f32.mrf.mxu0
  %v2512 = vadd.f32 0.0, %v2511
  %v2513 = vpop.f32.mrf.mxu0
  %v2514 = vpop.f32.mrf.mxu0
  %v2515 = vadd.f32 0.0, %v2514
  %v2516 = vpop.f32.mrf.mxu0
  %2517 = vmatprep.mubr.bf16.mxu0 0
  %2518 = vmatmul.mubr.bf16.gmra.mxu0 %v786
  %v2519 = vpop.f32.mrf.mxu0
  %v2520 = vadd.f32 0.0, %v2519
  %v2521 = vpop.f32.mrf.mxu0
  %v2522 = vpop.f32.mrf.mxu0
  %v2523 = vadd.f32 0.0, %v2522
  %v2524 = vpop.f32.mrf.mxu0
  %2525 = vmatprep.mubr.bf16.mxu0 0
  %2526 = vmatmul.mubr.bf16.gmra.mxu0 %v787
  %v2527 = vpop.f32.mrf.mxu0
  %v2528 = vadd.f32 0.0, %v2527
  %v2529 = vpop.f32.mrf.mxu0
  %v2530 = vpop.f32.mrf.mxu0
  %v2531 = vadd.f32 0.0, %v2530
  %v2532 = vpop.f32.mrf.mxu0
  %2533 = vmatprep.mubr.bf16.mxu0 0
  %2534 = vmatmul.mubr.bf16.gmra.mxu0 %v788
  %v2535 = vpop.f32.mrf.mxu0
  %v2536 = vadd.f32 0.0, %v2535
  %v2537 = vpop.f32.mrf.mxu0
  %v2538 = vpop.f32.mrf.mxu0
  %v2539 = vadd.f32 0.0, %v2538
  %v2540 = vpop.f32.mrf.mxu0
  %2541 = vmatprep.mubr.bf16.mxu0 0
  %2542 = vmatmul.mubr.bf16.gmra.mxu0 %v789
  %v2543 = vpop.f32.mrf.mxu0
  %v2544 = vadd.f32 0.0, %v2543
  %v2545 = vpop.f32.mrf.mxu0
  %v2546 = vpop.f32.mrf.mxu0
  %v2547 = vadd.f32 0.0, %v2546
  %v2548 = vpop.f32.mrf.mxu0
  %2549 = vmatprep.mubr.bf16.mxu0 0
  %2550 = vmatmul.mubr.bf16.gmra.mxu0 %v790
  %v2551 = vpop.f32.mrf.mxu0
  %v2552 = vadd.f32 0.0, %v2551
  %v2553 = vpop.f32.mrf.mxu0
  %v2554 = vpop.f32.mrf.mxu0
  %v2555 = vadd.f32 0.0, %v2554
  %v2556 = vpop.f32.mrf.mxu0
  %2557 = vmatprep.mubr.bf16.mxu0 0
  %2558 = vmatmul.mubr.bf16.gmra.mxu0 %v791
  %v2559 = vpop.f32.mrf.mxu0
  %v2560 = vadd.f32 0.0, %v2559
  %v2561 = vpop.f32.mrf.mxu0
  %v2562 = vpop.f32.mrf.mxu0
  %v2563 = vadd.f32 0.0, %v2562
  %v2564 = vpop.f32.mrf.mxu0
  %2565 = vmatprep.mubr.bf16.mxu0 0
  %2566 = vmatmul.mubr.bf16.gmra.mxu0 %v792
  %v2567 = vpop.f32.mrf.mxu0
  %v2568 = vadd.f32 0.0, %v2567
  %v2569 = vpop.f32.mrf.mxu0
  %v2570 = vpop.f32.mrf.mxu0
  %v2571 = vadd.f32 0.0, %v2570
  %v2572 = vpop.f32.mrf.mxu0
  %2573 = vmatprep.mubr.bf16.mxu0 0
  %2574 = vmatmul.mubr.bf16.gmra.mxu0 %v793
  %v2575 = vpop.f32.mrf.mxu0
  %v2576 = vadd.f32 0.0, %v2575
  %v2577 = vpop.f32.mrf.mxu0
  %v2578 = vpop.f32.mrf.mxu0
  %v2579 = vadd.f32 0.0, %v2578
  %v2580 = vpop.f32.mrf.mxu0
  %2581 = vmatprep.mubr.bf16.mxu0 0
  %2582 = vmatmul.mubr.bf16.gmra.mxu0 %v794
  %v2583 = vpop.f32.mrf.mxu0
  %v2584 = vadd.f32 0.0, %v2583
  %v2585 = vpop.f32.mrf.mxu0
  %v2586 = vpop.f32.mrf.mxu0
  %v2587 = vadd.f32 0.0, %v2586
  %v2588 = vpop.f32.mrf.mxu0
  %2589 = vmatprep.mubr.bf16.mxu0 0
  %2590 = vmatmul.mubr.bf16.gmra.mxu0 %v795
  %v2591 = vpop.f32.mrf.mxu0
  %v2592 = vadd.f32 0.0, %v2591
  %v2593 = vpop.f32.mrf.mxu0
  %v2594 = vpop.f32.mrf.mxu0
  %v2595 = vadd.f32 0.0, %v2594
  %v2596 = vpop.f32.mrf.mxu0
  %2597 = vmatprep.mubr.bf16.mxu0 0
  %2598 = vmatmul.mubr.bf16.gmra.mxu0 %v796
  %v2599 = vpop.f32.mrf.mxu0
  %v2600 = vadd.f32 0.0, %v2599
  %v2601 = vpop.f32.mrf.mxu0
  %v2602 = vpop.f32.mrf.mxu0
  %v2603 = vadd.f32 0.0, %v2602
  %v2604 = vpop.f32.mrf.mxu0
  %2605 = vmatprep.mubr.bf16.mxu0 0
  %2606 = vmatmul.mubr.bf16.gmra.mxu0 %v797
  %v2607 = vpop.f32.mrf.mxu0
  %v2608 = vadd.f32 0.0, %v2607
  %v2609 = vpop.f32.mrf.mxu0
  %v2610 = vpop.f32.mrf.mxu0
  %v2611 = vadd.f32 0.0, %v2610
  %v2612 = vpop.f32.mrf.mxu0
  %2613 = vmatprep.mubr.bf16.mxu0 0
  %2614 = vmatmul.mubr.bf16.gmra.mxu0 %v798
  %v2615 = vpop.f32.mrf.mxu0
  %v2616 = vadd.f32 0.0, %v2615
  %v2617 = vpop.f32.mrf.mxu0
  %v2618 = vpop.f32.mrf.mxu0
  %v2619 = vadd.f32 0.0, %v2618
  %v2620 = vpop.f32.mrf.mxu0
  %2621 = vdwg.mxu0
  %v2622 = vadd.f32 %v2221, %v2368
  %v2623 = vadd.f32 %v2222, %v2371
  %v2624 = vadd.f32 %v2223, %v2376
  %v2625 = vadd.f32 %v2224, %v2379
  %v2626 = vadd.f32 %v2225, %v2384
  %v2627 = vadd.f32 %v2226, %v2387
  %v2628 = vadd.f32 %v2227, %v2392
  %v2629 = vadd.f32 %v2228, %v2395
  %v2630 = vadd.f32 %v2229, %v2400
  %v2631 = vadd.f32 %v2230, %v2403
  %v2632 = vadd.f32 %v2231, %v2408
  %v2633 = vadd.f32 %v2232, %v2411
  %v2634 = vadd.f32 %v2233, %v2416
  %v2635 = vadd.f32 %v2234, %v2419
  %v2636 = vadd.f32 %v2235, %v2424
  %v2637 = vadd.f32 %v2236, %v2427
  %v2638 = vadd.f32 %v2237, %v2432
  %v2639 = vadd.f32 %v2238, %v2435
  %v2640 = vadd.f32 %v2239, %v2440
  %v2641 = vadd.f32 %v2240, %v2443
  %v2642 = vadd.f32 %v2241, %v2448
  %v2643 = vadd.f32 %v2242, %v2451
  %v2644 = vadd.f32 %v2243, %v2456
  %v2645 = vadd.f32 %v2244, %v2459
  %v2646 = vadd.f32 %v2245, %v2464
  %v2647 = vadd.f32 %v2246, %v2467
  %v2648 = vadd.f32 %v2247, %v2472
  %v2649 = vadd.f32 %v2248, %v2475
  %v2650 = vadd.f32 %v2249, %v2480
  %v2651 = vadd.f32 %v2250, %v2483
  %v2652 = vadd.f32 %v2251, %v2488
  %v2653 = vadd.f32 %v2252, %v2491
  %v2654 = vadd.f32 %v2253, %v2496
  %v2655 = vadd.f32 %v2254, %v2499
  %v2656 = vadd.f32 %v2255, %v2504
  %v2657 = vadd.f32 %v2256, %v2507
  %v2658 = vadd.f32 %v2257, %v2512
  %v2659 = vadd.f32 %v2258, %v2515
  %v2660 = vadd.f32 %v2259, %v2520
  %v2661 = vadd.f32 %v2260, %v2523
  %v2662 = vadd.f32 %v2261, %v2528
  %v2663 = vadd.f32 %v2262, %v2531
  %v2664 = vadd.f32 %v2263, %v2536
  %v2665 = vadd.f32 %v2264, %v2539
  %v2666 = vadd.f32 %v2265, %v2544
  %v2667 = vadd.f32 %v2266, %v2547
  %v2668 = vadd.f32 %v2267, %v2552
  %v2669 = vadd.f32 %v2268, %v2555
  %v2670 = vadd.f32 %v2269, %v2560
  %v2671 = vadd.f32 %v2270, %v2563
  %v2672 = vadd.f32 %v2271, %v2568
  %v2673 = vadd.f32 %v2272, %v2571
  %v2674 = vadd.f32 %v2273, %v2576
  %v2675 = vadd.f32 %v2274, %v2579
  %v2676 = vadd.f32 %v2275, %v2584
  %v2677 = vadd.f32 %v2276, %v2587
  %v2678 = vadd.f32 %v2277, %v2592
  %v2679 = vadd.f32 %v2278, %v2595
  %v2680 = vadd.f32 %v2279, %v2600
  %v2681 = vadd.f32 %v2280, %v2603
  %v2682 = vadd.f32 %v2281, %v2608
  %v2683 = vadd.f32 %v2282, %v2611
  %v2684 = vadd.f32 %v2283, %v2616
  %v2685 = vadd.f32 %v2284, %v2619
  %v2702 = vunpack.c.l.b16 %v1130
  %v2703 = vunpack.c.l.b16 %v1131
  %v2704 = vunpack.c.l.b16 %v1132
  %v2705 = vunpack.c.l.b16 %v1133
  %v2706 = vunpack.c.l.b16 %v1134
  %v2707 = vunpack.c.l.b16 %v1135
  %v2708 = vunpack.c.l.b16 %v1136
  %v2709 = vunpack.c.l.b16 %v1137
  %v2710 = vunpack.c.l.b16 %v1138
  %v2711 = vunpack.c.l.b16 %v1139
  %v2712 = vunpack.c.l.b16 %v1140
  %v2713 = vunpack.c.l.b16 %v1141
  %v2714 = vunpack.c.l.b16 %v1142
  %v2715 = vunpack.c.l.b16 %v1143
  %v2716 = vunpack.c.l.b16 %v1144
  %v2717 = vunpack.c.l.b16 %v1145
  %v2718 = vpack.c.b16 %v2703, %v2702
  %v2719 = vpack.c.b16 %v2705, %v2704
  %v2720 = vpack.c.b16 %v2707, %v2706
  %v2721 = vpack.c.b16 %v2709, %v2708
  %v2722 = vpack.c.b16 %v2711, %v2710
  %v2723 = vpack.c.b16 %v2713, %v2712
  %v2724 = vpack.c.b16 %v2715, %v2714
  %v2725 = vpack.c.b16 %v2717, %v2716
  %2734 = vmatprep.subr.bf16.mxu0 0
  %2735 = vmatpush1.bf16.msra.mxu0 %v2725
  %2736 = vmatprep.subr.bf16.mxu0 0
  %2737 = vmatpush1.bf16.msra.mxu0 %v2724
  %2738 = vmatprep.subr.bf16.mxu0 0
  %2739 = vmatpush1.bf16.msra.mxu0 %v2723
  %2740 = vmatprep.subr.bf16.mxu0 0
  %2741 = vmatpush1.bf16.msra.mxu0 %v2722
  %2742 = vmatprep.subr.bf16.mxu0 0
  %2743 = vmatpush1.bf16.msra.mxu0 %v2721
  %2744 = vmatprep.subr.bf16.mxu0 0
  %2745 = vmatpush1.bf16.msra.mxu0 %v2720
  %2746 = vmatprep.subr.bf16.mxu0 0
  %2747 = vmatpush1.bf16.msra.mxu0 %v2719
  %2748 = vmatprep.subr.bf16.mxu0 0
  %2749 = vmatpush1.bf16.msra.mxu0 %v2718
  %2750 = vmatprep.subr.bf16.mxu0 0
  %2751 = vmatpush2.bf16.msra.mxu0 0
  %2752 = vmatprep.subr.bf16.mxu0 0
  %2753 = vmatpush2.bf16.msra.mxu0 0
  %2754 = vmatprep.subr.bf16.mxu0 0
  %2755 = vmatpush2.bf16.msra.mxu0 0
  %2756 = vmatprep.subr.bf16.mxu0 0
  %2757 = vmatpush2.bf16.msra.mxu0 0
  %2758 = vmatprep.subr.bf16.mxu0 0
  %2759 = vmatpush2.bf16.msra.mxu0 0
  %2760 = vmatprep.subr.bf16.mxu0 0
  %2761 = vmatpush2.bf16.msra.mxu0 0
  %2762 = vmatprep.subr.bf16.mxu0 0
  %2763 = vmatpush2.bf16.msra.mxu0 0
  %2764 = vmatprep.subr.bf16.mxu0 0
  %2765 = vmatpush2.bf16.msra.mxu0 0
  %2766 = vmatprep.mubr.bf16.mxu0 0
  %2767 = vmatmul.mubr.bf16.gmra.mxu0 %v800
  %v2768 = vpop.f32.mrf.mxu0
  %v2769 = vadd.f32 0.0, %v2768
  %v2770 = vpop.f32.mrf.mxu0
  %v2771 = vpop.f32.mrf.mxu0
  %v2772 = vadd.f32 0.0, %v2771
  %v2773 = vpop.f32.mrf.mxu0
  %2774 = vmatprep.mubr.bf16.mxu0 0
  %2775 = vmatmul.mubr.bf16.gmra.mxu0 %v801
  %v2776 = vpop.f32.mrf.mxu0
  %v2777 = vadd.f32 0.0, %v2776
  %v2778 = vpop.f32.mrf.mxu0
  %v2779 = vpop.f32.mrf.mxu0
  %v2780 = vadd.f32 0.0, %v2779
  %v2781 = vpop.f32.mrf.mxu0
  %2782 = vmatprep.mubr.bf16.mxu0 0
  %2783 = vmatmul.mubr.bf16.gmra.mxu0 %v802
  %v2784 = vpop.f32.mrf.mxu0
  %v2785 = vadd.f32 0.0, %v2784
  %v2786 = vpop.f32.mrf.mxu0
  %v2787 = vpop.f32.mrf.mxu0
  %v2788 = vadd.f32 0.0, %v2787
  %v2789 = vpop.f32.mrf.mxu0
  %2790 = vmatprep.mubr.bf16.mxu0 0
  %2791 = vmatmul.mubr.bf16.gmra.mxu0 %v803
  %v2792 = vpop.f32.mrf.mxu0
  %v2793 = vadd.f32 0.0, %v2792
  %v2794 = vpop.f32.mrf.mxu0
  %v2795 = vpop.f32.mrf.mxu0
  %v2796 = vadd.f32 0.0, %v2795
  %v2797 = vpop.f32.mrf.mxu0
  %2798 = vmatprep.mubr.bf16.mxu0 0
  %2799 = vmatmul.mubr.bf16.gmra.mxu0 %v804
  %v2800 = vpop.f32.mrf.mxu0
  %v2801 = vadd.f32 0.0, %v2800
  %v2802 = vpop.f32.mrf.mxu0
  %v2803 = vpop.f32.mrf.mxu0
  %v2804 = vadd.f32 0.0, %v2803
  %v2805 = vpop.f32.mrf.mxu0
  %2806 = vmatprep.mubr.bf16.mxu0 0
  %2807 = vmatmul.mubr.bf16.gmra.mxu0 %v805
  %v2808 = vpop.f32.mrf.mxu0
  %v2809 = vadd.f32 0.0, %v2808
  %v2810 = vpop.f32.mrf.mxu0
  %v2811 = vpop.f32.mrf.mxu0
  %v2812 = vadd.f32 0.0, %v2811
  %v2813 = vpop.f32.mrf.mxu0
  %2814 = vmatprep.mubr.bf16.mxu0 0
  %2815 = vmatmul.mubr.bf16.gmra.mxu0 %v806
  %v2816 = vpop.f32.mrf.mxu0
  %v2817 = vadd.f32 0.0, %v2816
  %v2818 = vpop.f32.mrf.mxu0
  %v2819 = vpop.f32.mrf.mxu0
  %v2820 = vadd.f32 0.0, %v2819
  %v2821 = vpop.f32.mrf.mxu0
  %2822 = vmatprep.mubr.bf16.mxu0 0
  %2823 = vmatmul.mubr.bf16.gmra.mxu0 %v807
  %v2824 = vpop.f32.mrf.mxu0
  %v2825 = vadd.f32 0.0, %v2824
  %v2826 = vpop.f32.mrf.mxu0
  %v2827 = vpop.f32.mrf.mxu0
  %v2828 = vadd.f32 0.0, %v2827
  %v2829 = vpop.f32.mrf.mxu0
  %2830 = vmatprep.mubr.bf16.mxu0 0
  %2831 = vmatmul.mubr.bf16.gmra.mxu0 %v808
  %v2832 = vpop.f32.mrf.mxu0
  %v2833 = vadd.f32 0.0, %v2832
  %v2834 = vpop.f32.mrf.mxu0
  %v2835 = vpop.f32.mrf.mxu0
  %v2836 = vadd.f32 0.0, %v2835
  %v2837 = vpop.f32.mrf.mxu0
  %2838 = vmatprep.mubr.bf16.mxu0 0
  %2839 = vmatmul.mubr.bf16.gmra.mxu0 %v809
  %v2840 = vpop.f32.mrf.mxu0
  %v2841 = vadd.f32 0.0, %v2840
  %v2842 = vpop.f32.mrf.mxu0
  %v2843 = vpop.f32.mrf.mxu0
  %v2844 = vadd.f32 0.0, %v2843
  %v2845 = vpop.f32.mrf.mxu0
  %2846 = vmatprep.mubr.bf16.mxu0 0
  %2847 = vmatmul.mubr.bf16.gmra.mxu0 %v810
  %v2848 = vpop.f32.mrf.mxu0
  %v2849 = vadd.f32 0.0, %v2848
  %v2850 = vpop.f32.mrf.mxu0
  %v2851 = vpop.f32.mrf.mxu0
  %v2852 = vadd.f32 0.0, %v2851
  %v2853 = vpop.f32.mrf.mxu0
  %2854 = vmatprep.mubr.bf16.mxu0 0
  %2855 = vmatmul.mubr.bf16.gmra.mxu0 %v811
  %v2856 = vpop.f32.mrf.mxu0
  %v2857 = vadd.f32 0.0, %v2856
  %v2858 = vpop.f32.mrf.mxu0
  %v2859 = vpop.f32.mrf.mxu0
  %v2860 = vadd.f32 0.0, %v2859
  %v2861 = vpop.f32.mrf.mxu0
  %2862 = vmatprep.mubr.bf16.mxu0 0
  %2863 = vmatmul.mubr.bf16.gmra.mxu0 %v812
  %v2864 = vpop.f32.mrf.mxu0
  %v2865 = vadd.f32 0.0, %v2864
  %v2866 = vpop.f32.mrf.mxu0
  %v2867 = vpop.f32.mrf.mxu0
  %v2868 = vadd.f32 0.0, %v2867
  %v2869 = vpop.f32.mrf.mxu0
  %2870 = vmatprep.mubr.bf16.mxu0 0
  %2871 = vmatmul.mubr.bf16.gmra.mxu0 %v813
  %v2872 = vpop.f32.mrf.mxu0
  %v2873 = vadd.f32 0.0, %v2872
  %v2874 = vpop.f32.mrf.mxu0
  %v2875 = vpop.f32.mrf.mxu0
  %v2876 = vadd.f32 0.0, %v2875
  %v2877 = vpop.f32.mrf.mxu0
  %2878 = vmatprep.mubr.bf16.mxu0 0
  %2879 = vmatmul.mubr.bf16.gmra.mxu0 %v814
  %v2880 = vpop.f32.mrf.mxu0
  %v2881 = vadd.f32 0.0, %v2880
  %v2882 = vpop.f32.mrf.mxu0
  %v2883 = vpop.f32.mrf.mxu0
  %v2884 = vadd.f32 0.0, %v2883
  %v2885 = vpop.f32.mrf.mxu0
  %2886 = vmatprep.mubr.bf16.mxu0 0
  %2887 = vmatmul.mubr.bf16.gmra.mxu0 %v815
  %v2888 = vpop.f32.mrf.mxu0
  %v2889 = vadd.f32 0.0, %v2888
  %v2890 = vpop.f32.mrf.mxu0
  %v2891 = vpop.f32.mrf.mxu0
  %v2892 = vadd.f32 0.0, %v2891
  %v2893 = vpop.f32.mrf.mxu0
  %2894 = vmatprep.mubr.bf16.mxu0 0
  %2895 = vmatmul.mubr.bf16.gmra.mxu0 %v816
  %v2896 = vpop.f32.mrf.mxu0
  %v2897 = vadd.f32 0.0, %v2896
  %v2898 = vpop.f32.mrf.mxu0
  %v2899 = vpop.f32.mrf.mxu0
  %v2900 = vadd.f32 0.0, %v2899
  %v2901 = vpop.f32.mrf.mxu0
  %2902 = vmatprep.mubr.bf16.mxu0 0
  %2903 = vmatmul.mubr.bf16.gmra.mxu0 %v817
  %v2904 = vpop.f32.mrf.mxu0
  %v2905 = vadd.f32 0.0, %v2904
  %v2906 = vpop.f32.mrf.mxu0
  %v2907 = vpop.f32.mrf.mxu0
  %v2908 = vadd.f32 0.0, %v2907
  %v2909 = vpop.f32.mrf.mxu0
  %2910 = vmatprep.mubr.bf16.mxu0 0
  %2911 = vmatmul.mubr.bf16.gmra.mxu0 %v818
  %v2912 = vpop.f32.mrf.mxu0
  %v2913 = vadd.f32 0.0, %v2912
  %v2914 = vpop.f32.mrf.mxu0
  %v2915 = vpop.f32.mrf.mxu0
  %v2916 = vadd.f32 0.0, %v2915
  %v2917 = vpop.f32.mrf.mxu0
  %2918 = vmatprep.mubr.bf16.mxu0 0
  %2919 = vmatmul.mubr.bf16.gmra.mxu0 %v819
  %v2920 = vpop.f32.mrf.mxu0
  %v2921 = vadd.f32 0.0, %v2920
  %v2922 = vpop.f32.mrf.mxu0
  %v2923 = vpop.f32.mrf.mxu0
  %v2924 = vadd.f32 0.0, %v2923
  %v2925 = vpop.f32.mrf.mxu0
  %2926 = vmatprep.mubr.bf16.mxu0 0
  %2927 = vmatmul.mubr.bf16.gmra.mxu0 %v820
  %v2928 = vpop.f32.mrf.mxu0
  %v2929 = vadd.f32 0.0, %v2928
  %v2930 = vpop.f32.mrf.mxu0
  %v2931 = vpop.f32.mrf.mxu0
  %v2932 = vadd.f32 0.0, %v2931
  %v2933 = vpop.f32.mrf.mxu0
  %2934 = vmatprep.mubr.bf16.mxu0 0
  %2935 = vmatmul.mubr.bf16.gmra.mxu0 %v821
  %v2936 = vpop.f32.mrf.mxu0
  %v2937 = vadd.f32 0.0, %v2936
  %v2938 = vpop.f32.mrf.mxu0
  %v2939 = vpop.f32.mrf.mxu0
  %v2940 = vadd.f32 0.0, %v2939
  %v2941 = vpop.f32.mrf.mxu0
  %2942 = vmatprep.mubr.bf16.mxu0 0
  %2943 = vmatmul.mubr.bf16.gmra.mxu0 %v822
  %v2944 = vpop.f32.mrf.mxu0
  %v2945 = vadd.f32 0.0, %v2944
  %v2946 = vpop.f32.mrf.mxu0
  %v2947 = vpop.f32.mrf.mxu0
  %v2948 = vadd.f32 0.0, %v2947
  %v2949 = vpop.f32.mrf.mxu0
  %2950 = vmatprep.mubr.bf16.mxu0 0
  %2951 = vmatmul.mubr.bf16.gmra.mxu0 %v823
  %v2952 = vpop.f32.mrf.mxu0
  %v2953 = vadd.f32 0.0, %v2952
  %v2954 = vpop.f32.mrf.mxu0
  %v2955 = vpop.f32.mrf.mxu0
  %v2956 = vadd.f32 0.0, %v2955
  %v2957 = vpop.f32.mrf.mxu0
  %2958 = vmatprep.mubr.bf16.mxu0 0
  %2959 = vmatmul.mubr.bf16.gmra.mxu0 %v824
  %v2960 = vpop.f32.mrf.mxu0
  %v2961 = vadd.f32 0.0, %v2960
  %v2962 = vpop.f32.mrf.mxu0
  %v2963 = vpop.f32.mrf.mxu0
  %v2964 = vadd.f32 0.0, %v2963
  %v2965 = vpop.f32.mrf.mxu0
  %2966 = vmatprep.mubr.bf16.mxu0 0
  %2967 = vmatmul.mubr.bf16.gmra.mxu0 %v825
  %v2968 = vpop.f32.mrf.mxu0
  %v2969 = vadd.f32 0.0, %v2968
  %v2970 = vpop.f32.mrf.mxu0
  %v2971 = vpop.f32.mrf.mxu0
  %v2972 = vadd.f32 0.0, %v2971
  %v2973 = vpop.f32.mrf.mxu0
  %2974 = vmatprep.mubr.bf16.mxu0 0
  %2975 = vmatmul.mubr.bf16.gmra.mxu0 %v826
  %v2976 = vpop.f32.mrf.mxu0
  %v2977 = vadd.f32 0.0, %v2976
  %v2978 = vpop.f32.mrf.mxu0
  %v2979 = vpop.f32.mrf.mxu0
  %v2980 = vadd.f32 0.0, %v2979
  %v2981 = vpop.f32.mrf.mxu0
  %2982 = vmatprep.mubr.bf16.mxu0 0
  %2983 = vmatmul.mubr.bf16.gmra.mxu0 %v827
  %v2984 = vpop.f32.mrf.mxu0
  %v2985 = vadd.f32 0.0, %v2984
  %v2986 = vpop.f32.mrf.mxu0
  %v2987 = vpop.f32.mrf.mxu0
  %v2988 = vadd.f32 0.0, %v2987
  %v2989 = vpop.f32.mrf.mxu0
  %2990 = vmatprep.mubr.bf16.mxu0 0
  %2991 = vmatmul.mubr.bf16.gmra.mxu0 %v828
  %v2992 = vpop.f32.mrf.mxu0
  %v2993 = vadd.f32 0.0, %v2992
  %v2994 = vpop.f32.mrf.mxu0
  %v2995 = vpop.f32.mrf.mxu0
  %v2996 = vadd.f32 0.0, %v2995
  %v2997 = vpop.f32.mrf.mxu0
  %2998 = vmatprep.mubr.bf16.mxu0 0
  %2999 = vmatmul.mubr.bf16.gmra.mxu0 %v829
  %v3000 = vpop.f32.mrf.mxu0
  %v3001 = vadd.f32 0.0, %v3000
  %v3002 = vpop.f32.mrf.mxu0
  %v3003 = vpop.f32.mrf.mxu0
  %v3004 = vadd.f32 0.0, %v3003
  %v3005 = vpop.f32.mrf.mxu0
  %3006 = vmatprep.mubr.bf16.mxu0 0
  %3007 = vmatmul.mubr.bf16.gmra.mxu0 %v830
  %v3008 = vpop.f32.mrf.mxu0
  %v3009 = vadd.f32 0.0, %v3008
  %v3010 = vpop.f32.mrf.mxu0
  %v3011 = vpop.f32.mrf.mxu0
  %v3012 = vadd.f32 0.0, %v3011
  %v3013 = vpop.f32.mrf.mxu0
  %3014 = vmatprep.mubr.bf16.mxu0 0
  %3015 = vmatmul.mubr.bf16.gmra.mxu0 %v831
  %v3016 = vpop.f32.mrf.mxu0
  %v3017 = vadd.f32 0.0, %v3016
  %v3018 = vpop.f32.mrf.mxu0
  %v3019 = vpop.f32.mrf.mxu0
  %v3020 = vadd.f32 0.0, %v3019
  %v3021 = vpop.f32.mrf.mxu0
  %3022 = vdwg.mxu0
  %v3023 = vadd.f32 %v2622, %v2769
  %v3024 = vadd.f32 %v2623, %v2772
  %v3025 = vadd.f32 %v2624, %v2777
  %v3026 = vadd.f32 %v2625, %v2780
  %v3027 = vadd.f32 %v2626, %v2785
  %v3028 = vadd.f32 %v2627, %v2788
  %v3029 = vadd.f32 %v2628, %v2793
  %v3030 = vadd.f32 %v2629, %v2796
  %v3031 = vadd.f32 %v2630, %v2801
  %v3032 = vadd.f32 %v2631, %v2804
  %v3033 = vadd.f32 %v2632, %v2809
  %v3034 = vadd.f32 %v2633, %v2812
  %v3035 = vadd.f32 %v2634, %v2817
  %v3036 = vadd.f32 %v2635, %v2820
  %v3037 = vadd.f32 %v2636, %v2825
  %v3038 = vadd.f32 %v2637, %v2828
  %v3039 = vadd.f32 %v2638, %v2833
  %v3040 = vadd.f32 %v2639, %v2836
  %v3041 = vadd.f32 %v2640, %v2841
  %v3042 = vadd.f32 %v2641, %v2844
  %v3043 = vadd.f32 %v2642, %v2849
  %v3044 = vadd.f32 %v2643, %v2852
  %v3045 = vadd.f32 %v2644, %v2857
  %v3046 = vadd.f32 %v2645, %v2860
  %v3047 = vadd.f32 %v2646, %v2865
  %v3048 = vadd.f32 %v2647, %v2868
  %v3049 = vadd.f32 %v2648, %v2873
  %v3050 = vadd.f32 %v2649, %v2876
  %v3051 = vadd.f32 %v2650, %v2881
  %v3052 = vadd.f32 %v2651, %v2884
  %v3053 = vadd.f32 %v2652, %v2889
  %v3054 = vadd.f32 %v2653, %v2892
  %v3055 = vadd.f32 %v2654, %v2897
  %v3056 = vadd.f32 %v2655, %v2900
  %v3057 = vadd.f32 %v2656, %v2905
  %v3058 = vadd.f32 %v2657, %v2908
  %v3059 = vadd.f32 %v2658, %v2913
  %v3060 = vadd.f32 %v2659, %v2916
  %v3061 = vadd.f32 %v2660, %v2921
  %v3062 = vadd.f32 %v2661, %v2924
  %v3063 = vadd.f32 %v2662, %v2929
  %v3064 = vadd.f32 %v2663, %v2932
  %v3065 = vadd.f32 %v2664, %v2937
  %v3066 = vadd.f32 %v2665, %v2940
  %v3067 = vadd.f32 %v2666, %v2945
  %v3068 = vadd.f32 %v2667, %v2948
  %v3069 = vadd.f32 %v2668, %v2953
  %v3070 = vadd.f32 %v2669, %v2956
  %v3071 = vadd.f32 %v2670, %v2961
  %v3072 = vadd.f32 %v2671, %v2964
  %v3073 = vadd.f32 %v2672, %v2969
  %v3074 = vadd.f32 %v2673, %v2972
  %v3075 = vadd.f32 %v2674, %v2977
  %v3076 = vadd.f32 %v2675, %v2980
  %v3077 = vadd.f32 %v2676, %v2985
  %v3078 = vadd.f32 %v2677, %v2988
  %v3079 = vadd.f32 %v2678, %v2993
  %v3080 = vadd.f32 %v2679, %v2996
  %v3081 = vadd.f32 %v2680, %v3001
  %v3082 = vadd.f32 %v2681, %v3004
  %v3083 = vadd.f32 %v2682, %v3009
  %v3084 = vadd.f32 %v2683, %v3012
  %v3085 = vadd.f32 %v2684, %v3017
  %v3086 = vadd.f32 %v2685, %v3020
  %v3103 = vunpack.c.l.b16 %v1146
  %v3104 = vunpack.c.l.b16 %v1147
  %v3105 = vunpack.c.l.b16 %v1148
  %v3106 = vunpack.c.l.b16 %v1149
  %v3107 = vunpack.c.l.b16 %v1150
  %v3108 = vunpack.c.l.b16 %v1151
  %v3109 = vunpack.c.l.b16 %v1152
  %v3110 = vunpack.c.l.b16 %v1153
  %v3111 = vunpack.c.l.b16 %v1154
  %v3112 = vunpack.c.l.b16 %v1155
  %v3113 = vunpack.c.l.b16 %v1156
  %v3114 = vunpack.c.l.b16 %v1157
  %v3115 = vunpack.c.l.b16 %v1158
  %v3116 = vunpack.c.l.b16 %v1159
  %v3117 = vunpack.c.l.b16 %v1160
  %v3118 = vunpack.c.l.b16 %v1161
  %v3119 = vpack.c.b16 %v3104, %v3103
  %v3120 = vpack.c.b16 %v3106, %v3105
  %v3121 = vpack.c.b16 %v3108, %v3107
  %v3122 = vpack.c.b16 %v3110, %v3109
  %v3123 = vpack.c.b16 %v3112, %v3111
  %v3124 = vpack.c.b16 %v3114, %v3113
  %v3125 = vpack.c.b16 %v3116, %v3115
  %v3126 = vpack.c.b16 %v3118, %v3117
  %3135 = vmatprep.subr.bf16.mxu0 0
  %3136 = vmatpush1.bf16.msra.mxu0 %v3126
  %3137 = vmatprep.subr.bf16.mxu0 0
  %3138 = vmatpush1.bf16.msra.mxu0 %v3125
  %3139 = vmatprep.subr.bf16.mxu0 0
  %3140 = vmatpush1.bf16.msra.mxu0 %v3124
  %3141 = vmatprep.subr.bf16.mxu0 0
  %3142 = vmatpush1.bf16.msra.mxu0 %v3123
  %3143 = vmatprep.subr.bf16.mxu0 0
  %3144 = vmatpush1.bf16.msra.mxu0 %v3122
  %3145 = vmatprep.subr.bf16.mxu0 0
  %3146 = vmatpush1.bf16.msra.mxu0 %v3121
  %3147 = vmatprep.subr.bf16.mxu0 0
  %3148 = vmatpush1.bf16.msra.mxu0 %v3120
  %3149 = vmatprep.subr.bf16.mxu0 0
  %3150 = vmatpush1.bf16.msra.mxu0 %v3119
  %3151 = vmatprep.subr.bf16.mxu0 0
  %3152 = vmatpush2.bf16.msra.mxu0 0
  %3153 = vmatprep.subr.bf16.mxu0 0
  %3154 = vmatpush2.bf16.msra.mxu0 0
  %3155 = vmatprep.subr.bf16.mxu0 0
  %3156 = vmatpush2.bf16.msra.mxu0 0
  %3157 = vmatprep.subr.bf16.mxu0 0
  %3158 = vmatpush2.bf16.msra.mxu0 0
  %3159 = vmatprep.subr.bf16.mxu0 0
  %3160 = vmatpush2.bf16.msra.mxu0 0
  %3161 = vmatprep.subr.bf16.mxu0 0
  %3162 = vmatpush2.bf16.msra.mxu0 0
  %3163 = vmatprep.subr.bf16.mxu0 0
  %3164 = vmatpush2.bf16.msra.mxu0 0
  %3165 = vmatprep.subr.bf16.mxu0 0
  %3166 = vmatpush2.bf16.msra.mxu0 0
  %3167 = vmatprep.mubr.bf16.mxu0 0
  %3168 = vmatmul.mubr.bf16.gmra.mxu0 %v1034
  %v3169 = vpop.f32.mrf.mxu0
  %v3170 = vadd.f32 0.0, %v3169
  %v3171 = vpop.f32.mrf.mxu0
  %v3172 = vpop.f32.mrf.mxu0
  %v3173 = vadd.f32 0.0, %v3172
  %v3174 = vpop.f32.mrf.mxu0
  %3175 = vmatprep.mubr.bf16.mxu0 0
  %3176 = vmatmul.mubr.bf16.gmra.mxu0 %v1035
  %v3177 = vpop.f32.mrf.mxu0
  %v3178 = vadd.f32 0.0, %v3177
  %v3179 = vpop.f32.mrf.mxu0
  %v3180 = vpop.f32.mrf.mxu0
  %v3181 = vadd.f32 0.0, %v3180
  %v3182 = vpop.f32.mrf.mxu0
  %3183 = vmatprep.mubr.bf16.mxu0 0
  %3184 = vmatmul.mubr.bf16.gmra.mxu0 %v1036
  %v3185 = vpop.f32.mrf.mxu0
  %v3186 = vadd.f32 0.0, %v3185
  %v3187 = vpop.f32.mrf.mxu0
  %v3188 = vpop.f32.mrf.mxu0
  %v3189 = vadd.f32 0.0, %v3188
  %v3190 = vpop.f32.mrf.mxu0
  %3191 = vmatprep.mubr.bf16.mxu0 0
  %3192 = vmatmul.mubr.bf16.gmra.mxu0 %v1037
  %v3193 = vpop.f32.mrf.mxu0
  %v3194 = vadd.f32 0.0, %v3193
  %v3195 = vpop.f32.mrf.mxu0
  %v3196 = vpop.f32.mrf.mxu0
  %v3197 = vadd.f32 0.0, %v3196
  %v3198 = vpop.f32.mrf.mxu0
  %3199 = vmatprep.mubr.bf16.mxu0 0
  %3200 = vmatmul.mubr.bf16.gmra.mxu0 %v1038
  %v3201 = vpop.f32.mrf.mxu0
  %v3202 = vadd.f32 0.0, %v3201
  %v3203 = vpop.f32.mrf.mxu0
  %v3204 = vpop.f32.mrf.mxu0
  %v3205 = vadd.f32 0.0, %v3204
  %v3206 = vpop.f32.mrf.mxu0
  %3207 = vmatprep.mubr.bf16.mxu0 0
  %3208 = vmatmul.mubr.bf16.gmra.mxu0 %v1039
  %v3209 = vpop.f32.mrf.mxu0
  %v3210 = vadd.f32 0.0, %v3209
  %v3211 = vpop.f32.mrf.mxu0
  %v3212 = vpop.f32.mrf.mxu0
  %v3213 = vadd.f32 0.0, %v3212
  %v3214 = vpop.f32.mrf.mxu0
  %3215 = vmatprep.mubr.bf16.mxu0 0
  %3216 = vmatmul.mubr.bf16.gmra.mxu0 %v1040
  %v3217 = vpop.f32.mrf.mxu0
  %v3218 = vadd.f32 0.0, %v3217
  %v3219 = vpop.f32.mrf.mxu0
  %v3220 = vpop.f32.mrf.mxu0
  %v3221 = vadd.f32 0.0, %v3220
  %v3222 = vpop.f32.mrf.mxu0
  %3223 = vmatprep.mubr.bf16.mxu0 0
  %3224 = vmatmul.mubr.bf16.gmra.mxu0 %v1041
  %v3225 = vpop.f32.mrf.mxu0
  %v3226 = vadd.f32 0.0, %v3225
  %v3227 = vpop.f32.mrf.mxu0
  %v3228 = vpop.f32.mrf.mxu0
  %v3229 = vadd.f32 0.0, %v3228
  %v3230 = vpop.f32.mrf.mxu0
  %3231 = vmatprep.mubr.bf16.mxu0 0
  %3232 = vmatmul.mubr.bf16.gmra.mxu0 %v1042
  %v3233 = vpop.f32.mrf.mxu0
  %v3234 = vadd.f32 0.0, %v3233
  %v3235 = vpop.f32.mrf.mxu0
  %v3236 = vpop.f32.mrf.mxu0
  %v3237 = vadd.f32 0.0, %v3236
  %v3238 = vpop.f32.mrf.mxu0
  %3239 = vmatprep.mubr.bf16.mxu0 0
  %3240 = vmatmul.mubr.bf16.gmra.mxu0 %v1043
  %v3241 = vpop.f32.mrf.mxu0
  %v3242 = vadd.f32 0.0, %v3241
  %v3243 = vpop.f32.mrf.mxu0
  %v3244 = vpop.f32.mrf.mxu0
  %v3245 = vadd.f32 0.0, %v3244
  %v3246 = vpop.f32.mrf.mxu0
  %3247 = vmatprep.mubr.bf16.mxu0 0
  %3248 = vmatmul.mubr.bf16.gmra.mxu0 %v1044
  %v3249 = vpop.f32.mrf.mxu0
  %v3250 = vadd.f32 0.0, %v3249
  %v3251 = vpop.f32.mrf.mxu0
  %v3252 = vpop.f32.mrf.mxu0
  %v3253 = vadd.f32 0.0, %v3252
  %v3254 = vpop.f32.mrf.mxu0
  %3255 = vmatprep.mubr.bf16.mxu0 0
  %3256 = vmatmul.mubr.bf16.gmra.mxu0 %v1045
  %v3257 = vpop.f32.mrf.mxu0
  %v3258 = vadd.f32 0.0, %v3257
  %v3259 = vpop.f32.mrf.mxu0
  %v3260 = vpop.f32.mrf.mxu0
  %v3261 = vadd.f32 0.0, %v3260
  %v3262 = vpop.f32.mrf.mxu0
  %3263 = vmatprep.mubr.bf16.mxu0 0
  %3264 = vmatmul.mubr.bf16.gmra.mxu0 %v1046
  %v3265 = vpop.f32.mrf.mxu0
  %v3266 = vadd.f32 0.0, %v3265
  %v3267 = vpop.f32.mrf.mxu0
  %v3268 = vpop.f32.mrf.mxu0
  %v3269 = vadd.f32 0.0, %v3268
  %v3270 = vpop.f32.mrf.mxu0
  %3271 = vmatprep.mubr.bf16.mxu0 0
  %3272 = vmatmul.mubr.bf16.gmra.mxu0 %v1047
  %v3273 = vpop.f32.mrf.mxu0
  %v3274 = vadd.f32 0.0, %v3273
  %v3275 = vpop.f32.mrf.mxu0
  %v3276 = vpop.f32.mrf.mxu0
  %v3277 = vadd.f32 0.0, %v3276
  %v3278 = vpop.f32.mrf.mxu0
  %3279 = vmatprep.mubr.bf16.mxu0 0
  %3280 = vmatmul.mubr.bf16.gmra.mxu0 %v1048
  %v3281 = vpop.f32.mrf.mxu0
  %v3282 = vadd.f32 0.0, %v3281
  %v3283 = vpop.f32.mrf.mxu0
  %v3284 = vpop.f32.mrf.mxu0
  %v3285 = vadd.f32 0.0, %v3284
  %v3286 = vpop.f32.mrf.mxu0
  %3287 = vmatprep.mubr.bf16.mxu0 0
  %3288 = vmatmul.mubr.bf16.gmra.mxu0 %v1049
  %v3289 = vpop.f32.mrf.mxu0
  %v3290 = vadd.f32 0.0, %v3289
  %v3291 = vpop.f32.mrf.mxu0
  %v3292 = vpop.f32.mrf.mxu0
  %v3293 = vadd.f32 0.0, %v3292
  %v3294 = vpop.f32.mrf.mxu0
  %3295 = vmatprep.mubr.bf16.mxu0 0
  %3296 = vmatmul.mubr.bf16.gmra.mxu0 %v1050
  %v3297 = vpop.f32.mrf.mxu0
  %v3298 = vadd.f32 0.0, %v3297
  %v3299 = vpop.f32.mrf.mxu0
  %v3300 = vpop.f32.mrf.mxu0
  %v3301 = vadd.f32 0.0, %v3300
  %v3302 = vpop.f32.mrf.mxu0
  %3303 = vmatprep.mubr.bf16.mxu0 0
  %3304 = vmatmul.mubr.bf16.gmra.mxu0 %v1051
  %v3305 = vpop.f32.mrf.mxu0
  %v3306 = vadd.f32 0.0, %v3305
  %v3307 = vpop.f32.mrf.mxu0
  %v3308 = vpop.f32.mrf.mxu0
  %v3309 = vadd.f32 0.0, %v3308
  %v3310 = vpop.f32.mrf.mxu0
  %3311 = vmatprep.mubr.bf16.mxu0 0
  %3312 = vmatmul.mubr.bf16.gmra.mxu0 %v1052
  %v3313 = vpop.f32.mrf.mxu0
  %v3314 = vadd.f32 0.0, %v3313
  %v3315 = vpop.f32.mrf.mxu0
  %v3316 = vpop.f32.mrf.mxu0
  %v3317 = vadd.f32 0.0, %v3316
  %v3318 = vpop.f32.mrf.mxu0
  %3319 = vmatprep.mubr.bf16.mxu0 0
  %3320 = vmatmul.mubr.bf16.gmra.mxu0 %v1053
  %v3321 = vpop.f32.mrf.mxu0
  %v3322 = vadd.f32 0.0, %v3321
  %v3323 = vpop.f32.mrf.mxu0
  %v3324 = vpop.f32.mrf.mxu0
  %v3325 = vadd.f32 0.0, %v3324
  %v3326 = vpop.f32.mrf.mxu0
  %3327 = vmatprep.mubr.bf16.mxu0 0
  %3328 = vmatmul.mubr.bf16.gmra.mxu0 %v1054
  %v3329 = vpop.f32.mrf.mxu0
  %v3330 = vadd.f32 0.0, %v3329
  %v3331 = vpop.f32.mrf.mxu0
  %v3332 = vpop.f32.mrf.mxu0
  %v3333 = vadd.f32 0.0, %v3332
  %v3334 = vpop.f32.mrf.mxu0
  %3335 = vmatprep.mubr.bf16.mxu0 0
  %3336 = vmatmul.mubr.bf16.gmra.mxu0 %v1055
  %v3337 = vpop.f32.mrf.mxu0
  %v3338 = vadd.f32 0.0, %v3337
  %v3339 = vpop.f32.mrf.mxu0
  %v3340 = vpop.f32.mrf.mxu0
  %v3341 = vadd.f32 0.0, %v3340
  %v3342 = vpop.f32.mrf.mxu0
  %3343 = vmatprep.mubr.bf16.mxu0 0
  %3344 = vmatmul.mubr.bf16.gmra.mxu0 %v1056
  %v3345 = vpop.f32.mrf.mxu0
  %v3346 = vadd.f32 0.0, %v3345
  %v3347 = vpop.f32.mrf.mxu0
  %v3348 = vpop.f32.mrf.mxu0
  %v3349 = vadd.f32 0.0, %v3348
  %v3350 = vpop.f32.mrf.mxu0
  %3351 = vmatprep.mubr.bf16.mxu0 0
  %3352 = vmatmul.mubr.bf16.gmra.mxu0 %v1057
  %v3353 = vpop.f32.mrf.mxu0
  %v3354 = vadd.f32 0.0, %v3353
  %v3355 = vpop.f32.mrf.mxu0
  %v3356 = vpop.f32.mrf.mxu0
  %v3357 = vadd.f32 0.0, %v3356
  %v3358 = vpop.f32.mrf.mxu0
  %3359 = vmatprep.mubr.bf16.mxu0 0
  %3360 = vmatmul.mubr.bf16.gmra.mxu0 %v1058
  %v3361 = vpop.f32.mrf.mxu0
  %v3362 = vadd.f32 0.0, %v3361
  %v3363 = vpop.f32.mrf.mxu0
  %v3364 = vpop.f32.mrf.mxu0
  %v3365 = vadd.f32 0.0, %v3364
  %v3366 = vpop.f32.mrf.mxu0
  %3367 = vmatprep.mubr.bf16.mxu0 0
  %3368 = vmatmul.mubr.bf16.gmra.mxu0 %v1059
  %v3369 = vpop.f32.mrf.mxu0
  %v3370 = vadd.f32 0.0, %v3369
  %v3371 = vpop.f32.mrf.mxu0
  %v3372 = vpop.f32.mrf.mxu0
  %v3373 = vadd.f32 0.0, %v3372
  %v3374 = vpop.f32.mrf.mxu0
  %3375 = vmatprep.mubr.bf16.mxu0 0
  %3376 = vmatmul.mubr.bf16.gmra.mxu0 %v1060
  %v3377 = vpop.f32.mrf.mxu0
  %v3378 = vadd.f32 0.0, %v3377
  %v3379 = vpop.f32.mrf.mxu0
  %v3380 = vpop.f32.mrf.mxu0
  %v3381 = vadd.f32 0.0, %v3380
  %v3382 = vpop.f32.mrf.mxu0
  %3383 = vmatprep.mubr.bf16.mxu0 0
  %3384 = vmatmul.mubr.bf16.gmra.mxu0 %v1061
  %v3385 = vpop.f32.mrf.mxu0
  %v3386 = vadd.f32 0.0, %v3385
  %v3387 = vpop.f32.mrf.mxu0
  %v3388 = vpop.f32.mrf.mxu0
  %v3389 = vadd.f32 0.0, %v3388
  %v3390 = vpop.f32.mrf.mxu0
  %3391 = vmatprep.mubr.bf16.mxu0 0
  %3392 = vmatmul.mubr.bf16.gmra.mxu0 %v1062
  %v3393 = vpop.f32.mrf.mxu0
  %v3394 = vadd.f32 0.0, %v3393
  %v3395 = vpop.f32.mrf.mxu0
  %v3396 = vpop.f32.mrf.mxu0
  %v3397 = vadd.f32 0.0, %v3396
  %v3398 = vpop.f32.mrf.mxu0
  %3399 = vmatprep.mubr.bf16.mxu0 0
  %3400 = vmatmul.mubr.bf16.gmra.mxu0 %v1063
  %v3401 = vpop.f32.mrf.mxu0
  %v3402 = vadd.f32 0.0, %v3401
  %v3403 = vpop.f32.mrf.mxu0
  %v3404 = vpop.f32.mrf.mxu0
  %v3405 = vadd.f32 0.0, %v3404
  %v3406 = vpop.f32.mrf.mxu0
  %3407 = vmatprep.mubr.bf16.mxu0 0
  %3408 = vmatmul.mubr.bf16.gmra.mxu0 %v1064
  %v3409 = vpop.f32.mrf.mxu0
  %v3410 = vadd.f32 0.0, %v3409
  %v3411 = vpop.f32.mrf.mxu0
  %v3412 = vpop.f32.mrf.mxu0
  %v3413 = vadd.f32 0.0, %v3412
  %v3414 = vpop.f32.mrf.mxu0
  %3415 = vmatprep.mubr.bf16.mxu0 0
  %3416 = vmatmul.mubr.bf16.gmra.mxu0 %v1065
  %v3417 = vpop.f32.mrf.mxu0
  %v3418 = vadd.f32 0.0, %v3417
  %v3419 = vpop.f32.mrf.mxu0
  %v3420 = vpop.f32.mrf.mxu0
  %v3421 = vadd.f32 0.0, %v3420
  %v3422 = vpop.f32.mrf.mxu0
  %3423 = vdwg.mxu0
  %v3424 = vadd.f32 %v3023, %v3170
  %v3425 = vadd.f32 %v3024, %v3173
  %v3426 = vadd.f32 %v3025, %v3178
  %v3427 = vadd.f32 %v3026, %v3181
  %v3428 = vadd.f32 %v3027, %v3186
  %v3429 = vadd.f32 %v3028, %v3189
  %v3430 = vadd.f32 %v3029, %v3194
  %v3431 = vadd.f32 %v3030, %v3197
  %v3432 = vadd.f32 %v3031, %v3202
  %v3433 = vadd.f32 %v3032, %v3205
  %v3434 = vadd.f32 %v3033, %v3210
  %v3435 = vadd.f32 %v3034, %v3213
  %v3436 = vadd.f32 %v3035, %v3218
  %v3437 = vadd.f32 %v3036, %v3221
  %v3438 = vadd.f32 %v3037, %v3226
  %v3439 = vadd.f32 %v3038, %v3229
  %v3440 = vadd.f32 %v3039, %v3234
  %v3441 = vadd.f32 %v3040, %v3237
  %v3442 = vadd.f32 %v3041, %v3242
  %v3443 = vadd.f32 %v3042, %v3245
  %v3444 = vadd.f32 %v3043, %v3250
  %v3445 = vadd.f32 %v3044, %v3253
  %v3446 = vadd.f32 %v3045, %v3258
  %v3447 = vadd.f32 %v3046, %v3261
  %v3448 = vadd.f32 %v3047, %v3266
  %v3449 = vadd.f32 %v3048, %v3269
  %v3450 = vadd.f32 %v3049, %v3274
  %v3451 = vadd.f32 %v3050, %v3277
  %v3452 = vadd.f32 %v3051, %v3282
  %v3453 = vadd.f32 %v3052, %v3285
  %v3454 = vadd.f32 %v3053, %v3290
  %v3455 = vadd.f32 %v3054, %v3293
  %v3456 = vadd.f32 %v3055, %v3298
  %v3457 = vadd.f32 %v3056, %v3301
  %v3458 = vadd.f32 %v3057, %v3306
  %v3459 = vadd.f32 %v3058, %v3309
  %v3460 = vadd.f32 %v3059, %v3314
  %v3461 = vadd.f32 %v3060, %v3317
  %v3462 = vadd.f32 %v3061, %v3322
  %v3463 = vadd.f32 %v3062, %v3325
  %v3464 = vadd.f32 %v3063, %v3330
  %v3465 = vadd.f32 %v3064, %v3333
  %v3466 = vadd.f32 %v3065, %v3338
  %v3467 = vadd.f32 %v3066, %v3341
  %v3468 = vadd.f32 %v3067, %v3346
  %v3469 = vadd.f32 %v3068, %v3349
  %v3470 = vadd.f32 %v3069, %v3354
  %v3471 = vadd.f32 %v3070, %v3357
  %v3472 = vadd.f32 %v3071, %v3362
  %v3473 = vadd.f32 %v3072, %v3365
  %v3474 = vadd.f32 %v3073, %v3370
  %v3475 = vadd.f32 %v3074, %v3373
  %v3476 = vadd.f32 %v3075, %v3378
  %v3477 = vadd.f32 %v3076, %v3381
  %v3478 = vadd.f32 %v3077, %v3386
  %v3479 = vadd.f32 %v3078, %v3389
  %v3480 = vadd.f32 %v3079, %v3394
  %v3481 = vadd.f32 %v3080, %v3397
  %v3482 = vadd.f32 %v3081, %v3402
  %v3483 = vadd.f32 %v3082, %v3405
  %v3484 = vadd.f32 %v3083, %v3410
  %v3485 = vadd.f32 %v3084, %v3413
  %v3486 = vadd.f32 %v3085, %v3418
  %v3487 = vadd.f32 %v3086, %v3421
  %v3504 = vunpack.c.l.b16 %v1162
  %v3505 = vunpack.c.l.b16 %v1163
  %v3506 = vunpack.c.l.b16 %v1164
  %v3507 = vunpack.c.l.b16 %v1165
  %v3508 = vunpack.c.l.b16 %v1166
  %v3509 = vunpack.c.l.b16 %v1167
  %v3510 = vunpack.c.l.b16 %v1168
  %v3511 = vunpack.c.l.b16 %v1169
  %v3512 = vunpack.c.l.b16 %v1170
  %v3513 = vunpack.c.l.b16 %v1171
  %v3514 = vunpack.c.l.b16 %v1172
  %v3515 = vunpack.c.l.b16 %v1173
  %v3516 = vunpack.c.l.b16 %v1174
  %v3517 = vunpack.c.l.b16 %v1175
  %v3518 = vunpack.c.l.b16 %v1176
  %v3519 = vunpack.c.l.b16 %v1177
  %v3520 = vpack.c.b16 %v3505, %v3504
  %v3521 = vpack.c.b16 %v3507, %v3506
  %v3522 = vpack.c.b16 %v3509, %v3508
  %v3523 = vpack.c.b16 %v3511, %v3510
  %v3524 = vpack.c.b16 %v3513, %v3512
  %v3525 = vpack.c.b16 %v3515, %v3514
  %v3526 = vpack.c.b16 %v3517, %v3516
  %v3527 = vpack.c.b16 %v3519, %v3518
  %3536 = vmatprep.subr.bf16.mxu0 0
  %3537 = vmatpush1.bf16.msra.mxu0 %v3527
  %3538 = vmatprep.subr.bf16.mxu0 0
  %3539 = vmatpush1.bf16.msra.mxu0 %v3526
  %3540 = vmatprep.subr.bf16.mxu0 0
  %3541 = vmatpush1.bf16.msra.mxu0 %v3525
  %3542 = vmatprep.subr.bf16.mxu0 0
  %3543 = vmatpush1.bf16.msra.mxu0 %v3524
  %3544 = vmatprep.subr.bf16.mxu0 0
  %3545 = vmatpush1.bf16.msra.mxu0 %v3523
  %3546 = vmatprep.subr.bf16.mxu0 0
  %3547 = vmatpush1.bf16.msra.mxu0 %v3522
  %3548 = vmatprep.subr.bf16.mxu0 0
  %3549 = vmatpush1.bf16.msra.mxu0 %v3521
  %3550 = vmatprep.subr.bf16.mxu0 0
  %3551 = vmatpush1.bf16.msra.mxu0 %v3520
  %3552 = vmatprep.subr.bf16.mxu0 0
  %3553 = vmatpush2.bf16.msra.mxu0 0
  %3554 = vmatprep.subr.bf16.mxu0 0
  %3555 = vmatpush2.bf16.msra.mxu0 0
  %3556 = vmatprep.subr.bf16.mxu0 0
  %3557 = vmatpush2.bf16.msra.mxu0 0
  %3558 = vmatprep.subr.bf16.mxu0 0
  %3559 = vmatpush2.bf16.msra.mxu0 0
  %3560 = vmatprep.subr.bf16.mxu0 0
  %3561 = vmatpush2.bf16.msra.mxu0 0
  %3562 = vmatprep.subr.bf16.mxu0 0
  %3563 = vmatpush2.bf16.msra.mxu0 0
  %3564 = vmatprep.subr.bf16.mxu0 0
  %3565 = vmatpush2.bf16.msra.mxu0 0
  %3566 = vmatprep.subr.bf16.mxu0 0
  %3567 = vmatpush2.bf16.msra.mxu0 0
  %3568 = vmatprep.mubr.bf16.mxu0 0
  %3569 = vmatmul.mubr.bf16.gmra.mxu0 %v768
  %v3570 = vpop.f32.mrf.mxu0
  %v3571 = vadd.f32 0.0, %v3570
  %v3572 = vpop.f32.mrf.mxu0
  %v3573 = vpop.f32.mrf.mxu0
  %v3574 = vadd.f32 0.0, %v3573
  %v3575 = vpop.f32.mrf.mxu0
  %3576 = vmatprep.mubr.bf16.mxu0 0
  %3577 = vmatmul.mubr.bf16.gmra.mxu0 %v769
  %v3578 = vpop.f32.mrf.mxu0
  %v3579 = vadd.f32 0.0, %v3578
  %v3580 = vpop.f32.mrf.mxu0
  %v3581 = vpop.f32.mrf.mxu0
  %v3582 = vadd.f32 0.0, %v3581
  %v3583 = vpop.f32.mrf.mxu0
  %3584 = vmatprep.mubr.bf16.mxu0 0
  %3585 = vmatmul.mubr.bf16.gmra.mxu0 %v770
  %v3586 = vpop.f32.mrf.mxu0
  %v3587 = vadd.f32 0.0, %v3586
  %v3588 = vpop.f32.mrf.mxu0
  %v3589 = vpop.f32.mrf.mxu0
  %v3590 = vadd.f32 0.0, %v3589
  %v3591 = vpop.f32.mrf.mxu0
  %3592 = vmatprep.mubr.bf16.mxu0 0
  %3593 = vmatmul.mubr.bf16.gmra.mxu0 %v771
  %v3594 = vpop.f32.mrf.mxu0
  %v3595 = vadd.f32 0.0, %v3594
  %v3596 = vpop.f32.mrf.mxu0
  %v3597 = vpop.f32.mrf.mxu0
  %v3598 = vadd.f32 0.0, %v3597
  %v3599 = vpop.f32.mrf.mxu0
  %3600 = vmatprep.mubr.bf16.mxu0 0
  %3601 = vmatmul.mubr.bf16.gmra.mxu0 %v772
  %v3602 = vpop.f32.mrf.mxu0
  %v3603 = vadd.f32 0.0, %v3602
  %v3604 = vpop.f32.mrf.mxu0
  %v3605 = vpop.f32.mrf.mxu0
  %v3606 = vadd.f32 0.0, %v3605
  %v3607 = vpop.f32.mrf.mxu0
  %3608 = vmatprep.mubr.bf16.mxu0 0
  %3609 = vmatmul.mubr.bf16.gmra.mxu0 %v773
  %v3610 = vpop.f32.mrf.mxu0
  %v3611 = vadd.f32 0.0, %v3610
  %v3612 = vpop.f32.mrf.mxu0
  %v3613 = vpop.f32.mrf.mxu0
  %v3614 = vadd.f32 0.0, %v3613
  %v3615 = vpop.f32.mrf.mxu0
  %3616 = vmatprep.mubr.bf16.mxu0 0
  %3617 = vmatmul.mubr.bf16.gmra.mxu0 %v774
  %v3618 = vpop.f32.mrf.mxu0
  %v3619 = vadd.f32 0.0, %v3618
  %v3620 = vpop.f32.mrf.mxu0
  %v3621 = vpop.f32.mrf.mxu0
  %v3622 = vadd.f32 0.0, %v3621
  %v3623 = vpop.f32.mrf.mxu0
  %3624 = vmatprep.mubr.bf16.mxu0 0
  %3625 = vmatmul.mubr.bf16.gmra.mxu0 %v775
  %v3626 = vpop.f32.mrf.mxu0
  %v3627 = vadd.f32 0.0, %v3626
  %v3628 = vpop.f32.mrf.mxu0
  %v3629 = vpop.f32.mrf.mxu0
  %v3630 = vadd.f32 0.0, %v3629
  %v3631 = vpop.f32.mrf.mxu0
  %3632 = vmatprep.mubr.bf16.mxu0 0
  %3633 = vmatmul.mubr.bf16.gmra.mxu0 %v776
  %v3634 = vpop.f32.mrf.mxu0
  %v3635 = vadd.f32 0.0, %v3634
  %v3636 = vpop.f32.mrf.mxu0
  %v3637 = vpop.f32.mrf.mxu0
  %v3638 = vadd.f32 0.0, %v3637
  %v3639 = vpop.f32.mrf.mxu0
  %3640 = vmatprep.mubr.bf16.mxu0 0
  %3641 = vmatmul.mubr.bf16.gmra.mxu0 %v777
  %v3642 = vpop.f32.mrf.mxu0
  %v3643 = vadd.f32 0.0, %v3642
  %v3644 = vpop.f32.mrf.mxu0
  %v3645 = vpop.f32.mrf.mxu0
  %v3646 = vadd.f32 0.0, %v3645
  %v3647 = vpop.f32.mrf.mxu0
  %3648 = vmatprep.mubr.bf16.mxu0 0
  %3649 = vmatmul.mubr.bf16.gmra.mxu0 %v778
  %v3650 = vpop.f32.mrf.mxu0
  %v3651 = vadd.f32 0.0, %v3650
  %v3652 = vpop.f32.mrf.mxu0
  %v3653 = vpop.f32.mrf.mxu0
  %v3654 = vadd.f32 0.0, %v3653
  %v3655 = vpop.f32.mrf.mxu0
  %3656 = vmatprep.mubr.bf16.mxu0 0
  %3657 = vmatmul.mubr.bf16.gmra.mxu0 %v779
  %v3658 = vpop.f32.mrf.mxu0
  %v3659 = vadd.f32 0.0, %v3658
  %v3660 = vpop.f32.mrf.mxu0
  %v3661 = vpop.f32.mrf.mxu0
  %v3662 = vadd.f32 0.0, %v3661
  %v3663 = vpop.f32.mrf.mxu0
  %3664 = vmatprep.mubr.bf16.mxu0 0
  %3665 = vmatmul.mubr.bf16.gmra.mxu0 %v780
  %v3666 = vpop.f32.mrf.mxu0
  %v3667 = vadd.f32 0.0, %v3666
  %v3668 = vpop.f32.mrf.mxu0
  %v3669 = vpop.f32.mrf.mxu0
  %v3670 = vadd.f32 0.0, %v3669
  %v3671 = vpop.f32.mrf.mxu0
  %3672 = vmatprep.mubr.bf16.mxu0 0
  %3673 = vmatmul.mubr.bf16.gmra.mxu0 %v781
  %v3674 = vpop.f32.mrf.mxu0
  %v3675 = vadd.f32 0.0, %v3674
  %v3676 = vpop.f32.mrf.mxu0
  %v3677 = vpop.f32.mrf.mxu0
  %v3678 = vadd.f32 0.0, %v3677
  %v3679 = vpop.f32.mrf.mxu0
  %3680 = vmatprep.mubr.bf16.mxu0 0
  %3681 = vmatmul.mubr.bf16.gmra.mxu0 %v782
  %v3682 = vpop.f32.mrf.mxu0
  %v3683 = vadd.f32 0.0, %v3682
  %v3684 = vpop.f32.mrf.mxu0
  %v3685 = vpop.f32.mrf.mxu0
  %v3686 = vadd.f32 0.0, %v3685
  %v3687 = vpop.f32.mrf.mxu0
  %3688 = vmatprep.mubr.bf16.mxu0 0
  %3689 = vmatmul.mubr.bf16.gmra.mxu0 %v766
  %v3690 = vpop.f32.mrf.mxu0
  %v3691 = vadd.f32 0.0, %v3690
  %v3692 = vpop.f32.mrf.mxu0
  %v3693 = vpop.f32.mrf.mxu0
  %v3694 = vadd.f32 0.0, %v3693
  %v3695 = vpop.f32.mrf.mxu0
  %3696 = vmatprep.mubr.bf16.mxu0 0
  %3697 = vmatmul.mubr.bf16.gmra.mxu0 %v784
  %v3698 = vpop.f32.mrf.mxu0
  %v3699 = vadd.f32 0.0, %v3698
  %v3700 = vpop.f32.mrf.mxu0
  %v3701 = vpop.f32.mrf.mxu0
  %v3702 = vadd.f32 0.0, %v3701
  %v3703 = vpop.f32.mrf.mxu0
  %3704 = vmatprep.mubr.bf16.mxu0 0
  %3705 = vmatmul.mubr.bf16.gmra.mxu0 %v785
  %v3706 = vpop.f32.mrf.mxu0
  %v3707 = vadd.f32 0.0, %v3706
  %v3708 = vpop.f32.mrf.mxu0
  %v3709 = vpop.f32.mrf.mxu0
  %v3710 = vadd.f32 0.0, %v3709
  %v3711 = vpop.f32.mrf.mxu0
  %3712 = vmatprep.mubr.bf16.mxu0 0
  %3713 = vmatmul.mubr.bf16.gmra.mxu0 %v786
  %v3714 = vpop.f32.mrf.mxu0
  %v3715 = vadd.f32 0.0, %v3714
  %v3716 = vpop.f32.mrf.mxu0
  %v3717 = vpop.f32.mrf.mxu0
  %v3718 = vadd.f32 0.0, %v3717
  %v3719 = vpop.f32.mrf.mxu0
  %3720 = vmatprep.mubr.bf16.mxu0 0
  %3721 = vmatmul.mubr.bf16.gmra.mxu0 %v787
  %v3722 = vpop.f32.mrf.mxu0
  %v3723 = vadd.f32 0.0, %v3722
  %v3724 = vpop.f32.mrf.mxu0
  %v3725 = vpop.f32.mrf.mxu0
  %v3726 = vadd.f32 0.0, %v3725
  %v3727 = vpop.f32.mrf.mxu0
  %3728 = vmatprep.mubr.bf16.mxu0 0
  %3729 = vmatmul.mubr.bf16.gmra.mxu0 %v788
  %v3730 = vpop.f32.mrf.mxu0
  %v3731 = vadd.f32 0.0, %v3730
  %v3732 = vpop.f32.mrf.mxu0
  %v3733 = vpop.f32.mrf.mxu0
  %v3734 = vadd.f32 0.0, %v3733
  %v3735 = vpop.f32.mrf.mxu0
  %3736 = vmatprep.mubr.bf16.mxu0 0
  %3737 = vmatmul.mubr.bf16.gmra.mxu0 %v789
  %v3738 = vpop.f32.mrf.mxu0
  %v3739 = vadd.f32 0.0, %v3738
  %v3740 = vpop.f32.mrf.mxu0
  %v3741 = vpop.f32.mrf.mxu0
  %v3742 = vadd.f32 0.0, %v3741
  %v3743 = vpop.f32.mrf.mxu0
  %3744 = vmatprep.mubr.bf16.mxu0 0
  %3745 = vmatmul.mubr.bf16.gmra.mxu0 %v790
  %v3746 = vpop.f32.mrf.mxu0
  %v3747 = vadd.f32 0.0, %v3746
  %v3748 = vpop.f32.mrf.mxu0
  %v3749 = vpop.f32.mrf.mxu0
  %v3750 = vadd.f32 0.0, %v3749
  %v3751 = vpop.f32.mrf.mxu0
  %3752 = vmatprep.mubr.bf16.mxu0 0
  %3753 = vmatmul.mubr.bf16.gmra.mxu0 %v791
  %v3754 = vpop.f32.mrf.mxu0
  %v3755 = vadd.f32 0.0, %v3754
  %v3756 = vpop.f32.mrf.mxu0
  %v3757 = vpop.f32.mrf.mxu0
  %v3758 = vadd.f32 0.0, %v3757
  %v3759 = vpop.f32.mrf.mxu0
  %3760 = vmatprep.mubr.bf16.mxu0 0
  %3761 = vmatmul.mubr.bf16.gmra.mxu0 %v792
  %v3762 = vpop.f32.mrf.mxu0
  %v3763 = vadd.f32 0.0, %v3762
  %v3764 = vpop.f32.mrf.mxu0
  %v3765 = vpop.f32.mrf.mxu0
  %v3766 = vadd.f32 0.0, %v3765
  %v3767 = vpop.f32.mrf.mxu0
  %3768 = vmatprep.mubr.bf16.mxu0 0
  %3769 = vmatmul.mubr.bf16.gmra.mxu0 %v793
  %v3770 = vpop.f32.mrf.mxu0
  %v3771 = vadd.f32 0.0, %v3770
  %v3772 = vpop.f32.mrf.mxu0
  %v3773 = vpop.f32.mrf.mxu0
  %v3774 = vadd.f32 0.0, %v3773
  %v3775 = vpop.f32.mrf.mxu0
  %3776 = vmatprep.mubr.bf16.mxu0 0
  %3777 = vmatmul.mubr.bf16.gmra.mxu0 %v794
  %v3778 = vpop.f32.mrf.mxu0
  %v3779 = vadd.f32 0.0, %v3778
  %v3780 = vpop.f32.mrf.mxu0
  %v3781 = vpop.f32.mrf.mxu0
  %v3782 = vadd.f32 0.0, %v3781
  %v3783 = vpop.f32.mrf.mxu0
  %3784 = vmatprep.mubr.bf16.mxu0 0
  %3785 = vmatmul.mubr.bf16.gmra.mxu0 %v795
  %v3786 = vpop.f32.mrf.mxu0
  %v3787 = vadd.f32 0.0, %v3786
  %v3788 = vpop.f32.mrf.mxu0
  %v3789 = vpop.f32.mrf.mxu0
  %v3790 = vadd.f32 0.0, %v3789
  %v3791 = vpop.f32.mrf.mxu0
  %3792 = vmatprep.mubr.bf16.mxu0 0
  %3793 = vmatmul.mubr.bf16.gmra.mxu0 %v796
  %v3794 = vpop.f32.mrf.mxu0
  %v3795 = vadd.f32 0.0, %v3794
  %v3796 = vpop.f32.mrf.mxu0
  %v3797 = vpop.f32.mrf.mxu0
  %v3798 = vadd.f32 0.0, %v3797
  %v3799 = vpop.f32.mrf.mxu0
  %3800 = vmatprep.mubr.bf16.mxu0 0
  %3801 = vmatmul.mubr.bf16.gmra.mxu0 %v797
  %v3802 = vpop.f32.mrf.mxu0
  %v3803 = vadd.f32 0.0, %v3802
  %v3804 = vpop.f32.mrf.mxu0
  %v3805 = vpop.f32.mrf.mxu0
  %v3806 = vadd.f32 0.0, %v3805
  %v3807 = vpop.f32.mrf.mxu0
  %3808 = vmatprep.mubr.bf16.mxu0 0
  %3809 = vmatmul.mubr.bf16.gmra.mxu0 %v798
  %v3810 = vpop.f32.mrf.mxu0
  %v3811 = vadd.f32 0.0, %v3810
  %v3812 = vpop.f32.mrf.mxu0
  %v3813 = vpop.f32.mrf.mxu0
  %v3814 = vadd.f32 0.0, %v3813
  %v3815 = vpop.f32.mrf.mxu0
  %3816 = vmatprep.mubr.bf16.mxu0 0
  %3817 = vmatmul.mubr.bf16.gmra.mxu0 %v766
  %v3818 = vpop.f32.mrf.mxu0
  %v3819 = vadd.f32 0.0, %v3818
  %v3820 = vpop.f32.mrf.mxu0
  %v3821 = vpop.f32.mrf.mxu0
  %v3822 = vadd.f32 0.0, %v3821
  %v3823 = vpop.f32.mrf.mxu0
  %3824 = vdwg.mxu0
  %v3825 = vadd.f32 %v3424, %v3571
  %v3826 = vadd.f32 %v3425, %v3574
  %v3827 = vadd.f32 %v3426, %v3579
  %v3828 = vadd.f32 %v3427, %v3582
  %v3829 = vadd.f32 %v3428, %v3587
  %v3830 = vadd.f32 %v3429, %v3590
  %v3831 = vadd.f32 %v3430, %v3595
  %v3832 = vadd.f32 %v3431, %v3598
  %v3833 = vadd.f32 %v3432, %v3603
  %v3834 = vadd.f32 %v3433, %v3606
  %v3835 = vadd.f32 %v3434, %v3611
  %v3836 = vadd.f32 %v3435, %v3614
  %v3837 = vadd.f32 %v3436, %v3619
  %v3838 = vadd.f32 %v3437, %v3622
  %v3839 = vadd.f32 %v3438, %v3627
  %v3840 = vadd.f32 %v3439, %v3630
  %v3841 = vadd.f32 %v3440, %v3635
  %v3842 = vadd.f32 %v3441, %v3638
  %v3843 = vadd.f32 %v3442, %v3643
  %v3844 = vadd.f32 %v3443, %v3646
  %v3845 = vadd.f32 %v3444, %v3651
  %v3846 = vadd.f32 %v3445, %v3654
  %v3847 = vadd.f32 %v3446, %v3659
  %v3848 = vadd.f32 %v3447, %v3662
  %v3849 = vadd.f32 %v3448, %v3667
  %v3850 = vadd.f32 %v3449, %v3670
  %v3851 = vadd.f32 %v3450, %v3675
  %v3852 = vadd.f32 %v3451, %v3678
  %v3853 = vadd.f32 %v3452, %v3683
  %v3854 = vadd.f32 %v3453, %v3686
  %v3855 = vadd.f32 %v3454, %v3691
  %v3856 = vadd.f32 %v3455, %v3694
  %v3857 = vadd.f32 %v3456, %v3699
  %v3858 = vadd.f32 %v3457, %v3702
  %v3859 = vadd.f32 %v3458, %v3707
  %v3860 = vadd.f32 %v3459, %v3710
  %v3861 = vadd.f32 %v3460, %v3715
  %v3862 = vadd.f32 %v3461, %v3718
  %v3863 = vadd.f32 %v3462, %v3723
  %v3864 = vadd.f32 %v3463, %v3726
  %v3865 = vadd.f32 %v3464, %v3731
  %v3866 = vadd.f32 %v3465, %v3734
  %v3867 = vadd.f32 %v3466, %v3739
  %v3868 = vadd.f32 %v3467, %v3742
  %v3869 = vadd.f32 %v3468, %v3747
  %v3870 = vadd.f32 %v3469, %v3750
  %v3871 = vadd.f32 %v3470, %v3755
  %v3872 = vadd.f32 %v3471, %v3758
  %v3873 = vadd.f32 %v3472, %v3763
  %v3874 = vadd.f32 %v3473, %v3766
  %v3875 = vadd.f32 %v3474, %v3771
  %v3876 = vadd.f32 %v3475, %v3774
  %v3877 = vadd.f32 %v3476, %v3779
  %v3878 = vadd.f32 %v3477, %v3782
  %v3879 = vadd.f32 %v3478, %v3787
  %v3880 = vadd.f32 %v3479, %v3790
  %v3881 = vadd.f32 %v3480, %v3795
  %v3882 = vadd.f32 %v3481, %v3798
  %v3883 = vadd.f32 %v3482, %v3803
  %v3884 = vadd.f32 %v3483, %v3806
  %v3885 = vadd.f32 %v3484, %v3811
  %v3886 = vadd.f32 %v3485, %v3814
  %v3887 = vadd.f32 %v3486, %v3819
  %v3888 = vadd.f32 %v3487, %v3822
  %v3905 = vunpack.c.l.b16 %v1178
  %v3906 = vunpack.c.l.b16 %v1179
  %v3907 = vunpack.c.l.b16 %v1180
  %v3908 = vunpack.c.l.b16 %v1181
  %v3909 = vunpack.c.l.b16 %v1182
  %v3910 = vunpack.c.l.b16 %v1183
  %v3911 = vunpack.c.l.b16 %v1184
  %v3912 = vunpack.c.l.b16 %v1185
  %v3913 = vunpack.c.l.b16 %v1186
  %v3914 = vunpack.c.l.b16 %v1187
  %v3915 = vunpack.c.l.b16 %v1188
  %v3916 = vunpack.c.l.b16 %v1189
  %v3917 = vunpack.c.l.b16 %v1190
  %v3918 = vunpack.c.l.b16 %v1191
  %v3919 = vunpack.c.l.b16 %v1192
  %v3920 = vunpack.c.l.b16 %v1193
  %v3921 = vpack.c.b16 %v3906, %v3905
  %v3922 = vpack.c.b16 %v3908, %v3907
  %v3923 = vpack.c.b16 %v3910, %v3909
  %v3924 = vpack.c.b16 %v3912, %v3911
  %v3925 = vpack.c.b16 %v3914, %v3913
  %v3926 = vpack.c.b16 %v3916, %v3915
  %v3927 = vpack.c.b16 %v3918, %v3917
  %v3928 = vpack.c.b16 %v3920, %v3919
  %3937 = vmatprep.subr.bf16.mxu0 0
  %3938 = vmatpush1.bf16.msra.mxu0 %v3928
  %3939 = vmatprep.subr.bf16.mxu0 0
  %3940 = vmatpush1.bf16.msra.mxu0 %v3927
  %3941 = vmatprep.subr.bf16.mxu0 0
  %3942 = vmatpush1.bf16.msra.mxu0 %v3926
  %3943 = vmatprep.subr.bf16.mxu0 0
  %3944 = vmatpush1.bf16.msra.mxu0 %v3925
  %3945 = vmatprep.subr.bf16.mxu0 0
  %3946 = vmatpush1.bf16.msra.mxu0 %v3924
  %3947 = vmatprep.subr.bf16.mxu0 0
  %3948 = vmatpush1.bf16.msra.mxu0 %v3923
  %3949 = vmatprep.subr.bf16.mxu0 0
  %3950 = vmatpush1.bf16.msra.mxu0 %v3922
  %3951 = vmatprep.subr.bf16.mxu0 0
  %3952 = vmatpush1.bf16.msra.mxu0 %v3921
  %3953 = vmatprep.subr.bf16.mxu0 0
  %3954 = vmatpush2.bf16.msra.mxu0 0
  %3955 = vmatprep.subr.bf16.mxu0 0
  %3956 = vmatpush2.bf16.msra.mxu0 0
  %3957 = vmatprep.subr.bf16.mxu0 0
  %3958 = vmatpush2.bf16.msra.mxu0 0
  %3959 = vmatprep.subr.bf16.mxu0 0
  %3960 = vmatpush2.bf16.msra.mxu0 0
  %3961 = vmatprep.subr.bf16.mxu0 0
  %3962 = vmatpush2.bf16.msra.mxu0 0
  %3963 = vmatprep.subr.bf16.mxu0 0
  %3964 = vmatpush2.bf16.msra.mxu0 0
  %3965 = vmatprep.subr.bf16.mxu0 0
  %3966 = vmatpush2.bf16.msra.mxu0 0
  %3967 = vmatprep.subr.bf16.mxu0 0
  %3968 = vmatpush2.bf16.msra.mxu0 0
  %3969 = vmatprep.mubr.bf16.mxu0 0
  %3970 = vmatmul.mubr.bf16.gmra.mxu0 %v801
  %v3971 = vpop.f32.mrf.mxu0
  %v3972 = vadd.f32 0.0, %v3971
  %v3973 = vpop.f32.mrf.mxu0
  %v3974 = vpop.f32.mrf.mxu0
  %v3975 = vadd.f32 0.0, %v3974
  %v3976 = vpop.f32.mrf.mxu0
  %3977 = vmatprep.mubr.bf16.mxu0 0
  %3978 = vmatmul.mubr.bf16.gmra.mxu0 %v802
  %v3979 = vpop.f32.mrf.mxu0
  %v3980 = vadd.f32 0.0, %v3979
  %v3981 = vpop.f32.mrf.mxu0
  %v3982 = vpop.f32.mrf.mxu0
  %v3983 = vadd.f32 0.0, %v3982
  %v3984 = vpop.f32.mrf.mxu0
  %3985 = vmatprep.mubr.bf16.mxu0 0
  %3986 = vmatmul.mubr.bf16.gmra.mxu0 %v803
  %v3987 = vpop.f32.mrf.mxu0
  %v3988 = vadd.f32 0.0, %v3987
  %v3989 = vpop.f32.mrf.mxu0
  %v3990 = vpop.f32.mrf.mxu0
  %v3991 = vadd.f32 0.0, %v3990
  %v3992 = vpop.f32.mrf.mxu0
  %3993 = vmatprep.mubr.bf16.mxu0 0
  %3994 = vmatmul.mubr.bf16.gmra.mxu0 %v804
  %v3995 = vpop.f32.mrf.mxu0
  %v3996 = vadd.f32 0.0, %v3995
  %v3997 = vpop.f32.mrf.mxu0
  %v3998 = vpop.f32.mrf.mxu0
  %v3999 = vadd.f32 0.0, %v3998
  %v4000 = vpop.f32.mrf.mxu0
  %4001 = vmatprep.mubr.bf16.mxu0 0
  %4002 = vmatmul.mubr.bf16.gmra.mxu0 %v805
  %v4003 = vpop.f32.mrf.mxu0
  %v4004 = vadd.f32 0.0, %v4003
  %v4005 = vpop.f32.mrf.mxu0
  %v4006 = vpop.f32.mrf.mxu0
  %v4007 = vadd.f32 0.0, %v4006
  %v4008 = vpop.f32.mrf.mxu0
  %4009 = vmatprep.mubr.bf16.mxu0 0
  %4010 = vmatmul.mubr.bf16.gmra.mxu0 %v806
  %v4011 = vpop.f32.mrf.mxu0
  %v4012 = vadd.f32 0.0, %v4011
  %v4013 = vpop.f32.mrf.mxu0
  %v4014 = vpop.f32.mrf.mxu0
  %v4015 = vadd.f32 0.0, %v4014
  %v4016 = vpop.f32.mrf.mxu0
  %4017 = vmatprep.mubr.bf16.mxu0 0
  %4018 = vmatmul.mubr.bf16.gmra.mxu0 %v807
  %v4019 = vpop.f32.mrf.mxu0
  %v4020 = vadd.f32 0.0, %v4019
  %v4021 = vpop.f32.mrf.mxu0
  %v4022 = vpop.f32.mrf.mxu0
  %v4023 = vadd.f32 0.0, %v4022
  %v4024 = vpop.f32.mrf.mxu0
  %4025 = vmatprep.mubr.bf16.mxu0 0
  %4026 = vmatmul.mubr.bf16.gmra.mxu0 %v808
  %v4027 = vpop.f32.mrf.mxu0
  %v4028 = vadd.f32 0.0, %v4027
  %v4029 = vpop.f32.mrf.mxu0
  %v4030 = vpop.f32.mrf.mxu0
  %v4031 = vadd.f32 0.0, %v4030
  %v4032 = vpop.f32.mrf.mxu0
  %4033 = vmatprep.mubr.bf16.mxu0 0
  %4034 = vmatmul.mubr.bf16.gmra.mxu0 %v809
  %v4035 = vpop.f32.mrf.mxu0
  %v4036 = vadd.f32 0.0, %v4035
  %v4037 = vpop.f32.mrf.mxu0
  %v4038 = vpop.f32.mrf.mxu0
  %v4039 = vadd.f32 0.0, %v4038
  %v4040 = vpop.f32.mrf.mxu0
  %4041 = vmatprep.mubr.bf16.mxu0 0
  %4042 = vmatmul.mubr.bf16.gmra.mxu0 %v810
  %v4043 = vpop.f32.mrf.mxu0
  %v4044 = vadd.f32 0.0, %v4043
  %v4045 = vpop.f32.mrf.mxu0
  %v4046 = vpop.f32.mrf.mxu0
  %v4047 = vadd.f32 0.0, %v4046
  %v4048 = vpop.f32.mrf.mxu0
  %4049 = vmatprep.mubr.bf16.mxu0 0
  %4050 = vmatmul.mubr.bf16.gmra.mxu0 %v811
  %v4051 = vpop.f32.mrf.mxu0
  %v4052 = vadd.f32 0.0, %v4051
  %v4053 = vpop.f32.mrf.mxu0
  %v4054 = vpop.f32.mrf.mxu0
  %v4055 = vadd.f32 0.0, %v4054
  %v4056 = vpop.f32.mrf.mxu0
  %4057 = vmatprep.mubr.bf16.mxu0 0
  %4058 = vmatmul.mubr.bf16.gmra.mxu0 %v812
  %v4059 = vpop.f32.mrf.mxu0
  %v4060 = vadd.f32 0.0, %v4059
  %v4061 = vpop.f32.mrf.mxu0
  %v4062 = vpop.f32.mrf.mxu0
  %v4063 = vadd.f32 0.0, %v4062
  %v4064 = vpop.f32.mrf.mxu0
  %4065 = vmatprep.mubr.bf16.mxu0 0
  %4066 = vmatmul.mubr.bf16.gmra.mxu0 %v813
  %v4067 = vpop.f32.mrf.mxu0
  %v4068 = vadd.f32 0.0, %v4067
  %v4069 = vpop.f32.mrf.mxu0
  %v4070 = vpop.f32.mrf.mxu0
  %v4071 = vadd.f32 0.0, %v4070
  %v4072 = vpop.f32.mrf.mxu0
  %4073 = vmatprep.mubr.bf16.mxu0 0
  %4074 = vmatmul.mubr.bf16.gmra.mxu0 %v814
  %v4075 = vpop.f32.mrf.mxu0
  %v4076 = vadd.f32 0.0, %v4075
  %v4077 = vpop.f32.mrf.mxu0
  %v4078 = vpop.f32.mrf.mxu0
  %v4079 = vadd.f32 0.0, %v4078
  %v4080 = vpop.f32.mrf.mxu0
  %4081 = vmatprep.mubr.bf16.mxu0 0
  %4082 = vmatmul.mubr.bf16.gmra.mxu0 %v815
  %v4083 = vpop.f32.mrf.mxu0
  %v4084 = vadd.f32 0.0, %v4083
  %v4085 = vpop.f32.mrf.mxu0
  %v4086 = vpop.f32.mrf.mxu0
  %v4087 = vadd.f32 0.0, %v4086
  %v4088 = vpop.f32.mrf.mxu0
  %4089 = vmatprep.mubr.bf16.mxu0 0
  %4090 = vmatmul.mubr.bf16.gmra.mxu0 %v799
  %v4091 = vpop.f32.mrf.mxu0
  %v4092 = vadd.f32 0.0, %v4091
  %v4093 = vpop.f32.mrf.mxu0
  %v4094 = vpop.f32.mrf.mxu0
  %v4095 = vadd.f32 0.0, %v4094
  %v4096 = vpop.f32.mrf.mxu0
  %4097 = vmatprep.mubr.bf16.mxu0 0
  %4098 = vmatmul.mubr.bf16.gmra.mxu0 %v817
  %v4099 = vpop.f32.mrf.mxu0
  %v4100 = vadd.f32 0.0, %v4099
  %v4101 = vpop.f32.mrf.mxu0
  %v4102 = vpop.f32.mrf.mxu0
  %v4103 = vadd.f32 0.0, %v4102
  %v4104 = vpop.f32.mrf.mxu0
  %4105 = vmatprep.mubr.bf16.mxu0 0
  %4106 = vmatmul.mubr.bf16.gmra.mxu0 %v818
  %v4107 = vpop.f32.mrf.mxu0
  %v4108 = vadd.f32 0.0, %v4107
  %v4109 = vpop.f32.mrf.mxu0
  %v4110 = vpop.f32.mrf.mxu0
  %v4111 = vadd.f32 0.0, %v4110
  %v4112 = vpop.f32.mrf.mxu0
  %4113 = vmatprep.mubr.bf16.mxu0 0
  %4114 = vmatmul.mubr.bf16.gmra.mxu0 %v819
  %v4115 = vpop.f32.mrf.mxu0
  %v4116 = vadd.f32 0.0, %v4115
  %v4117 = vpop.f32.mrf.mxu0
  %v4118 = vpop.f32.mrf.mxu0
  %v4119 = vadd.f32 0.0, %v4118
  %v4120 = vpop.f32.mrf.mxu0
  %4121 = vmatprep.mubr.bf16.mxu0 0
  %4122 = vmatmul.mubr.bf16.gmra.mxu0 %v820
  %v4123 = vpop.f32.mrf.mxu0
  %v4124 = vadd.f32 0.0, %v4123
  %v4125 = vpop.f32.mrf.mxu0
  %v4126 = vpop.f32.mrf.mxu0
  %v4127 = vadd.f32 0.0, %v4126
  %v4128 = vpop.f32.mrf.mxu0
  %4129 = vmatprep.mubr.bf16.mxu0 0
  %4130 = vmatmul.mubr.bf16.gmra.mxu0 %v821
  %v4131 = vpop.f32.mrf.mxu0
  %v4132 = vadd.f32 0.0, %v4131
  %v4133 = vpop.f32.mrf.mxu0
  %v4134 = vpop.f32.mrf.mxu0
  %v4135 = vadd.f32 0.0, %v4134
  %v4136 = vpop.f32.mrf.mxu0
  %4137 = vmatprep.mubr.bf16.mxu0 0
  %4138 = vmatmul.mubr.bf16.gmra.mxu0 %v822
  %v4139 = vpop.f32.mrf.mxu0
  %v4140 = vadd.f32 0.0, %v4139
  %v4141 = vpop.f32.mrf.mxu0
  %v4142 = vpop.f32.mrf.mxu0
  %v4143 = vadd.f32 0.0, %v4142
  %v4144 = vpop.f32.mrf.mxu0
  %4145 = vmatprep.mubr.bf16.mxu0 0
  %4146 = vmatmul.mubr.bf16.gmra.mxu0 %v823
  %v4147 = vpop.f32.mrf.mxu0
  %v4148 = vadd.f32 0.0, %v4147
  %v4149 = vpop.f32.mrf.mxu0
  %v4150 = vpop.f32.mrf.mxu0
  %v4151 = vadd.f32 0.0, %v4150
  %v4152 = vpop.f32.mrf.mxu0
  %4153 = vmatprep.mubr.bf16.mxu0 0
  %4154 = vmatmul.mubr.bf16.gmra.mxu0 %v824
  %v4155 = vpop.f32.mrf.mxu0
  %v4156 = vadd.f32 0.0, %v4155
  %v4157 = vpop.f32.mrf.mxu0
  %v4158 = vpop.f32.mrf.mxu0
  %v4159 = vadd.f32 0.0, %v4158
  %v4160 = vpop.f32.mrf.mxu0
  %4161 = vmatprep.mubr.bf16.mxu0 0
  %4162 = vmatmul.mubr.bf16.gmra.mxu0 %v825
  %v4163 = vpop.f32.mrf.mxu0
  %v4164 = vadd.f32 0.0, %v4163
  %v4165 = vpop.f32.mrf.mxu0
  %v4166 = vpop.f32.mrf.mxu0
  %v4167 = vadd.f32 0.0, %v4166
  %v4168 = vpop.f32.mrf.mxu0
  %4169 = vmatprep.mubr.bf16.mxu0 0
  %4170 = vmatmul.mubr.bf16.gmra.mxu0 %v826
  %v4171 = vpop.f32.mrf.mxu0
  %v4172 = vadd.f32 0.0, %v4171
  %v4173 = vpop.f32.mrf.mxu0
  %v4174 = vpop.f32.mrf.mxu0
  %v4175 = vadd.f32 0.0, %v4174
  %v4176 = vpop.f32.mrf.mxu0
  %4177 = vmatprep.mubr.bf16.mxu0 0
  %4178 = vmatmul.mubr.bf16.gmra.mxu0 %v827
  %v4179 = vpop.f32.mrf.mxu0
  %v4180 = vadd.f32 0.0, %v4179
  %v4181 = vpop.f32.mrf.mxu0
  %v4182 = vpop.f32.mrf.mxu0
  %v4183 = vadd.f32 0.0, %v4182
  %v4184 = vpop.f32.mrf.mxu0
  %4185 = vmatprep.mubr.bf16.mxu0 0
  %4186 = vmatmul.mubr.bf16.gmra.mxu0 %v828
  %v4187 = vpop.f32.mrf.mxu0
  %v4188 = vadd.f32 0.0, %v4187
  %v4189 = vpop.f32.mrf.mxu0
  %v4190 = vpop.f32.mrf.mxu0
  %v4191 = vadd.f32 0.0, %v4190
  %v4192 = vpop.f32.mrf.mxu0
  %4193 = vmatprep.mubr.bf16.mxu0 0
  %4194 = vmatmul.mubr.bf16.gmra.mxu0 %v829
  %v4195 = vpop.f32.mrf.mxu0
  %v4196 = vadd.f32 0.0, %v4195
  %v4197 = vpop.f32.mrf.mxu0
  %v4198 = vpop.f32.mrf.mxu0
  %v4199 = vadd.f32 0.0, %v4198
  %v4200 = vpop.f32.mrf.mxu0
  %4201 = vmatprep.mubr.bf16.mxu0 0
  %4202 = vmatmul.mubr.bf16.gmra.mxu0 %v830
  %v4203 = vpop.f32.mrf.mxu0
  %v4204 = vadd.f32 0.0, %v4203
  %v4205 = vpop.f32.mrf.mxu0
  %v4206 = vpop.f32.mrf.mxu0
  %v4207 = vadd.f32 0.0, %v4206
  %v4208 = vpop.f32.mrf.mxu0
  %4209 = vmatprep.mubr.bf16.mxu0 0
  %4210 = vmatmul.mubr.bf16.gmra.mxu0 %v831
  %v4211 = vpop.f32.mrf.mxu0
  %v4212 = vadd.f32 0.0, %v4211
  %v4213 = vpop.f32.mrf.mxu0
  %v4214 = vpop.f32.mrf.mxu0
  %v4215 = vadd.f32 0.0, %v4214
  %v4216 = vpop.f32.mrf.mxu0
  %4217 = vmatprep.mubr.bf16.mxu0 0
  %4218 = vmatmul.mubr.bf16.gmra.mxu0 %v799
  %v4219 = vpop.f32.mrf.mxu0
  %v4220 = vadd.f32 0.0, %v4219
  %v4221 = vpop.f32.mrf.mxu0
  %v4222 = vpop.f32.mrf.mxu0
  %v4223 = vadd.f32 0.0, %v4222
  %v4224 = vpop.f32.mrf.mxu0
  %4225 = vdwg.mxu0
  %v4226 = vadd.f32 %v3825, %v3972
  %v4227 = vadd.f32 %v3826, %v3975
  %v4228 = vadd.f32 %v3827, %v3980
  %v4229 = vadd.f32 %v3828, %v3983
  %v4230 = vadd.f32 %v3829, %v3988
  %v4231 = vadd.f32 %v3830, %v3991
  %v4232 = vadd.f32 %v3831, %v3996
  %v4233 = vadd.f32 %v3832, %v3999
  %v4234 = vadd.f32 %v3833, %v4004
  %v4235 = vadd.f32 %v3834, %v4007
  %v4236 = vadd.f32 %v3835, %v4012
  %v4237 = vadd.f32 %v3836, %v4015
  %v4238 = vadd.f32 %v3837, %v4020
  %v4239 = vadd.f32 %v3838, %v4023
  %v4240 = vadd.f32 %v3839, %v4028
  %v4241 = vadd.f32 %v3840, %v4031
  %v4242 = vadd.f32 %v3841, %v4036
  %v4243 = vadd.f32 %v3842, %v4039
  %v4244 = vadd.f32 %v3843, %v4044
  %v4245 = vadd.f32 %v3844, %v4047
  %v4246 = vadd.f32 %v3845, %v4052
  %v4247 = vadd.f32 %v3846, %v4055
  %v4248 = vadd.f32 %v3847, %v4060
  %v4249 = vadd.f32 %v3848, %v4063
  %v4250 = vadd.f32 %v3849, %v4068
  %v4251 = vadd.f32 %v3850, %v4071
  %v4252 = vadd.f32 %v3851, %v4076
  %v4253 = vadd.f32 %v3852, %v4079
  %v4254 = vadd.f32 %v3853, %v4084
  %v4255 = vadd.f32 %v3854, %v4087
  %v4256 = vadd.f32 %v3855, %v4092
  %v4257 = vadd.f32 %v3856, %v4095
  %v4258 = vadd.f32 %v3857, %v4100
  %v4259 = vadd.f32 %v3858, %v4103
  %v4260 = vadd.f32 %v3859, %v4108
  %v4261 = vadd.f32 %v3860, %v4111
  %v4262 = vadd.f32 %v3861, %v4116
  %v4263 = vadd.f32 %v3862, %v4119
  %v4264 = vadd.f32 %v3863, %v4124
  %v4265 = vadd.f32 %v3864, %v4127
  %v4266 = vadd.f32 %v3865, %v4132
  %v4267 = vadd.f32 %v3866, %v4135
  %v4268 = vadd.f32 %v3867, %v4140
  %v4269 = vadd.f32 %v3868, %v4143
  %v4270 = vadd.f32 %v3869, %v4148
  %v4271 = vadd.f32 %v3870, %v4151
  %v4272 = vadd.f32 %v3871, %v4156
  %v4273 = vadd.f32 %v3872, %v4159
  %v4274 = vadd.f32 %v3873, %v4164
  %v4275 = vadd.f32 %v3874, %v4167
  %v4276 = vadd.f32 %v3875, %v4172
  %v4277 = vadd.f32 %v3876, %v4175
  %v4278 = vadd.f32 %v3877, %v4180
  %v4279 = vadd.f32 %v3878, %v4183
  %v4280 = vadd.f32 %v3879, %v4188
  %v4281 = vadd.f32 %v3880, %v4191
  %v4282 = vadd.f32 %v3881, %v4196
  %v4283 = vadd.f32 %v3882, %v4199
  %v4284 = vadd.f32 %v3883, %v4204
  %v4285 = vadd.f32 %v3884, %v4207
  %v4286 = vadd.f32 %v3885, %v4212
  %v4287 = vadd.f32 %v3886, %v4215
  %v4288 = vadd.f32 %v3887, %v4220
  %v4289 = vadd.f32 %v3888, %v4223
  %v4306 = vunpack.c.l.b16 %v1194
  %v4307 = vunpack.c.l.b16 %v1195
  %v4308 = vunpack.c.l.b16 %v1196
  %v4309 = vunpack.c.l.b16 %v1197
  %v4310 = vunpack.c.l.b16 %v1198
  %v4311 = vunpack.c.l.b16 %v1199
  %v4312 = vunpack.c.l.b16 %v1200
  %v4313 = vunpack.c.l.b16 %v1201
  %v4314 = vunpack.c.l.b16 %v1202
  %v4315 = vunpack.c.l.b16 %v1203
  %v4316 = vunpack.c.l.b16 %v1204
  %v4317 = vunpack.c.l.b16 %v1205
  %v4318 = vunpack.c.l.b16 %v1206
  %v4319 = vunpack.c.l.b16 %v1207
  %v4320 = vunpack.c.l.b16 %v1208
  %v4321 = vunpack.c.l.b16 %v1209
  %v4322 = vpack.c.b16 %v4307, %v4306
  %v4323 = vpack.c.b16 %v4309, %v4308
  %v4324 = vpack.c.b16 %v4311, %v4310
  %v4325 = vpack.c.b16 %v4313, %v4312
  %v4326 = vpack.c.b16 %v4315, %v4314
  %v4327 = vpack.c.b16 %v4317, %v4316
  %v4328 = vpack.c.b16 %v4319, %v4318
  %v4329 = vpack.c.b16 %v4321, %v4320
  %4338 = vmatprep.subr.bf16.mxu0 0
  %4339 = vmatpush1.bf16.msra.mxu0 %v4329
  %4340 = vmatprep.subr.bf16.mxu0 0
  %4341 = vmatpush1.bf16.msra.mxu0 %v4328
  %4342 = vmatprep.subr.bf16.mxu0 0
  %4343 = vmatpush1.bf16.msra.mxu0 %v4327
  %4344 = vmatprep.subr.bf16.mxu0 0
  %4345 = vmatpush1.bf16.msra.mxu0 %v4326
  %4346 = vmatprep.subr.bf16.mxu0 0
  %4347 = vmatpush1.bf16.msra.mxu0 %v4325
  %4348 = vmatprep.subr.bf16.mxu0 0
  %4349 = vmatpush1.bf16.msra.mxu0 %v4324
  %4350 = vmatprep.subr.bf16.mxu0 0
  %4351 = vmatpush1.bf16.msra.mxu0 %v4323
  %4352 = vmatprep.subr.bf16.mxu0 0
  %4353 = vmatpush1.bf16.msra.mxu0 %v4322
  %4354 = vmatprep.subr.bf16.mxu0 0
  %4355 = vmatpush2.bf16.msra.mxu0 0
  %4356 = vmatprep.subr.bf16.mxu0 0
  %4357 = vmatpush2.bf16.msra.mxu0 0
  %4358 = vmatprep.subr.bf16.mxu0 0
  %4359 = vmatpush2.bf16.msra.mxu0 0
  %4360 = vmatprep.subr.bf16.mxu0 0
  %4361 = vmatpush2.bf16.msra.mxu0 0
  %4362 = vmatprep.subr.bf16.mxu0 0
  %4363 = vmatpush2.bf16.msra.mxu0 0
  %4364 = vmatprep.subr.bf16.mxu0 0
  %4365 = vmatpush2.bf16.msra.mxu0 0
  %4366 = vmatprep.subr.bf16.mxu0 0
  %4367 = vmatpush2.bf16.msra.mxu0 0
  %4368 = vmatprep.subr.bf16.mxu0 0
  %4369 = vmatpush2.bf16.msra.mxu0 0
  %4370 = vmatprep.mubr.bf16.mxu0 0
  %4371 = vmatmul.mubr.bf16.gmra.mxu0 %v1035
  %v4372 = vpop.f32.mrf.mxu0
  %v4373 = vadd.f32 0.0, %v4372
  %v4374 = vpop.f32.mrf.mxu0
  %v4375 = vpop.f32.mrf.mxu0
  %v4376 = vadd.f32 0.0, %v4375
  %v4377 = vpop.f32.mrf.mxu0
  %4378 = vmatprep.mubr.bf16.mxu0 0
  %4379 = vmatmul.mubr.bf16.gmra.mxu0 %v1036
  %v4380 = vpop.f32.mrf.mxu0
  %v4381 = vadd.f32 0.0, %v4380
  %v4382 = vpop.f32.mrf.mxu0
  %v4383 = vpop.f32.mrf.mxu0
  %v4384 = vadd.f32 0.0, %v4383
  %v4385 = vpop.f32.mrf.mxu0
  %4386 = vmatprep.mubr.bf16.mxu0 0
  %4387 = vmatmul.mubr.bf16.gmra.mxu0 %v1037
  %v4388 = vpop.f32.mrf.mxu0
  %v4389 = vadd.f32 0.0, %v4388
  %v4390 = vpop.f32.mrf.mxu0
  %v4391 = vpop.f32.mrf.mxu0
  %v4392 = vadd.f32 0.0, %v4391
  %v4393 = vpop.f32.mrf.mxu0
  %4394 = vmatprep.mubr.bf16.mxu0 0
  %4395 = vmatmul.mubr.bf16.gmra.mxu0 %v1038
  %v4396 = vpop.f32.mrf.mxu0
  %v4397 = vadd.f32 0.0, %v4396
  %v4398 = vpop.f32.mrf.mxu0
  %v4399 = vpop.f32.mrf.mxu0
  %v4400 = vadd.f32 0.0, %v4399
  %v4401 = vpop.f32.mrf.mxu0
  %4402 = vmatprep.mubr.bf16.mxu0 0
  %4403 = vmatmul.mubr.bf16.gmra.mxu0 %v1039
  %v4404 = vpop.f32.mrf.mxu0
  %v4405 = vadd.f32 0.0, %v4404
  %v4406 = vpop.f32.mrf.mxu0
  %v4407 = vpop.f32.mrf.mxu0
  %v4408 = vadd.f32 0.0, %v4407
  %v4409 = vpop.f32.mrf.mxu0
  %4410 = vmatprep.mubr.bf16.mxu0 0
  %4411 = vmatmul.mubr.bf16.gmra.mxu0 %v1040
  %v4412 = vpop.f32.mrf.mxu0
  %v4413 = vadd.f32 0.0, %v4412
  %v4414 = vpop.f32.mrf.mxu0
  %v4415 = vpop.f32.mrf.mxu0
  %v4416 = vadd.f32 0.0, %v4415
  %v4417 = vpop.f32.mrf.mxu0
  %4418 = vmatprep.mubr.bf16.mxu0 0
  %4419 = vmatmul.mubr.bf16.gmra.mxu0 %v1041
  %v4420 = vpop.f32.mrf.mxu0
  %v4421 = vadd.f32 0.0, %v4420
  %v4422 = vpop.f32.mrf.mxu0
  %v4423 = vpop.f32.mrf.mxu0
  %v4424 = vadd.f32 0.0, %v4423
  %v4425 = vpop.f32.mrf.mxu0
  %4426 = vmatprep.mubr.bf16.mxu0 0
  %4427 = vmatmul.mubr.bf16.gmra.mxu0 %v1042
  %v4428 = vpop.f32.mrf.mxu0
  %v4429 = vadd.f32 0.0, %v4428
  %v4430 = vpop.f32.mrf.mxu0
  %v4431 = vpop.f32.mrf.mxu0
  %v4432 = vadd.f32 0.0, %v4431
  %v4433 = vpop.f32.mrf.mxu0
  %4434 = vmatprep.mubr.bf16.mxu0 0
  %4435 = vmatmul.mubr.bf16.gmra.mxu0 %v1043
  %v4436 = vpop.f32.mrf.mxu0
  %v4437 = vadd.f32 0.0, %v4436
  %v4438 = vpop.f32.mrf.mxu0
  %v4439 = vpop.f32.mrf.mxu0
  %v4440 = vadd.f32 0.0, %v4439
  %v4441 = vpop.f32.mrf.mxu0
  %4442 = vmatprep.mubr.bf16.mxu0 0
  %4443 = vmatmul.mubr.bf16.gmra.mxu0 %v1044
  %v4444 = vpop.f32.mrf.mxu0
  %v4445 = vadd.f32 0.0, %v4444
  %v4446 = vpop.f32.mrf.mxu0
  %v4447 = vpop.f32.mrf.mxu0
  %v4448 = vadd.f32 0.0, %v4447
  %v4449 = vpop.f32.mrf.mxu0
  %4450 = vmatprep.mubr.bf16.mxu0 0
  %4451 = vmatmul.mubr.bf16.gmra.mxu0 %v1045
  %v4452 = vpop.f32.mrf.mxu0
  %v4453 = vadd.f32 0.0, %v4452
  %v4454 = vpop.f32.mrf.mxu0
  %v4455 = vpop.f32.mrf.mxu0
  %v4456 = vadd.f32 0.0, %v4455
  %v4457 = vpop.f32.mrf.mxu0
  %4458 = vmatprep.mubr.bf16.mxu0 0
  %4459 = vmatmul.mubr.bf16.gmra.mxu0 %v1046
  %v4460 = vpop.f32.mrf.mxu0
  %v4461 = vadd.f32 0.0, %v4460
  %v4462 = vpop.f32.mrf.mxu0
  %v4463 = vpop.f32.mrf.mxu0
  %v4464 = vadd.f32 0.0, %v4463
  %v4465 = vpop.f32.mrf.mxu0
  %4466 = vmatprep.mubr.bf16.mxu0 0
  %4467 = vmatmul.mubr.bf16.gmra.mxu0 %v1047
  %v4468 = vpop.f32.mrf.mxu0
  %v4469 = vadd.f32 0.0, %v4468
  %v4470 = vpop.f32.mrf.mxu0
  %v4471 = vpop.f32.mrf.mxu0
  %v4472 = vadd.f32 0.0, %v4471
  %v4473 = vpop.f32.mrf.mxu0
  %4474 = vmatprep.mubr.bf16.mxu0 0
  %4475 = vmatmul.mubr.bf16.gmra.mxu0 %v1048
  %v4476 = vpop.f32.mrf.mxu0
  %v4477 = vadd.f32 0.0, %v4476
  %v4478 = vpop.f32.mrf.mxu0
  %v4479 = vpop.f32.mrf.mxu0
  %v4480 = vadd.f32 0.0, %v4479
  %v4481 = vpop.f32.mrf.mxu0
  %4482 = vmatprep.mubr.bf16.mxu0 0
  %4483 = vmatmul.mubr.bf16.gmra.mxu0 %v1049
  %v4484 = vpop.f32.mrf.mxu0
  %v4485 = vadd.f32 0.0, %v4484
  %v4486 = vpop.f32.mrf.mxu0
  %v4487 = vpop.f32.mrf.mxu0
  %v4488 = vadd.f32 0.0, %v4487
  %v4489 = vpop.f32.mrf.mxu0
  %4490 = vmatprep.mubr.bf16.mxu0 0
  %4491 = vmatmul.mubr.bf16.gmra.mxu0 %v1033
  %v4492 = vpop.f32.mrf.mxu0
  %v4493 = vadd.f32 0.0, %v4492
  %v4494 = vpop.f32.mrf.mxu0
  %v4495 = vpop.f32.mrf.mxu0
  %v4496 = vadd.f32 0.0, %v4495
  %v4497 = vpop.f32.mrf.mxu0
  %4498 = vmatprep.mubr.bf16.mxu0 0
  %4499 = vmatmul.mubr.bf16.gmra.mxu0 %v1051
  %v4500 = vpop.f32.mrf.mxu0
  %v4501 = vadd.f32 0.0, %v4500
  %v4502 = vpop.f32.mrf.mxu0
  %v4503 = vpop.f32.mrf.mxu0
  %v4504 = vadd.f32 0.0, %v4503
  %v4505 = vpop.f32.mrf.mxu0
  %4506 = vmatprep.mubr.bf16.mxu0 0
  %4507 = vmatmul.mubr.bf16.gmra.mxu0 %v1052
  %v4508 = vpop.f32.mrf.mxu0
  %v4509 = vadd.f32 0.0, %v4508
  %v4510 = vpop.f32.mrf.mxu0
  %v4511 = vpop.f32.mrf.mxu0
  %v4512 = vadd.f32 0.0, %v4511
  %v4513 = vpop.f32.mrf.mxu0
  %4514 = vmatprep.mubr.bf16.mxu0 0
  %4515 = vmatmul.mubr.bf16.gmra.mxu0 %v1053
  %v4516 = vpop.f32.mrf.mxu0
  %v4517 = vadd.f32 0.0, %v4516
  %v4518 = vpop.f32.mrf.mxu0
  %v4519 = vpop.f32.mrf.mxu0
  %v4520 = vadd.f32 0.0, %v4519
  %v4521 = vpop.f32.mrf.mxu0
  %4522 = vmatprep.mubr.bf16.mxu0 0
  %4523 = vmatmul.mubr.bf16.gmra.mxu0 %v1054
  %v4524 = vpop.f32.mrf.mxu0
  %v4525 = vadd.f32 0.0, %v4524
  %v4526 = vpop.f32.mrf.mxu0
  %v4527 = vpop.f32.mrf.mxu0
  %v4528 = vadd.f32 0.0, %v4527
  %v4529 = vpop.f32.mrf.mxu0
  %4530 = vmatprep.mubr.bf16.mxu0 0
  %4531 = vmatmul.mubr.bf16.gmra.mxu0 %v1055
  %v4532 = vpop.f32.mrf.mxu0
  %v4533 = vadd.f32 0.0, %v4532
  %v4534 = vpop.f32.mrf.mxu0
  %v4535 = vpop.f32.mrf.mxu0
  %v4536 = vadd.f32 0.0, %v4535
  %v4537 = vpop.f32.mrf.mxu0
  %4538 = vmatprep.mubr.bf16.mxu0 0
  %4539 = vmatmul.mubr.bf16.gmra.mxu0 %v1056
  %v4540 = vpop.f32.mrf.mxu0
  %v4541 = vadd.f32 0.0, %v4540
  %v4542 = vpop.f32.mrf.mxu0
  %v4543 = vpop.f32.mrf.mxu0
  %v4544 = vadd.f32 0.0, %v4543
  %v4545 = vpop.f32.mrf.mxu0
  %4546 = vmatprep.mubr.bf16.mxu0 0
  %4547 = vmatmul.mubr.bf16.gmra.mxu0 %v1057
  %v4548 = vpop.f32.mrf.mxu0
  %v4549 = vadd.f32 0.0, %v4548
  %v4550 = vpop.f32.mrf.mxu0
  %v4551 = vpop.f32.mrf.mxu0
  %v4552 = vadd.f32 0.0, %v4551
  %v4553 = vpop.f32.mrf.mxu0
  %4554 = vmatprep.mubr.bf16.mxu0 0
  %4555 = vmatmul.mubr.bf16.gmra.mxu0 %v1058
  %v4556 = vpop.f32.mrf.mxu0
  %v4557 = vadd.f32 0.0, %v4556
  %v4558 = vpop.f32.mrf.mxu0
  %v4559 = vpop.f32.mrf.mxu0
  %v4560 = vadd.f32 0.0, %v4559
  %v4561 = vpop.f32.mrf.mxu0
  %4562 = vmatprep.mubr.bf16.mxu0 0
  %4563 = vmatmul.mubr.bf16.gmra.mxu0 %v1059
  %v4564 = vpop.f32.mrf.mxu0
  %v4565 = vadd.f32 0.0, %v4564
  %v4566 = vpop.f32.mrf.mxu0
  %v4567 = vpop.f32.mrf.mxu0
  %v4568 = vadd.f32 0.0, %v4567
  %v4569 = vpop.f32.mrf.mxu0
  %4570 = vmatprep.mubr.bf16.mxu0 0
  %4571 = vmatmul.mubr.bf16.gmra.mxu0 %v1060
  %v4572 = vpop.f32.mrf.mxu0
  %v4573 = vadd.f32 0.0, %v4572
  %v4574 = vpop.f32.mrf.mxu0
  %v4575 = vpop.f32.mrf.mxu0
  %v4576 = vadd.f32 0.0, %v4575
  %v4577 = vpop.f32.mrf.mxu0
  %4578 = vmatprep.mubr.bf16.mxu0 0
  %4579 = vmatmul.mubr.bf16.gmra.mxu0 %v1061
  %v4580 = vpop.f32.mrf.mxu0
  %v4581 = vadd.f32 0.0, %v4580
  %v4582 = vpop.f32.mrf.mxu0
  %v4583 = vpop.f32.mrf.mxu0
  %v4584 = vadd.f32 0.0, %v4583
  %v4585 = vpop.f32.mrf.mxu0
  %4586 = vmatprep.mubr.bf16.mxu0 0
  %4587 = vmatmul.mubr.bf16.gmra.mxu0 %v1062
  %v4588 = vpop.f32.mrf.mxu0
  %v4589 = vadd.f32 0.0, %v4588
  %v4590 = vpop.f32.mrf.mxu0
  %v4591 = vpop.f32.mrf.mxu0
  %v4592 = vadd.f32 0.0, %v4591
  %v4593 = vpop.f32.mrf.mxu0
  %4594 = vmatprep.mubr.bf16.mxu0 0
  %4595 = vmatmul.mubr.bf16.gmra.mxu0 %v1063
  %v4596 = vpop.f32.mrf.mxu0
  %v4597 = vadd.f32 0.0, %v4596
  %v4598 = vpop.f32.mrf.mxu0
  %v4599 = vpop.f32.mrf.mxu0
  %v4600 = vadd.f32 0.0, %v4599
  %v4601 = vpop.f32.mrf.mxu0
  %4602 = vmatprep.mubr.bf16.mxu0 0
  %4603 = vmatmul.mubr.bf16.gmra.mxu0 %v1064
  %v4604 = vpop.f32.mrf.mxu0
  %v4605 = vadd.f32 0.0, %v4604
  %v4606 = vpop.f32.mrf.mxu0
  %v4607 = vpop.f32.mrf.mxu0
  %v4608 = vadd.f32 0.0, %v4607
  %v4609 = vpop.f32.mrf.mxu0
  %4610 = vmatprep.mubr.bf16.mxu0 0
  %4611 = vmatmul.mubr.bf16.gmra.mxu0 %v1065
  %v4612 = vpop.f32.mrf.mxu0
  %v4613 = vadd.f32 0.0, %v4612
  %v4614 = vpop.f32.mrf.mxu0
  %v4615 = vpop.f32.mrf.mxu0
  %v4616 = vadd.f32 0.0, %v4615
  %v4617 = vpop.f32.mrf.mxu0
  %4618 = vmatprep.mubr.bf16.mxu0 0
  %4619 = vmatmul.mubr.bf16.gmra.mxu0 %v1033
  %v4620 = vpop.f32.mrf.mxu0
  %v4621 = vadd.f32 0.0, %v4620
  %v4622 = vpop.f32.mrf.mxu0
  %v4623 = vpop.f32.mrf.mxu0
  %v4624 = vadd.f32 0.0, %v4623
  %v4625 = vpop.f32.mrf.mxu0
  %4626 = vdwg.mxu0
  %v4627 = vadd.f32 %v4226, %v4373
  %v4628 = vadd.f32 %v4227, %v4376
  %v4629 = vadd.f32 %v4228, %v4381
  %v4630 = vadd.f32 %v4229, %v4384
  %v4631 = vadd.f32 %v4230, %v4389
  %v4632 = vadd.f32 %v4231, %v4392
  %v4633 = vadd.f32 %v4232, %v4397
  %v4634 = vadd.f32 %v4233, %v4400
  %v4635 = vadd.f32 %v4234, %v4405
  %v4636 = vadd.f32 %v4235, %v4408
  %v4637 = vadd.f32 %v4236, %v4413
  %v4638 = vadd.f32 %v4237, %v4416
  %v4639 = vadd.f32 %v4238, %v4421
  %v4640 = vadd.f32 %v4239, %v4424
  %v4641 = vadd.f32 %v4240, %v4429
  %v4642 = vadd.f32 %v4241, %v4432
  %v4643 = vadd.f32 %v4242, %v4437
  %v4644 = vadd.f32 %v4243, %v4440
  %v4645 = vadd.f32 %v4244, %v4445
  %v4646 = vadd.f32 %v4245, %v4448
  %v4647 = vadd.f32 %v4246, %v4453
  %v4648 = vadd.f32 %v4247, %v4456
  %v4649 = vadd.f32 %v4248, %v4461
  %v4650 = vadd.f32 %v4249, %v4464
  %v4651 = vadd.f32 %v4250, %v4469
  %v4652 = vadd.f32 %v4251, %v4472
  %v4653 = vadd.f32 %v4252, %v4477
  %v4654 = vadd.f32 %v4253, %v4480
  %v4655 = vadd.f32 %v4254, %v4485
  %v4656 = vadd.f32 %v4255, %v4488
  %v4657 = vadd.f32 %v4256, %v4493
  %v4658 = vadd.f32 %v4257, %v4496
  %v4659 = vadd.f32 %v4258, %v4501
  %v4660 = vadd.f32 %v4259, %v4504
  %v4661 = vadd.f32 %v4260, %v4509
  %v4662 = vadd.f32 %v4261, %v4512
  %v4663 = vadd.f32 %v4262, %v4517
  %v4664 = vadd.f32 %v4263, %v4520
  %v4665 = vadd.f32 %v4264, %v4525
  %v4666 = vadd.f32 %v4265, %v4528
  %v4667 = vadd.f32 %v4266, %v4533
  %v4668 = vadd.f32 %v4267, %v4536
  %v4669 = vadd.f32 %v4268, %v4541
  %v4670 = vadd.f32 %v4269, %v4544
  %v4671 = vadd.f32 %v4270, %v4549
  %v4672 = vadd.f32 %v4271, %v4552
  %v4673 = vadd.f32 %v4272, %v4557
  %v4674 = vadd.f32 %v4273, %v4560
  %v4675 = vadd.f32 %v4274, %v4565
  %v4676 = vadd.f32 %v4275, %v4568
  %v4677 = vadd.f32 %v4276, %v4573
  %v4678 = vadd.f32 %v4277, %v4576
  %v4679 = vadd.f32 %v4278, %v4581
  %v4680 = vadd.f32 %v4279, %v4584
  %v4681 = vadd.f32 %v4280, %v4589
  %v4682 = vadd.f32 %v4281, %v4592
  %v4683 = vadd.f32 %v4282, %v4597
  %v4684 = vadd.f32 %v4283, %v4600
  %v4685 = vadd.f32 %v4284, %v4605
  %v4686 = vadd.f32 %v4285, %v4608
  %v4687 = vadd.f32 %v4286, %v4613
  %v4688 = vadd.f32 %v4287, %v4616
  %v4689 = vadd.f32 %v4288, %v4621
  %v4690 = vadd.f32 %v4289, %v4624
  %v4691 = vadd.f32 %v21, %v4627
  %v4692 = vadd.f32 %v22, %v4628
  %v4693 = vadd.f32 %v23, %v4629
  %v4694 = vadd.f32 %v24, %v4630
  %v4695 = vadd.f32 %v25, %v4631
  %v4696 = vadd.f32 %v26, %v4632
  %v4697 = vadd.f32 %v27, %v4633
  %v4698 = vadd.f32 %v28, %v4634
  %v4699 = vadd.f32 %v29, %v4635
  %v4700 = vadd.f32 %v30, %v4636
  %v4701 = vadd.f32 %v31, %v4637
  %v4702 = vadd.f32 %v32, %v4638
  %v4703 = vadd.f32 %v33, %v4639
  %v4704 = vadd.f32 %v34, %v4640
  %v4705 = vadd.f32 %v35, %v4641
  %v4706 = vadd.f32 %v36, %v4642
  %v4707 = vadd.f32 %v37, %v4643
  %v4708 = vadd.f32 %v38, %v4644
  %v4709 = vadd.f32 %v39, %v4645
  %v4710 = vadd.f32 %v40, %v4646
  %v4711 = vadd.f32 %v41, %v4647
  %v4712 = vadd.f32 %v42, %v4648
  %v4713 = vadd.f32 %v43, %v4649
  %v4714 = vadd.f32 %v44, %v4650
  %v4715 = vadd.f32 %v45, %v4651
  %v4716 = vadd.f32 %v46, %v4652
  %v4717 = vadd.f32 %v47, %v4653
  %v4718 = vadd.f32 %v48, %v4654
  %v4719 = vadd.f32 %v49, %v4655
  %v4720 = vadd.f32 %v50, %v4656
  %v4721 = vadd.f32 %v51, %v4657
  %v4722 = vadd.f32 %v52, %v4658
  %v4723 = vadd.f32 %v53, %v4659
  %v4724 = vadd.f32 %v54, %v4660
  %v4725 = vadd.f32 %v55, %v4661
  %v4726 = vadd.f32 %v56, %v4662
  %v4727 = vadd.f32 %v57, %v4663
  %v4728 = vadd.f32 %v58, %v4664
  %v4729 = vadd.f32 %v59, %v4665
  %v4730 = vadd.f32 %v60, %v4666
  %v4731 = vadd.f32 %v61, %v4667
  %v4732 = vadd.f32 %v62, %v4668
  %v4733 = vadd.f32 %v63, %v4669
  %v4734 = vadd.f32 %v64, %v4670
  %v4735 = vadd.f32 %v65, %v4671
  %v4736 = vadd.f32 %v66, %v4672
  %v4737 = vadd.f32 %v67, %v4673
  %v4738 = vadd.f32 %v68, %v4674
  %v4739 = vadd.f32 %v69, %v4675
  %v4740 = vadd.f32 %v70, %v4676
  %v4741 = vadd.f32 %v71, %v4677
  %v4742 = vadd.f32 %v72, %v4678
  %v4743 = vadd.f32 %v73, %v4679
  %v4744 = vadd.f32 %v74, %v4680
  %v4745 = vadd.f32 %v75, %v4681
  %v4746 = vadd.f32 %v76, %v4682
  %v4747 = vadd.f32 %v77, %v4683
  %v4748 = vadd.f32 %v78, %v4684
  %v4749 = vadd.f32 %v79, %v4685
  %v4750 = vadd.f32 %v80, %v4686
  %v4751 = vadd.f32 %v81, %v4687
  %v4752 = vadd.f32 %v82, %v4688
  %v4753 = vadd.f32 %v83, %v4689
  %v4754 = vadd.f32 %v84, %v4690
  %v4755 = vlaneseq
  %v4756 = vshrl.u32 %v4755, 7
  %v4757 = vsub.s32 0, %v4756
  %v4758 = vrot.slane %v87, %v4757
  %v4759 = vadd.f32 %v4691, %v4758
  %v4760 = vadd.f32 %v4692, %v4758
  %v4761 = vadd.f32 %v4693, %v4758
  %v4762 = vadd.f32 %v4694, %v4758
  %v4763 = vadd.f32 %v4695, %v4758
  %v4764 = vadd.f32 %v4696, %v4758
  %v4765 = vadd.f32 %v4697, %v4758
  %v4766 = vadd.f32 %v4698, %v4758
  %v4767 = vadd.f32 %v4699, %v4758
  %v4768 = vadd.f32 %v4700, %v4758
  %v4769 = vadd.f32 %v4701, %v4758
  %v4770 = vadd.f32 %v4702, %v4758
  %v4771 = vadd.f32 %v4703, %v4758
  %v4772 = vadd.f32 %v4704, %v4758
  %v4773 = vadd.f32 %v4705, %v4758
  %v4774 = vadd.f32 %v4706, %v4758
  %v4775 = vadd.f32 %v4707, %v4758
  %v4776 = vadd.f32 %v4708, %v4758
  %v4777 = vadd.f32 %v4709, %v4758
  %v4778 = vadd.f32 %v4710, %v4758
  %v4779 = vadd.f32 %v4711, %v4758
  %v4780 = vadd.f32 %v4712, %v4758
  %v4781 = vadd.f32 %v4713, %v4758
  %v4782 = vadd.f32 %v4714, %v4758
  %v4783 = vadd.f32 %v4715, %v4758
  %v4784 = vadd.f32 %v4716, %v4758
  %v4785 = vadd.f32 %v4717, %v4758
  %v4786 = vadd.f32 %v4718, %v4758
  %v4787 = vadd.f32 %v4719, %v4758
  %v4788 = vadd.f32 %v4720, %v4758
  %v4789 = vadd.f32 %v4721, %v4758
  %v4790 = vadd.f32 %v4722, %v4758
  %v4791 = vadd.f32 %v4723, %v4758
  %v4792 = vadd.f32 %v4724, %v4758
  %v4793 = vadd.f32 %v4725, %v4758
  %v4794 = vadd.f32 %v4726, %v4758
  %v4795 = vadd.f32 %v4727, %v4758
  %v4796 = vadd.f32 %v4728, %v4758
  %v4797 = vadd.f32 %v4729, %v4758
  %v4798 = vadd.f32 %v4730, %v4758
  %v4799 = vadd.f32 %v4731, %v4758
  %v4800 = vadd.f32 %v4732, %v4758
  %v4801 = vadd.f32 %v4733, %v4758
  %v4802 = vadd.f32 %v4734, %v4758
  %v4803 = vadd.f32 %v4735, %v4758
  %v4804 = vadd.f32 %v4736, %v4758
  %v4805 = vadd.f32 %v4737, %v4758
  %v4806 = vadd.f32 %v4738, %v4758
  %v4807 = vadd.f32 %v4739, %v4758
  %v4808 = vadd.f32 %v4740, %v4758
  %v4809 = vadd.f32 %v4741, %v4758
  %v4810 = vadd.f32 %v4742, %v4758
  %v4811 = vadd.f32 %v4743, %v4758
  %v4812 = vadd.f32 %v4744, %v4758
  %v4813 = vadd.f32 %v4745, %v4758
  %v4814 = vadd.f32 %v4746, %v4758
  %v4815 = vadd.f32 %v4747, %v4758
  %v4816 = vadd.f32 %v4748, %v4758
  %v4817 = vadd.f32 %v4749, %v4758
  %v4818 = vadd.f32 %v4750, %v4758
  %v4819 = vadd.f32 %v4751, %v4758
  %v4820 = vadd.f32 %v4752, %v4758
  %v4821 = vadd.f32 %v4753, %v4758
  %v4822 = vadd.f32 %v4754, %v4758
  %v4823 = vadd.f32 %v4759, %v4760
  %v4824 = vadd.f32 %v4823, %v4761
  %v4825 = vadd.f32 %v4824, %v4762
  %v4826 = vadd.f32 %v4825, %v4763
  %v4827 = vadd.f32 %v4826, %v4764
  %v4828 = vadd.f32 %v4827, %v4765
  %v4829 = vadd.f32 %v4828, %v4766
  %v4830 = vadd.f32 %v4829, %v4767
  %v4831 = vadd.f32 %v4830, %v4768
  %v4832 = vadd.f32 %v4831, %v4769
  %v4833 = vadd.f32 %v4832, %v4770
  %v4834 = vadd.f32 %v4833, %v4771
  %v4835 = vadd.f32 %v4834, %v4772
  %v4836 = vadd.f32 %v4835, %v4773
  %v4837 = vadd.f32 %v4836, %v4774
  %v4838 = vadd.f32 %v4837, %v4775
  %v4839 = vadd.f32 %v4838, %v4776
  %v4840 = vadd.f32 %v4839, %v4777
  %v4841 = vadd.f32 %v4840, %v4778
  %v4842 = vadd.f32 %v4841, %v4779
  %v4843 = vadd.f32 %v4842, %v4780
  %v4844 = vadd.f32 %v4843, %v4781
  %v4845 = vadd.f32 %v4844, %v4782
  %v4846 = vadd.f32 %v4845, %v4783
  %v4847 = vadd.f32 %v4846, %v4784
  %v4848 = vadd.f32 %v4847, %v4785
  %v4849 = vadd.f32 %v4848, %v4786
  %v4850 = vadd.f32 %v4849, %v4787
  %v4851 = vadd.f32 %v4850, %v4788
  %v4852 = vadd.f32 %v4851, %v4789
  %v4853 = vadd.f32 %v4852, %v4790
  %v4854 = vadd.f32 %v4853, %v4791
  %v4855 = vadd.f32 %v4854, %v4792
  %v4856 = vadd.f32 %v4855, %v4793
  %v4857 = vadd.f32 %v4856, %v4794
  %v4858 = vadd.f32 %v4857, %v4795
  %v4859 = vadd.f32 %v4858, %v4796
  %v4860 = vadd.f32 %v4859, %v4797
  %v4861 = vadd.f32 %v4860, %v4798
  %v4862 = vadd.f32 %v4861, %v4799
  %v4863 = vadd.f32 %v4862, %v4800
  %v4864 = vadd.f32 %v4863, %v4801
  %v4865 = vadd.f32 %v4864, %v4802
  %v4866 = vadd.f32 %v4865, %v4803
  %v4867 = vadd.f32 %v4866, %v4804
  %v4868 = vadd.f32 %v4867, %v4805
  %v4869 = vadd.f32 %v4868, %v4806
  %v4870 = vadd.f32 %v4869, %v4807
  %v4871 = vadd.f32 %v4870, %v4808
  %v4872 = vadd.f32 %v4871, %v4809
  %v4873 = vadd.f32 %v4872, %v4810
  %v4874 = vadd.f32 %v4873, %v4811
  %v4875 = vadd.f32 %v4874, %v4812
  %v4876 = vadd.f32 %v4875, %v4813
  %v4877 = vadd.f32 %v4876, %v4814
  %v4878 = vadd.f32 %v4877, %v4815
  %v4879 = vadd.f32 %v4878, %v4816
  %v4880 = vadd.f32 %v4879, %v4817
  %v4881 = vadd.f32 %v4880, %v4818
  %v4882 = vadd.f32 %v4881, %v4819
  %v4883 = vadd.f32 %v4882, %v4820
  %v4884 = vadd.f32 %v4883, %v4821
  %v4885 = vadd.f32 %v4884, %v4822
  %v4886 = vrot.slane %v4885, 4
  %v4887 = vadd.f32 %v4885, %v4886
  %v4888 = vrot.slane %v4887, 2
  %v4889 = vadd.f32 %v4887, %v4888
  %v4890 = vrot.slane %v4889, 1
  %v4891 = vadd.f32 %v4889, %v4890
  %v4892 = vmul.f32 %v4891, %v160
  %v4893 = vsub.f32 %v4759, %v4892
  %v4894 = vsub.f32 %v4760, %v4892
  %v4895 = vsub.f32 %v4761, %v4892
  %v4896 = vsub.f32 %v4762, %v4892
  %v4897 = vsub.f32 %v4763, %v4892
  %v4898 = vsub.f32 %v4764, %v4892
  %v4899 = vsub.f32 %v4765, %v4892
  %v4900 = vsub.f32 %v4766, %v4892
  %v4901 = vsub.f32 %v4767, %v4892
  %v4902 = vsub.f32 %v4768, %v4892
  %v4903 = vsub.f32 %v4769, %v4892
  %v4904 = vsub.f32 %v4770, %v4892
  %v4905 = vsub.f32 %v4771, %v4892
  %v4906 = vsub.f32 %v4772, %v4892
  %v4907 = vsub.f32 %v4773, %v4892
  %v4908 = vsub.f32 %v4774, %v4892
  %v4909 = vsub.f32 %v4775, %v4892
  %v4910 = vsub.f32 %v4776, %v4892
  %v4911 = vsub.f32 %v4777, %v4892
  %v4912 = vsub.f32 %v4778, %v4892
  %v4913 = vsub.f32 %v4779, %v4892
  %v4914 = vsub.f32 %v4780, %v4892
  %v4915 = vsub.f32 %v4781, %v4892
  %v4916 = vsub.f32 %v4782, %v4892
  %v4917 = vsub.f32 %v4783, %v4892
  %v4918 = vsub.f32 %v4784, %v4892
  %v4919 = vsub.f32 %v4785, %v4892
  %v4920 = vsub.f32 %v4786, %v4892
  %v4921 = vsub.f32 %v4787, %v4892
  %v4922 = vsub.f32 %v4788, %v4892
  %v4923 = vsub.f32 %v4789, %v4892
  %v4924 = vsub.f32 %v4790, %v4892
  %v4925 = vsub.f32 %v4791, %v4892
  %v4926 = vsub.f32 %v4792, %v4892
  %v4927 = vsub.f32 %v4793, %v4892
  %v4928 = vsub.f32 %v4794, %v4892
  %v4929 = vsub.f32 %v4795, %v4892
  %v4930 = vsub.f32 %v4796, %v4892
  %v4931 = vsub.f32 %v4797, %v4892
  %v4932 = vsub.f32 %v4798, %v4892
  %v4933 = vsub.f32 %v4799, %v4892
  %v4934 = vsub.f32 %v4800, %v4892
  %v4935 = vsub.f32 %v4801, %v4892
  %v4936 = vsub.f32 %v4802, %v4892
  %v4937 = vsub.f32 %v4803, %v4892
  %v4938 = vsub.f32 %v4804, %v4892
  %v4939 = vsub.f32 %v4805, %v4892
  %v4940 = vsub.f32 %v4806, %v4892
  %v4941 = vsub.f32 %v4807, %v4892
  %v4942 = vsub.f32 %v4808, %v4892
  %v4943 = vsub.f32 %v4809, %v4892
  %v4944 = vsub.f32 %v4810, %v4892
  %v4945 = vsub.f32 %v4811, %v4892
  %v4946 = vsub.f32 %v4812, %v4892
  %v4947 = vsub.f32 %v4813, %v4892
  %v4948 = vsub.f32 %v4814, %v4892
  %v4949 = vsub.f32 %v4815, %v4892
  %v4950 = vsub.f32 %v4816, %v4892
  %v4951 = vsub.f32 %v4817, %v4892
  %v4952 = vsub.f32 %v4818, %v4892
  %v4953 = vsub.f32 %v4819, %v4892
  %v4954 = vsub.f32 %v4820, %v4892
  %v4955 = vsub.f32 %v4821, %v4892
  %v4956 = vsub.f32 %v4822, %v4892
  %v4957 = vmul.f32 %v4893, %v4893
  %v4958 = vmul.f32 %v4894, %v4894
  %v4959 = vmul.f32 %v4895, %v4895
  %v4960 = vmul.f32 %v4896, %v4896
  %v4961 = vmul.f32 %v4897, %v4897
  %v4962 = vmul.f32 %v4898, %v4898
  %v4963 = vmul.f32 %v4899, %v4899
  %v4964 = vmul.f32 %v4900, %v4900
  %v4965 = vmul.f32 %v4901, %v4901
  %v4966 = vmul.f32 %v4902, %v4902
  %v4967 = vmul.f32 %v4903, %v4903
  %v4968 = vmul.f32 %v4904, %v4904
  %v4969 = vmul.f32 %v4905, %v4905
  %v4970 = vmul.f32 %v4906, %v4906
  %v4971 = vmul.f32 %v4907, %v4907
  %v4972 = vmul.f32 %v4908, %v4908
  %v4973 = vmul.f32 %v4909, %v4909
  %v4974 = vmul.f32 %v4910, %v4910
  %v4975 = vmul.f32 %v4911, %v4911
  %v4976 = vmul.f32 %v4912, %v4912
  %v4977 = vmul.f32 %v4913, %v4913
  %v4978 = vmul.f32 %v4914, %v4914
  %v4979 = vmul.f32 %v4915, %v4915
  %v4980 = vmul.f32 %v4916, %v4916
  %v4981 = vmul.f32 %v4917, %v4917
  %v4982 = vmul.f32 %v4918, %v4918
  %v4983 = vmul.f32 %v4919, %v4919
  %v4984 = vmul.f32 %v4920, %v4920
  %v4985 = vmul.f32 %v4921, %v4921
  %v4986 = vmul.f32 %v4922, %v4922
  %v4987 = vmul.f32 %v4923, %v4923
  %v4988 = vmul.f32 %v4924, %v4924
  %v4989 = vmul.f32 %v4925, %v4925
  %v4990 = vmul.f32 %v4926, %v4926
  %v4991 = vmul.f32 %v4927, %v4927
  %v4992 = vmul.f32 %v4928, %v4928
  %v4993 = vmul.f32 %v4929, %v4929
  %v4994 = vmul.f32 %v4930, %v4930
  %v4995 = vmul.f32 %v4931, %v4931
  %v4996 = vmul.f32 %v4932, %v4932
  %v4997 = vmul.f32 %v4933, %v4933
  %v4998 = vmul.f32 %v4934, %v4934
  %v4999 = vmul.f32 %v4935, %v4935
  %v5000 = vmul.f32 %v4936, %v4936
  %v5001 = vmul.f32 %v4937, %v4937
  %v5002 = vmul.f32 %v4938, %v4938
  %v5003 = vmul.f32 %v4939, %v4939
  %v5004 = vmul.f32 %v4940, %v4940
  %v5005 = vmul.f32 %v4941, %v4941
  %v5006 = vmul.f32 %v4942, %v4942
  %v5007 = vmul.f32 %v4943, %v4943
  %v5008 = vmul.f32 %v4944, %v4944
  %v5009 = vmul.f32 %v4945, %v4945
  %v5010 = vmul.f32 %v4946, %v4946
  %v5011 = vmul.f32 %v4947, %v4947
  %v5012 = vmul.f32 %v4948, %v4948
  %v5013 = vmul.f32 %v4949, %v4949
  %v5014 = vmul.f32 %v4950, %v4950
  %v5015 = vmul.f32 %v4951, %v4951
  %v5016 = vmul.f32 %v4952, %v4952
  %v5017 = vmul.f32 %v4953, %v4953
  %v5018 = vmul.f32 %v4954, %v4954
  %v5019 = vmul.f32 %v4955, %v4955
  %v5020 = vmul.f32 %v4956, %v4956
  %v5021 = vadd.f32 %v4957, %v4958
  %v5022 = vadd.f32 %v5021, %v4959
  %v5023 = vadd.f32 %v5022, %v4960
  %v5024 = vadd.f32 %v5023, %v4961
  %v5025 = vadd.f32 %v5024, %v4962
  %v5026 = vadd.f32 %v5025, %v4963
  %v5027 = vadd.f32 %v5026, %v4964
  %v5028 = vadd.f32 %v5027, %v4965
  %v5029 = vadd.f32 %v5028, %v4966
  %v5030 = vadd.f32 %v5029, %v4967
  %v5031 = vadd.f32 %v5030, %v4968
  %v5032 = vadd.f32 %v5031, %v4969
  %v5033 = vadd.f32 %v5032, %v4970
  %v5034 = vadd.f32 %v5033, %v4971
  %v5035 = vadd.f32 %v5034, %v4972
  %v5036 = vadd.f32 %v5035, %v4973
  %v5037 = vadd.f32 %v5036, %v4974
  %v5038 = vadd.f32 %v5037, %v4975
  %v5039 = vadd.f32 %v5038, %v4976
  %v5040 = vadd.f32 %v5039, %v4977
  %v5041 = vadd.f32 %v5040, %v4978
  %v5042 = vadd.f32 %v5041, %v4979
  %v5043 = vadd.f32 %v5042, %v4980
  %v5044 = vadd.f32 %v5043, %v4981
  %v5045 = vadd.f32 %v5044, %v4982
  %v5046 = vadd.f32 %v5045, %v4983
  %v5047 = vadd.f32 %v5046, %v4984
  %v5048 = vadd.f32 %v5047, %v4985
  %v5049 = vadd.f32 %v5048, %v4986
  %v5050 = vadd.f32 %v5049, %v4987
  %v5051 = vadd.f32 %v5050, %v4988
  %v5052 = vadd.f32 %v5051, %v4989
  %v5053 = vadd.f32 %v5052, %v4990
  %v5054 = vadd.f32 %v5053, %v4991
  %v5055 = vadd.f32 %v5054, %v4992
  %v5056 = vadd.f32 %v5055, %v4993
  %v5057 = vadd.f32 %v5056, %v4994
  %v5058 = vadd.f32 %v5057, %v4995
  %v5059 = vadd.f32 %v5058, %v4996
  %v5060 = vadd.f32 %v5059, %v4997
  %v5061 = vadd.f32 %v5060, %v4998
  %v5062 = vadd.f32 %v5061, %v4999
  %v5063 = vadd.f32 %v5062, %v5000
  %v5064 = vadd.f32 %v5063, %v5001
  %v5065 = vadd.f32 %v5064, %v5002
  %v5066 = vadd.f32 %v5065, %v5003
  %v5067 = vadd.f32 %v5066, %v5004
  %v5068 = vadd.f32 %v5067, %v5005
  %v5069 = vadd.f32 %v5068, %v5006
  %v5070 = vadd.f32 %v5069, %v5007
  %v5071 = vadd.f32 %v5070, %v5008
  %v5072 = vadd.f32 %v5071, %v5009
  %v5073 = vadd.f32 %v5072, %v5010
  %v5074 = vadd.f32 %v5073, %v5011
  %v5075 = vadd.f32 %v5074, %v5012
  %v5076 = vadd.f32 %v5075, %v5013
  %v5077 = vadd.f32 %v5076, %v5014
  %v5078 = vadd.f32 %v5077, %v5015
  %v5079 = vadd.f32 %v5078, %v5016
  %v5080 = vadd.f32 %v5079, %v5017
  %v5081 = vadd.f32 %v5080, %v5018
  %v5082 = vadd.f32 %v5081, %v5019
  %v5083 = vadd.f32 %v5082, %v5020
  %v5084 = vrot.slane %v5083, 4
  %v5085 = vadd.f32 %v5083, %v5084
  %v5086 = vrot.slane %v5085, 2
  %v5087 = vadd.f32 %v5085, %v5086
  %v5088 = vrot.slane %v5087, 1
  %v5089 = vadd.f32 %v5087, %v5088
  %v5090 = vmul.f32 %v5089, %v160
  %v5091 = vadd.f32 %v5090, 1e-05
  %v5092 = vrsqrt.pop %v5091
  %v5093 = vmul.f32 %v85, %v5092
  %v5094 = vmul.f32 %v5093, %v4892
  %v5095 = vsub.f32 %v86, %v5094
  %v5096 = vlaneseq
  %v5097 = vshrl.u32 %v5096, 7
  %v5098 = vsub.s32 1, %v5097
  %v5099 = vrot.slane %v5093, %v5098
  %v5100 = vmul.f32 %v4759, %v5099
  %v5101 = vmul.f32 %v4760, %v5099
  %v5102 = vmul.f32 %v4761, %v5099
  %v5103 = vmul.f32 %v4762, %v5099
  %v5104 = vmul.f32 %v4763, %v5099
  %v5105 = vmul.f32 %v4764, %v5099
  %v5106 = vmul.f32 %v4765, %v5099
  %v5107 = vmul.f32 %v4766, %v5099
  %v5108 = vmul.f32 %v4767, %v5099
  %v5109 = vmul.f32 %v4768, %v5099
  %v5110 = vmul.f32 %v4769, %v5099
  %v5111 = vmul.f32 %v4770, %v5099
  %v5112 = vmul.f32 %v4771, %v5099
  %v5113 = vmul.f32 %v4772, %v5099
  %v5114 = vmul.f32 %v4773, %v5099
  %v5115 = vmul.f32 %v4774, %v5099
  %v5116 = vmul.f32 %v4775, %v5099
  %v5117 = vmul.f32 %v4776, %v5099
  %v5118 = vmul.f32 %v4777, %v5099
  %v5119 = vmul.f32 %v4778, %v5099
  %v5120 = vmul.f32 %v4779, %v5099
  %v5121 = vmul.f32 %v4780, %v5099
  %v5122 = vmul.f32 %v4781, %v5099
  %v5123 = vmul.f32 %v4782, %v5099
  %v5124 = vmul.f32 %v4783, %v5099
  %v5125 = vmul.f32 %v4784, %v5099
  %v5126 = vmul.f32 %v4785, %v5099
  %v5127 = vmul.f32 %v4786, %v5099
  %v5128 = vmul.f32 %v4787, %v5099
  %v5129 = vmul.f32 %v4788, %v5099
  %v5130 = vmul.f32 %v4789, %v5099
  %v5131 = vmul.f32 %v4790, %v5099
  %v5132 = vmul.f32 %v4791, %v5099
  %v5133 = vmul.f32 %v4792, %v5099
  %v5134 = vmul.f32 %v4793, %v5099
  %v5135 = vmul.f32 %v4794, %v5099
  %v5136 = vmul.f32 %v4795, %v5099
  %v5137 = vmul.f32 %v4796, %v5099
  %v5138 = vmul.f32 %v4797, %v5099
  %v5139 = vmul.f32 %v4798, %v5099
  %v5140 = vmul.f32 %v4799, %v5099
  %v5141 = vmul.f32 %v4800, %v5099
  %v5142 = vmul.f32 %v4801, %v5099
  %v5143 = vmul.f32 %v4802, %v5099
  %v5144 = vmul.f32 %v4803, %v5099
  %v5145 = vmul.f32 %v4804, %v5099
  %v5146 = vmul.f32 %v4805, %v5099
  %v5147 = vmul.f32 %v4806, %v5099
  %v5148 = vmul.f32 %v4807, %v5099
  %v5149 = vmul.f32 %v4808, %v5099
  %v5150 = vmul.f32 %v4809, %v5099
  %v5151 = vmul.f32 %v4810, %v5099
  %v5152 = vmul.f32 %v4811, %v5099
  %v5153 = vmul.f32 %v4812, %v5099
  %v5154 = vmul.f32 %v4813, %v5099
  %v5155 = vmul.f32 %v4814, %v5099
  %v5156 = vmul.f32 %v4815, %v5099
  %v5157 = vmul.f32 %v4816, %v5099
  %v5158 = vmul.f32 %v4817, %v5099
  %v5159 = vmul.f32 %v4818, %v5099
  %v5160 = vmul.f32 %v4819, %v5099
  %v5161 = vmul.f32 %v4820, %v5099
  %v5162 = vmul.f32 %v4821, %v5099
  %v5163 = vmul.f32 %v4822, %v5099
  %v5164 = vlaneseq
  %v5165 = vshrl.u32 %v5164, 7
  %v5166 = vsub.s32 1, %v5165
  %v5167 = vrot.slane %v5095, %v5166
  %v5168 = vadd.f32 %v5100, %v5167
  %v5169 = vadd.f32 %v5101, %v5167
  %v5170 = vadd.f32 %v5102, %v5167
  %v5171 = vadd.f32 %v5103, %v5167
  %v5172 = vadd.f32 %v5104, %v5167
  %v5173 = vadd.f32 %v5105, %v5167
  %v5174 = vadd.f32 %v5106, %v5167
  %v5175 = vadd.f32 %v5107, %v5167
  %v5176 = vadd.f32 %v5108, %v5167
  %v5177 = vadd.f32 %v5109, %v5167
  %v5178 = vadd.f32 %v5110, %v5167
  %v5179 = vadd.f32 %v5111, %v5167
  %v5180 = vadd.f32 %v5112, %v5167
  %v5181 = vadd.f32 %v5113, %v5167
  %v5182 = vadd.f32 %v5114, %v5167
  %v5183 = vadd.f32 %v5115, %v5167
  %v5184 = vadd.f32 %v5116, %v5167
  %v5185 = vadd.f32 %v5117, %v5167
  %v5186 = vadd.f32 %v5118, %v5167
  %v5187 = vadd.f32 %v5119, %v5167
  %v5188 = vadd.f32 %v5120, %v5167
  %v5189 = vadd.f32 %v5121, %v5167
  %v5190 = vadd.f32 %v5122, %v5167
  %v5191 = vadd.f32 %v5123, %v5167
  %v5192 = vadd.f32 %v5124, %v5167
  %v5193 = vadd.f32 %v5125, %v5167
  %v5194 = vadd.f32 %v5126, %v5167
  %v5195 = vadd.f32 %v5127, %v5167
  %v5196 = vadd.f32 %v5128, %v5167
  %v5197 = vadd.f32 %v5129, %v5167
  %v5198 = vadd.f32 %v5130, %v5167
  %v5199 = vadd.f32 %v5131, %v5167
  %v5200 = vadd.f32 %v5132, %v5167
  %v5201 = vadd.f32 %v5133, %v5167
  %v5202 = vadd.f32 %v5134, %v5167
  %v5203 = vadd.f32 %v5135, %v5167
  %v5204 = vadd.f32 %v5136, %v5167
  %v5205 = vadd.f32 %v5137, %v5167
  %v5206 = vadd.f32 %v5138, %v5167
  %v5207 = vadd.f32 %v5139, %v5167
  %v5208 = vadd.f32 %v5140, %v5167
  %v5209 = vadd.f32 %v5141, %v5167
  %v5210 = vadd.f32 %v5142, %v5167
  %v5211 = vadd.f32 %v5143, %v5167
  %v5212 = vadd.f32 %v5144, %v5167
  %v5213 = vadd.f32 %v5145, %v5167
  %v5214 = vadd.f32 %v5146, %v5167
  %v5215 = vadd.f32 %v5147, %v5167
  %v5216 = vadd.f32 %v5148, %v5167
  %v5217 = vadd.f32 %v5149, %v5167
  %v5218 = vadd.f32 %v5150, %v5167
  %v5219 = vadd.f32 %v5151, %v5167
  %v5220 = vadd.f32 %v5152, %v5167
  %v5221 = vadd.f32 %v5153, %v5167
  %v5222 = vadd.f32 %v5154, %v5167
  %v5223 = vadd.f32 %v5155, %v5167
  %v5224 = vadd.f32 %v5156, %v5167
  %v5225 = vadd.f32 %v5157, %v5167
  %v5226 = vadd.f32 %v5158, %v5167
  %v5227 = vadd.f32 %v5159, %v5167
  %v5228 = vadd.f32 %v5160, %v5167
  %v5229 = vadd.f32 %v5161, %v5167
  %v5230 = vadd.f32 %v5162, %v5167
  %v5231 = vadd.f32 %v5163, %v5167
  %v5232 = vmax.f32 %v5168, 0.0
  %v5233 = vmax.f32 %v5169, 0.0
  %v5234 = vmax.f32 %v5170, 0.0
  %v5235 = vmax.f32 %v5171, 0.0
  %v5236 = vmax.f32 %v5172, 0.0
  %v5237 = vmax.f32 %v5173, 0.0
  %v5238 = vmax.f32 %v5174, 0.0
  %v5239 = vmax.f32 %v5175, 0.0
  %v5240 = vmax.f32 %v5176, 0.0
  %v5241 = vmax.f32 %v5177, 0.0
  %v5242 = vmax.f32 %v5178, 0.0
  %v5243 = vmax.f32 %v5179, 0.0
  %v5244 = vmax.f32 %v5180, 0.0
  %v5245 = vmax.f32 %v5181, 0.0
  %v5246 = vmax.f32 %v5182, 0.0
  %v5247 = vmax.f32 %v5183, 0.0
  %v5248 = vmax.f32 %v5184, 0.0
  %v5249 = vmax.f32 %v5185, 0.0
  %v5250 = vmax.f32 %v5186, 0.0
  %v5251 = vmax.f32 %v5187, 0.0
  %v5252 = vmax.f32 %v5188, 0.0
  %v5253 = vmax.f32 %v5189, 0.0
  %v5254 = vmax.f32 %v5190, 0.0
  %v5255 = vmax.f32 %v5191, 0.0
  %v5256 = vmax.f32 %v5192, 0.0
  %v5257 = vmax.f32 %v5193, 0.0
  %v5258 = vmax.f32 %v5194, 0.0
  %v5259 = vmax.f32 %v5195, 0.0
  %v5260 = vmax.f32 %v5196, 0.0
  %v5261 = vmax.f32 %v5197, 0.0
  %v5262 = vmax.f32 %v5198, 0.0
  %v5263 = vmax.f32 %v5199, 0.0
  %v5264 = vmax.f32 %v5200, 0.0
  %v5265 = vmax.f32 %v5201, 0.0
  %v5266 = vmax.f32 %v5202, 0.0
  %v5267 = vmax.f32 %v5203, 0.0
  %v5268 = vmax.f32 %v5204, 0.0
  %v5269 = vmax.f32 %v5205, 0.0
  %v5270 = vmax.f32 %v5206, 0.0
  %v5271 = vmax.f32 %v5207, 0.0
  %v5272 = vmax.f32 %v5208, 0.0
  %v5273 = vmax.f32 %v5209, 0.0
  %v5274 = vmax.f32 %v5210, 0.0
  %v5275 = vmax.f32 %v5211, 0.0
  %v5276 = vmax.f32 %v5212, 0.0
  %v5277 = vmax.f32 %v5213, 0.0
  %v5278 = vmax.f32 %v5214, 0.0
  %v5279 = vmax.f32 %v5215, 0.0
  %v5280 = vmax.f32 %v5216, 0.0
  %v5281 = vmax.f32 %v5217, 0.0
  %v5282 = vmax.f32 %v5218, 0.0
  %v5283 = vmax.f32 %v5219, 0.0
  %v5284 = vmax.f32 %v5220, 0.0
  %v5285 = vmax.f32 %v5221, 0.0
  %v5286 = vmax.f32 %v5222, 0.0
  %v5287 = vmax.f32 %v5223, 0.0
  %v5288 = vmax.f32 %v5224, 0.0
  %v5289 = vmax.f32 %v5225, 0.0
  %v5290 = vmax.f32 %v5226, 0.0
  %v5291 = vmax.f32 %v5227, 0.0
  %v5292 = vmax.f32 %v5228, 0.0
  %v5293 = vmax.f32 %v5229, 0.0
  %v5294 = vmax.f32 %v5230, 0.0
  %v5295 = vmax.f32 %v5231, 0.0
  %v5296 = vrot.slane %v5232, 7
  %v5297 = vrot.slane %v5234, 7
  %v5298 = vrot.slane %v5236, 7
  %v5299 = vrot.slane %v5238, 7
  %v5300 = vrot.slane %v5240, 7
  %v5301 = vrot.slane %v5242, 7
  %v5302 = vrot.slane %v5244, 7
  %v5303 = vrot.slane %v5246, 7
  %v5304 = vrot.slane %v5248, 7
  %v5305 = vrot.slane %v5250, 7
  %v5306 = vrot.slane %v5252, 7
  %v5307 = vrot.slane %v5254, 7
  %v5308 = vrot.slane %v5256, 7
  %v5309 = vrot.slane %v5258, 7
  %v5310 = vrot.slane %v5260, 7
  %v5311 = vrot.slane %v5262, 7
  %v5312 = vrot.slane %v5264, 7
  %v5313 = vrot.slane %v5266, 7
  %v5314 = vrot.slane %v5268, 7
  %v5315 = vrot.slane %v5270, 7
  %v5316 = vrot.slane %v5272, 7
  %v5317 = vrot.slane %v5274, 7
  %v5318 = vrot.slane %v5276, 7
  %v5319 = vrot.slane %v5278, 7
  %v5320 = vrot.slane %v5280, 7
  %v5321 = vrot.slane %v5282, 7
  %v5322 = vrot.slane %v5284, 7
  %v5323 = vrot.slane %v5286, 7
  %v5324 = vrot.slane %v5288, 7
  %v5325 = vrot.slane %v5290, 7
  %v5326 = vrot.slane %v5292, 7
  %v5327 = vrot.slane %v5294, 7
  %v5328 = vrot.slane %v5233, 7
  %v5329 = vrot.slane %v5235, 7
  %v5330 = vrot.slane %v5237, 7
  %v5331 = vrot.slane %v5239, 7
  %v5332 = vrot.slane %v5241, 7
  %v5333 = vrot.slane %v5243, 7
  %v5334 = vrot.slane %v5245, 7
  %v5335 = vrot.slane %v5247, 7
  %v5336 = vrot.slane %v5249, 7
  %v5337 = vrot.slane %v5251, 7
  %v5338 = vrot.slane %v5253, 7
  %v5339 = vrot.slane %v5255, 7
  %v5340 = vrot.slane %v5257, 7
  %v5341 = vrot.slane %v5259, 7
  %v5342 = vrot.slane %v5261, 7
  %v5343 = vrot.slane %v5263, 7
  %v5344 = vrot.slane %v5265, 7
  %v5345 = vrot.slane %v5267, 7
  %v5346 = vrot.slane %v5269, 7
  %v5347 = vrot.slane %v5271, 7
  %v5348 = vrot.slane %v5273, 7
  %v5349 = vrot.slane %v5275, 7
  %v5350 = vrot.slane %v5277, 7
  %v5351 = vrot.slane %v5279, 7
  %v5352 = vrot.slane %v5281, 7
  %v5353 = vrot.slane %v5283, 7
  %v5354 = vrot.slane %v5285, 7
  %v5355 = vrot.slane %v5287, 7
  %v5356 = vrot.slane %v5289, 7
  %v5357 = vrot.slane %v5291, 7
  %v5358 = vrot.slane %v5293, 7
  %v5359 = vrot.slane %v5295, 7
  %v5360 = vsel %vm629, %v5296, %v5328
  %v5361 = vsel %vm629, %v5297, %v5329
  %v5362 = vsel %vm629, %v5298, %v5330
  %v5363 = vsel %vm629, %v5299, %v5331
  %v5364 = vsel %vm629, %v5300, %v5332
  %v5365 = vsel %vm629, %v5301, %v5333
  %v5366 = vsel %vm629, %v5302, %v5334
  %v5367 = vsel %vm629, %v5303, %v5335
  %v5368 = vsel %vm629, %v5304, %v5336
  %v5369 = vsel %vm629, %v5305, %v5337
  %v5370 = vsel %vm629, %v5306, %v5338
  %v5371 = vsel %vm629, %v5307, %v5339
  %v5372 = vsel %vm629, %v5308, %v5340
  %v5373 = vsel %vm629, %v5309, %v5341
  %v5374 = vsel %vm629, %v5310, %v5342
  %v5375 = vsel %vm629, %v5311, %v5343
  %v5376 = vsel %vm629, %v5312, %v5344
  %v5377 = vsel %vm629, %v5313, %v5345
  %v5378 = vsel %vm629, %v5314, %v5346
  %v5379 = vsel %vm629, %v5315, %v5347
  %v5380 = vsel %vm629, %v5316, %v5348
  %v5381 = vsel %vm629, %v5317, %v5349
  %v5382 = vsel %vm629, %v5318, %v5350
  %v5383 = vsel %vm629, %v5319, %v5351
  %v5384 = vsel %vm629, %v5320, %v5352
  %v5385 = vsel %vm629, %v5321, %v5353
  %v5386 = vsel %vm629, %v5322, %v5354
  %v5387 = vsel %vm629, %v5323, %v5355
  %v5388 = vsel %vm629, %v5324, %v5356
  %v5389 = vsel %vm629, %v5325, %v5357
  %v5390 = vsel %vm629, %v5326, %v5358
  %v5391 = vsel %vm629, %v5327, %v5359
  %v5392 = vsel %vm629, %v5328, %v5296
  %v5393 = vsel %vm629, %v5329, %v5297
  %v5394 = vsel %vm629, %v5330, %v5298
  %v5395 = vsel %vm629, %v5331, %v5299
  %v5396 = vsel %vm629, %v5332, %v5300
  %v5397 = vsel %vm629, %v5333, %v5301
  %v5398 = vsel %vm629, %v5334, %v5302
  %v5399 = vsel %vm629, %v5335, %v5303
  %v5400 = vsel %vm629, %v5336, %v5304
  %v5401 = vsel %vm629, %v5337, %v5305
  %v5402 = vsel %vm629, %v5338, %v5306
  %v5403 = vsel %vm629, %v5339, %v5307
  %v5404 = vsel %vm629, %v5340, %v5308
  %v5405 = vsel %vm629, %v5341, %v5309
  %v5406 = vsel %vm629, %v5342, %v5310
  %v5407 = vsel %vm629, %v5343, %v5311
  %v5408 = vsel %vm629, %v5344, %v5312
  %v5409 = vsel %vm629, %v5345, %v5313
  %v5410 = vsel %vm629, %v5346, %v5314
  %v5411 = vsel %vm629, %v5347, %v5315
  %v5412 = vsel %vm629, %v5348, %v5316
  %v5413 = vsel %vm629, %v5349, %v5317
  %v5414 = vsel %vm629, %v5350, %v5318
  %v5415 = vsel %vm629, %v5351, %v5319
  %v5416 = vsel %vm629, %v5352, %v5320
  %v5417 = vsel %vm629, %v5353, %v5321
  %v5418 = vsel %vm629, %v5354, %v5322
  %v5419 = vsel %vm629, %v5355, %v5323
  %v5420 = vsel %vm629, %v5356, %v5324
  %v5421 = vsel %vm629, %v5357, %v5325
  %v5422 = vsel %vm629, %v5358, %v5326
  %v5423 = vsel %vm629, %v5359, %v5327
  %v5424 = vmul.f32 %v5392, %v698
  %v5425 = vmul.f32 %v5360, %v699
  %v5426 = vmul.f32 %v5393, %v698
  %v5427 = vmul.f32 %v5361, %v699
  %v5428 = vmul.f32 %v5394, %v698
  %v5429 = vmul.f32 %v5362, %v699
  %v5430 = vmul.f32 %v5395, %v698
  %v5431 = vmul.f32 %v5363, %v699
  %v5432 = vmul.f32 %v5396, %v698
  %v5433 = vmul.f32 %v5364, %v699
  %v5434 = vmul.f32 %v5397, %v698
  %v5435 = vmul.f32 %v5365, %v699
  %v5436 = vmul.f32 %v5398, %v698
  %v5437 = vmul.f32 %v5366, %v699
  %v5438 = vmul.f32 %v5399, %v698
  %v5439 = vmul.f32 %v5367, %v699
  %v5440 = vmul.f32 %v5400, %v698
  %v5441 = vmul.f32 %v5368, %v699
  %v5442 = vmul.f32 %v5401, %v698
  %v5443 = vmul.f32 %v5369, %v699
  %v5444 = vmul.f32 %v5402, %v698
  %v5445 = vmul.f32 %v5370, %v699
  %v5446 = vmul.f32 %v5403, %v698
  %v5447 = vmul.f32 %v5371, %v699
  %v5448 = vmul.f32 %v5404, %v698
  %v5449 = vmul.f32 %v5372, %v699
  %v5450 = vmul.f32 %v5405, %v698
  %v5451 = vmul.f32 %v5373, %v699
  %v5452 = vmul.f32 %v5406, %v698
  %v5453 = vmul.f32 %v5374, %v699
  %v5454 = vmul.f32 %v5407, %v698
  %v5455 = vmul.f32 %v5375, %v699
  %v5456 = vmul.f32 %v5408, %v698
  %v5457 = vmul.f32 %v5376, %v699
  %v5458 = vmul.f32 %v5409, %v698
  %v5459 = vmul.f32 %v5377, %v699
  %v5460 = vmul.f32 %v5410, %v698
  %v5461 = vmul.f32 %v5378, %v699
  %v5462 = vmul.f32 %v5411, %v698
  %v5463 = vmul.f32 %v5379, %v699
  %v5464 = vmul.f32 %v5412, %v698
  %v5465 = vmul.f32 %v5380, %v699
  %v5466 = vmul.f32 %v5413, %v698
  %v5467 = vmul.f32 %v5381, %v699
  %v5468 = vmul.f32 %v5414, %v698
  %v5469 = vmul.f32 %v5382, %v699
  %v5470 = vmul.f32 %v5415, %v698
  %v5471 = vmul.f32 %v5383, %v699
  %v5472 = vmul.f32 %v5416, %v698
  %v5473 = vmul.f32 %v5384, %v699
  %v5474 = vmul.f32 %v5417, %v698
  %v5475 = vmul.f32 %v5385, %v699
  %v5476 = vmul.f32 %v5418, %v698
  %v5477 = vmul.f32 %v5386, %v699
  %v5478 = vmul.f32 %v5419, %v698
  %v5479 = vmul.f32 %v5387, %v699
  %v5480 = vmul.f32 %v5420, %v698
  %v5481 = vmul.f32 %v5388, %v699
  %v5482 = vmul.f32 %v5421, %v698
  %v5483 = vmul.f32 %v5389, %v699
  %v5484 = vmul.f32 %v5422, %v698
  %v5485 = vmul.f32 %v5390, %v699
  %v5486 = vmul.f32 %v5423, %v698
  %v5487 = vmul.f32 %v5391, %v699
  %v5488 = vpack.c.bf16 %v5425, %v5424
  %v5489 = vpack.c.bf16 %v5427, %v5426
  %v5490 = vpack.c.bf16 %v5429, %v5428
  %v5491 = vpack.c.bf16 %v5431, %v5430
  %v5492 = vpack.c.bf16 %v5433, %v5432
  %v5493 = vpack.c.bf16 %v5435, %v5434
  %v5494 = vpack.c.bf16 %v5437, %v5436
  %v5495 = vpack.c.bf16 %v5439, %v5438
  %v5496 = vpack.c.bf16 %v5441, %v5440
  %v5497 = vpack.c.bf16 %v5443, %v5442
  %v5498 = vpack.c.bf16 %v5445, %v5444
  %v5499 = vpack.c.bf16 %v5447, %v5446
  %v5500 = vpack.c.bf16 %v5449, %v5448
  %v5501 = vpack.c.bf16 %v5451, %v5450
  %v5502 = vpack.c.bf16 %v5453, %v5452
  %v5503 = vpack.c.bf16 %v5455, %v5454
  %v5504 = vpack.c.bf16 %v5457, %v5456
  %v5505 = vpack.c.bf16 %v5459, %v5458
  %v5506 = vpack.c.bf16 %v5461, %v5460
  %v5507 = vpack.c.bf16 %v5463, %v5462
  %v5508 = vpack.c.bf16 %v5465, %v5464
  %v5509 = vpack.c.bf16 %v5467, %v5466
  %v5510 = vpack.c.bf16 %v5469, %v5468
  %v5511 = vpack.c.bf16 %v5471, %v5470
  %v5512 = vpack.c.bf16 %v5473, %v5472
  %v5513 = vpack.c.bf16 %v5475, %v5474
  %v5514 = vpack.c.bf16 %v5477, %v5476
  %v5515 = vpack.c.bf16 %v5479, %v5478
  %v5516 = vpack.c.bf16 %v5481, %v5480
  %v5517 = vpack.c.bf16 %v5483, %v5482
  %v5518 = vpack.c.bf16 %v5485, %v5484
  %v5519 = vpack.c.bf16 %v5487, %v5486
  %v5520 = vpack.c.bf16 %v5233, %v5232
  %v5521 = vpack.c.bf16 %v5235, %v5234
  %v5522 = vpack.c.bf16 %v5237, %v5236
  %v5523 = vpack.c.bf16 %v5239, %v5238
  %v5524 = vpack.c.bf16 %v5241, %v5240
  %v5525 = vpack.c.bf16 %v5243, %v5242
  %v5526 = vpack.c.bf16 %v5245, %v5244
  %v5527 = vpack.c.bf16 %v5247, %v5246
  %v5528 = vpack.c.bf16 %v5249, %v5248
  %v5529 = vpack.c.bf16 %v5251, %v5250
  %v5530 = vpack.c.bf16 %v5253, %v5252
  %v5531 = vpack.c.bf16 %v5255, %v5254
  %v5532 = vpack.c.bf16 %v5257, %v5256
  %v5533 = vpack.c.bf16 %v5259, %v5258
  %v5534 = vpack.c.bf16 %v5261, %v5260
  %v5535 = vpack.c.bf16 %v5263, %v5262
  %v5536 = vpack.c.bf16 %v5265, %v5264
  %v5537 = vpack.c.bf16 %v5267, %v5266
  %v5538 = vpack.c.bf16 %v5269, %v5268
  %v5539 = vpack.c.bf16 %v5271, %v5270
  %v5540 = vpack.c.bf16 %v5273, %v5272
  %v5541 = vpack.c.bf16 %v5275, %v5274
  %v5542 = vpack.c.bf16 %v5277, %v5276
  %v5543 = vpack.c.bf16 %v5279, %v5278
  %v5544 = vpack.c.bf16 %v5281, %v5280
  %v5545 = vpack.c.bf16 %v5283, %v5282
  %v5546 = vpack.c.bf16 %v5285, %v5284
  %v5547 = vpack.c.bf16 %v5287, %v5286
  %v5548 = vpack.c.bf16 %v5289, %v5288
  %v5549 = vpack.c.bf16 %v5291, %v5290
  %v5550 = vpack.c.bf16 %v5293, %v5292
  %v5551 = vpack.c.bf16 %v5295, %v5294
  %v5552 = vrot.slane %v5232, 1
  %v5553 = vrot.slane %v5234, 1
  %v5554 = vrot.slane %v5236, 1
  %v5555 = vrot.slane %v5238, 1
  %v5556 = vrot.slane %v5240, 1
  %v5557 = vrot.slane %v5242, 1
  %v5558 = vrot.slane %v5244, 1
  %v5559 = vrot.slane %v5246, 1
  %v5560 = vrot.slane %v5248, 1
  %v5561 = vrot.slane %v5250, 1
  %v5562 = vrot.slane %v5252, 1
  %v5563 = vrot.slane %v5254, 1
  %v5564 = vrot.slane %v5256, 1
  %v5565 = vrot.slane %v5258, 1
  %v5566 = vrot.slane %v5260, 1
  %v5567 = vrot.slane %v5262, 1
  %v5568 = vrot.slane %v5264, 1
  %v5569 = vrot.slane %v5266, 1
  %v5570 = vrot.slane %v5268, 1
  %v5571 = vrot.slane %v5270, 1
  %v5572 = vrot.slane %v5272, 1
  %v5573 = vrot.slane %v5274, 1
  %v5574 = vrot.slane %v5276, 1
  %v5575 = vrot.slane %v5278, 1
  %v5576 = vrot.slane %v5280, 1
  %v5577 = vrot.slane %v5282, 1
  %v5578 = vrot.slane %v5284, 1
  %v5579 = vrot.slane %v5286, 1
  %v5580 = vrot.slane %v5288, 1
  %v5581 = vrot.slane %v5290, 1
  %v5582 = vrot.slane %v5292, 1
  %v5583 = vrot.slane %v5294, 1
  %v5584 = vrot.slane %v5233, 1
  %v5585 = vrot.slane %v5235, 1
  %v5586 = vrot.slane %v5237, 1
  %v5587 = vrot.slane %v5239, 1
  %v5588 = vrot.slane %v5241, 1
  %v5589 = vrot.slane %v5243, 1
  %v5590 = vrot.slane %v5245, 1
  %v5591 = vrot.slane %v5247, 1
  %v5592 = vrot.slane %v5249, 1
  %v5593 = vrot.slane %v5251, 1
  %v5594 = vrot.slane %v5253, 1
  %v5595 = vrot.slane %v5255, 1
  %v5596 = vrot.slane %v5257, 1
  %v5597 = vrot.slane %v5259, 1
  %v5598 = vrot.slane %v5261, 1
  %v5599 = vrot.slane %v5263, 1
  %v5600 = vrot.slane %v5265, 1
  %v5601 = vrot.slane %v5267, 1
  %v5602 = vrot.slane %v5269, 1
  %v5603 = vrot.slane %v5271, 1
  %v5604 = vrot.slane %v5273, 1
  %v5605 = vrot.slane %v5275, 1
  %v5606 = vrot.slane %v5277, 1
  %v5607 = vrot.slane %v5279, 1
  %v5608 = vrot.slane %v5281, 1
  %v5609 = vrot.slane %v5283, 1
  %v5610 = vrot.slane %v5285, 1
  %v5611 = vrot.slane %v5287, 1
  %v5612 = vrot.slane %v5289, 1
  %v5613 = vrot.slane %v5291, 1
  %v5614 = vrot.slane %v5293, 1
  %v5615 = vrot.slane %v5295, 1
  %v5616 = vsel %vm896, %v5552, %v5584
  %v5617 = vsel %vm896, %v5553, %v5585
  %v5618 = vsel %vm896, %v5554, %v5586
  %v5619 = vsel %vm896, %v5555, %v5587
  %v5620 = vsel %vm896, %v5556, %v5588
  %v5621 = vsel %vm896, %v5557, %v5589
  %v5622 = vsel %vm896, %v5558, %v5590
  %v5623 = vsel %vm896, %v5559, %v5591
  %v5624 = vsel %vm896, %v5560, %v5592
  %v5625 = vsel %vm896, %v5561, %v5593
  %v5626 = vsel %vm896, %v5562, %v5594
  %v5627 = vsel %vm896, %v5563, %v5595
  %v5628 = vsel %vm896, %v5564, %v5596
  %v5629 = vsel %vm896, %v5565, %v5597
  %v5630 = vsel %vm896, %v5566, %v5598
  %v5631 = vsel %vm896, %v5567, %v5599
  %v5632 = vsel %vm896, %v5568, %v5600
  %v5633 = vsel %vm896, %v5569, %v5601
  %v5634 = vsel %vm896, %v5570, %v5602
  %v5635 = vsel %vm896, %v5571, %v5603
  %v5636 = vsel %vm896, %v5572, %v5604
  %v5637 = vsel %vm896, %v5573, %v5605
  %v5638 = vsel %vm896, %v5574, %v5606
  %v5639 = vsel %vm896, %v5575, %v5607
  %v5640 = vsel %vm896, %v5576, %v5608
  %v5641 = vsel %vm896, %v5577, %v5609
  %v5642 = vsel %vm896, %v5578, %v5610
  %v5643 = vsel %vm896, %v5579, %v5611
  %v5644 = vsel %vm896, %v5580, %v5612
  %v5645 = vsel %vm896, %v5581, %v5613
  %v5646 = vsel %vm896, %v5582, %v5614
  %v5647 = vsel %vm896, %v5583, %v5615
  %v5648 = vsel %vm896, %v5584, %v5552
  %v5649 = vsel %vm896, %v5585, %v5553
  %v5650 = vsel %vm896, %v5586, %v5554
  %v5651 = vsel %vm896, %v5587, %v5555
  %v5652 = vsel %vm896, %v5588, %v5556
  %v5653 = vsel %vm896, %v5589, %v5557
  %v5654 = vsel %vm896, %v5590, %v5558
  %v5655 = vsel %vm896, %v5591, %v5559
  %v5656 = vsel %vm896, %v5592, %v5560
  %v5657 = vsel %vm896, %v5593, %v5561
  %v5658 = vsel %vm896, %v5594, %v5562
  %v5659 = vsel %vm896, %v5595, %v5563
  %v5660 = vsel %vm896, %v5596, %v5564
  %v5661 = vsel %vm896, %v5597, %v5565
  %v5662 = vsel %vm896, %v5598, %v5566
  %v5663 = vsel %vm896, %v5599, %v5567
  %v5664 = vsel %vm896, %v5600, %v5568
  %v5665 = vsel %vm896, %v5601, %v5569
  %v5666 = vsel %vm896, %v5602, %v5570
  %v5667 = vsel %vm896, %v5603, %v5571
  %v5668 = vsel %vm896, %v5604, %v5572
  %v5669 = vsel %vm896, %v5605, %v5573
  %v5670 = vsel %vm896, %v5606, %v5574
  %v5671 = vsel %vm896, %v5607, %v5575
  %v5672 = vsel %vm896, %v5608, %v5576
  %v5673 = vsel %vm896, %v5609, %v5577
  %v5674 = vsel %vm896, %v5610, %v5578
  %v5675 = vsel %vm896, %v5611, %v5579
  %v5676 = vsel %vm896, %v5612, %v5580
  %v5677 = vsel %vm896, %v5613, %v5581
  %v5678 = vsel %vm896, %v5614, %v5582
  %v5679 = vsel %vm896, %v5615, %v5583
  %v5680 = vmul.f32 %v5616, %v965
  %v5681 = vmul.f32 %v5648, %v966
  %v5682 = vmul.f32 %v5617, %v965
  %v5683 = vmul.f32 %v5649, %v966
  %v5684 = vmul.f32 %v5618, %v965
  %v5685 = vmul.f32 %v5650, %v966
  %v5686 = vmul.f32 %v5619, %v965
  %v5687 = vmul.f32 %v5651, %v966
  %v5688 = vmul.f32 %v5620, %v965
  %v5689 = vmul.f32 %v5652, %v966
  %v5690 = vmul.f32 %v5621, %v965
  %v5691 = vmul.f32 %v5653, %v966
  %v5692 = vmul.f32 %v5622, %v965
  %v5693 = vmul.f32 %v5654, %v966
  %v5694 = vmul.f32 %v5623, %v965
  %v5695 = vmul.f32 %v5655, %v966
  %v5696 = vmul.f32 %v5624, %v965
  %v5697 = vmul.f32 %v5656, %v966
  %v5698 = vmul.f32 %v5625, %v965
  %v5699 = vmul.f32 %v5657, %v966
  %v5700 = vmul.f32 %v5626, %v965
  %v5701 = vmul.f32 %v5658, %v966
  %v5702 = vmul.f32 %v5627, %v965
  %v5703 = vmul.f32 %v5659, %v966
  %v5704 = vmul.f32 %v5628, %v965
  %v5705 = vmul.f32 %v5660, %v966
  %v5706 = vmul.f32 %v5629, %v965
  %v5707 = vmul.f32 %v5661, %v966
  %v5708 = vmul.f32 %v5630, %v965
  %v5709 = vmul.f32 %v5662, %v966
  %v5710 = vmul.f32 %v5631, %v965
  %v5711 = vmul.f32 %v5663, %v966
  %v5712 = vmul.f32 %v5632, %v965
  %v5713 = vmul.f32 %v5664, %v966
  %v5714 = vmul.f32 %v5633, %v965
  %v5715 = vmul.f32 %v5665, %v966
  %v5716 = vmul.f32 %v5634, %v965
  %v5717 = vmul.f32 %v5666, %v966
  %v5718 = vmul.f32 %v5635, %v965
  %v5719 = vmul.f32 %v5667, %v966
  %v5720 = vmul.f32 %v5636, %v965
  %v5721 = vmul.f32 %v5668, %v966
  %v5722 = vmul.f32 %v5637, %v965
  %v5723 = vmul.f32 %v5669, %v966
  %v5724 = vmul.f32 %v5638, %v965
  %v5725 = vmul.f32 %v5670, %v966
  %v5726 = vmul.f32 %v5639, %v965
  %v5727 = vmul.f32 %v5671, %v966
  %v5728 = vmul.f32 %v5640, %v965
  %v5729 = vmul.f32 %v5672, %v966
  %v5730 = vmul.f32 %v5641, %v965
  %v5731 = vmul.f32 %v5673, %v966
  %v5732 = vmul.f32 %v5642, %v965
  %v5733 = vmul.f32 %v5674, %v966
  %v5734 = vmul.f32 %v5643, %v965
  %v5735 = vmul.f32 %v5675, %v966
  %v5736 = vmul.f32 %v5644, %v965
  %v5737 = vmul.f32 %v5676, %v966
  %v5738 = vmul.f32 %v5645, %v965
  %v5739 = vmul.f32 %v5677, %v966
  %v5740 = vmul.f32 %v5646, %v965
  %v5741 = vmul.f32 %v5678, %v966
  %v5742 = vmul.f32 %v5647, %v965
  %v5743 = vmul.f32 %v5679, %v966
  %v5744 = vpack.c.bf16 %v5681, %v5680
  %v5745 = vpack.c.bf16 %v5683, %v5682
  %v5746 = vpack.c.bf16 %v5685, %v5684
  %v5747 = vpack.c.bf16 %v5687, %v5686
  %v5748 = vpack.c.bf16 %v5689, %v5688
  %v5749 = vpack.c.bf16 %v5691, %v5690
  %v5750 = vpack.c.bf16 %v5693, %v5692
  %v5751 = vpack.c.bf16 %v5695, %v5694
  %v5752 = vpack.c.bf16 %v5697, %v5696
  %v5753 = vpack.c.bf16 %v5699, %v5698
  %v5754 = vpack.c.bf16 %v5701, %v5700
  %v5755 = vpack.c.bf16 %v5703, %v5702
  %v5756 = vpack.c.bf16 %v5705, %v5704
  %v5757 = vpack.c.bf16 %v5707, %v5706
  %v5758 = vpack.c.bf16 %v5709, %v5708
  %v5759 = vpack.c.bf16 %v5711, %v5710
  %v5760 = vpack.c.bf16 %v5713, %v5712
  %v5761 = vpack.c.bf16 %v5715, %v5714
  %v5762 = vpack.c.bf16 %v5717, %v5716
  %v5763 = vpack.c.bf16 %v5719, %v5718
  %v5764 = vpack.c.bf16 %v5721, %v5720
  %v5765 = vpack.c.bf16 %v5723, %v5722
  %v5766 = vpack.c.bf16 %v5725, %v5724
  %v5767 = vpack.c.bf16 %v5727, %v5726
  %v5768 = vpack.c.bf16 %v5729, %v5728
  %v5769 = vpack.c.bf16 %v5731, %v5730
  %v5770 = vpack.c.bf16 %v5733, %v5732
  %v5771 = vpack.c.bf16 %v5735, %v5734
  %v5772 = vpack.c.bf16 %v5737, %v5736
  %v5773 = vpack.c.bf16 %v5739, %v5738
  %v5774 = vpack.c.bf16 %v5741, %v5740
  %v5775 = vpack.c.bf16 %v5743, %v5742
  %s5776 = scalar_lea.vmem %s3, 576
  %v5777 = vld [vmem:[%s5776] sm:$0xf]
  %v5778 = vld [vmem:[%s5776 + $0x4] sm:$0xf]
  %v5779 = vld [vmem:[%s5776 + $0x8] sm:$0xf]
  %v5780 = vld [vmem:[%s5776 + $0xc] sm:$0xf]
  %v5781 = vld [vmem:[%s5776 + $0x10] sm:$0xf]
  %v5782 = vld [vmem:[%s5776 + $0x14] sm:$0xf]
  %v5783 = vld [vmem:[%s5776 + $0x18] sm:$0xf]
  %v5784 = vld [vmem:[%s5776 + $0x1c] sm:$0xf]
  %v5785 = vld [vmem:[%s5776 + $0x20] sm:$0xf]
  %v5786 = vld [vmem:[%s5776 + $0x24] sm:$0xf]
  %v5787 = vld [vmem:[%s5776 + $0x28] sm:$0xf]
  %v5788 = vld [vmem:[%s5776 + $0x2c] sm:$0xf]
  %v5789 = vld [vmem:[%s5776 + $0x30] sm:$0xf]
  %v5790 = vld [vmem:[%s5776 + $0x34] sm:$0xf]
  %v5791 = vld [vmem:[%s5776 + $0x38] sm:$0xf]
  %v5792 = vld [vmem:[%s5776 + $0x3c] sm:$0xf]
  %v5793 = vld [vmem:[%s5776 + $0x40] sm:$0xf]
  %v5794 = vld [vmem:[%s5776 + $0x44] sm:$0xf]
  %v5795 = vld [vmem:[%s5776 + $0x48] sm:$0xf]
  %v5796 = vld [vmem:[%s5776 + $0x4c] sm:$0xf]
  %v5797 = vld [vmem:[%s5776 + $0x50] sm:$0xf]
  %v5798 = vld [vmem:[%s5776 + $0x54] sm:$0xf]
  %v5799 = vld [vmem:[%s5776 + $0x58] sm:$0xf]
  %v5800 = vld [vmem:[%s5776 + $0x5c] sm:$0xf]
  %v5801 = vld [vmem:[%s5776 + $0x60] sm:$0xf]
  %v5802 = vld [vmem:[%s5776 + $0x64] sm:$0xf]
  %v5803 = vld [vmem:[%s5776 + $0x68] sm:$0xf]
  %v5804 = vld [vmem:[%s5776 + $0x6c] sm:$0xf]
  %v5805 = vld [vmem:[%s5776 + $0x70] sm:$0xf]
  %v5806 = vld [vmem:[%s5776 + $0x74] sm:$0xf]
  %v5807 = vld [vmem:[%s5776 + $0x78] sm:$0xf]
  %v5808 = vld [vmem:[%s5776 + $0x7c] sm:$0xf]
  %v5809 = vld [vmem:[%s5776 + $0x80] sm:$0xf]
  %v5810 = vld [vmem:[%s5776 + $0x84] sm:$0xf]
  %v5811 = vld [vmem:[%s5776 + $0x88] sm:$0xf]
  %v5812 = vld [vmem:[%s5776 + $0x8c] sm:$0xf]
  %v5813 = vld [vmem:[%s5776 + $0x90] sm:$0xf]
  %v5814 = vld [vmem:[%s5776 + $0x94] sm:$0xf]
  %v5815 = vld [vmem:[%s5776 + $0x98] sm:$0xf]
  %v5816 = vld [vmem:[%s5776 + $0x9c] sm:$0xf]
  %v5817 = vld [vmem:[%s5776 + $0xa0] sm:$0xf]
  %v5818 = vld [vmem:[%s5776 + $0xa4] sm:$0xf]
  %v5819 = vld [vmem:[%s5776 + $0xa8] sm:$0xf]
  %v5820 = vld [vmem:[%s5776 + $0xac] sm:$0xf]
  %v5821 = vld [vmem:[%s5776 + $0xb0] sm:$0xf]
  %v5822 = vld [vmem:[%s5776 + $0xb4] sm:$0xf]
  %v5823 = vld [vmem:[%s5776 + $0xb8] sm:$0xf]
  %v5824 = vld [vmem:[%s5776 + $0xbc] sm:$0xf]
  %v5825 = vld [vmem:[%s5776 + $0xc0] sm:$0xf]
  %v5826 = vld [vmem:[%s5776 + $0xc4] sm:$0xf]
  %v5827 = vld [vmem:[%s5776 + $0xc8] sm:$0xf]
  %v5828 = vld [vmem:[%s5776 + $0xcc] sm:$0xf]
  %v5829 = vld [vmem:[%s5776 + $0xd0] sm:$0xf]
  %v5830 = vld [vmem:[%s5776 + $0xd4] sm:$0xf]
  %v5831 = vld [vmem:[%s5776 + $0xd8] sm:$0xf]
  %v5832 = vld [vmem:[%s5776 + $0xdc] sm:$0xf]
  %v5833 = vld [vmem:[%s5776 + $0xe0] sm:$0xf]
  %v5834 = vld [vmem:[%s5776 + $0xe4] sm:$0xf]
  %v5835 = vld [vmem:[%s5776 + $0xe8] sm:$0xf]
  %v5836 = vld [vmem:[%s5776 + $0xec] sm:$0xf]
  %v5837 = vld [vmem:[%s5776 + $0xf0] sm:$0xf]
  %v5838 = vld [vmem:[%s5776 + $0xf4] sm:$0xf]
  %v5839 = vld [vmem:[%s5776 + $0xf8] sm:$0xf]
  %v5840 = vld [vmem:[%s5776 + $0xfc] sm:$0xf]
  %v5841 = vld [vmem:[%s5776 + $0x100] sm:$0xf]
  %v5842 = vld [vmem:[%s5776 + $0x104] sm:$0xf]
  %v5843 = vld [vmem:[%s5776 + $0x108] sm:$0xf]
  %v5844 = vld [vmem:[%s5776 + $0x10c] sm:$0xf]
  %v5845 = vld [vmem:[%s5776 + $0x110] sm:$0xf]
  %v5846 = vld [vmem:[%s5776 + $0x114] sm:$0xf]
  %v5847 = vld [vmem:[%s5776 + $0x118] sm:$0xf]
  %v5848 = vld [vmem:[%s5776 + $0x11c] sm:$0xf]
  %v5849 = vld [vmem:[%s5776 + $0x120] sm:$0xf]
  %v5850 = vld [vmem:[%s5776 + $0x124] sm:$0xf]
  %v5851 = vld [vmem:[%s5776 + $0x128] sm:$0xf]
  %v5852 = vld [vmem:[%s5776 + $0x12c] sm:$0xf]
  %v5853 = vld [vmem:[%s5776 + $0x130] sm:$0xf]
  %v5854 = vld [vmem:[%s5776 + $0x134] sm:$0xf]
  %v5855 = vld [vmem:[%s5776 + $0x138] sm:$0xf]
  %v5856 = vld [vmem:[%s5776 + $0x13c] sm:$0xf]
  %v5857 = vld [vmem:[%s5776 + $0x140] sm:$0xf]
  %v5858 = vld [vmem:[%s5776 + $0x144] sm:$0xf]
  %v5859 = vld [vmem:[%s5776 + $0x148] sm:$0xf]
  %v5860 = vld [vmem:[%s5776 + $0x14c] sm:$0xf]
  %v5861 = vld [vmem:[%s5776 + $0x150] sm:$0xf]
  %v5862 = vld [vmem:[%s5776 + $0x154] sm:$0xf]
  %v5863 = vld [vmem:[%s5776 + $0x158] sm:$0xf]
  %v5864 = vld [vmem:[%s5776 + $0x15c] sm:$0xf]
  %v5865 = vld [vmem:[%s5776 + $0x160] sm:$0xf]
  %v5866 = vld [vmem:[%s5776 + $0x164] sm:$0xf]
  %v5867 = vld [vmem:[%s5776 + $0x168] sm:$0xf]
  %v5868 = vld [vmem:[%s5776 + $0x16c] sm:$0xf]
  %v5869 = vld [vmem:[%s5776 + $0x170] sm:$0xf]
  %v5870 = vld [vmem:[%s5776 + $0x174] sm:$0xf]
  %v5871 = vld [vmem:[%s5776 + $0x178] sm:$0xf]
  %v5872 = vld [vmem:[%s5776 + $0x17c] sm:$0xf]
  %v5873 = vld [vmem:[%s5776 + $0x180] sm:$0xf]
  %v5874 = vld [vmem:[%s5776 + $0x184] sm:$0xf]
  %v5875 = vld [vmem:[%s5776 + $0x188] sm:$0xf]
  %v5876 = vld [vmem:[%s5776 + $0x18c] sm:$0xf]
  %v5877 = vld [vmem:[%s5776 + $0x190] sm:$0xf]
  %v5878 = vld [vmem:[%s5776 + $0x194] sm:$0xf]
  %v5879 = vld [vmem:[%s5776 + $0x198] sm:$0xf]
  %v5880 = vld [vmem:[%s5776 + $0x19c] sm:$0xf]
  %v5881 = vld [vmem:[%s5776 + $0x1a0] sm:$0xf]
  %v5882 = vld [vmem:[%s5776 + $0x1a4] sm:$0xf]
  %v5883 = vld [vmem:[%s5776 + $0x1a8] sm:$0xf]
  %v5884 = vld [vmem:[%s5776 + $0x1ac] sm:$0xf]
  %v5885 = vld [vmem:[%s5776 + $0x1b0] sm:$0xf]
  %v5886 = vld [vmem:[%s5776 + $0x1b4] sm:$0xf]
  %v5887 = vld [vmem:[%s5776 + $0x1b8] sm:$0xf]
  %v5888 = vld [vmem:[%s5776 + $0x1bc] sm:$0xf]
  %v5889 = vld [vmem:[%s5776 + $0x1c0] sm:$0xf]
  %v5890 = vld [vmem:[%s5776 + $0x1c4] sm:$0xf]
  %v5891 = vld [vmem:[%s5776 + $0x1c8] sm:$0xf]
  %v5892 = vld [vmem:[%s5776 + $0x1cc] sm:$0xf]
  %v5893 = vld [vmem:[%s5776 + $0x1d0] sm:$0xf]
  %v5894 = vld [vmem:[%s5776 + $0x1d4] sm:$0xf]
  %v5895 = vld [vmem:[%s5776 + $0x1d8] sm:$0xf]
  %v5896 = vld [vmem:[%s5776 + $0x1dc] sm:$0xf]
  %v5897 = vld [vmem:[%s5776 + $0x1e0] sm:$0xf]
  %v5898 = vld [vmem:[%s5776 + $0x1e4] sm:$0xf]
  %v5899 = vld [vmem:[%s5776 + $0x1e8] sm:$0xf]
  %v5900 = vld [vmem:[%s5776 + $0x1ec] sm:$0xf]
  %v5901 = vld [vmem:[%s5776 + $0x1f0] sm:$0xf]
  %v5902 = vld [vmem:[%s5776 + $0x1f4] sm:$0xf]
  %v5903 = vld [vmem:[%s5776 + $0x1f8] sm:$0xf]
  %v5904 = vld [vmem:[%s5776 + $0x1fc] sm:$0xf]
  %v5905 = vld [vmem:[%s5776 + $0x200] sm:$0xf]
  %v5906 = vld [vmem:[%s5776 + $0x204] sm:$0xf]
  %v5907 = vld [vmem:[%s5776 + $0x208] sm:$0xf]
  %v5908 = vld [vmem:[%s5776 + $0x20c] sm:$0xf]
  %v5909 = vld [vmem:[%s5776 + $0x210] sm:$0xf]
  %v5910 = vld [vmem:[%s5776 + $0x214] sm:$0xf]
  %v5911 = vld [vmem:[%s5776 + $0x218] sm:$0xf]
  %v5912 = vld [vmem:[%s5776 + $0x21c] sm:$0xf]
  %v5913 = vld [vmem:[%s5776 + $0x220] sm:$0xf]
  %v5914 = vld [vmem:[%s5776 + $0x224] sm:$0xf]
  %v5915 = vld [vmem:[%s5776 + $0x228] sm:$0xf]
  %v5916 = vld [vmem:[%s5776 + $0x22c] sm:$0xf]
  %v5917 = vld [vmem:[%s5776 + $0x230] sm:$0xf]
  %v5918 = vld [vmem:[%s5776 + $0x234] sm:$0xf]
  %v5919 = vld [vmem:[%s5776 + $0x238] sm:$0xf]
  %v5920 = vld [vmem:[%s5776 + $0x23c] sm:$0xf]
  %v5937 = vunpack.c.l.b16 %v5793
  %v5938 = vunpack.c.l.b16 %v5794
  %v5939 = vunpack.c.l.b16 %v5795
  %v5940 = vunpack.c.l.b16 %v5796
  %v5941 = vunpack.c.l.b16 %v5797
  %v5942 = vunpack.c.l.b16 %v5798
  %v5943 = vunpack.c.l.b16 %v5799
  %v5944 = vunpack.c.l.b16 %v5800
  %v5945 = vunpack.c.l.b16 %v5801
  %v5946 = vunpack.c.l.b16 %v5802
  %v5947 = vunpack.c.l.b16 %v5803
  %v5948 = vunpack.c.l.b16 %v5804
  %v5949 = vunpack.c.l.b16 %v5805
  %v5950 = vunpack.c.l.b16 %v5806
  %v5951 = vunpack.c.l.b16 %v5807
  %v5952 = vunpack.c.l.b16 %v5808
  %v5953 = vpack.c.b16 %v5938, %v5937
  %v5954 = vpack.c.b16 %v5940, %v5939
  %v5955 = vpack.c.b16 %v5942, %v5941
  %v5956 = vpack.c.b16 %v5944, %v5943
  %v5957 = vpack.c.b16 %v5946, %v5945
  %v5958 = vpack.c.b16 %v5948, %v5947
  %v5959 = vpack.c.b16 %v5950, %v5949
  %v5960 = vpack.c.b16 %v5952, %v5951
  %5969 = vmatprep.subr.bf16.mxu0 0
  %5970 = vmatpush1.bf16.msra.mxu0 %v5960
  %5971 = vmatprep.subr.bf16.mxu0 0
  %5972 = vmatpush1.bf16.msra.mxu0 %v5959
  %5973 = vmatprep.subr.bf16.mxu0 0
  %5974 = vmatpush1.bf16.msra.mxu0 %v5958
  %5975 = vmatprep.subr.bf16.mxu0 0
  %5976 = vmatpush1.bf16.msra.mxu0 %v5957
  %5977 = vmatprep.subr.bf16.mxu0 0
  %5978 = vmatpush1.bf16.msra.mxu0 %v5956
  %5979 = vmatprep.subr.bf16.mxu0 0
  %5980 = vmatpush1.bf16.msra.mxu0 %v5955
  %5981 = vmatprep.subr.bf16.mxu0 0
  %5982 = vmatpush1.bf16.msra.mxu0 %v5954
  %5983 = vmatprep.subr.bf16.mxu0 0
  %5984 = vmatpush1.bf16.msra.mxu0 %v5953
  %5985 = vmatprep.subr.bf16.mxu0 0
  %5986 = vmatpush2.bf16.msra.mxu0 0
  %5987 = vmatprep.subr.bf16.mxu0 0
  %5988 = vmatpush2.bf16.msra.mxu0 0
  %5989 = vmatprep.subr.bf16.mxu0 0
  %5990 = vmatpush2.bf16.msra.mxu0 0
  %5991 = vmatprep.subr.bf16.mxu0 0
  %5992 = vmatpush2.bf16.msra.mxu0 0
  %5993 = vmatprep.subr.bf16.mxu0 0
  %5994 = vmatpush2.bf16.msra.mxu0 0
  %5995 = vmatprep.subr.bf16.mxu0 0
  %5996 = vmatpush2.bf16.msra.mxu0 0
  %5997 = vmatprep.subr.bf16.mxu0 0
  %5998 = vmatpush2.bf16.msra.mxu0 0
  %5999 = vmatprep.subr.bf16.mxu0 0
  %6000 = vmatpush2.bf16.msra.mxu0 0
  %6001 = vmatprep.mubr.bf16.mxu0 0
  %6002 = vmatmul.mubr.bf16.gmra.mxu0 %v799
  %v6003 = vpop.f32.mrf.mxu0
  %v6004 = vadd.f32 0.0, %v6003
  %v6005 = vpop.f32.mrf.mxu0
  %v6006 = vpop.f32.mrf.mxu0
  %v6007 = vadd.f32 0.0, %v6006
  %v6008 = vpop.f32.mrf.mxu0
  %6009 = vmatprep.mubr.bf16.mxu0 0
  %6010 = vmatmul.mubr.bf16.gmra.mxu0 %v5520
  %v6011 = vpop.f32.mrf.mxu0
  %v6012 = vadd.f32 0.0, %v6011
  %v6013 = vpop.f32.mrf.mxu0
  %v6014 = vpop.f32.mrf.mxu0
  %v6015 = vadd.f32 0.0, %v6014
  %v6016 = vpop.f32.mrf.mxu0
  %6017 = vmatprep.mubr.bf16.mxu0 0
  %6018 = vmatmul.mubr.bf16.gmra.mxu0 %v5521
  %v6019 = vpop.f32.mrf.mxu0
  %v6020 = vadd.f32 0.0, %v6019
  %v6021 = vpop.f32.mrf.mxu0
  %v6022 = vpop.f32.mrf.mxu0
  %v6023 = vadd.f32 0.0, %v6022
  %v6024 = vpop.f32.mrf.mxu0
  %6025 = vmatprep.mubr.bf16.mxu0 0
  %6026 = vmatmul.mubr.bf16.gmra.mxu0 %v5522
  %v6027 = vpop.f32.mrf.mxu0
  %v6028 = vadd.f32 0.0, %v6027
  %v6029 = vpop.f32.mrf.mxu0
  %v6030 = vpop.f32.mrf.mxu0
  %v6031 = vadd.f32 0.0, %v6030
  %v6032 = vpop.f32.mrf.mxu0
  %6033 = vmatprep.mubr.bf16.mxu0 0
  %6034 = vmatmul.mubr.bf16.gmra.mxu0 %v5523
  %v6035 = vpop.f32.mrf.mxu0
  %v6036 = vadd.f32 0.0, %v6035
  %v6037 = vpop.f32.mrf.mxu0
  %v6038 = vpop.f32.mrf.mxu0
  %v6039 = vadd.f32 0.0, %v6038
  %v6040 = vpop.f32.mrf.mxu0
  %6041 = vmatprep.mubr.bf16.mxu0 0
  %6042 = vmatmul.mubr.bf16.gmra.mxu0 %v5524
  %v6043 = vpop.f32.mrf.mxu0
  %v6044 = vadd.f32 0.0, %v6043
  %v6045 = vpop.f32.mrf.mxu0
  %v6046 = vpop.f32.mrf.mxu0
  %v6047 = vadd.f32 0.0, %v6046
  %v6048 = vpop.f32.mrf.mxu0
  %6049 = vmatprep.mubr.bf16.mxu0 0
  %6050 = vmatmul.mubr.bf16.gmra.mxu0 %v5525
  %v6051 = vpop.f32.mrf.mxu0
  %v6052 = vadd.f32 0.0, %v6051
  %v6053 = vpop.f32.mrf.mxu0
  %v6054 = vpop.f32.mrf.mxu0
  %v6055 = vadd.f32 0.0, %v6054
  %v6056 = vpop.f32.mrf.mxu0
  %6057 = vmatprep.mubr.bf16.mxu0 0
  %6058 = vmatmul.mubr.bf16.gmra.mxu0 %v5526
  %v6059 = vpop.f32.mrf.mxu0
  %v6060 = vadd.f32 0.0, %v6059
  %v6061 = vpop.f32.mrf.mxu0
  %v6062 = vpop.f32.mrf.mxu0
  %v6063 = vadd.f32 0.0, %v6062
  %v6064 = vpop.f32.mrf.mxu0
  %6065 = vmatprep.mubr.bf16.mxu0 0
  %6066 = vmatmul.mubr.bf16.gmra.mxu0 %v5527
  %v6067 = vpop.f32.mrf.mxu0
  %v6068 = vadd.f32 0.0, %v6067
  %v6069 = vpop.f32.mrf.mxu0
  %v6070 = vpop.f32.mrf.mxu0
  %v6071 = vadd.f32 0.0, %v6070
  %v6072 = vpop.f32.mrf.mxu0
  %6073 = vmatprep.mubr.bf16.mxu0 0
  %6074 = vmatmul.mubr.bf16.gmra.mxu0 %v5528
  %v6075 = vpop.f32.mrf.mxu0
  %v6076 = vadd.f32 0.0, %v6075
  %v6077 = vpop.f32.mrf.mxu0
  %v6078 = vpop.f32.mrf.mxu0
  %v6079 = vadd.f32 0.0, %v6078
  %v6080 = vpop.f32.mrf.mxu0
  %6081 = vmatprep.mubr.bf16.mxu0 0
  %6082 = vmatmul.mubr.bf16.gmra.mxu0 %v5529
  %v6083 = vpop.f32.mrf.mxu0
  %v6084 = vadd.f32 0.0, %v6083
  %v6085 = vpop.f32.mrf.mxu0
  %v6086 = vpop.f32.mrf.mxu0
  %v6087 = vadd.f32 0.0, %v6086
  %v6088 = vpop.f32.mrf.mxu0
  %6089 = vmatprep.mubr.bf16.mxu0 0
  %6090 = vmatmul.mubr.bf16.gmra.mxu0 %v5530
  %v6091 = vpop.f32.mrf.mxu0
  %v6092 = vadd.f32 0.0, %v6091
  %v6093 = vpop.f32.mrf.mxu0
  %v6094 = vpop.f32.mrf.mxu0
  %v6095 = vadd.f32 0.0, %v6094
  %v6096 = vpop.f32.mrf.mxu0
  %6097 = vmatprep.mubr.bf16.mxu0 0
  %6098 = vmatmul.mubr.bf16.gmra.mxu0 %v5531
  %v6099 = vpop.f32.mrf.mxu0
  %v6100 = vadd.f32 0.0, %v6099
  %v6101 = vpop.f32.mrf.mxu0
  %v6102 = vpop.f32.mrf.mxu0
  %v6103 = vadd.f32 0.0, %v6102
  %v6104 = vpop.f32.mrf.mxu0
  %6105 = vmatprep.mubr.bf16.mxu0 0
  %6106 = vmatmul.mubr.bf16.gmra.mxu0 %v5532
  %v6107 = vpop.f32.mrf.mxu0
  %v6108 = vadd.f32 0.0, %v6107
  %v6109 = vpop.f32.mrf.mxu0
  %v6110 = vpop.f32.mrf.mxu0
  %v6111 = vadd.f32 0.0, %v6110
  %v6112 = vpop.f32.mrf.mxu0
  %6113 = vmatprep.mubr.bf16.mxu0 0
  %6114 = vmatmul.mubr.bf16.gmra.mxu0 %v5533
  %v6115 = vpop.f32.mrf.mxu0
  %v6116 = vadd.f32 0.0, %v6115
  %v6117 = vpop.f32.mrf.mxu0
  %v6118 = vpop.f32.mrf.mxu0
  %v6119 = vadd.f32 0.0, %v6118
  %v6120 = vpop.f32.mrf.mxu0
  %6121 = vmatprep.mubr.bf16.mxu0 0
  %6122 = vmatmul.mubr.bf16.gmra.mxu0 %v5534
  %v6123 = vpop.f32.mrf.mxu0
  %v6124 = vadd.f32 0.0, %v6123
  %v6125 = vpop.f32.mrf.mxu0
  %v6126 = vpop.f32.mrf.mxu0
  %v6127 = vadd.f32 0.0, %v6126
  %v6128 = vpop.f32.mrf.mxu0
  %6129 = vmatprep.mubr.bf16.mxu0 0
  %6130 = vmatmul.mubr.bf16.gmra.mxu0 %v799
  %v6131 = vpop.f32.mrf.mxu0
  %v6132 = vadd.f32 0.0, %v6131
  %v6133 = vpop.f32.mrf.mxu0
  %v6134 = vpop.f32.mrf.mxu0
  %v6135 = vadd.f32 0.0, %v6134
  %v6136 = vpop.f32.mrf.mxu0
  %6137 = vmatprep.mubr.bf16.mxu0 0
  %6138 = vmatmul.mubr.bf16.gmra.mxu0 %v5536
  %v6139 = vpop.f32.mrf.mxu0
  %v6140 = vadd.f32 0.0, %v6139
  %v6141 = vpop.f32.mrf.mxu0
  %v6142 = vpop.f32.mrf.mxu0
  %v6143 = vadd.f32 0.0, %v6142
  %v6144 = vpop.f32.mrf.mxu0
  %6145 = vmatprep.mubr.bf16.mxu0 0
  %6146 = vmatmul.mubr.bf16.gmra.mxu0 %v5537
  %v6147 = vpop.f32.mrf.mxu0
  %v6148 = vadd.f32 0.0, %v6147
  %v6149 = vpop.f32.mrf.mxu0
  %v6150 = vpop.f32.mrf.mxu0
  %v6151 = vadd.f32 0.0, %v6150
  %v6152 = vpop.f32.mrf.mxu0
  %6153 = vmatprep.mubr.bf16.mxu0 0
  %6154 = vmatmul.mubr.bf16.gmra.mxu0 %v5538
  %v6155 = vpop.f32.mrf.mxu0
  %v6156 = vadd.f32 0.0, %v6155
  %v6157 = vpop.f32.mrf.mxu0
  %v6158 = vpop.f32.mrf.mxu0
  %v6159 = vadd.f32 0.0, %v6158
  %v6160 = vpop.f32.mrf.mxu0
  %6161 = vmatprep.mubr.bf16.mxu0 0
  %6162 = vmatmul.mubr.bf16.gmra.mxu0 %v5539
  %v6163 = vpop.f32.mrf.mxu0
  %v6164 = vadd.f32 0.0, %v6163
  %v6165 = vpop.f32.mrf.mxu0
  %v6166 = vpop.f32.mrf.mxu0
  %v6167 = vadd.f32 0.0, %v6166
  %v6168 = vpop.f32.mrf.mxu0
  %6169 = vmatprep.mubr.bf16.mxu0 0
  %6170 = vmatmul.mubr.bf16.gmra.mxu0 %v5540
  %v6171 = vpop.f32.mrf.mxu0
  %v6172 = vadd.f32 0.0, %v6171
  %v6173 = vpop.f32.mrf.mxu0
  %v6174 = vpop.f32.mrf.mxu0
  %v6175 = vadd.f32 0.0, %v6174
  %v6176 = vpop.f32.mrf.mxu0
  %6177 = vmatprep.mubr.bf16.mxu0 0
  %6178 = vmatmul.mubr.bf16.gmra.mxu0 %v5541
  %v6179 = vpop.f32.mrf.mxu0
  %v6180 = vadd.f32 0.0, %v6179
  %v6181 = vpop.f32.mrf.mxu0
  %v6182 = vpop.f32.mrf.mxu0
  %v6183 = vadd.f32 0.0, %v6182
  %v6184 = vpop.f32.mrf.mxu0
  %6185 = vmatprep.mubr.bf16.mxu0 0
  %6186 = vmatmul.mubr.bf16.gmra.mxu0 %v5542
  %v6187 = vpop.f32.mrf.mxu0
  %v6188 = vadd.f32 0.0, %v6187
  %v6189 = vpop.f32.mrf.mxu0
  %v6190 = vpop.f32.mrf.mxu0
  %v6191 = vadd.f32 0.0, %v6190
  %v6192 = vpop.f32.mrf.mxu0
  %6193 = vmatprep.mubr.bf16.mxu0 0
  %6194 = vmatmul.mubr.bf16.gmra.mxu0 %v5543
  %v6195 = vpop.f32.mrf.mxu0
  %v6196 = vadd.f32 0.0, %v6195
  %v6197 = vpop.f32.mrf.mxu0
  %v6198 = vpop.f32.mrf.mxu0
  %v6199 = vadd.f32 0.0, %v6198
  %v6200 = vpop.f32.mrf.mxu0
  %6201 = vmatprep.mubr.bf16.mxu0 0
  %6202 = vmatmul.mubr.bf16.gmra.mxu0 %v5544
  %v6203 = vpop.f32.mrf.mxu0
  %v6204 = vadd.f32 0.0, %v6203
  %v6205 = vpop.f32.mrf.mxu0
  %v6206 = vpop.f32.mrf.mxu0
  %v6207 = vadd.f32 0.0, %v6206
  %v6208 = vpop.f32.mrf.mxu0
  %6209 = vmatprep.mubr.bf16.mxu0 0
  %6210 = vmatmul.mubr.bf16.gmra.mxu0 %v5545
  %v6211 = vpop.f32.mrf.mxu0
  %v6212 = vadd.f32 0.0, %v6211
  %v6213 = vpop.f32.mrf.mxu0
  %v6214 = vpop.f32.mrf.mxu0
  %v6215 = vadd.f32 0.0, %v6214
  %v6216 = vpop.f32.mrf.mxu0
  %6217 = vmatprep.mubr.bf16.mxu0 0
  %6218 = vmatmul.mubr.bf16.gmra.mxu0 %v5546
  %v6219 = vpop.f32.mrf.mxu0
  %v6220 = vadd.f32 0.0, %v6219
  %v6221 = vpop.f32.mrf.mxu0
  %v6222 = vpop.f32.mrf.mxu0
  %v6223 = vadd.f32 0.0, %v6222
  %v6224 = vpop.f32.mrf.mxu0
  %6225 = vmatprep.mubr.bf16.mxu0 0
  %6226 = vmatmul.mubr.bf16.gmra.mxu0 %v5547
  %v6227 = vpop.f32.mrf.mxu0
  %v6228 = vadd.f32 0.0, %v6227
  %v6229 = vpop.f32.mrf.mxu0
  %v6230 = vpop.f32.mrf.mxu0
  %v6231 = vadd.f32 0.0, %v6230
  %v6232 = vpop.f32.mrf.mxu0
  %6233 = vmatprep.mubr.bf16.mxu0 0
  %6234 = vmatmul.mubr.bf16.gmra.mxu0 %v5548
  %v6235 = vpop.f32.mrf.mxu0
  %v6236 = vadd.f32 0.0, %v6235
  %v6237 = vpop.f32.mrf.mxu0
  %v6238 = vpop.f32.mrf.mxu0
  %v6239 = vadd.f32 0.0, %v6238
  %v6240 = vpop.f32.mrf.mxu0
  %6241 = vmatprep.mubr.bf16.mxu0 0
  %6242 = vmatmul.mubr.bf16.gmra.mxu0 %v5549
  %v6243 = vpop.f32.mrf.mxu0
  %v6244 = vadd.f32 0.0, %v6243
  %v6245 = vpop.f32.mrf.mxu0
  %v6246 = vpop.f32.mrf.mxu0
  %v6247 = vadd.f32 0.0, %v6246
  %v6248 = vpop.f32.mrf.mxu0
  %6249 = vmatprep.mubr.bf16.mxu0 0
  %6250 = vmatmul.mubr.bf16.gmra.mxu0 %v5550
  %v6251 = vpop.f32.mrf.mxu0
  %v6252 = vadd.f32 0.0, %v6251
  %v6253 = vpop.f32.mrf.mxu0
  %v6254 = vpop.f32.mrf.mxu0
  %v6255 = vadd.f32 0.0, %v6254
  %v6256 = vpop.f32.mrf.mxu0
  %6257 = vdwg.mxu0
  %v6274 = vunpack.c.l.b16 %v5777
  %v6275 = vunpack.c.l.b16 %v5778
  %v6276 = vunpack.c.l.b16 %v5779
  %v6277 = vunpack.c.l.b16 %v5780
  %v6278 = vunpack.c.l.b16 %v5781
  %v6279 = vunpack.c.l.b16 %v5782
  %v6280 = vunpack.c.l.b16 %v5783
  %v6281 = vunpack.c.l.b16 %v5784
  %v6282 = vunpack.c.l.b16 %v5785
  %v6283 = vunpack.c.l.b16 %v5786
  %v6284 = vunpack.c.l.b16 %v5787
  %v6285 = vunpack.c.l.b16 %v5788
  %v6286 = vunpack.c.l.b16 %v5789
  %v6287 = vunpack.c.l.b16 %v5790
  %v6288 = vunpack.c.l.b16 %v5791
  %v6289 = vunpack.c.l.b16 %v5792
  %v6290 = vpack.c.b16 %v6275, %v6274
  %v6291 = vpack.c.b16 %v6277, %v6276
  %v6292 = vpack.c.b16 %v6279, %v6278
  %v6293 = vpack.c.b16 %v6281, %v6280
  %v6294 = vpack.c.b16 %v6283, %v6282
  %v6295 = vpack.c.b16 %v6285, %v6284
  %v6296 = vpack.c.b16 %v6287, %v6286
  %v6297 = vpack.c.b16 %v6289, %v6288
  %6306 = vmatprep.subr.bf16.mxu0 0
  %6307 = vmatpush1.bf16.msra.mxu0 %v6297
  %6308 = vmatprep.subr.bf16.mxu0 0
  %6309 = vmatpush1.bf16.msra.mxu0 %v6296
  %6310 = vmatprep.subr.bf16.mxu0 0
  %6311 = vmatpush1.bf16.msra.mxu0 %v6295
  %6312 = vmatprep.subr.bf16.mxu0 0
  %6313 = vmatpush1.bf16.msra.mxu0 %v6294
  %6314 = vmatprep.subr.bf16.mxu0 0
  %6315 = vmatpush1.bf16.msra.mxu0 %v6293
  %6316 = vmatprep.subr.bf16.mxu0 0
  %6317 = vmatpush1.bf16.msra.mxu0 %v6292
  %6318 = vmatprep.subr.bf16.mxu0 0
  %6319 = vmatpush1.bf16.msra.mxu0 %v6291
  %6320 = vmatprep.subr.bf16.mxu0 0
  %6321 = vmatpush1.bf16.msra.mxu0 %v6290
  %6322 = vmatprep.subr.bf16.mxu0 0
  %6323 = vmatpush2.bf16.msra.mxu0 0
  %6324 = vmatprep.subr.bf16.mxu0 0
  %6325 = vmatpush2.bf16.msra.mxu0 0
  %6326 = vmatprep.subr.bf16.mxu0 0
  %6327 = vmatpush2.bf16.msra.mxu0 0
  %6328 = vmatprep.subr.bf16.mxu0 0
  %6329 = vmatpush2.bf16.msra.mxu0 0
  %6330 = vmatprep.subr.bf16.mxu0 0
  %6331 = vmatpush2.bf16.msra.mxu0 0
  %6332 = vmatprep.subr.bf16.mxu0 0
  %6333 = vmatpush2.bf16.msra.mxu0 0
  %6334 = vmatprep.subr.bf16.mxu0 0
  %6335 = vmatpush2.bf16.msra.mxu0 0
  %6336 = vmatprep.subr.bf16.mxu0 0
  %6337 = vmatpush2.bf16.msra.mxu0 0
  %6338 = vmatprep.mubr.bf16.mxu0 0
  %6339 = vmatmul.mubr.bf16.gmra.mxu0 %v766
  %v6340 = vpop.f32.mrf.mxu0
  %v6341 = vadd.f32 %v6004, %v6340
  %v6342 = vpop.f32.mrf.mxu0
  %v6343 = vpop.f32.mrf.mxu0
  %v6344 = vadd.f32 %v6007, %v6343
  %v6345 = vpop.f32.mrf.mxu0
  %6346 = vmatprep.mubr.bf16.mxu0 0
  %6347 = vmatmul.mubr.bf16.gmra.mxu0 %v5488
  %v6348 = vpop.f32.mrf.mxu0
  %v6349 = vadd.f32 %v6012, %v6348
  %v6350 = vpop.f32.mrf.mxu0
  %v6351 = vpop.f32.mrf.mxu0
  %v6352 = vadd.f32 %v6015, %v6351
  %v6353 = vpop.f32.mrf.mxu0
  %6354 = vmatprep.mubr.bf16.mxu0 0
  %6355 = vmatmul.mubr.bf16.gmra.mxu0 %v5489
  %v6356 = vpop.f32.mrf.mxu0
  %v6357 = vadd.f32 %v6020, %v6356
  %v6358 = vpop.f32.mrf.mxu0
  %v6359 = vpop.f32.mrf.mxu0
  %v6360 = vadd.f32 %v6023, %v6359
  %v6361 = vpop.f32.mrf.mxu0
  %6362 = vmatprep.mubr.bf16.mxu0 0
  %6363 = vmatmul.mubr.bf16.gmra.mxu0 %v5490
  %v6364 = vpop.f32.mrf.mxu0
  %v6365 = vadd.f32 %v6028, %v6364
  %v6366 = vpop.f32.mrf.mxu0
  %v6367 = vpop.f32.mrf.mxu0
  %v6368 = vadd.f32 %v6031, %v6367
  %v6369 = vpop.f32.mrf.mxu0
  %6370 = vmatprep.mubr.bf16.mxu0 0
  %6371 = vmatmul.mubr.bf16.gmra.mxu0 %v5491
  %v6372 = vpop.f32.mrf.mxu0
  %v6373 = vadd.f32 %v6036, %v6372
  %v6374 = vpop.f32.mrf.mxu0
  %v6375 = vpop.f32.mrf.mxu0
  %v6376 = vadd.f32 %v6039, %v6375
  %v6377 = vpop.f32.mrf.mxu0
  %6378 = vmatprep.mubr.bf16.mxu0 0
  %6379 = vmatmul.mubr.bf16.gmra.mxu0 %v5492
  %v6380 = vpop.f32.mrf.mxu0
  %v6381 = vadd.f32 %v6044, %v6380
  %v6382 = vpop.f32.mrf.mxu0
  %v6383 = vpop.f32.mrf.mxu0
  %v6384 = vadd.f32 %v6047, %v6383
  %v6385 = vpop.f32.mrf.mxu0
  %6386 = vmatprep.mubr.bf16.mxu0 0
  %6387 = vmatmul.mubr.bf16.gmra.mxu0 %v5493
  %v6388 = vpop.f32.mrf.mxu0
  %v6389 = vadd.f32 %v6052, %v6388
  %v6390 = vpop.f32.mrf.mxu0
  %v6391 = vpop.f32.mrf.mxu0
  %v6392 = vadd.f32 %v6055, %v6391
  %v6393 = vpop.f32.mrf.mxu0
  %6394 = vmatprep.mubr.bf16.mxu0 0
  %6395 = vmatmul.mubr.bf16.gmra.mxu0 %v5494
  %v6396 = vpop.f32.mrf.mxu0
  %v6397 = vadd.f32 %v6060, %v6396
  %v6398 = vpop.f32.mrf.mxu0
  %v6399 = vpop.f32.mrf.mxu0
  %v6400 = vadd.f32 %v6063, %v6399
  %v6401 = vpop.f32.mrf.mxu0
  %6402 = vmatprep.mubr.bf16.mxu0 0
  %6403 = vmatmul.mubr.bf16.gmra.mxu0 %v5495
  %v6404 = vpop.f32.mrf.mxu0
  %v6405 = vadd.f32 %v6068, %v6404
  %v6406 = vpop.f32.mrf.mxu0
  %v6407 = vpop.f32.mrf.mxu0
  %v6408 = vadd.f32 %v6071, %v6407
  %v6409 = vpop.f32.mrf.mxu0
  %6410 = vmatprep.mubr.bf16.mxu0 0
  %6411 = vmatmul.mubr.bf16.gmra.mxu0 %v5496
  %v6412 = vpop.f32.mrf.mxu0
  %v6413 = vadd.f32 %v6076, %v6412
  %v6414 = vpop.f32.mrf.mxu0
  %v6415 = vpop.f32.mrf.mxu0
  %v6416 = vadd.f32 %v6079, %v6415
  %v6417 = vpop.f32.mrf.mxu0
  %6418 = vmatprep.mubr.bf16.mxu0 0
  %6419 = vmatmul.mubr.bf16.gmra.mxu0 %v5497
  %v6420 = vpop.f32.mrf.mxu0
  %v6421 = vadd.f32 %v6084, %v6420
  %v6422 = vpop.f32.mrf.mxu0
  %v6423 = vpop.f32.mrf.mxu0
  %v6424 = vadd.f32 %v6087, %v6423
  %v6425 = vpop.f32.mrf.mxu0
  %6426 = vmatprep.mubr.bf16.mxu0 0
  %6427 = vmatmul.mubr.bf16.gmra.mxu0 %v5498
  %v6428 = vpop.f32.mrf.mxu0
  %v6429 = vadd.f32 %v6092, %v6428
  %v6430 = vpop.f32.mrf.mxu0
  %v6431 = vpop.f32.mrf.mxu0
  %v6432 = vadd.f32 %v6095, %v6431
  %v6433 = vpop.f32.mrf.mxu0
  %6434 = vmatprep.mubr.bf16.mxu0 0
  %6435 = vmatmul.mubr.bf16.gmra.mxu0 %v5499
  %v6436 = vpop.f32.mrf.mxu0
  %v6437 = vadd.f32 %v6100, %v6436
  %v6438 = vpop.f32.mrf.mxu0
  %v6439 = vpop.f32.mrf.mxu0
  %v6440 = vadd.f32 %v6103, %v6439
  %v6441 = vpop.f32.mrf.mxu0
  %6442 = vmatprep.mubr.bf16.mxu0 0
  %6443 = vmatmul.mubr.bf16.gmra.mxu0 %v5500
  %v6444 = vpop.f32.mrf.mxu0
  %v6445 = vadd.f32 %v6108, %v6444
  %v6446 = vpop.f32.mrf.mxu0
  %v6447 = vpop.f32.mrf.mxu0
  %v6448 = vadd.f32 %v6111, %v6447
  %v6449 = vpop.f32.mrf.mxu0
  %6450 = vmatprep.mubr.bf16.mxu0 0
  %6451 = vmatmul.mubr.bf16.gmra.mxu0 %v5501
  %v6452 = vpop.f32.mrf.mxu0
  %v6453 = vadd.f32 %v6116, %v6452
  %v6454 = vpop.f32.mrf.mxu0
  %v6455 = vpop.f32.mrf.mxu0
  %v6456 = vadd.f32 %v6119, %v6455
  %v6457 = vpop.f32.mrf.mxu0
  %6458 = vmatprep.mubr.bf16.mxu0 0
  %6459 = vmatmul.mubr.bf16.gmra.mxu0 %v5502
  %v6460 = vpop.f32.mrf.mxu0
  %v6461 = vadd.f32 %v6124, %v6460
  %v6462 = vpop.f32.mrf.mxu0
  %v6463 = vpop.f32.mrf.mxu0
  %v6464 = vadd.f32 %v6127, %v6463
  %v6465 = vpop.f32.mrf.mxu0
  %6466 = vmatprep.mubr.bf16.mxu0 0
  %6467 = vmatmul.mubr.bf16.gmra.mxu0 %v766
  %v6468 = vpop.f32.mrf.mxu0
  %v6469 = vadd.f32 %v6132, %v6468
  %v6470 = vpop.f32.mrf.mxu0
  %v6471 = vpop.f32.mrf.mxu0
  %v6472 = vadd.f32 %v6135, %v6471
  %v6473 = vpop.f32.mrf.mxu0
  %6474 = vmatprep.mubr.bf16.mxu0 0
  %6475 = vmatmul.mubr.bf16.gmra.mxu0 %v5504
  %v6476 = vpop.f32.mrf.mxu0
  %v6477 = vadd.f32 %v6140, %v6476
  %v6478 = vpop.f32.mrf.mxu0
  %v6479 = vpop.f32.mrf.mxu0
  %v6480 = vadd.f32 %v6143, %v6479
  %v6481 = vpop.f32.mrf.mxu0
  %6482 = vmatprep.mubr.bf16.mxu0 0
  %6483 = vmatmul.mubr.bf16.gmra.mxu0 %v5505
  %v6484 = vpop.f32.mrf.mxu0
  %v6485 = vadd.f32 %v6148, %v6484
  %v6486 = vpop.f32.mrf.mxu0
  %v6487 = vpop.f32.mrf.mxu0
  %v6488 = vadd.f32 %v6151, %v6487
  %v6489 = vpop.f32.mrf.mxu0
  %6490 = vmatprep.mubr.bf16.mxu0 0
  %6491 = vmatmul.mubr.bf16.gmra.mxu0 %v5506
  %v6492 = vpop.f32.mrf.mxu0
  %v6493 = vadd.f32 %v6156, %v6492
  %v6494 = vpop.f32.mrf.mxu0
  %v6495 = vpop.f32.mrf.mxu0
  %v6496 = vadd.f32 %v6159, %v6495
  %v6497 = vpop.f32.mrf.mxu0
  %6498 = vmatprep.mubr.bf16.mxu0 0
  %6499 = vmatmul.mubr.bf16.gmra.mxu0 %v5507
  %v6500 = vpop.f32.mrf.mxu0
  %v6501 = vadd.f32 %v6164, %v6500
  %v6502 = vpop.f32.mrf.mxu0
  %v6503 = vpop.f32.mrf.mxu0
  %v6504 = vadd.f32 %v6167, %v6503
  %v6505 = vpop.f32.mrf.mxu0
  %6506 = vmatprep.mubr.bf16.mxu0 0
  %6507 = vmatmul.mubr.bf16.gmra.mxu0 %v5508
  %v6508 = vpop.f32.mrf.mxu0
  %v6509 = vadd.f32 %v6172, %v6508
  %v6510 = vpop.f32.mrf.mxu0
  %v6511 = vpop.f32.mrf.mxu0
  %v6512 = vadd.f32 %v6175, %v6511
  %v6513 = vpop.f32.mrf.mxu0
  %6514 = vmatprep.mubr.bf16.mxu0 0
  %6515 = vmatmul.mubr.bf16.gmra.mxu0 %v5509
  %v6516 = vpop.f32.mrf.mxu0
  %v6517 = vadd.f32 %v6180, %v6516
  %v6518 = vpop.f32.mrf.mxu0
  %v6519 = vpop.f32.mrf.mxu0
  %v6520 = vadd.f32 %v6183, %v6519
  %v6521 = vpop.f32.mrf.mxu0
  %6522 = vmatprep.mubr.bf16.mxu0 0
  %6523 = vmatmul.mubr.bf16.gmra.mxu0 %v5510
  %v6524 = vpop.f32.mrf.mxu0
  %v6525 = vadd.f32 %v6188, %v6524
  %v6526 = vpop.f32.mrf.mxu0
  %v6527 = vpop.f32.mrf.mxu0
  %v6528 = vadd.f32 %v6191, %v6527
  %v6529 = vpop.f32.mrf.mxu0
  %6530 = vmatprep.mubr.bf16.mxu0 0
  %6531 = vmatmul.mubr.bf16.gmra.mxu0 %v5511
  %v6532 = vpop.f32.mrf.mxu0
  %v6533 = vadd.f32 %v6196, %v6532
  %v6534 = vpop.f32.mrf.mxu0
  %v6535 = vpop.f32.mrf.mxu0
  %v6536 = vadd.f32 %v6199, %v6535
  %v6537 = vpop.f32.mrf.mxu0
  %6538 = vmatprep.mubr.bf16.mxu0 0
  %6539 = vmatmul.mubr.bf16.gmra.mxu0 %v5512
  %v6540 = vpop.f32.mrf.mxu0
  %v6541 = vadd.f32 %v6204, %v6540
  %v6542 = vpop.f32.mrf.mxu0
  %v6543 = vpop.f32.mrf.mxu0
  %v6544 = vadd.f32 %v6207, %v6543
  %v6545 = vpop.f32.mrf.mxu0
  %6546 = vmatprep.mubr.bf16.mxu0 0
  %6547 = vmatmul.mubr.bf16.gmra.mxu0 %v5513
  %v6548 = vpop.f32.mrf.mxu0
  %v6549 = vadd.f32 %v6212, %v6548
  %v6550 = vpop.f32.mrf.mxu0
  %v6551 = vpop.f32.mrf.mxu0
  %v6552 = vadd.f32 %v6215, %v6551
  %v6553 = vpop.f32.mrf.mxu0
  %6554 = vmatprep.mubr.bf16.mxu0 0
  %6555 = vmatmul.mubr.bf16.gmra.mxu0 %v5514
  %v6556 = vpop.f32.mrf.mxu0
  %v6557 = vadd.f32 %v6220, %v6556
  %v6558 = vpop.f32.mrf.mxu0
  %v6559 = vpop.f32.mrf.mxu0
  %v6560 = vadd.f32 %v6223, %v6559
  %v6561 = vpop.f32.mrf.mxu0
  %6562 = vmatprep.mubr.bf16.mxu0 0
  %6563 = vmatmul.mubr.bf16.gmra.mxu0 %v5515
  %v6564 = vpop.f32.mrf.mxu0
  %v6565 = vadd.f32 %v6228, %v6564
  %v6566 = vpop.f32.mrf.mxu0
  %v6567 = vpop.f32.mrf.mxu0
  %v6568 = vadd.f32 %v6231, %v6567
  %v6569 = vpop.f32.mrf.mxu0
  %6570 = vmatprep.mubr.bf16.mxu0 0
  %6571 = vmatmul.mubr.bf16.gmra.mxu0 %v5516
  %v6572 = vpop.f32.mrf.mxu0
  %v6573 = vadd.f32 %v6236, %v6572
  %v6574 = vpop.f32.mrf.mxu0
  %v6575 = vpop.f32.mrf.mxu0
  %v6576 = vadd.f32 %v6239, %v6575
  %v6577 = vpop.f32.mrf.mxu0
  %6578 = vmatprep.mubr.bf16.mxu0 0
  %6579 = vmatmul.mubr.bf16.gmra.mxu0 %v5517
  %v6580 = vpop.f32.mrf.mxu0
  %v6581 = vadd.f32 %v6244, %v6580
  %v6582 = vpop.f32.mrf.mxu0
  %v6583 = vpop.f32.mrf.mxu0
  %v6584 = vadd.f32 %v6247, %v6583
  %v6585 = vpop.f32.mrf.mxu0
  %6586 = vmatprep.mubr.bf16.mxu0 0
  %6587 = vmatmul.mubr.bf16.gmra.mxu0 %v5518
  %v6588 = vpop.f32.mrf.mxu0
  %v6589 = vadd.f32 %v6252, %v6588
  %v6590 = vpop.f32.mrf.mxu0
  %v6591 = vpop.f32.mrf.mxu0
  %v6592 = vadd.f32 %v6255, %v6591
  %v6593 = vpop.f32.mrf.mxu0
  %6594 = vdwg.mxu0
  %v6611 = vunpack.c.l.b16 %v5809
  %v6612 = vunpack.c.l.b16 %v5810
  %v6613 = vunpack.c.l.b16 %v5811
  %v6614 = vunpack.c.l.b16 %v5812
  %v6615 = vunpack.c.l.b16 %v5813
  %v6616 = vunpack.c.l.b16 %v5814
  %v6617 = vunpack.c.l.b16 %v5815
  %v6618 = vunpack.c.l.b16 %v5816
  %v6619 = vunpack.c.l.b16 %v5817
  %v6620 = vunpack.c.l.b16 %v5818
  %v6621 = vunpack.c.l.b16 %v5819
  %v6622 = vunpack.c.l.b16 %v5820
  %v6623 = vunpack.c.l.b16 %v5821
  %v6624 = vunpack.c.l.b16 %v5822
  %v6625 = vunpack.c.l.b16 %v5823
  %v6626 = vunpack.c.l.b16 %v5824
  %v6627 = vpack.c.b16 %v6612, %v6611
  %v6628 = vpack.c.b16 %v6614, %v6613
  %v6629 = vpack.c.b16 %v6616, %v6615
  %v6630 = vpack.c.b16 %v6618, %v6617
  %v6631 = vpack.c.b16 %v6620, %v6619
  %v6632 = vpack.c.b16 %v6622, %v6621
  %v6633 = vpack.c.b16 %v6624, %v6623
  %v6634 = vpack.c.b16 %v6626, %v6625
  %6643 = vmatprep.subr.bf16.mxu0 0
  %6644 = vmatpush1.bf16.msra.mxu0 %v6634
  %6645 = vmatprep.subr.bf16.mxu0 0
  %6646 = vmatpush1.bf16.msra.mxu0 %v6633
  %6647 = vmatprep.subr.bf16.mxu0 0
  %6648 = vmatpush1.bf16.msra.mxu0 %v6632
  %6649 = vmatprep.subr.bf16.mxu0 0
  %6650 = vmatpush1.bf16.msra.mxu0 %v6631
  %6651 = vmatprep.subr.bf16.mxu0 0
  %6652 = vmatpush1.bf16.msra.mxu0 %v6630
  %6653 = vmatprep.subr.bf16.mxu0 0
  %6654 = vmatpush1.bf16.msra.mxu0 %v6629
  %6655 = vmatprep.subr.bf16.mxu0 0
  %6656 = vmatpush1.bf16.msra.mxu0 %v6628
  %6657 = vmatprep.subr.bf16.mxu0 0
  %6658 = vmatpush1.bf16.msra.mxu0 %v6627
  %6659 = vmatprep.subr.bf16.mxu0 0
  %6660 = vmatpush2.bf16.msra.mxu0 0
  %6661 = vmatprep.subr.bf16.mxu0 0
  %6662 = vmatpush2.bf16.msra.mxu0 0
  %6663 = vmatprep.subr.bf16.mxu0 0
  %6664 = vmatpush2.bf16.msra.mxu0 0
  %6665 = vmatprep.subr.bf16.mxu0 0
  %6666 = vmatpush2.bf16.msra.mxu0 0
  %6667 = vmatprep.subr.bf16.mxu0 0
  %6668 = vmatpush2.bf16.msra.mxu0 0
  %6669 = vmatprep.subr.bf16.mxu0 0
  %6670 = vmatpush2.bf16.msra.mxu0 0
  %6671 = vmatprep.subr.bf16.mxu0 0
  %6672 = vmatpush2.bf16.msra.mxu0 0
  %6673 = vmatprep.subr.bf16.mxu0 0
  %6674 = vmatpush2.bf16.msra.mxu0 0
  %6675 = vmatprep.mubr.bf16.mxu0 0
  %6676 = vmatmul.mubr.bf16.gmra.mxu0 %v1033
  %v6677 = vpop.f32.mrf.mxu0
  %v6678 = vadd.f32 0.0, %v6677
  %v6679 = vpop.f32.mrf.mxu0
  %v6680 = vpop.f32.mrf.mxu0
  %v6681 = vadd.f32 0.0, %v6680
  %v6682 = vpop.f32.mrf.mxu0
  %6683 = vmatprep.mubr.bf16.mxu0 0
  %6684 = vmatmul.mubr.bf16.gmra.mxu0 %v5744
  %v6685 = vpop.f32.mrf.mxu0
  %v6686 = vadd.f32 0.0, %v6685
  %v6687 = vpop.f32.mrf.mxu0
  %v6688 = vpop.f32.mrf.mxu0
  %v6689 = vadd.f32 0.0, %v6688
  %v6690 = vpop.f32.mrf.mxu0
  %6691 = vmatprep.mubr.bf16.mxu0 0
  %6692 = vmatmul.mubr.bf16.gmra.mxu0 %v5745
  %v6693 = vpop.f32.mrf.mxu0
  %v6694 = vadd.f32 0.0, %v6693
  %v6695 = vpop.f32.mrf.mxu0
  %v6696 = vpop.f32.mrf.mxu0
  %v6697 = vadd.f32 0.0, %v6696
  %v6698 = vpop.f32.mrf.mxu0
  %6699 = vmatprep.mubr.bf16.mxu0 0
  %6700 = vmatmul.mubr.bf16.gmra.mxu0 %v5746
  %v6701 = vpop.f32.mrf.mxu0
  %v6702 = vadd.f32 0.0, %v6701
  %v6703 = vpop.f32.mrf.mxu0
  %v6704 = vpop.f32.mrf.mxu0
  %v6705 = vadd.f32 0.0, %v6704
  %v6706 = vpop.f32.mrf.mxu0
  %6707 = vmatprep.mubr.bf16.mxu0 0
  %6708 = vmatmul.mubr.bf16.gmra.mxu0 %v5747
  %v6709 = vpop.f32.mrf.mxu0
  %v6710 = vadd.f32 0.0, %v6709
  %v6711 = vpop.f32.mrf.mxu0
  %v6712 = vpop.f32.mrf.mxu0
  %v6713 = vadd.f32 0.0, %v6712
  %v6714 = vpop.f32.mrf.mxu0
  %6715 = vmatprep.mubr.bf16.mxu0 0
  %6716 = vmatmul.mubr.bf16.gmra.mxu0 %v5748
  %v6717 = vpop.f32.mrf.mxu0
  %v6718 = vadd.f32 0.0, %v6717
  %v6719 = vpop.f32.mrf.mxu0
  %v6720 = vpop.f32.mrf.mxu0
  %v6721 = vadd.f32 0.0, %v6720
  %v6722 = vpop.f32.mrf.mxu0
  %6723 = vmatprep.mubr.bf16.mxu0 0
  %6724 = vmatmul.mubr.bf16.gmra.mxu0 %v5749
  %v6725 = vpop.f32.mrf.mxu0
  %v6726 = vadd.f32 0.0, %v6725
  %v6727 = vpop.f32.mrf.mxu0
  %v6728 = vpop.f32.mrf.mxu0
  %v6729 = vadd.f32 0.0, %v6728
  %v6730 = vpop.f32.mrf.mxu0
  %6731 = vmatprep.mubr.bf16.mxu0 0
  %6732 = vmatmul.mubr.bf16.gmra.mxu0 %v5750
  %v6733 = vpop.f32.mrf.mxu0
  %v6734 = vadd.f32 0.0, %v6733
  %v6735 = vpop.f32.mrf.mxu0
  %v6736 = vpop.f32.mrf.mxu0
  %v6737 = vadd.f32 0.0, %v6736
  %v6738 = vpop.f32.mrf.mxu0
  %6739 = vmatprep.mubr.bf16.mxu0 0
  %6740 = vmatmul.mubr.bf16.gmra.mxu0 %v5751
  %v6741 = vpop.f32.mrf.mxu0
  %v6742 = vadd.f32 0.0, %v6741
  %v6743 = vpop.f32.mrf.mxu0
  %v6744 = vpop.f32.mrf.mxu0
  %v6745 = vadd.f32 0.0, %v6744
  %v6746 = vpop.f32.mrf.mxu0
  %6747 = vmatprep.mubr.bf16.mxu0 0
  %6748 = vmatmul.mubr.bf16.gmra.mxu0 %v5752
  %v6749 = vpop.f32.mrf.mxu0
  %v6750 = vadd.f32 0.0, %v6749
  %v6751 = vpop.f32.mrf.mxu0
  %v6752 = vpop.f32.mrf.mxu0
  %v6753 = vadd.f32 0.0, %v6752
  %v6754 = vpop.f32.mrf.mxu0
  %6755 = vmatprep.mubr.bf16.mxu0 0
  %6756 = vmatmul.mubr.bf16.gmra.mxu0 %v5753
  %v6757 = vpop.f32.mrf.mxu0
  %v6758 = vadd.f32 0.0, %v6757
  %v6759 = vpop.f32.mrf.mxu0
  %v6760 = vpop.f32.mrf.mxu0
  %v6761 = vadd.f32 0.0, %v6760
  %v6762 = vpop.f32.mrf.mxu0
  %6763 = vmatprep.mubr.bf16.mxu0 0
  %6764 = vmatmul.mubr.bf16.gmra.mxu0 %v5754
  %v6765 = vpop.f32.mrf.mxu0
  %v6766 = vadd.f32 0.0, %v6765
  %v6767 = vpop.f32.mrf.mxu0
  %v6768 = vpop.f32.mrf.mxu0
  %v6769 = vadd.f32 0.0, %v6768
  %v6770 = vpop.f32.mrf.mxu0
  %6771 = vmatprep.mubr.bf16.mxu0 0
  %6772 = vmatmul.mubr.bf16.gmra.mxu0 %v5755
  %v6773 = vpop.f32.mrf.mxu0
  %v6774 = vadd.f32 0.0, %v6773
  %v6775 = vpop.f32.mrf.mxu0
  %v6776 = vpop.f32.mrf.mxu0
  %v6777 = vadd.f32 0.0, %v6776
  %v6778 = vpop.f32.mrf.mxu0
  %6779 = vmatprep.mubr.bf16.mxu0 0
  %6780 = vmatmul.mubr.bf16.gmra.mxu0 %v5756
  %v6781 = vpop.f32.mrf.mxu0
  %v6782 = vadd.f32 0.0, %v6781
  %v6783 = vpop.f32.mrf.mxu0
  %v6784 = vpop.f32.mrf.mxu0
  %v6785 = vadd.f32 0.0, %v6784
  %v6786 = vpop.f32.mrf.mxu0
  %6787 = vmatprep.mubr.bf16.mxu0 0
  %6788 = vmatmul.mubr.bf16.gmra.mxu0 %v5757
  %v6789 = vpop.f32.mrf.mxu0
  %v6790 = vadd.f32 0.0, %v6789
  %v6791 = vpop.f32.mrf.mxu0
  %v6792 = vpop.f32.mrf.mxu0
  %v6793 = vadd.f32 0.0, %v6792
  %v6794 = vpop.f32.mrf.mxu0
  %6795 = vmatprep.mubr.bf16.mxu0 0
  %6796 = vmatmul.mubr.bf16.gmra.mxu0 %v5758
  %v6797 = vpop.f32.mrf.mxu0
  %v6798 = vadd.f32 0.0, %v6797
  %v6799 = vpop.f32.mrf.mxu0
  %v6800 = vpop.f32.mrf.mxu0
  %v6801 = vadd.f32 0.0, %v6800
  %v6802 = vpop.f32.mrf.mxu0
  %6803 = vmatprep.mubr.bf16.mxu0 0
  %6804 = vmatmul.mubr.bf16.gmra.mxu0 %v1033
  %v6805 = vpop.f32.mrf.mxu0
  %v6806 = vadd.f32 0.0, %v6805
  %v6807 = vpop.f32.mrf.mxu0
  %v6808 = vpop.f32.mrf.mxu0
  %v6809 = vadd.f32 0.0, %v6808
  %v6810 = vpop.f32.mrf.mxu0
  %6811 = vmatprep.mubr.bf16.mxu0 0
  %6812 = vmatmul.mubr.bf16.gmra.mxu0 %v5760
  %v6813 = vpop.f32.mrf.mxu0
  %v6814 = vadd.f32 0.0, %v6813
  %v6815 = vpop.f32.mrf.mxu0
  %v6816 = vpop.f32.mrf.mxu0
  %v6817 = vadd.f32 0.0, %v6816
  %v6818 = vpop.f32.mrf.mxu0
  %6819 = vmatprep.mubr.bf16.mxu0 0
  %6820 = vmatmul.mubr.bf16.gmra.mxu0 %v5761
  %v6821 = vpop.f32.mrf.mxu0
  %v6822 = vadd.f32 0.0, %v6821
  %v6823 = vpop.f32.mrf.mxu0
  %v6824 = vpop.f32.mrf.mxu0
  %v6825 = vadd.f32 0.0, %v6824
  %v6826 = vpop.f32.mrf.mxu0
  %6827 = vmatprep.mubr.bf16.mxu0 0
  %6828 = vmatmul.mubr.bf16.gmra.mxu0 %v5762
  %v6829 = vpop.f32.mrf.mxu0
  %v6830 = vadd.f32 0.0, %v6829
  %v6831 = vpop.f32.mrf.mxu0
  %v6832 = vpop.f32.mrf.mxu0
  %v6833 = vadd.f32 0.0, %v6832
  %v6834 = vpop.f32.mrf.mxu0
  %6835 = vmatprep.mubr.bf16.mxu0 0
  %6836 = vmatmul.mubr.bf16.gmra.mxu0 %v5763
  %v6837 = vpop.f32.mrf.mxu0
  %v6838 = vadd.f32 0.0, %v6837
  %v6839 = vpop.f32.mrf.mxu0
  %v6840 = vpop.f32.mrf.mxu0
  %v6841 = vadd.f32 0.0, %v6840
  %v6842 = vpop.f32.mrf.mxu0
  %6843 = vmatprep.mubr.bf16.mxu0 0
  %6844 = vmatmul.mubr.bf16.gmra.mxu0 %v5764
  %v6845 = vpop.f32.mrf.mxu0
  %v6846 = vadd.f32 0.0, %v6845
  %v6847 = vpop.f32.mrf.mxu0
  %v6848 = vpop.f32.mrf.mxu0
  %v6849 = vadd.f32 0.0, %v6848
  %v6850 = vpop.f32.mrf.mxu0
  %6851 = vmatprep.mubr.bf16.mxu0 0
  %6852 = vmatmul.mubr.bf16.gmra.mxu0 %v5765
  %v6853 = vpop.f32.mrf.mxu0
  %v6854 = vadd.f32 0.0, %v6853
  %v6855 = vpop.f32.mrf.mxu0
  %v6856 = vpop.f32.mrf.mxu0
  %v6857 = vadd.f32 0.0, %v6856
  %v6858 = vpop.f32.mrf.mxu0
  %6859 = vmatprep.mubr.bf16.mxu0 0
  %6860 = vmatmul.mubr.bf16.gmra.mxu0 %v5766
  %v6861 = vpop.f32.mrf.mxu0
  %v6862 = vadd.f32 0.0, %v6861
  %v6863 = vpop.f32.mrf.mxu0
  %v6864 = vpop.f32.mrf.mxu0
  %v6865 = vadd.f32 0.0, %v6864
  %v6866 = vpop.f32.mrf.mxu0
  %6867 = vmatprep.mubr.bf16.mxu0 0
  %6868 = vmatmul.mubr.bf16.gmra.mxu0 %v5767
  %v6869 = vpop.f32.mrf.mxu0
  %v6870 = vadd.f32 0.0, %v6869
  %v6871 = vpop.f32.mrf.mxu0
  %v6872 = vpop.f32.mrf.mxu0
  %v6873 = vadd.f32 0.0, %v6872
  %v6874 = vpop.f32.mrf.mxu0
  %6875 = vmatprep.mubr.bf16.mxu0 0
  %6876 = vmatmul.mubr.bf16.gmra.mxu0 %v5768
  %v6877 = vpop.f32.mrf.mxu0
  %v6878 = vadd.f32 0.0, %v6877
  %v6879 = vpop.f32.mrf.mxu0
  %v6880 = vpop.f32.mrf.mxu0
  %v6881 = vadd.f32 0.0, %v6880
  %v6882 = vpop.f32.mrf.mxu0
  %6883 = vmatprep.mubr.bf16.mxu0 0
  %6884 = vmatmul.mubr.bf16.gmra.mxu0 %v5769
  %v6885 = vpop.f32.mrf.mxu0
  %v6886 = vadd.f32 0.0, %v6885
  %v6887 = vpop.f32.mrf.mxu0
  %v6888 = vpop.f32.mrf.mxu0
  %v6889 = vadd.f32 0.0, %v6888
  %v6890 = vpop.f32.mrf.mxu0
  %6891 = vmatprep.mubr.bf16.mxu0 0
  %6892 = vmatmul.mubr.bf16.gmra.mxu0 %v5770
  %v6893 = vpop.f32.mrf.mxu0
  %v6894 = vadd.f32 0.0, %v6893
  %v6895 = vpop.f32.mrf.mxu0
  %v6896 = vpop.f32.mrf.mxu0
  %v6897 = vadd.f32 0.0, %v6896
  %v6898 = vpop.f32.mrf.mxu0
  %6899 = vmatprep.mubr.bf16.mxu0 0
  %6900 = vmatmul.mubr.bf16.gmra.mxu0 %v5771
  %v6901 = vpop.f32.mrf.mxu0
  %v6902 = vadd.f32 0.0, %v6901
  %v6903 = vpop.f32.mrf.mxu0
  %v6904 = vpop.f32.mrf.mxu0
  %v6905 = vadd.f32 0.0, %v6904
  %v6906 = vpop.f32.mrf.mxu0
  %6907 = vmatprep.mubr.bf16.mxu0 0
  %6908 = vmatmul.mubr.bf16.gmra.mxu0 %v5772
  %v6909 = vpop.f32.mrf.mxu0
  %v6910 = vadd.f32 0.0, %v6909
  %v6911 = vpop.f32.mrf.mxu0
  %v6912 = vpop.f32.mrf.mxu0
  %v6913 = vadd.f32 0.0, %v6912
  %v6914 = vpop.f32.mrf.mxu0
  %6915 = vmatprep.mubr.bf16.mxu0 0
  %6916 = vmatmul.mubr.bf16.gmra.mxu0 %v5773
  %v6917 = vpop.f32.mrf.mxu0
  %v6918 = vadd.f32 0.0, %v6917
  %v6919 = vpop.f32.mrf.mxu0
  %v6920 = vpop.f32.mrf.mxu0
  %v6921 = vadd.f32 0.0, %v6920
  %v6922 = vpop.f32.mrf.mxu0
  %6923 = vmatprep.mubr.bf16.mxu0 0
  %6924 = vmatmul.mubr.bf16.gmra.mxu0 %v5774
  %v6925 = vpop.f32.mrf.mxu0
  %v6926 = vadd.f32 0.0, %v6925
  %v6927 = vpop.f32.mrf.mxu0
  %v6928 = vpop.f32.mrf.mxu0
  %v6929 = vadd.f32 0.0, %v6928
  %v6930 = vpop.f32.mrf.mxu0
  %6931 = vdwg.mxu0
  %v6932 = vadd.f32 %v6341, %v6678
  %v6933 = vadd.f32 %v6344, %v6681
  %v6934 = vadd.f32 %v6349, %v6686
  %v6935 = vadd.f32 %v6352, %v6689
  %v6936 = vadd.f32 %v6357, %v6694
  %v6937 = vadd.f32 %v6360, %v6697
  %v6938 = vadd.f32 %v6365, %v6702
  %v6939 = vadd.f32 %v6368, %v6705
  %v6940 = vadd.f32 %v6373, %v6710
  %v6941 = vadd.f32 %v6376, %v6713
  %v6942 = vadd.f32 %v6381, %v6718
  %v6943 = vadd.f32 %v6384, %v6721
  %v6944 = vadd.f32 %v6389, %v6726
  %v6945 = vadd.f32 %v6392, %v6729
  %v6946 = vadd.f32 %v6397, %v6734
  %v6947 = vadd.f32 %v6400, %v6737
  %v6948 = vadd.f32 %v6405, %v6742
  %v6949 = vadd.f32 %v6408, %v6745
  %v6950 = vadd.f32 %v6413, %v6750
  %v6951 = vadd.f32 %v6416, %v6753
  %v6952 = vadd.f32 %v6421, %v6758
  %v6953 = vadd.f32 %v6424, %v6761
  %v6954 = vadd.f32 %v6429, %v6766
  %v6955 = vadd.f32 %v6432, %v6769
  %v6956 = vadd.f32 %v6437, %v6774
  %v6957 = vadd.f32 %v6440, %v6777
  %v6958 = vadd.f32 %v6445, %v6782
  %v6959 = vadd.f32 %v6448, %v6785
  %v6960 = vadd.f32 %v6453, %v6790
  %v6961 = vadd.f32 %v6456, %v6793
  %v6962 = vadd.f32 %v6461, %v6798
  %v6963 = vadd.f32 %v6464, %v6801
  %v6964 = vadd.f32 %v6469, %v6806
  %v6965 = vadd.f32 %v6472, %v6809
  %v6966 = vadd.f32 %v6477, %v6814
  %v6967 = vadd.f32 %v6480, %v6817
  %v6968 = vadd.f32 %v6485, %v6822
  %v6969 = vadd.f32 %v6488, %v6825
  %v6970 = vadd.f32 %v6493, %v6830
  %v6971 = vadd.f32 %v6496, %v6833
  %v6972 = vadd.f32 %v6501, %v6838
  %v6973 = vadd.f32 %v6504, %v6841
  %v6974 = vadd.f32 %v6509, %v6846
  %v6975 = vadd.f32 %v6512, %v6849
  %v6976 = vadd.f32 %v6517, %v6854
  %v6977 = vadd.f32 %v6520, %v6857
  %v6978 = vadd.f32 %v6525, %v6862
  %v6979 = vadd.f32 %v6528, %v6865
  %v6980 = vadd.f32 %v6533, %v6870
  %v6981 = vadd.f32 %v6536, %v6873
  %v6982 = vadd.f32 %v6541, %v6878
  %v6983 = vadd.f32 %v6544, %v6881
  %v6984 = vadd.f32 %v6549, %v6886
  %v6985 = vadd.f32 %v6552, %v6889
  %v6986 = vadd.f32 %v6557, %v6894
  %v6987 = vadd.f32 %v6560, %v6897
  %v6988 = vadd.f32 %v6565, %v6902
  %v6989 = vadd.f32 %v6568, %v6905
  %v6990 = vadd.f32 %v6573, %v6910
  %v6991 = vadd.f32 %v6576, %v6913
  %v6992 = vadd.f32 %v6581, %v6918
  %v6993 = vadd.f32 %v6584, %v6921
  %v6994 = vadd.f32 %v6589, %v6926
  %v6995 = vadd.f32 %v6592, %v6929
  %v7012 = vunpack.c.l.b16 %v5825
  %v7013 = vunpack.c.l.b16 %v5826
  %v7014 = vunpack.c.l.b16 %v5827
  %v7015 = vunpack.c.l.b16 %v5828
  %v7016 = vunpack.c.l.b16 %v5829
  %v7017 = vunpack.c.l.b16 %v5830
  %v7018 = vunpack.c.l.b16 %v5831
  %v7019 = vunpack.c.l.b16 %v5832
  %v7020 = vunpack.c.l.b16 %v5833
  %v7021 = vunpack.c.l.b16 %v5834
  %v7022 = vunpack.c.l.b16 %v5835
  %v7023 = vunpack.c.l.b16 %v5836
  %v7024 = vunpack.c.l.b16 %v5837
  %v7025 = vunpack.c.l.b16 %v5838
  %v7026 = vunpack.c.l.b16 %v5839
  %v7027 = vunpack.c.l.b16 %v5840
  %v7028 = vpack.c.b16 %v7013, %v7012
  %v7029 = vpack.c.b16 %v7015, %v7014
  %v7030 = vpack.c.b16 %v7017, %v7016
  %v7031 = vpack.c.b16 %v7019, %v7018
  %v7032 = vpack.c.b16 %v7021, %v7020
  %v7033 = vpack.c.b16 %v7023, %v7022
  %v7034 = vpack.c.b16 %v7025, %v7024
  %v7035 = vpack.c.b16 %v7027, %v7026
  %7044 = vmatprep.subr.bf16.mxu0 0
  %7045 = vmatpush1.bf16.msra.mxu0 %v7035
  %7046 = vmatprep.subr.bf16.mxu0 0
  %7047 = vmatpush1.bf16.msra.mxu0 %v7034
  %7048 = vmatprep.subr.bf16.mxu0 0
  %7049 = vmatpush1.bf16.msra.mxu0 %v7033
  %7050 = vmatprep.subr.bf16.mxu0 0
  %7051 = vmatpush1.bf16.msra.mxu0 %v7032
  %7052 = vmatprep.subr.bf16.mxu0 0
  %7053 = vmatpush1.bf16.msra.mxu0 %v7031
  %7054 = vmatprep.subr.bf16.mxu0 0
  %7055 = vmatpush1.bf16.msra.mxu0 %v7030
  %7056 = vmatprep.subr.bf16.mxu0 0
  %7057 = vmatpush1.bf16.msra.mxu0 %v7029
  %7058 = vmatprep.subr.bf16.mxu0 0
  %7059 = vmatpush1.bf16.msra.mxu0 %v7028
  %7060 = vmatprep.subr.bf16.mxu0 0
  %7061 = vmatpush2.bf16.msra.mxu0 0
  %7062 = vmatprep.subr.bf16.mxu0 0
  %7063 = vmatpush2.bf16.msra.mxu0 0
  %7064 = vmatprep.subr.bf16.mxu0 0
  %7065 = vmatpush2.bf16.msra.mxu0 0
  %7066 = vmatprep.subr.bf16.mxu0 0
  %7067 = vmatpush2.bf16.msra.mxu0 0
  %7068 = vmatprep.subr.bf16.mxu0 0
  %7069 = vmatpush2.bf16.msra.mxu0 0
  %7070 = vmatprep.subr.bf16.mxu0 0
  %7071 = vmatpush2.bf16.msra.mxu0 0
  %7072 = vmatprep.subr.bf16.mxu0 0
  %7073 = vmatpush2.bf16.msra.mxu0 0
  %7074 = vmatprep.subr.bf16.mxu0 0
  %7075 = vmatpush2.bf16.msra.mxu0 0
  %7076 = vmatprep.mubr.bf16.mxu0 0
  %7077 = vmatmul.mubr.bf16.gmra.mxu0 %v5488
  %v7078 = vpop.f32.mrf.mxu0
  %v7079 = vadd.f32 0.0, %v7078
  %v7080 = vpop.f32.mrf.mxu0
  %v7081 = vpop.f32.mrf.mxu0
  %v7082 = vadd.f32 0.0, %v7081
  %v7083 = vpop.f32.mrf.mxu0
  %7084 = vmatprep.mubr.bf16.mxu0 0
  %7085 = vmatmul.mubr.bf16.gmra.mxu0 %v5489
  %v7086 = vpop.f32.mrf.mxu0
  %v7087 = vadd.f32 0.0, %v7086
  %v7088 = vpop.f32.mrf.mxu0
  %v7089 = vpop.f32.mrf.mxu0
  %v7090 = vadd.f32 0.0, %v7089
  %v7091 = vpop.f32.mrf.mxu0
  %7092 = vmatprep.mubr.bf16.mxu0 0
  %7093 = vmatmul.mubr.bf16.gmra.mxu0 %v5490
  %v7094 = vpop.f32.mrf.mxu0
  %v7095 = vadd.f32 0.0, %v7094
  %v7096 = vpop.f32.mrf.mxu0
  %v7097 = vpop.f32.mrf.mxu0
  %v7098 = vadd.f32 0.0, %v7097
  %v7099 = vpop.f32.mrf.mxu0
  %7100 = vmatprep.mubr.bf16.mxu0 0
  %7101 = vmatmul.mubr.bf16.gmra.mxu0 %v5491
  %v7102 = vpop.f32.mrf.mxu0
  %v7103 = vadd.f32 0.0, %v7102
  %v7104 = vpop.f32.mrf.mxu0
  %v7105 = vpop.f32.mrf.mxu0
  %v7106 = vadd.f32 0.0, %v7105
  %v7107 = vpop.f32.mrf.mxu0
  %7108 = vmatprep.mubr.bf16.mxu0 0
  %7109 = vmatmul.mubr.bf16.gmra.mxu0 %v5492
  %v7110 = vpop.f32.mrf.mxu0
  %v7111 = vadd.f32 0.0, %v7110
  %v7112 = vpop.f32.mrf.mxu0
  %v7113 = vpop.f32.mrf.mxu0
  %v7114 = vadd.f32 0.0, %v7113
  %v7115 = vpop.f32.mrf.mxu0
  %7116 = vmatprep.mubr.bf16.mxu0 0
  %7117 = vmatmul.mubr.bf16.gmra.mxu0 %v5493
  %v7118 = vpop.f32.mrf.mxu0
  %v7119 = vadd.f32 0.0, %v7118
  %v7120 = vpop.f32.mrf.mxu0
  %v7121 = vpop.f32.mrf.mxu0
  %v7122 = vadd.f32 0.0, %v7121
  %v7123 = vpop.f32.mrf.mxu0
  %7124 = vmatprep.mubr.bf16.mxu0 0
  %7125 = vmatmul.mubr.bf16.gmra.mxu0 %v5494
  %v7126 = vpop.f32.mrf.mxu0
  %v7127 = vadd.f32 0.0, %v7126
  %v7128 = vpop.f32.mrf.mxu0
  %v7129 = vpop.f32.mrf.mxu0
  %v7130 = vadd.f32 0.0, %v7129
  %v7131 = vpop.f32.mrf.mxu0
  %7132 = vmatprep.mubr.bf16.mxu0 0
  %7133 = vmatmul.mubr.bf16.gmra.mxu0 %v5495
  %v7134 = vpop.f32.mrf.mxu0
  %v7135 = vadd.f32 0.0, %v7134
  %v7136 = vpop.f32.mrf.mxu0
  %v7137 = vpop.f32.mrf.mxu0
  %v7138 = vadd.f32 0.0, %v7137
  %v7139 = vpop.f32.mrf.mxu0
  %7140 = vmatprep.mubr.bf16.mxu0 0
  %7141 = vmatmul.mubr.bf16.gmra.mxu0 %v5496
  %v7142 = vpop.f32.mrf.mxu0
  %v7143 = vadd.f32 0.0, %v7142
  %v7144 = vpop.f32.mrf.mxu0
  %v7145 = vpop.f32.mrf.mxu0
  %v7146 = vadd.f32 0.0, %v7145
  %v7147 = vpop.f32.mrf.mxu0
  %7148 = vmatprep.mubr.bf16.mxu0 0
  %7149 = vmatmul.mubr.bf16.gmra.mxu0 %v5497
  %v7150 = vpop.f32.mrf.mxu0
  %v7151 = vadd.f32 0.0, %v7150
  %v7152 = vpop.f32.mrf.mxu0
  %v7153 = vpop.f32.mrf.mxu0
  %v7154 = vadd.f32 0.0, %v7153
  %v7155 = vpop.f32.mrf.mxu0
  %7156 = vmatprep.mubr.bf16.mxu0 0
  %7157 = vmatmul.mubr.bf16.gmra.mxu0 %v5498
  %v7158 = vpop.f32.mrf.mxu0
  %v7159 = vadd.f32 0.0, %v7158
  %v7160 = vpop.f32.mrf.mxu0
  %v7161 = vpop.f32.mrf.mxu0
  %v7162 = vadd.f32 0.0, %v7161
  %v7163 = vpop.f32.mrf.mxu0
  %7164 = vmatprep.mubr.bf16.mxu0 0
  %7165 = vmatmul.mubr.bf16.gmra.mxu0 %v5499
  %v7166 = vpop.f32.mrf.mxu0
  %v7167 = vadd.f32 0.0, %v7166
  %v7168 = vpop.f32.mrf.mxu0
  %v7169 = vpop.f32.mrf.mxu0
  %v7170 = vadd.f32 0.0, %v7169
  %v7171 = vpop.f32.mrf.mxu0
  %7172 = vmatprep.mubr.bf16.mxu0 0
  %7173 = vmatmul.mubr.bf16.gmra.mxu0 %v5500
  %v7174 = vpop.f32.mrf.mxu0
  %v7175 = vadd.f32 0.0, %v7174
  %v7176 = vpop.f32.mrf.mxu0
  %v7177 = vpop.f32.mrf.mxu0
  %v7178 = vadd.f32 0.0, %v7177
  %v7179 = vpop.f32.mrf.mxu0
  %7180 = vmatprep.mubr.bf16.mxu0 0
  %7181 = vmatmul.mubr.bf16.gmra.mxu0 %v5501
  %v7182 = vpop.f32.mrf.mxu0
  %v7183 = vadd.f32 0.0, %v7182
  %v7184 = vpop.f32.mrf.mxu0
  %v7185 = vpop.f32.mrf.mxu0
  %v7186 = vadd.f32 0.0, %v7185
  %v7187 = vpop.f32.mrf.mxu0
  %7188 = vmatprep.mubr.bf16.mxu0 0
  %7189 = vmatmul.mubr.bf16.gmra.mxu0 %v5502
  %v7190 = vpop.f32.mrf.mxu0
  %v7191 = vadd.f32 0.0, %v7190
  %v7192 = vpop.f32.mrf.mxu0
  %v7193 = vpop.f32.mrf.mxu0
  %v7194 = vadd.f32 0.0, %v7193
  %v7195 = vpop.f32.mrf.mxu0
  %7196 = vmatprep.mubr.bf16.mxu0 0
  %7197 = vmatmul.mubr.bf16.gmra.mxu0 %v5503
  %v7198 = vpop.f32.mrf.mxu0
  %v7199 = vadd.f32 0.0, %v7198
  %v7200 = vpop.f32.mrf.mxu0
  %v7201 = vpop.f32.mrf.mxu0
  %v7202 = vadd.f32 0.0, %v7201
  %v7203 = vpop.f32.mrf.mxu0
  %7204 = vmatprep.mubr.bf16.mxu0 0
  %7205 = vmatmul.mubr.bf16.gmra.mxu0 %v5504
  %v7206 = vpop.f32.mrf.mxu0
  %v7207 = vadd.f32 0.0, %v7206
  %v7208 = vpop.f32.mrf.mxu0
  %v7209 = vpop.f32.mrf.mxu0
  %v7210 = vadd.f32 0.0, %v7209
  %v7211 = vpop.f32.mrf.mxu0
  %7212 = vmatprep.mubr.bf16.mxu0 0
  %7213 = vmatmul.mubr.bf16.gmra.mxu0 %v5505
  %v7214 = vpop.f32.mrf.mxu0
  %v7215 = vadd.f32 0.0, %v7214
  %v7216 = vpop.f32.mrf.mxu0
  %v7217 = vpop.f32.mrf.mxu0
  %v7218 = vadd.f32 0.0, %v7217
  %v7219 = vpop.f32.mrf.mxu0
  %7220 = vmatprep.mubr.bf16.mxu0 0
  %7221 = vmatmul.mubr.bf16.gmra.mxu0 %v5506
  %v7222 = vpop.f32.mrf.mxu0
  %v7223 = vadd.f32 0.0, %v7222
  %v7224 = vpop.f32.mrf.mxu0
  %v7225 = vpop.f32.mrf.mxu0
  %v7226 = vadd.f32 0.0, %v7225
  %v7227 = vpop.f32.mrf.mxu0
  %7228 = vmatprep.mubr.bf16.mxu0 0
  %7229 = vmatmul.mubr.bf16.gmra.mxu0 %v5507
  %v7230 = vpop.f32.mrf.mxu0
  %v7231 = vadd.f32 0.0, %v7230
  %v7232 = vpop.f32.mrf.mxu0
  %v7233 = vpop.f32.mrf.mxu0
  %v7234 = vadd.f32 0.0, %v7233
  %v7235 = vpop.f32.mrf.mxu0
  %7236 = vmatprep.mubr.bf16.mxu0 0
  %7237 = vmatmul.mubr.bf16.gmra.mxu0 %v5508
  %v7238 = vpop.f32.mrf.mxu0
  %v7239 = vadd.f32 0.0, %v7238
  %v7240 = vpop.f32.mrf.mxu0
  %v7241 = vpop.f32.mrf.mxu0
  %v7242 = vadd.f32 0.0, %v7241
  %v7243 = vpop.f32.mrf.mxu0
  %7244 = vmatprep.mubr.bf16.mxu0 0
  %7245 = vmatmul.mubr.bf16.gmra.mxu0 %v5509
  %v7246 = vpop.f32.mrf.mxu0
  %v7247 = vadd.f32 0.0, %v7246
  %v7248 = vpop.f32.mrf.mxu0
  %v7249 = vpop.f32.mrf.mxu0
  %v7250 = vadd.f32 0.0, %v7249
  %v7251 = vpop.f32.mrf.mxu0
  %7252 = vmatprep.mubr.bf16.mxu0 0
  %7253 = vmatmul.mubr.bf16.gmra.mxu0 %v5510
  %v7254 = vpop.f32.mrf.mxu0
  %v7255 = vadd.f32 0.0, %v7254
  %v7256 = vpop.f32.mrf.mxu0
  %v7257 = vpop.f32.mrf.mxu0
  %v7258 = vadd.f32 0.0, %v7257
  %v7259 = vpop.f32.mrf.mxu0
  %7260 = vmatprep.mubr.bf16.mxu0 0
  %7261 = vmatmul.mubr.bf16.gmra.mxu0 %v5511
  %v7262 = vpop.f32.mrf.mxu0
  %v7263 = vadd.f32 0.0, %v7262
  %v7264 = vpop.f32.mrf.mxu0
  %v7265 = vpop.f32.mrf.mxu0
  %v7266 = vadd.f32 0.0, %v7265
  %v7267 = vpop.f32.mrf.mxu0
  %7268 = vmatprep.mubr.bf16.mxu0 0
  %7269 = vmatmul.mubr.bf16.gmra.mxu0 %v5512
  %v7270 = vpop.f32.mrf.mxu0
  %v7271 = vadd.f32 0.0, %v7270
  %v7272 = vpop.f32.mrf.mxu0
  %v7273 = vpop.f32.mrf.mxu0
  %v7274 = vadd.f32 0.0, %v7273
  %v7275 = vpop.f32.mrf.mxu0
  %7276 = vmatprep.mubr.bf16.mxu0 0
  %7277 = vmatmul.mubr.bf16.gmra.mxu0 %v5513
  %v7278 = vpop.f32.mrf.mxu0
  %v7279 = vadd.f32 0.0, %v7278
  %v7280 = vpop.f32.mrf.mxu0
  %v7281 = vpop.f32.mrf.mxu0
  %v7282 = vadd.f32 0.0, %v7281
  %v7283 = vpop.f32.mrf.mxu0
  %7284 = vmatprep.mubr.bf16.mxu0 0
  %7285 = vmatmul.mubr.bf16.gmra.mxu0 %v5514
  %v7286 = vpop.f32.mrf.mxu0
  %v7287 = vadd.f32 0.0, %v7286
  %v7288 = vpop.f32.mrf.mxu0
  %v7289 = vpop.f32.mrf.mxu0
  %v7290 = vadd.f32 0.0, %v7289
  %v7291 = vpop.f32.mrf.mxu0
  %7292 = vmatprep.mubr.bf16.mxu0 0
  %7293 = vmatmul.mubr.bf16.gmra.mxu0 %v5515
  %v7294 = vpop.f32.mrf.mxu0
  %v7295 = vadd.f32 0.0, %v7294
  %v7296 = vpop.f32.mrf.mxu0
  %v7297 = vpop.f32.mrf.mxu0
  %v7298 = vadd.f32 0.0, %v7297
  %v7299 = vpop.f32.mrf.mxu0
  %7300 = vmatprep.mubr.bf16.mxu0 0
  %7301 = vmatmul.mubr.bf16.gmra.mxu0 %v5516
  %v7302 = vpop.f32.mrf.mxu0
  %v7303 = vadd.f32 0.0, %v7302
  %v7304 = vpop.f32.mrf.mxu0
  %v7305 = vpop.f32.mrf.mxu0
  %v7306 = vadd.f32 0.0, %v7305
  %v7307 = vpop.f32.mrf.mxu0
  %7308 = vmatprep.mubr.bf16.mxu0 0
  %7309 = vmatmul.mubr.bf16.gmra.mxu0 %v5517
  %v7310 = vpop.f32.mrf.mxu0
  %v7311 = vadd.f32 0.0, %v7310
  %v7312 = vpop.f32.mrf.mxu0
  %v7313 = vpop.f32.mrf.mxu0
  %v7314 = vadd.f32 0.0, %v7313
  %v7315 = vpop.f32.mrf.mxu0
  %7316 = vmatprep.mubr.bf16.mxu0 0
  %7317 = vmatmul.mubr.bf16.gmra.mxu0 %v5518
  %v7318 = vpop.f32.mrf.mxu0
  %v7319 = vadd.f32 0.0, %v7318
  %v7320 = vpop.f32.mrf.mxu0
  %v7321 = vpop.f32.mrf.mxu0
  %v7322 = vadd.f32 0.0, %v7321
  %v7323 = vpop.f32.mrf.mxu0
  %7324 = vmatprep.mubr.bf16.mxu0 0
  %7325 = vmatmul.mubr.bf16.gmra.mxu0 %v5519
  %v7326 = vpop.f32.mrf.mxu0
  %v7327 = vadd.f32 0.0, %v7326
  %v7328 = vpop.f32.mrf.mxu0
  %v7329 = vpop.f32.mrf.mxu0
  %v7330 = vadd.f32 0.0, %v7329
  %v7331 = vpop.f32.mrf.mxu0
  %7332 = vdwg.mxu0
  %v7333 = vadd.f32 %v6932, %v7079
  %v7334 = vadd.f32 %v6933, %v7082
  %v7335 = vadd.f32 %v6934, %v7087
  %v7336 = vadd.f32 %v6935, %v7090
  %v7337 = vadd.f32 %v6936, %v7095
  %v7338 = vadd.f32 %v6937, %v7098
  %v7339 = vadd.f32 %v6938, %v7103
  %v7340 = vadd.f32 %v6939, %v7106
  %v7341 = vadd.f32 %v6940, %v7111
  %v7342 = vadd.f32 %v6941, %v7114
  %v7343 = vadd.f32 %v6942, %v7119
  %v7344 = vadd.f32 %v6943, %v7122
  %v7345 = vadd.f32 %v6944, %v7127
  %v7346 = vadd.f32 %v6945, %v7130
  %v7347 = vadd.f32 %v6946, %v7135
  %v7348 = vadd.f32 %v6947, %v7138
  %v7349 = vadd.f32 %v6948, %v7143
  %v7350 = vadd.f32 %v6949, %v7146
  %v7351 = vadd.f32 %v6950, %v7151
  %v7352 = vadd.f32 %v6951, %v7154
  %v7353 = vadd.f32 %v6952, %v7159
  %v7354 = vadd.f32 %v6953, %v7162
  %v7355 = vadd.f32 %v6954, %v7167
  %v7356 = vadd.f32 %v6955, %v7170
  %v7357 = vadd.f32 %v6956, %v7175
  %v7358 = vadd.f32 %v6957, %v7178
  %v7359 = vadd.f32 %v6958, %v7183
  %v7360 = vadd.f32 %v6959, %v7186
  %v7361 = vadd.f32 %v6960, %v7191
  %v7362 = vadd.f32 %v6961, %v7194
  %v7363 = vadd.f32 %v6962, %v7199
  %v7364 = vadd.f32 %v6963, %v7202
  %v7365 = vadd.f32 %v6964, %v7207
  %v7366 = vadd.f32 %v6965, %v7210
  %v7367 = vadd.f32 %v6966, %v7215
  %v7368 = vadd.f32 %v6967, %v7218
  %v7369 = vadd.f32 %v6968, %v7223
  %v7370 = vadd.f32 %v6969, %v7226
  %v7371 = vadd.f32 %v6970, %v7231
  %v7372 = vadd.f32 %v6971, %v7234
  %v7373 = vadd.f32 %v6972, %v7239
  %v7374 = vadd.f32 %v6973, %v7242
  %v7375 = vadd.f32 %v6974, %v7247
  %v7376 = vadd.f32 %v6975, %v7250
  %v7377 = vadd.f32 %v6976, %v7255
  %v7378 = vadd.f32 %v6977, %v7258
  %v7379 = vadd.f32 %v6978, %v7263
  %v7380 = vadd.f32 %v6979, %v7266
  %v7381 = vadd.f32 %v6980, %v7271
  %v7382 = vadd.f32 %v6981, %v7274
  %v7383 = vadd.f32 %v6982, %v7279
  %v7384 = vadd.f32 %v6983, %v7282
  %v7385 = vadd.f32 %v6984, %v7287
  %v7386 = vadd.f32 %v6985, %v7290
  %v7387 = vadd.f32 %v6986, %v7295
  %v7388 = vadd.f32 %v6987, %v7298
  %v7389 = vadd.f32 %v6988, %v7303
  %v7390 = vadd.f32 %v6989, %v7306
  %v7391 = vadd.f32 %v6990, %v7311
  %v7392 = vadd.f32 %v6991, %v7314
  %v7393 = vadd.f32 %v6992, %v7319
  %v7394 = vadd.f32 %v6993, %v7322
  %v7395 = vadd.f32 %v6994, %v7327
  %v7396 = vadd.f32 %v6995, %v7330
  %v7413 = vunpack.c.l.b16 %v5841
  %v7414 = vunpack.c.l.b16 %v5842
  %v7415 = vunpack.c.l.b16 %v5843
  %v7416 = vunpack.c.l.b16 %v5844
  %v7417 = vunpack.c.l.b16 %v5845
  %v7418 = vunpack.c.l.b16 %v5846
  %v7419 = vunpack.c.l.b16 %v5847
  %v7420 = vunpack.c.l.b16 %v5848
  %v7421 = vunpack.c.l.b16 %v5849
  %v7422 = vunpack.c.l.b16 %v5850
  %v7423 = vunpack.c.l.b16 %v5851
  %v7424 = vunpack.c.l.b16 %v5852
  %v7425 = vunpack.c.l.b16 %v5853
  %v7426 = vunpack.c.l.b16 %v5854
  %v7427 = vunpack.c.l.b16 %v5855
  %v7428 = vunpack.c.l.b16 %v5856
  %v7429 = vpack.c.b16 %v7414, %v7413
  %v7430 = vpack.c.b16 %v7416, %v7415
  %v7431 = vpack.c.b16 %v7418, %v7417
  %v7432 = vpack.c.b16 %v7420, %v7419
  %v7433 = vpack.c.b16 %v7422, %v7421
  %v7434 = vpack.c.b16 %v7424, %v7423
  %v7435 = vpack.c.b16 %v7426, %v7425
  %v7436 = vpack.c.b16 %v7428, %v7427
  %7445 = vmatprep.subr.bf16.mxu0 0
  %7446 = vmatpush1.bf16.msra.mxu0 %v7436
  %7447 = vmatprep.subr.bf16.mxu0 0
  %7448 = vmatpush1.bf16.msra.mxu0 %v7435
  %7449 = vmatprep.subr.bf16.mxu0 0
  %7450 = vmatpush1.bf16.msra.mxu0 %v7434
  %7451 = vmatprep.subr.bf16.mxu0 0
  %7452 = vmatpush1.bf16.msra.mxu0 %v7433
  %7453 = vmatprep.subr.bf16.mxu0 0
  %7454 = vmatpush1.bf16.msra.mxu0 %v7432
  %7455 = vmatprep.subr.bf16.mxu0 0
  %7456 = vmatpush1.bf16.msra.mxu0 %v7431
  %7457 = vmatprep.subr.bf16.mxu0 0
  %7458 = vmatpush1.bf16.msra.mxu0 %v7430
  %7459 = vmatprep.subr.bf16.mxu0 0
  %7460 = vmatpush1.bf16.msra.mxu0 %v7429
  %7461 = vmatprep.subr.bf16.mxu0 0
  %7462 = vmatpush2.bf16.msra.mxu0 0
  %7463 = vmatprep.subr.bf16.mxu0 0
  %7464 = vmatpush2.bf16.msra.mxu0 0
  %7465 = vmatprep.subr.bf16.mxu0 0
  %7466 = vmatpush2.bf16.msra.mxu0 0
  %7467 = vmatprep.subr.bf16.mxu0 0
  %7468 = vmatpush2.bf16.msra.mxu0 0
  %7469 = vmatprep.subr.bf16.mxu0 0
  %7470 = vmatpush2.bf16.msra.mxu0 0
  %7471 = vmatprep.subr.bf16.mxu0 0
  %7472 = vmatpush2.bf16.msra.mxu0 0
  %7473 = vmatprep.subr.bf16.mxu0 0
  %7474 = vmatpush2.bf16.msra.mxu0 0
  %7475 = vmatprep.subr.bf16.mxu0 0
  %7476 = vmatpush2.bf16.msra.mxu0 0
  %7477 = vmatprep.mubr.bf16.mxu0 0
  %7478 = vmatmul.mubr.bf16.gmra.mxu0 %v5520
  %v7479 = vpop.f32.mrf.mxu0
  %v7480 = vadd.f32 0.0, %v7479
  %v7481 = vpop.f32.mrf.mxu0
  %v7482 = vpop.f32.mrf.mxu0
  %v7483 = vadd.f32 0.0, %v7482
  %v7484 = vpop.f32.mrf.mxu0
  %7485 = vmatprep.mubr.bf16.mxu0 0
  %7486 = vmatmul.mubr.bf16.gmra.mxu0 %v5521
  %v7487 = vpop.f32.mrf.mxu0
  %v7488 = vadd.f32 0.0, %v7487
  %v7489 = vpop.f32.mrf.mxu0
  %v7490 = vpop.f32.mrf.mxu0
  %v7491 = vadd.f32 0.0, %v7490
  %v7492 = vpop.f32.mrf.mxu0
  %7493 = vmatprep.mubr.bf16.mxu0 0
  %7494 = vmatmul.mubr.bf16.gmra.mxu0 %v5522
  %v7495 = vpop.f32.mrf.mxu0
  %v7496 = vadd.f32 0.0, %v7495
  %v7497 = vpop.f32.mrf.mxu0
  %v7498 = vpop.f32.mrf.mxu0
  %v7499 = vadd.f32 0.0, %v7498
  %v7500 = vpop.f32.mrf.mxu0
  %7501 = vmatprep.mubr.bf16.mxu0 0
  %7502 = vmatmul.mubr.bf16.gmra.mxu0 %v5523
  %v7503 = vpop.f32.mrf.mxu0
  %v7504 = vadd.f32 0.0, %v7503
  %v7505 = vpop.f32.mrf.mxu0
  %v7506 = vpop.f32.mrf.mxu0
  %v7507 = vadd.f32 0.0, %v7506
  %v7508 = vpop.f32.mrf.mxu0
  %7509 = vmatprep.mubr.bf16.mxu0 0
  %7510 = vmatmul.mubr.bf16.gmra.mxu0 %v5524
  %v7511 = vpop.f32.mrf.mxu0
  %v7512 = vadd.f32 0.0, %v7511
  %v7513 = vpop.f32.mrf.mxu0
  %v7514 = vpop.f32.mrf.mxu0
  %v7515 = vadd.f32 0.0, %v7514
  %v7516 = vpop.f32.mrf.mxu0
  %7517 = vmatprep.mubr.bf16.mxu0 0
  %7518 = vmatmul.mubr.bf16.gmra.mxu0 %v5525
  %v7519 = vpop.f32.mrf.mxu0
  %v7520 = vadd.f32 0.0, %v7519
  %v7521 = vpop.f32.mrf.mxu0
  %v7522 = vpop.f32.mrf.mxu0
  %v7523 = vadd.f32 0.0, %v7522
  %v7524 = vpop.f32.mrf.mxu0
  %7525 = vmatprep.mubr.bf16.mxu0 0
  %7526 = vmatmul.mubr.bf16.gmra.mxu0 %v5526
  %v7527 = vpop.f32.mrf.mxu0
  %v7528 = vadd.f32 0.0, %v7527
  %v7529 = vpop.f32.mrf.mxu0
  %v7530 = vpop.f32.mrf.mxu0
  %v7531 = vadd.f32 0.0, %v7530
  %v7532 = vpop.f32.mrf.mxu0
  %7533 = vmatprep.mubr.bf16.mxu0 0
  %7534 = vmatmul.mubr.bf16.gmra.mxu0 %v5527
  %v7535 = vpop.f32.mrf.mxu0
  %v7536 = vadd.f32 0.0, %v7535
  %v7537 = vpop.f32.mrf.mxu0
  %v7538 = vpop.f32.mrf.mxu0
  %v7539 = vadd.f32 0.0, %v7538
  %v7540 = vpop.f32.mrf.mxu0
  %7541 = vmatprep.mubr.bf16.mxu0 0
  %7542 = vmatmul.mubr.bf16.gmra.mxu0 %v5528
  %v7543 = vpop.f32.mrf.mxu0
  %v7544 = vadd.f32 0.0, %v7543
  %v7545 = vpop.f32.mrf.mxu0
  %v7546 = vpop.f32.mrf.mxu0
  %v7547 = vadd.f32 0.0, %v7546
  %v7548 = vpop.f32.mrf.mxu0
  %7549 = vmatprep.mubr.bf16.mxu0 0
  %7550 = vmatmul.mubr.bf16.gmra.mxu0 %v5529
  %v7551 = vpop.f32.mrf.mxu0
  %v7552 = vadd.f32 0.0, %v7551
  %v7553 = vpop.f32.mrf.mxu0
  %v7554 = vpop.f32.mrf.mxu0
  %v7555 = vadd.f32 0.0, %v7554
  %v7556 = vpop.f32.mrf.mxu0
  %7557 = vmatprep.mubr.bf16.mxu0 0
  %7558 = vmatmul.mubr.bf16.gmra.mxu0 %v5530
  %v7559 = vpop.f32.mrf.mxu0
  %v7560 = vadd.f32 0.0, %v7559
  %v7561 = vpop.f32.mrf.mxu0
  %v7562 = vpop.f32.mrf.mxu0
  %v7563 = vadd.f32 0.0, %v7562
  %v7564 = vpop.f32.mrf.mxu0
  %7565 = vmatprep.mubr.bf16.mxu0 0
  %7566 = vmatmul.mubr.bf16.gmra.mxu0 %v5531
  %v7567 = vpop.f32.mrf.mxu0
  %v7568 = vadd.f32 0.0, %v7567
  %v7569 = vpop.f32.mrf.mxu0
  %v7570 = vpop.f32.mrf.mxu0
  %v7571 = vadd.f32 0.0, %v7570
  %v7572 = vpop.f32.mrf.mxu0
  %7573 = vmatprep.mubr.bf16.mxu0 0
  %7574 = vmatmul.mubr.bf16.gmra.mxu0 %v5532
  %v7575 = vpop.f32.mrf.mxu0
  %v7576 = vadd.f32 0.0, %v7575
  %v7577 = vpop.f32.mrf.mxu0
  %v7578 = vpop.f32.mrf.mxu0
  %v7579 = vadd.f32 0.0, %v7578
  %v7580 = vpop.f32.mrf.mxu0
  %7581 = vmatprep.mubr.bf16.mxu0 0
  %7582 = vmatmul.mubr.bf16.gmra.mxu0 %v5533
  %v7583 = vpop.f32.mrf.mxu0
  %v7584 = vadd.f32 0.0, %v7583
  %v7585 = vpop.f32.mrf.mxu0
  %v7586 = vpop.f32.mrf.mxu0
  %v7587 = vadd.f32 0.0, %v7586
  %v7588 = vpop.f32.mrf.mxu0
  %7589 = vmatprep.mubr.bf16.mxu0 0
  %7590 = vmatmul.mubr.bf16.gmra.mxu0 %v5534
  %v7591 = vpop.f32.mrf.mxu0
  %v7592 = vadd.f32 0.0, %v7591
  %v7593 = vpop.f32.mrf.mxu0
  %v7594 = vpop.f32.mrf.mxu0
  %v7595 = vadd.f32 0.0, %v7594
  %v7596 = vpop.f32.mrf.mxu0
  %7597 = vmatprep.mubr.bf16.mxu0 0
  %7598 = vmatmul.mubr.bf16.gmra.mxu0 %v5535
  %v7599 = vpop.f32.mrf.mxu0
  %v7600 = vadd.f32 0.0, %v7599
  %v7601 = vpop.f32.mrf.mxu0
  %v7602 = vpop.f32.mrf.mxu0
  %v7603 = vadd.f32 0.0, %v7602
  %v7604 = vpop.f32.mrf.mxu0
  %7605 = vmatprep.mubr.bf16.mxu0 0
  %7606 = vmatmul.mubr.bf16.gmra.mxu0 %v5536
  %v7607 = vpop.f32.mrf.mxu0
  %v7608 = vadd.f32 0.0, %v7607
  %v7609 = vpop.f32.mrf.mxu0
  %v7610 = vpop.f32.mrf.mxu0
  %v7611 = vadd.f32 0.0, %v7610
  %v7612 = vpop.f32.mrf.mxu0
  %7613 = vmatprep.mubr.bf16.mxu0 0
  %7614 = vmatmul.mubr.bf16.gmra.mxu0 %v5537
  %v7615 = vpop.f32.mrf.mxu0
  %v7616 = vadd.f32 0.0, %v7615
  %v7617 = vpop.f32.mrf.mxu0
  %v7618 = vpop.f32.mrf.mxu0
  %v7619 = vadd.f32 0.0, %v7618
  %v7620 = vpop.f32.mrf.mxu0
  %7621 = vmatprep.mubr.bf16.mxu0 0
  %7622 = vmatmul.mubr.bf16.gmra.mxu0 %v5538
  %v7623 = vpop.f32.mrf.mxu0
  %v7624 = vadd.f32 0.0, %v7623
  %v7625 = vpop.f32.mrf.mxu0
  %v7626 = vpop.f32.mrf.mxu0
  %v7627 = vadd.f32 0.0, %v7626
  %v7628 = vpop.f32.mrf.mxu0
  %7629 = vmatprep.mubr.bf16.mxu0 0
  %7630 = vmatmul.mubr.bf16.gmra.mxu0 %v5539
  %v7631 = vpop.f32.mrf.mxu0
  %v7632 = vadd.f32 0.0, %v7631
  %v7633 = vpop.f32.mrf.mxu0
  %v7634 = vpop.f32.mrf.mxu0
  %v7635 = vadd.f32 0.0, %v7634
  %v7636 = vpop.f32.mrf.mxu0
  %7637 = vmatprep.mubr.bf16.mxu0 0
  %7638 = vmatmul.mubr.bf16.gmra.mxu0 %v5540
  %v7639 = vpop.f32.mrf.mxu0
  %v7640 = vadd.f32 0.0, %v7639
  %v7641 = vpop.f32.mrf.mxu0
  %v7642 = vpop.f32.mrf.mxu0
  %v7643 = vadd.f32 0.0, %v7642
  %v7644 = vpop.f32.mrf.mxu0
  %7645 = vmatprep.mubr.bf16.mxu0 0
  %7646 = vmatmul.mubr.bf16.gmra.mxu0 %v5541
  %v7647 = vpop.f32.mrf.mxu0
  %v7648 = vadd.f32 0.0, %v7647
  %v7649 = vpop.f32.mrf.mxu0
  %v7650 = vpop.f32.mrf.mxu0
  %v7651 = vadd.f32 0.0, %v7650
  %v7652 = vpop.f32.mrf.mxu0
  %7653 = vmatprep.mubr.bf16.mxu0 0
  %7654 = vmatmul.mubr.bf16.gmra.mxu0 %v5542
  %v7655 = vpop.f32.mrf.mxu0
  %v7656 = vadd.f32 0.0, %v7655
  %v7657 = vpop.f32.mrf.mxu0
  %v7658 = vpop.f32.mrf.mxu0
  %v7659 = vadd.f32 0.0, %v7658
  %v7660 = vpop.f32.mrf.mxu0
  %7661 = vmatprep.mubr.bf16.mxu0 0
  %7662 = vmatmul.mubr.bf16.gmra.mxu0 %v5543
  %v7663 = vpop.f32.mrf.mxu0
  %v7664 = vadd.f32 0.0, %v7663
  %v7665 = vpop.f32.mrf.mxu0
  %v7666 = vpop.f32.mrf.mxu0
  %v7667 = vadd.f32 0.0, %v7666
  %v7668 = vpop.f32.mrf.mxu0
  %7669 = vmatprep.mubr.bf16.mxu0 0
  %7670 = vmatmul.mubr.bf16.gmra.mxu0 %v5544
  %v7671 = vpop.f32.mrf.mxu0
  %v7672 = vadd.f32 0.0, %v7671
  %v7673 = vpop.f32.mrf.mxu0
  %v7674 = vpop.f32.mrf.mxu0
  %v7675 = vadd.f32 0.0, %v7674
  %v7676 = vpop.f32.mrf.mxu0
  %7677 = vmatprep.mubr.bf16.mxu0 0
  %7678 = vmatmul.mubr.bf16.gmra.mxu0 %v5545
  %v7679 = vpop.f32.mrf.mxu0
  %v7680 = vadd.f32 0.0, %v7679
  %v7681 = vpop.f32.mrf.mxu0
  %v7682 = vpop.f32.mrf.mxu0
  %v7683 = vadd.f32 0.0, %v7682
  %v7684 = vpop.f32.mrf.mxu0
  %7685 = vmatprep.mubr.bf16.mxu0 0
  %7686 = vmatmul.mubr.bf16.gmra.mxu0 %v5546
  %v7687 = vpop.f32.mrf.mxu0
  %v7688 = vadd.f32 0.0, %v7687
  %v7689 = vpop.f32.mrf.mxu0
  %v7690 = vpop.f32.mrf.mxu0
  %v7691 = vadd.f32 0.0, %v7690
  %v7692 = vpop.f32.mrf.mxu0
  %7693 = vmatprep.mubr.bf16.mxu0 0
  %7694 = vmatmul.mubr.bf16.gmra.mxu0 %v5547
  %v7695 = vpop.f32.mrf.mxu0
  %v7696 = vadd.f32 0.0, %v7695
  %v7697 = vpop.f32.mrf.mxu0
  %v7698 = vpop.f32.mrf.mxu0
  %v7699 = vadd.f32 0.0, %v7698
  %v7700 = vpop.f32.mrf.mxu0
  %7701 = vmatprep.mubr.bf16.mxu0 0
  %7702 = vmatmul.mubr.bf16.gmra.mxu0 %v5548
  %v7703 = vpop.f32.mrf.mxu0
  %v7704 = vadd.f32 0.0, %v7703
  %v7705 = vpop.f32.mrf.mxu0
  %v7706 = vpop.f32.mrf.mxu0
  %v7707 = vadd.f32 0.0, %v7706
  %v7708 = vpop.f32.mrf.mxu0
  %7709 = vmatprep.mubr.bf16.mxu0 0
  %7710 = vmatmul.mubr.bf16.gmra.mxu0 %v5549
  %v7711 = vpop.f32.mrf.mxu0
  %v7712 = vadd.f32 0.0, %v7711
  %v7713 = vpop.f32.mrf.mxu0
  %v7714 = vpop.f32.mrf.mxu0
  %v7715 = vadd.f32 0.0, %v7714
  %v7716 = vpop.f32.mrf.mxu0
  %7717 = vmatprep.mubr.bf16.mxu0 0
  %7718 = vmatmul.mubr.bf16.gmra.mxu0 %v5550
  %v7719 = vpop.f32.mrf.mxu0
  %v7720 = vadd.f32 0.0, %v7719
  %v7721 = vpop.f32.mrf.mxu0
  %v7722 = vpop.f32.mrf.mxu0
  %v7723 = vadd.f32 0.0, %v7722
  %v7724 = vpop.f32.mrf.mxu0
  %7725 = vmatprep.mubr.bf16.mxu0 0
  %7726 = vmatmul.mubr.bf16.gmra.mxu0 %v5551
  %v7727 = vpop.f32.mrf.mxu0
  %v7728 = vadd.f32 0.0, %v7727
  %v7729 = vpop.f32.mrf.mxu0
  %v7730 = vpop.f32.mrf.mxu0
  %v7731 = vadd.f32 0.0, %v7730
  %v7732 = vpop.f32.mrf.mxu0
  %7733 = vdwg.mxu0
  %v7734 = vadd.f32 %v7333, %v7480
  %v7735 = vadd.f32 %v7334, %v7483
  %v7736 = vadd.f32 %v7335, %v7488
  %v7737 = vadd.f32 %v7336, %v7491
  %v7738 = vadd.f32 %v7337, %v7496
  %v7739 = vadd.f32 %v7338, %v7499
  %v7740 = vadd.f32 %v7339, %v7504
  %v7741 = vadd.f32 %v7340, %v7507
  %v7742 = vadd.f32 %v7341, %v7512
  %v7743 = vadd.f32 %v7342, %v7515
  %v7744 = vadd.f32 %v7343, %v7520
  %v7745 = vadd.f32 %v7344, %v7523
  %v7746 = vadd.f32 %v7345, %v7528
  %v7747 = vadd.f32 %v7346, %v7531
  %v7748 = vadd.f32 %v7347, %v7536
  %v7749 = vadd.f32 %v7348, %v7539
  %v7750 = vadd.f32 %v7349, %v7544
  %v7751 = vadd.f32 %v7350, %v7547
  %v7752 = vadd.f32 %v7351, %v7552
  %v7753 = vadd.f32 %v7352, %v7555
  %v7754 = vadd.f32 %v7353, %v7560
  %v7755 = vadd.f32 %v7354, %v7563
  %v7756 = vadd.f32 %v7355, %v7568
  %v7757 = vadd.f32 %v7356, %v7571
  %v7758 = vadd.f32 %v7357, %v7576
  %v7759 = vadd.f32 %v7358, %v7579
  %v7760 = vadd.f32 %v7359, %v7584
  %v7761 = vadd.f32 %v7360, %v7587
  %v7762 = vadd.f32 %v7361, %v7592
  %v7763 = vadd.f32 %v7362, %v7595
  %v7764 = vadd.f32 %v7363, %v7600
  %v7765 = vadd.f32 %v7364, %v7603
  %v7766 = vadd.f32 %v7365, %v7608
  %v7767 = vadd.f32 %v7366, %v7611
  %v7768 = vadd.f32 %v7367, %v7616
  %v7769 = vadd.f32 %v7368, %v7619
  %v7770 = vadd.f32 %v7369, %v7624
  %v7771 = vadd.f32 %v7370, %v7627
  %v7772 = vadd.f32 %v7371, %v7632
  %v7773 = vadd.f32 %v7372, %v7635
  %v7774 = vadd.f32 %v7373, %v7640
  %v7775 = vadd.f32 %v7374, %v7643
  %v7776 = vadd.f32 %v7375, %v7648
  %v7777 = vadd.f32 %v7376, %v7651
  %v7778 = vadd.f32 %v7377, %v7656
  %v7779 = vadd.f32 %v7378, %v7659
  %v7780 = vadd.f32 %v7379, %v7664
  %v7781 = vadd.f32 %v7380, %v7667
  %v7782 = vadd.f32 %v7381, %v7672
  %v7783 = vadd.f32 %v7382, %v7675
  %v7784 = vadd.f32 %v7383, %v7680
  %v7785 = vadd.f32 %v7384, %v7683
  %v7786 = vadd.f32 %v7385, %v7688
  %v7787 = vadd.f32 %v7386, %v7691
  %v7788 = vadd.f32 %v7387, %v7696
  %v7789 = vadd.f32 %v7388, %v7699
  %v7790 = vadd.f32 %v7389, %v7704
  %v7791 = vadd.f32 %v7390, %v7707
  %v7792 = vadd.f32 %v7391, %v7712
  %v7793 = vadd.f32 %v7392, %v7715
  %v7794 = vadd.f32 %v7393, %v7720
  %v7795 = vadd.f32 %v7394, %v7723
  %v7796 = vadd.f32 %v7395, %v7728
  %v7797 = vadd.f32 %v7396, %v7731
  %v7814 = vunpack.c.l.b16 %v5857
  %v7815 = vunpack.c.l.b16 %v5858
  %v7816 = vunpack.c.l.b16 %v5859
  %v7817 = vunpack.c.l.b16 %v5860
  %v7818 = vunpack.c.l.b16 %v5861
  %v7819 = vunpack.c.l.b16 %v5862
  %v7820 = vunpack.c.l.b16 %v5863
  %v7821 = vunpack.c.l.b16 %v5864
  %v7822 = vunpack.c.l.b16 %v5865
  %v7823 = vunpack.c.l.b16 %v5866
  %v7824 = vunpack.c.l.b16 %v5867
  %v7825 = vunpack.c.l.b16 %v5868
  %v7826 = vunpack.c.l.b16 %v5869
  %v7827 = vunpack.c.l.b16 %v5870
  %v7828 = vunpack.c.l.b16 %v5871
  %v7829 = vunpack.c.l.b16 %v5872
  %v7830 = vpack.c.b16 %v7815, %v7814
  %v7831 = vpack.c.b16 %v7817, %v7816
  %v7832 = vpack.c.b16 %v7819, %v7818
  %v7833 = vpack.c.b16 %v7821, %v7820
  %v7834 = vpack.c.b16 %v7823, %v7822
  %v7835 = vpack.c.b16 %v7825, %v7824
  %v7836 = vpack.c.b16 %v7827, %v7826
  %v7837 = vpack.c.b16 %v7829, %v7828
  %7846 = vmatprep.subr.bf16.mxu0 0
  %7847 = vmatpush1.bf16.msra.mxu0 %v7837
  %7848 = vmatprep.subr.bf16.mxu0 0
  %7849 = vmatpush1.bf16.msra.mxu0 %v7836
  %7850 = vmatprep.subr.bf16.mxu0 0
  %7851 = vmatpush1.bf16.msra.mxu0 %v7835
  %7852 = vmatprep.subr.bf16.mxu0 0
  %7853 = vmatpush1.bf16.msra.mxu0 %v7834
  %7854 = vmatprep.subr.bf16.mxu0 0
  %7855 = vmatpush1.bf16.msra.mxu0 %v7833
  %7856 = vmatprep.subr.bf16.mxu0 0
  %7857 = vmatpush1.bf16.msra.mxu0 %v7832
  %7858 = vmatprep.subr.bf16.mxu0 0
  %7859 = vmatpush1.bf16.msra.mxu0 %v7831
  %7860 = vmatprep.subr.bf16.mxu0 0
  %7861 = vmatpush1.bf16.msra.mxu0 %v7830
  %7862 = vmatprep.subr.bf16.mxu0 0
  %7863 = vmatpush2.bf16.msra.mxu0 0
  %7864 = vmatprep.subr.bf16.mxu0 0
  %7865 = vmatpush2.bf16.msra.mxu0 0
  %7866 = vmatprep.subr.bf16.mxu0 0
  %7867 = vmatpush2.bf16.msra.mxu0 0
  %7868 = vmatprep.subr.bf16.mxu0 0
  %7869 = vmatpush2.bf16.msra.mxu0 0
  %7870 = vmatprep.subr.bf16.mxu0 0
  %7871 = vmatpush2.bf16.msra.mxu0 0
  %7872 = vmatprep.subr.bf16.mxu0 0
  %7873 = vmatpush2.bf16.msra.mxu0 0
  %7874 = vmatprep.subr.bf16.mxu0 0
  %7875 = vmatpush2.bf16.msra.mxu0 0
  %7876 = vmatprep.subr.bf16.mxu0 0
  %7877 = vmatpush2.bf16.msra.mxu0 0
  %7878 = vmatprep.mubr.bf16.mxu0 0
  %7879 = vmatmul.mubr.bf16.gmra.mxu0 %v5744
  %v7880 = vpop.f32.mrf.mxu0
  %v7881 = vadd.f32 0.0, %v7880
  %v7882 = vpop.f32.mrf.mxu0
  %v7883 = vpop.f32.mrf.mxu0
  %v7884 = vadd.f32 0.0, %v7883
  %v7885 = vpop.f32.mrf.mxu0
  %7886 = vmatprep.mubr.bf16.mxu0 0
  %7887 = vmatmul.mubr.bf16.gmra.mxu0 %v5745
  %v7888 = vpop.f32.mrf.mxu0
  %v7889 = vadd.f32 0.0, %v7888
  %v7890 = vpop.f32.mrf.mxu0
  %v7891 = vpop.f32.mrf.mxu0
  %v7892 = vadd.f32 0.0, %v7891
  %v7893 = vpop.f32.mrf.mxu0
  %7894 = vmatprep.mubr.bf16.mxu0 0
  %7895 = vmatmul.mubr.bf16.gmra.mxu0 %v5746
  %v7896 = vpop.f32.mrf.mxu0
  %v7897 = vadd.f32 0.0, %v7896
  %v7898 = vpop.f32.mrf.mxu0
  %v7899 = vpop.f32.mrf.mxu0
  %v7900 = vadd.f32 0.0, %v7899
  %v7901 = vpop.f32.mrf.mxu0
  %7902 = vmatprep.mubr.bf16.mxu0 0
  %7903 = vmatmul.mubr.bf16.gmra.mxu0 %v5747
  %v7904 = vpop.f32.mrf.mxu0
  %v7905 = vadd.f32 0.0, %v7904
  %v7906 = vpop.f32.mrf.mxu0
  %v7907 = vpop.f32.mrf.mxu0
  %v7908 = vadd.f32 0.0, %v7907
  %v7909 = vpop.f32.mrf.mxu0
  %7910 = vmatprep.mubr.bf16.mxu0 0
  %7911 = vmatmul.mubr.bf16.gmra.mxu0 %v5748
  %v7912 = vpop.f32.mrf.mxu0
  %v7913 = vadd.f32 0.0, %v7912
  %v7914 = vpop.f32.mrf.mxu0
  %v7915 = vpop.f32.mrf.mxu0
  %v7916 = vadd.f32 0.0, %v7915
  %v7917 = vpop.f32.mrf.mxu0
  %7918 = vmatprep.mubr.bf16.mxu0 0
  %7919 = vmatmul.mubr.bf16.gmra.mxu0 %v5749
  %v7920 = vpop.f32.mrf.mxu0
  %v7921 = vadd.f32 0.0, %v7920
  %v7922 = vpop.f32.mrf.mxu0
  %v7923 = vpop.f32.mrf.mxu0
  %v7924 = vadd.f32 0.0, %v7923
  %v7925 = vpop.f32.mrf.mxu0
  %7926 = vmatprep.mubr.bf16.mxu0 0
  %7927 = vmatmul.mubr.bf16.gmra.mxu0 %v5750
  %v7928 = vpop.f32.mrf.mxu0
  %v7929 = vadd.f32 0.0, %v7928
  %v7930 = vpop.f32.mrf.mxu0
  %v7931 = vpop.f32.mrf.mxu0
  %v7932 = vadd.f32 0.0, %v7931
  %v7933 = vpop.f32.mrf.mxu0
  %7934 = vmatprep.mubr.bf16.mxu0 0
  %7935 = vmatmul.mubr.bf16.gmra.mxu0 %v5751
  %v7936 = vpop.f32.mrf.mxu0
  %v7937 = vadd.f32 0.0, %v7936
  %v7938 = vpop.f32.mrf.mxu0
  %v7939 = vpop.f32.mrf.mxu0
  %v7940 = vadd.f32 0.0, %v7939
  %v7941 = vpop.f32.mrf.mxu0
  %7942 = vmatprep.mubr.bf16.mxu0 0
  %7943 = vmatmul.mubr.bf16.gmra.mxu0 %v5752
  %v7944 = vpop.f32.mrf.mxu0
  %v7945 = vadd.f32 0.0, %v7944
  %v7946 = vpop.f32.mrf.mxu0
  %v7947 = vpop.f32.mrf.mxu0
  %v7948 = vadd.f32 0.0, %v7947
  %v7949 = vpop.f32.mrf.mxu0
  %7950 = vmatprep.mubr.bf16.mxu0 0
  %7951 = vmatmul.mubr.bf16.gmra.mxu0 %v5753
  %v7952 = vpop.f32.mrf.mxu0
  %v7953 = vadd.f32 0.0, %v7952
  %v7954 = vpop.f32.mrf.mxu0
  %v7955 = vpop.f32.mrf.mxu0
  %v7956 = vadd.f32 0.0, %v7955
  %v7957 = vpop.f32.mrf.mxu0
  %7958 = vmatprep.mubr.bf16.mxu0 0
  %7959 = vmatmul.mubr.bf16.gmra.mxu0 %v5754
  %v7960 = vpop.f32.mrf.mxu0
  %v7961 = vadd.f32 0.0, %v7960
  %v7962 = vpop.f32.mrf.mxu0
  %v7963 = vpop.f32.mrf.mxu0
  %v7964 = vadd.f32 0.0, %v7963
  %v7965 = vpop.f32.mrf.mxu0
  %7966 = vmatprep.mubr.bf16.mxu0 0
  %7967 = vmatmul.mubr.bf16.gmra.mxu0 %v5755
  %v7968 = vpop.f32.mrf.mxu0
  %v7969 = vadd.f32 0.0, %v7968
  %v7970 = vpop.f32.mrf.mxu0
  %v7971 = vpop.f32.mrf.mxu0
  %v7972 = vadd.f32 0.0, %v7971
  %v7973 = vpop.f32.mrf.mxu0
  %7974 = vmatprep.mubr.bf16.mxu0 0
  %7975 = vmatmul.mubr.bf16.gmra.mxu0 %v5756
  %v7976 = vpop.f32.mrf.mxu0
  %v7977 = vadd.f32 0.0, %v7976
  %v7978 = vpop.f32.mrf.mxu0
  %v7979 = vpop.f32.mrf.mxu0
  %v7980 = vadd.f32 0.0, %v7979
  %v7981 = vpop.f32.mrf.mxu0
  %7982 = vmatprep.mubr.bf16.mxu0 0
  %7983 = vmatmul.mubr.bf16.gmra.mxu0 %v5757
  %v7984 = vpop.f32.mrf.mxu0
  %v7985 = vadd.f32 0.0, %v7984
  %v7986 = vpop.f32.mrf.mxu0
  %v7987 = vpop.f32.mrf.mxu0
  %v7988 = vadd.f32 0.0, %v7987
  %v7989 = vpop.f32.mrf.mxu0
  %7990 = vmatprep.mubr.bf16.mxu0 0
  %7991 = vmatmul.mubr.bf16.gmra.mxu0 %v5758
  %v7992 = vpop.f32.mrf.mxu0
  %v7993 = vadd.f32 0.0, %v7992
  %v7994 = vpop.f32.mrf.mxu0
  %v7995 = vpop.f32.mrf.mxu0
  %v7996 = vadd.f32 0.0, %v7995
  %v7997 = vpop.f32.mrf.mxu0
  %7998 = vmatprep.mubr.bf16.mxu0 0
  %7999 = vmatmul.mubr.bf16.gmra.mxu0 %v5759
  %v8000 = vpop.f32.mrf.mxu0
  %v8001 = vadd.f32 0.0, %v8000
  %v8002 = vpop.f32.mrf.mxu0
  %v8003 = vpop.f32.mrf.mxu0
  %v8004 = vadd.f32 0.0, %v8003
  %v8005 = vpop.f32.mrf.mxu0
  %8006 = vmatprep.mubr.bf16.mxu0 0
  %8007 = vmatmul.mubr.bf16.gmra.mxu0 %v5760
  %v8008 = vpop.f32.mrf.mxu0
  %v8009 = vadd.f32 0.0, %v8008
  %v8010 = vpop.f32.mrf.mxu0
  %v8011 = vpop.f32.mrf.mxu0
  %v8012 = vadd.f32 0.0, %v8011
  %v8013 = vpop.f32.mrf.mxu0
  %8014 = vmatprep.mubr.bf16.mxu0 0
  %8015 = vmatmul.mubr.bf16.gmra.mxu0 %v5761
  %v8016 = vpop.f32.mrf.mxu0
  %v8017 = vadd.f32 0.0, %v8016
  %v8018 = vpop.f32.mrf.mxu0
  %v8019 = vpop.f32.mrf.mxu0
  %v8020 = vadd.f32 0.0, %v8019
  %v8021 = vpop.f32.mrf.mxu0
  %8022 = vmatprep.mubr.bf16.mxu0 0
  %8023 = vmatmul.mubr.bf16.gmra.mxu0 %v5762
  %v8024 = vpop.f32.mrf.mxu0
  %v8025 = vadd.f32 0.0, %v8024
  %v8026 = vpop.f32.mrf.mxu0
  %v8027 = vpop.f32.mrf.mxu0
  %v8028 = vadd.f32 0.0, %v8027
  %v8029 = vpop.f32.mrf.mxu0
  %8030 = vmatprep.mubr.bf16.mxu0 0
  %8031 = vmatmul.mubr.bf16.gmra.mxu0 %v5763
  %v8032 = vpop.f32.mrf.mxu0
  %v8033 = vadd.f32 0.0, %v8032
  %v8034 = vpop.f32.mrf.mxu0
  %v8035 = vpop.f32.mrf.mxu0
  %v8036 = vadd.f32 0.0, %v8035
  %v8037 = vpop.f32.mrf.mxu0
  %8038 = vmatprep.mubr.bf16.mxu0 0
  %8039 = vmatmul.mubr.bf16.gmra.mxu0 %v5764
  %v8040 = vpop.f32.mrf.mxu0
  %v8041 = vadd.f32 0.0, %v8040
  %v8042 = vpop.f32.mrf.mxu0
  %v8043 = vpop.f32.mrf.mxu0
  %v8044 = vadd.f32 0.0, %v8043
  %v8045 = vpop.f32.mrf.mxu0
  %8046 = vmatprep.mubr.bf16.mxu0 0
  %8047 = vmatmul.mubr.bf16.gmra.mxu0 %v5765
  %v8048 = vpop.f32.mrf.mxu0
  %v8049 = vadd.f32 0.0, %v8048
  %v8050 = vpop.f32.mrf.mxu0
  %v8051 = vpop.f32.mrf.mxu0
  %v8052 = vadd.f32 0.0, %v8051
  %v8053 = vpop.f32.mrf.mxu0
  %8054 = vmatprep.mubr.bf16.mxu0 0
  %8055 = vmatmul.mubr.bf16.gmra.mxu0 %v5766
  %v8056 = vpop.f32.mrf.mxu0
  %v8057 = vadd.f32 0.0, %v8056
  %v8058 = vpop.f32.mrf.mxu0
  %v8059 = vpop.f32.mrf.mxu0
  %v8060 = vadd.f32 0.0, %v8059
  %v8061 = vpop.f32.mrf.mxu0
  %8062 = vmatprep.mubr.bf16.mxu0 0
  %8063 = vmatmul.mubr.bf16.gmra.mxu0 %v5767
  %v8064 = vpop.f32.mrf.mxu0
  %v8065 = vadd.f32 0.0, %v8064
  %v8066 = vpop.f32.mrf.mxu0
  %v8067 = vpop.f32.mrf.mxu0
  %v8068 = vadd.f32 0.0, %v8067
  %v8069 = vpop.f32.mrf.mxu0
  %8070 = vmatprep.mubr.bf16.mxu0 0
  %8071 = vmatmul.mubr.bf16.gmra.mxu0 %v5768
  %v8072 = vpop.f32.mrf.mxu0
  %v8073 = vadd.f32 0.0, %v8072
  %v8074 = vpop.f32.mrf.mxu0
  %v8075 = vpop.f32.mrf.mxu0
  %v8076 = vadd.f32 0.0, %v8075
  %v8077 = vpop.f32.mrf.mxu0
  %8078 = vmatprep.mubr.bf16.mxu0 0
  %8079 = vmatmul.mubr.bf16.gmra.mxu0 %v5769
  %v8080 = vpop.f32.mrf.mxu0
  %v8081 = vadd.f32 0.0, %v8080
  %v8082 = vpop.f32.mrf.mxu0
  %v8083 = vpop.f32.mrf.mxu0
  %v8084 = vadd.f32 0.0, %v8083
  %v8085 = vpop.f32.mrf.mxu0
  %8086 = vmatprep.mubr.bf16.mxu0 0
  %8087 = vmatmul.mubr.bf16.gmra.mxu0 %v5770
  %v8088 = vpop.f32.mrf.mxu0
  %v8089 = vadd.f32 0.0, %v8088
  %v8090 = vpop.f32.mrf.mxu0
  %v8091 = vpop.f32.mrf.mxu0
  %v8092 = vadd.f32 0.0, %v8091
  %v8093 = vpop.f32.mrf.mxu0
  %8094 = vmatprep.mubr.bf16.mxu0 0
  %8095 = vmatmul.mubr.bf16.gmra.mxu0 %v5771
  %v8096 = vpop.f32.mrf.mxu0
  %v8097 = vadd.f32 0.0, %v8096
  %v8098 = vpop.f32.mrf.mxu0
  %v8099 = vpop.f32.mrf.mxu0
  %v8100 = vadd.f32 0.0, %v8099
  %v8101 = vpop.f32.mrf.mxu0
  %8102 = vmatprep.mubr.bf16.mxu0 0
  %8103 = vmatmul.mubr.bf16.gmra.mxu0 %v5772
  %v8104 = vpop.f32.mrf.mxu0
  %v8105 = vadd.f32 0.0, %v8104
  %v8106 = vpop.f32.mrf.mxu0
  %v8107 = vpop.f32.mrf.mxu0
  %v8108 = vadd.f32 0.0, %v8107
  %v8109 = vpop.f32.mrf.mxu0
  %8110 = vmatprep.mubr.bf16.mxu0 0
  %8111 = vmatmul.mubr.bf16.gmra.mxu0 %v5773
  %v8112 = vpop.f32.mrf.mxu0
  %v8113 = vadd.f32 0.0, %v8112
  %v8114 = vpop.f32.mrf.mxu0
  %v8115 = vpop.f32.mrf.mxu0
  %v8116 = vadd.f32 0.0, %v8115
  %v8117 = vpop.f32.mrf.mxu0
  %8118 = vmatprep.mubr.bf16.mxu0 0
  %8119 = vmatmul.mubr.bf16.gmra.mxu0 %v5774
  %v8120 = vpop.f32.mrf.mxu0
  %v8121 = vadd.f32 0.0, %v8120
  %v8122 = vpop.f32.mrf.mxu0
  %v8123 = vpop.f32.mrf.mxu0
  %v8124 = vadd.f32 0.0, %v8123
  %v8125 = vpop.f32.mrf.mxu0
  %8126 = vmatprep.mubr.bf16.mxu0 0
  %8127 = vmatmul.mubr.bf16.gmra.mxu0 %v5775
  %v8128 = vpop.f32.mrf.mxu0
  %v8129 = vadd.f32 0.0, %v8128
  %v8130 = vpop.f32.mrf.mxu0
  %v8131 = vpop.f32.mrf.mxu0
  %v8132 = vadd.f32 0.0, %v8131
  %v8133 = vpop.f32.mrf.mxu0
  %8134 = vdwg.mxu0
  %v8135 = vadd.f32 %v7734, %v7881
  %v8136 = vadd.f32 %v7735, %v7884
  %v8137 = vadd.f32 %v7736, %v7889
  %v8138 = vadd.f32 %v7737, %v7892
  %v8139 = vadd.f32 %v7738, %v7897
  %v8140 = vadd.f32 %v7739, %v7900
  %v8141 = vadd.f32 %v7740, %v7905
  %v8142 = vadd.f32 %v7741, %v7908
  %v8143 = vadd.f32 %v7742, %v7913
  %v8144 = vadd.f32 %v7743, %v7916
  %v8145 = vadd.f32 %v7744, %v7921
  %v8146 = vadd.f32 %v7745, %v7924
  %v8147 = vadd.f32 %v7746, %v7929
  %v8148 = vadd.f32 %v7747, %v7932
  %v8149 = vadd.f32 %v7748, %v7937
  %v8150 = vadd.f32 %v7749, %v7940
  %v8151 = vadd.f32 %v7750, %v7945
  %v8152 = vadd.f32 %v7751, %v7948
  %v8153 = vadd.f32 %v7752, %v7953
  %v8154 = vadd.f32 %v7753, %v7956
  %v8155 = vadd.f32 %v7754, %v7961
  %v8156 = vadd.f32 %v7755, %v7964
  %v8157 = vadd.f32 %v7756, %v7969
  %v8158 = vadd.f32 %v7757, %v7972
  %v8159 = vadd.f32 %v7758, %v7977
  %v8160 = vadd.f32 %v7759, %v7980
  %v8161 = vadd.f32 %v7760, %v7985
  %v8162 = vadd.f32 %v7761, %v7988
  %v8163 = vadd.f32 %v7762, %v7993
  %v8164 = vadd.f32 %v7763, %v7996
  %v8165 = vadd.f32 %v7764, %v8001
  %v8166 = vadd.f32 %v7765, %v8004
  %v8167 = vadd.f32 %v7766, %v8009
  %v8168 = vadd.f32 %v7767, %v8012
  %v8169 = vadd.f32 %v7768, %v8017
  %v8170 = vadd.f32 %v7769, %v8020
  %v8171 = vadd.f32 %v7770, %v8025
  %v8172 = vadd.f32 %v7771, %v8028
  %v8173 = vadd.f32 %v7772, %v8033
  %v8174 = vadd.f32 %v7773, %v8036
  %v8175 = vadd.f32 %v7774, %v8041
  %v8176 = vadd.f32 %v7775, %v8044
  %v8177 = vadd.f32 %v7776, %v8049
  %v8178 = vadd.f32 %v7777, %v8052
  %v8179 = vadd.f32 %v7778, %v8057
  %v8180 = vadd.f32 %v7779, %v8060
  %v8181 = vadd.f32 %v7780, %v8065
  %v8182 = vadd.f32 %v7781, %v8068
  %v8183 = vadd.f32 %v7782, %v8073
  %v8184 = vadd.f32 %v7783, %v8076
  %v8185 = vadd.f32 %v7784, %v8081
  %v8186 = vadd.f32 %v7785, %v8084
  %v8187 = vadd.f32 %v7786, %v8089
  %v8188 = vadd.f32 %v7787, %v8092
  %v8189 = vadd.f32 %v7788, %v8097
  %v8190 = vadd.f32 %v7789, %v8100
  %v8191 = vadd.f32 %v7790, %v8105
  %v8192 = vadd.f32 %v7791, %v8108
  %v8193 = vadd.f32 %v7792, %v8113
  %v8194 = vadd.f32 %v7793, %v8116
  %v8195 = vadd.f32 %v7794, %v8121
  %v8196 = vadd.f32 %v7795, %v8124
  %v8197 = vadd.f32 %v7796, %v8129
  %v8198 = vadd.f32 %v7797, %v8132
  %v8215 = vunpack.c.l.b16 %v5873
  %v8216 = vunpack.c.l.b16 %v5874
  %v8217 = vunpack.c.l.b16 %v5875
  %v8218 = vunpack.c.l.b16 %v5876
  %v8219 = vunpack.c.l.b16 %v5877
  %v8220 = vunpack.c.l.b16 %v5878
  %v8221 = vunpack.c.l.b16 %v5879
  %v8222 = vunpack.c.l.b16 %v5880
  %v8223 = vunpack.c.l.b16 %v5881
  %v8224 = vunpack.c.l.b16 %v5882
  %v8225 = vunpack.c.l.b16 %v5883
  %v8226 = vunpack.c.l.b16 %v5884
  %v8227 = vunpack.c.l.b16 %v5885
  %v8228 = vunpack.c.l.b16 %v5886
  %v8229 = vunpack.c.l.b16 %v5887
  %v8230 = vunpack.c.l.b16 %v5888
  %v8231 = vpack.c.b16 %v8216, %v8215
  %v8232 = vpack.c.b16 %v8218, %v8217
  %v8233 = vpack.c.b16 %v8220, %v8219
  %v8234 = vpack.c.b16 %v8222, %v8221
  %v8235 = vpack.c.b16 %v8224, %v8223
  %v8236 = vpack.c.b16 %v8226, %v8225
  %v8237 = vpack.c.b16 %v8228, %v8227
  %v8238 = vpack.c.b16 %v8230, %v8229
  %8247 = vmatprep.subr.bf16.mxu0 0
  %8248 = vmatpush1.bf16.msra.mxu0 %v8238
  %8249 = vmatprep.subr.bf16.mxu0 0
  %8250 = vmatpush1.bf16.msra.mxu0 %v8237
  %8251 = vmatprep.subr.bf16.mxu0 0
  %8252 = vmatpush1.bf16.msra.mxu0 %v8236
  %8253 = vmatprep.subr.bf16.mxu0 0
  %8254 = vmatpush1.bf16.msra.mxu0 %v8235
  %8255 = vmatprep.subr.bf16.mxu0 0
  %8256 = vmatpush1.bf16.msra.mxu0 %v8234
  %8257 = vmatprep.subr.bf16.mxu0 0
  %8258 = vmatpush1.bf16.msra.mxu0 %v8233
  %8259 = vmatprep.subr.bf16.mxu0 0
  %8260 = vmatpush1.bf16.msra.mxu0 %v8232
  %8261 = vmatprep.subr.bf16.mxu0 0
  %8262 = vmatpush1.bf16.msra.mxu0 %v8231
  %8263 = vmatprep.subr.bf16.mxu0 0
  %8264 = vmatpush2.bf16.msra.mxu0 0
  %8265 = vmatprep.subr.bf16.mxu0 0
  %8266 = vmatpush2.bf16.msra.mxu0 0
  %8267 = vmatprep.subr.bf16.mxu0 0
  %8268 = vmatpush2.bf16.msra.mxu0 0
  %8269 = vmatprep.subr.bf16.mxu0 0
  %8270 = vmatpush2.bf16.msra.mxu0 0
  %8271 = vmatprep.subr.bf16.mxu0 0
  %8272 = vmatpush2.bf16.msra.mxu0 0
  %8273 = vmatprep.subr.bf16.mxu0 0
  %8274 = vmatpush2.bf16.msra.mxu0 0
  %8275 = vmatprep.subr.bf16.mxu0 0
  %8276 = vmatpush2.bf16.msra.mxu0 0
  %8277 = vmatprep.subr.bf16.mxu0 0
  %8278 = vmatpush2.bf16.msra.mxu0 0
  %8279 = vmatprep.mubr.bf16.mxu0 0
  %8280 = vmatmul.mubr.bf16.gmra.mxu0 %v5489
  %v8281 = vpop.f32.mrf.mxu0
  %v8282 = vadd.f32 0.0, %v8281
  %v8283 = vpop.f32.mrf.mxu0
  %v8284 = vpop.f32.mrf.mxu0
  %v8285 = vadd.f32 0.0, %v8284
  %v8286 = vpop.f32.mrf.mxu0
  %8287 = vmatprep.mubr.bf16.mxu0 0
  %8288 = vmatmul.mubr.bf16.gmra.mxu0 %v5490
  %v8289 = vpop.f32.mrf.mxu0
  %v8290 = vadd.f32 0.0, %v8289
  %v8291 = vpop.f32.mrf.mxu0
  %v8292 = vpop.f32.mrf.mxu0
  %v8293 = vadd.f32 0.0, %v8292
  %v8294 = vpop.f32.mrf.mxu0
  %8295 = vmatprep.mubr.bf16.mxu0 0
  %8296 = vmatmul.mubr.bf16.gmra.mxu0 %v5491
  %v8297 = vpop.f32.mrf.mxu0
  %v8298 = vadd.f32 0.0, %v8297
  %v8299 = vpop.f32.mrf.mxu0
  %v8300 = vpop.f32.mrf.mxu0
  %v8301 = vadd.f32 0.0, %v8300
  %v8302 = vpop.f32.mrf.mxu0
  %8303 = vmatprep.mubr.bf16.mxu0 0
  %8304 = vmatmul.mubr.bf16.gmra.mxu0 %v5492
  %v8305 = vpop.f32.mrf.mxu0
  %v8306 = vadd.f32 0.0, %v8305
  %v8307 = vpop.f32.mrf.mxu0
  %v8308 = vpop.f32.mrf.mxu0
  %v8309 = vadd.f32 0.0, %v8308
  %v8310 = vpop.f32.mrf.mxu0
  %8311 = vmatprep.mubr.bf16.mxu0 0
  %8312 = vmatmul.mubr.bf16.gmra.mxu0 %v5493
  %v8313 = vpop.f32.mrf.mxu0
  %v8314 = vadd.f32 0.0, %v8313
  %v8315 = vpop.f32.mrf.mxu0
  %v8316 = vpop.f32.mrf.mxu0
  %v8317 = vadd.f32 0.0, %v8316
  %v8318 = vpop.f32.mrf.mxu0
  %8319 = vmatprep.mubr.bf16.mxu0 0
  %8320 = vmatmul.mubr.bf16.gmra.mxu0 %v5494
  %v8321 = vpop.f32.mrf.mxu0
  %v8322 = vadd.f32 0.0, %v8321
  %v8323 = vpop.f32.mrf.mxu0
  %v8324 = vpop.f32.mrf.mxu0
  %v8325 = vadd.f32 0.0, %v8324
  %v8326 = vpop.f32.mrf.mxu0
  %8327 = vmatprep.mubr.bf16.mxu0 0
  %8328 = vmatmul.mubr.bf16.gmra.mxu0 %v5495
  %v8329 = vpop.f32.mrf.mxu0
  %v8330 = vadd.f32 0.0, %v8329
  %v8331 = vpop.f32.mrf.mxu0
  %v8332 = vpop.f32.mrf.mxu0
  %v8333 = vadd.f32 0.0, %v8332
  %v8334 = vpop.f32.mrf.mxu0
  %8335 = vmatprep.mubr.bf16.mxu0 0
  %8336 = vmatmul.mubr.bf16.gmra.mxu0 %v5496
  %v8337 = vpop.f32.mrf.mxu0
  %v8338 = vadd.f32 0.0, %v8337
  %v8339 = vpop.f32.mrf.mxu0
  %v8340 = vpop.f32.mrf.mxu0
  %v8341 = vadd.f32 0.0, %v8340
  %v8342 = vpop.f32.mrf.mxu0
  %8343 = vmatprep.mubr.bf16.mxu0 0
  %8344 = vmatmul.mubr.bf16.gmra.mxu0 %v5497
  %v8345 = vpop.f32.mrf.mxu0
  %v8346 = vadd.f32 0.0, %v8345
  %v8347 = vpop.f32.mrf.mxu0
  %v8348 = vpop.f32.mrf.mxu0
  %v8349 = vadd.f32 0.0, %v8348
  %v8350 = vpop.f32.mrf.mxu0
  %8351 = vmatprep.mubr.bf16.mxu0 0
  %8352 = vmatmul.mubr.bf16.gmra.mxu0 %v5498
  %v8353 = vpop.f32.mrf.mxu0
  %v8354 = vadd.f32 0.0, %v8353
  %v8355 = vpop.f32.mrf.mxu0
  %v8356 = vpop.f32.mrf.mxu0
  %v8357 = vadd.f32 0.0, %v8356
  %v8358 = vpop.f32.mrf.mxu0
  %8359 = vmatprep.mubr.bf16.mxu0 0
  %8360 = vmatmul.mubr.bf16.gmra.mxu0 %v5499
  %v8361 = vpop.f32.mrf.mxu0
  %v8362 = vadd.f32 0.0, %v8361
  %v8363 = vpop.f32.mrf.mxu0
  %v8364 = vpop.f32.mrf.mxu0
  %v8365 = vadd.f32 0.0, %v8364
  %v8366 = vpop.f32.mrf.mxu0
  %8367 = vmatprep.mubr.bf16.mxu0 0
  %8368 = vmatmul.mubr.bf16.gmra.mxu0 %v5500
  %v8369 = vpop.f32.mrf.mxu0
  %v8370 = vadd.f32 0.0, %v8369
  %v8371 = vpop.f32.mrf.mxu0
  %v8372 = vpop.f32.mrf.mxu0
  %v8373 = vadd.f32 0.0, %v8372
  %v8374 = vpop.f32.mrf.mxu0
  %8375 = vmatprep.mubr.bf16.mxu0 0
  %8376 = vmatmul.mubr.bf16.gmra.mxu0 %v5501
  %v8377 = vpop.f32.mrf.mxu0
  %v8378 = vadd.f32 0.0, %v8377
  %v8379 = vpop.f32.mrf.mxu0
  %v8380 = vpop.f32.mrf.mxu0
  %v8381 = vadd.f32 0.0, %v8380
  %v8382 = vpop.f32.mrf.mxu0
  %8383 = vmatprep.mubr.bf16.mxu0 0
  %8384 = vmatmul.mubr.bf16.gmra.mxu0 %v5502
  %v8385 = vpop.f32.mrf.mxu0
  %v8386 = vadd.f32 0.0, %v8385
  %v8387 = vpop.f32.mrf.mxu0
  %v8388 = vpop.f32.mrf.mxu0
  %v8389 = vadd.f32 0.0, %v8388
  %v8390 = vpop.f32.mrf.mxu0
  %8391 = vmatprep.mubr.bf16.mxu0 0
  %8392 = vmatmul.mubr.bf16.gmra.mxu0 %v5503
  %v8393 = vpop.f32.mrf.mxu0
  %v8394 = vadd.f32 0.0, %v8393
  %v8395 = vpop.f32.mrf.mxu0
  %v8396 = vpop.f32.mrf.mxu0
  %v8397 = vadd.f32 0.0, %v8396
  %v8398 = vpop.f32.mrf.mxu0
  %8399 = vmatprep.mubr.bf16.mxu0 0
  %8400 = vmatmul.mubr.bf16.gmra.mxu0 %v766
  %v8401 = vpop.f32.mrf.mxu0
  %v8402 = vadd.f32 0.0, %v8401
  %v8403 = vpop.f32.mrf.mxu0
  %v8404 = vpop.f32.mrf.mxu0
  %v8405 = vadd.f32 0.0, %v8404
  %v8406 = vpop.f32.mrf.mxu0
  %8407 = vmatprep.mubr.bf16.mxu0 0
  %8408 = vmatmul.mubr.bf16.gmra.mxu0 %v5505
  %v8409 = vpop.f32.mrf.mxu0
  %v8410 = vadd.f32 0.0, %v8409
  %v8411 = vpop.f32.mrf.mxu0
  %v8412 = vpop.f32.mrf.mxu0
  %v8413 = vadd.f32 0.0, %v8412
  %v8414 = vpop.f32.mrf.mxu0
  %8415 = vmatprep.mubr.bf16.mxu0 0
  %8416 = vmatmul.mubr.bf16.gmra.mxu0 %v5506
  %v8417 = vpop.f32.mrf.mxu0
  %v8418 = vadd.f32 0.0, %v8417
  %v8419 = vpop.f32.mrf.mxu0
  %v8420 = vpop.f32.mrf.mxu0
  %v8421 = vadd.f32 0.0, %v8420
  %v8422 = vpop.f32.mrf.mxu0
  %8423 = vmatprep.mubr.bf16.mxu0 0
  %8424 = vmatmul.mubr.bf16.gmra.mxu0 %v5507
  %v8425 = vpop.f32.mrf.mxu0
  %v8426 = vadd.f32 0.0, %v8425
  %v8427 = vpop.f32.mrf.mxu0
  %v8428 = vpop.f32.mrf.mxu0
  %v8429 = vadd.f32 0.0, %v8428
  %v8430 = vpop.f32.mrf.mxu0
  %8431 = vmatprep.mubr.bf16.mxu0 0
  %8432 = vmatmul.mubr.bf16.gmra.mxu0 %v5508
  %v8433 = vpop.f32.mrf.mxu0
  %v8434 = vadd.f32 0.0, %v8433
  %v8435 = vpop.f32.mrf.mxu0
  %v8436 = vpop.f32.mrf.mxu0
  %v8437 = vadd.f32 0.0, %v8436
  %v8438 = vpop.f32.mrf.mxu0
  %8439 = vmatprep.mubr.bf16.mxu0 0
  %8440 = vmatmul.mubr.bf16.gmra.mxu0 %v5509
  %v8441 = vpop.f32.mrf.mxu0
  %v8442 = vadd.f32 0.0, %v8441
  %v8443 = vpop.f32.mrf.mxu0
  %v8444 = vpop.f32.mrf.mxu0
  %v8445 = vadd.f32 0.0, %v8444
  %v8446 = vpop.f32.mrf.mxu0
  %8447 = vmatprep.mubr.bf16.mxu0 0
  %8448 = vmatmul.mubr.bf16.gmra.mxu0 %v5510
  %v8449 = vpop.f32.mrf.mxu0
  %v8450 = vadd.f32 0.0, %v8449
  %v8451 = vpop.f32.mrf.mxu0
  %v8452 = vpop.f32.mrf.mxu0
  %v8453 = vadd.f32 0.0, %v8452
  %v8454 = vpop.f32.mrf.mxu0
  %8455 = vmatprep.mubr.bf16.mxu0 0
  %8456 = vmatmul.mubr.bf16.gmra.mxu0 %v5511
  %v8457 = vpop.f32.mrf.mxu0
  %v8458 = vadd.f32 0.0, %v8457
  %v8459 = vpop.f32.mrf.mxu0
  %v8460 = vpop.f32.mrf.mxu0
  %v8461 = vadd.f32 0.0, %v8460
  %v8462 = vpop.f32.mrf.mxu0
  %8463 = vmatprep.mubr.bf16.mxu0 0
  %8464 = vmatmul.mubr.bf16.gmra.mxu0 %v5512
  %v8465 = vpop.f32.mrf.mxu0
  %v8466 = vadd.f32 0.0, %v8465
  %v8467 = vpop.f32.mrf.mxu0
  %v8468 = vpop.f32.mrf.mxu0
  %v8469 = vadd.f32 0.0, %v8468
  %v8470 = vpop.f32.mrf.mxu0
  %8471 = vmatprep.mubr.bf16.mxu0 0
  %8472 = vmatmul.mubr.bf16.gmra.mxu0 %v5513
  %v8473 = vpop.f32.mrf.mxu0
  %v8474 = vadd.f32 0.0, %v8473
  %v8475 = vpop.f32.mrf.mxu0
  %v8476 = vpop.f32.mrf.mxu0
  %v8477 = vadd.f32 0.0, %v8476
  %v8478 = vpop.f32.mrf.mxu0
  %8479 = vmatprep.mubr.bf16.mxu0 0
  %8480 = vmatmul.mubr.bf16.gmra.mxu0 %v5514
  %v8481 = vpop.f32.mrf.mxu0
  %v8482 = vadd.f32 0.0, %v8481
  %v8483 = vpop.f32.mrf.mxu0
  %v8484 = vpop.f32.mrf.mxu0
  %v8485 = vadd.f32 0.0, %v8484
  %v8486 = vpop.f32.mrf.mxu0
  %8487 = vmatprep.mubr.bf16.mxu0 0
  %8488 = vmatmul.mubr.bf16.gmra.mxu0 %v5515
  %v8489 = vpop.f32.mrf.mxu0
  %v8490 = vadd.f32 0.0, %v8489
  %v8491 = vpop.f32.mrf.mxu0
  %v8492 = vpop.f32.mrf.mxu0
  %v8493 = vadd.f32 0.0, %v8492
  %v8494 = vpop.f32.mrf.mxu0
  %8495 = vmatprep.mubr.bf16.mxu0 0
  %8496 = vmatmul.mubr.bf16.gmra.mxu0 %v5516
  %v8497 = vpop.f32.mrf.mxu0
  %v8498 = vadd.f32 0.0, %v8497
  %v8499 = vpop.f32.mrf.mxu0
  %v8500 = vpop.f32.mrf.mxu0
  %v8501 = vadd.f32 0.0, %v8500
  %v8502 = vpop.f32.mrf.mxu0
  %8503 = vmatprep.mubr.bf16.mxu0 0
  %8504 = vmatmul.mubr.bf16.gmra.mxu0 %v5517
  %v8505 = vpop.f32.mrf.mxu0
  %v8506 = vadd.f32 0.0, %v8505
  %v8507 = vpop.f32.mrf.mxu0
  %v8508 = vpop.f32.mrf.mxu0
  %v8509 = vadd.f32 0.0, %v8508
  %v8510 = vpop.f32.mrf.mxu0
  %8511 = vmatprep.mubr.bf16.mxu0 0
  %8512 = vmatmul.mubr.bf16.gmra.mxu0 %v5518
  %v8513 = vpop.f32.mrf.mxu0
  %v8514 = vadd.f32 0.0, %v8513
  %v8515 = vpop.f32.mrf.mxu0
  %v8516 = vpop.f32.mrf.mxu0
  %v8517 = vadd.f32 0.0, %v8516
  %v8518 = vpop.f32.mrf.mxu0
  %8519 = vmatprep.mubr.bf16.mxu0 0
  %8520 = vmatmul.mubr.bf16.gmra.mxu0 %v5519
  %v8521 = vpop.f32.mrf.mxu0
  %v8522 = vadd.f32 0.0, %v8521
  %v8523 = vpop.f32.mrf.mxu0
  %v8524 = vpop.f32.mrf.mxu0
  %v8525 = vadd.f32 0.0, %v8524
  %v8526 = vpop.f32.mrf.mxu0
  %8527 = vmatprep.mubr.bf16.mxu0 0
  %8528 = vmatmul.mubr.bf16.gmra.mxu0 %v766
  %v8529 = vpop.f32.mrf.mxu0
  %v8530 = vadd.f32 0.0, %v8529
  %v8531 = vpop.f32.mrf.mxu0
  %v8532 = vpop.f32.mrf.mxu0
  %v8533 = vadd.f32 0.0, %v8532
  %v8534 = vpop.f32.mrf.mxu0
  %8535 = vdwg.mxu0
  %v8536 = vadd.f32 %v8135, %v8282
  %v8537 = vadd.f32 %v8136, %v8285
  %v8538 = vadd.f32 %v8137, %v8290
  %v8539 = vadd.f32 %v8138, %v8293
  %v8540 = vadd.f32 %v8139, %v8298
  %v8541 = vadd.f32 %v8140, %v8301
  %v8542 = vadd.f32 %v8141, %v8306
  %v8543 = vadd.f32 %v8142, %v8309
  %v8544 = vadd.f32 %v8143, %v8314
  %v8545 = vadd.f32 %v8144, %v8317
  %v8546 = vadd.f32 %v8145, %v8322
  %v8547 = vadd.f32 %v8146, %v8325
  %v8548 = vadd.f32 %v8147, %v8330
  %v8549 = vadd.f32 %v8148, %v8333
  %v8550 = vadd.f32 %v8149, %v8338
  %v8551 = vadd.f32 %v8150, %v8341
  %v8552 = vadd.f32 %v8151, %v8346
  %v8553 = vadd.f32 %v8152, %v8349
  %v8554 = vadd.f32 %v8153, %v8354
  %v8555 = vadd.f32 %v8154, %v8357
  %v8556 = vadd.f32 %v8155, %v8362
  %v8557 = vadd.f32 %v8156, %v8365
  %v8558 = vadd.f32 %v8157, %v8370
  %v8559 = vadd.f32 %v8158, %v8373
  %v8560 = vadd.f32 %v8159, %v8378
  %v8561 = vadd.f32 %v8160, %v8381
  %v8562 = vadd.f32 %v8161, %v8386
  %v8563 = vadd.f32 %v8162, %v8389
  %v8564 = vadd.f32 %v8163, %v8394
  %v8565 = vadd.f32 %v8164, %v8397
  %v8566 = vadd.f32 %v8165, %v8402
  %v8567 = vadd.f32 %v8166, %v8405
  %v8568 = vadd.f32 %v8167, %v8410
  %v8569 = vadd.f32 %v8168, %v8413
  %v8570 = vadd.f32 %v8169, %v8418
  %v8571 = vadd.f32 %v8170, %v8421
  %v8572 = vadd.f32 %v8171, %v8426
  %v8573 = vadd.f32 %v8172, %v8429
  %v8574 = vadd.f32 %v8173, %v8434
  %v8575 = vadd.f32 %v8174, %v8437
  %v8576 = vadd.f32 %v8175, %v8442
  %v8577 = vadd.f32 %v8176, %v8445
  %v8578 = vadd.f32 %v8177, %v8450
  %v8579 = vadd.f32 %v8178, %v8453
  %v8580 = vadd.f32 %v8179, %v8458
  %v8581 = vadd.f32 %v8180, %v8461
  %v8582 = vadd.f32 %v8181, %v8466
  %v8583 = vadd.f32 %v8182, %v8469
  %v8584 = vadd.f32 %v8183, %v8474
  %v8585 = vadd.f32 %v8184, %v8477
  %v8586 = vadd.f32 %v8185, %v8482
  %v8587 = vadd.f32 %v8186, %v8485
  %v8588 = vadd.f32 %v8187, %v8490
  %v8589 = vadd.f32 %v8188, %v8493
  %v8590 = vadd.f32 %v8189, %v8498
  %v8591 = vadd.f32 %v8190, %v8501
  %v8592 = vadd.f32 %v8191, %v8506
  %v8593 = vadd.f32 %v8192, %v8509
  %v8594 = vadd.f32 %v8193, %v8514
  %v8595 = vadd.f32 %v8194, %v8517
  %v8596 = vadd.f32 %v8195, %v8522
  %v8597 = vadd.f32 %v8196, %v8525
  %v8598 = vadd.f32 %v8197, %v8530
  %v8599 = vadd.f32 %v8198, %v8533
  %v8616 = vunpack.c.l.b16 %v5889
  %v8617 = vunpack.c.l.b16 %v5890
  %v8618 = vunpack.c.l.b16 %v5891
  %v8619 = vunpack.c.l.b16 %v5892
  %v8620 = vunpack.c.l.b16 %v5893
  %v8621 = vunpack.c.l.b16 %v5894
  %v8622 = vunpack.c.l.b16 %v5895
  %v8623 = vunpack.c.l.b16 %v5896
  %v8624 = vunpack.c.l.b16 %v5897
  %v8625 = vunpack.c.l.b16 %v5898
  %v8626 = vunpack.c.l.b16 %v5899
  %v8627 = vunpack.c.l.b16 %v5900
  %v8628 = vunpack.c.l.b16 %v5901
  %v8629 = vunpack.c.l.b16 %v5902
  %v8630 = vunpack.c.l.b16 %v5903
  %v8631 = vunpack.c.l.b16 %v5904
  %v8632 = vpack.c.b16 %v8617, %v8616
  %v8633 = vpack.c.b16 %v8619, %v8618
  %v8634 = vpack.c.b16 %v8621, %v8620
  %v8635 = vpack.c.b16 %v8623, %v8622
  %v8636 = vpack.c.b16 %v8625, %v8624
  %v8637 = vpack.c.b16 %v8627, %v8626
  %v8638 = vpack.c.b16 %v8629, %v8628
  %v8639 = vpack.c.b16 %v8631, %v8630
  %8648 = vmatprep.subr.bf16.mxu0 0
  %8649 = vmatpush1.bf16.msra.mxu0 %v8639
  %8650 = vmatprep.subr.bf16.mxu0 0
  %8651 = vmatpush1.bf16.msra.mxu0 %v8638
  %8652 = vmatprep.subr.bf16.mxu0 0
  %8653 = vmatpush1.bf16.msra.mxu0 %v8637
  %8654 = vmatprep.subr.bf16.mxu0 0
  %8655 = vmatpush1.bf16.msra.mxu0 %v8636
  %8656 = vmatprep.subr.bf16.mxu0 0
  %8657 = vmatpush1.bf16.msra.mxu0 %v8635
  %8658 = vmatprep.subr.bf16.mxu0 0
  %8659 = vmatpush1.bf16.msra.mxu0 %v8634
  %8660 = vmatprep.subr.bf16.mxu0 0
  %8661 = vmatpush1.bf16.msra.mxu0 %v8633
  %8662 = vmatprep.subr.bf16.mxu0 0
  %8663 = vmatpush1.bf16.msra.mxu0 %v8632
  %8664 = vmatprep.subr.bf16.mxu0 0
  %8665 = vmatpush2.bf16.msra.mxu0 0
  %8666 = vmatprep.subr.bf16.mxu0 0
  %8667 = vmatpush2.bf16.msra.mxu0 0
  %8668 = vmatprep.subr.bf16.mxu0 0
  %8669 = vmatpush2.bf16.msra.mxu0 0
  %8670 = vmatprep.subr.bf16.mxu0 0
  %8671 = vmatpush2.bf16.msra.mxu0 0
  %8672 = vmatprep.subr.bf16.mxu0 0
  %8673 = vmatpush2.bf16.msra.mxu0 0
  %8674 = vmatprep.subr.bf16.mxu0 0
  %8675 = vmatpush2.bf16.msra.mxu0 0
  %8676 = vmatprep.subr.bf16.mxu0 0
  %8677 = vmatpush2.bf16.msra.mxu0 0
  %8678 = vmatprep.subr.bf16.mxu0 0
  %8679 = vmatpush2.bf16.msra.mxu0 0
  %8680 = vmatprep.mubr.bf16.mxu0 0
  %8681 = vmatmul.mubr.bf16.gmra.mxu0 %v5521
  %v8682 = vpop.f32.mrf.mxu0
  %v8683 = vadd.f32 0.0, %v8682
  %v8684 = vpop.f32.mrf.mxu0
  %v8685 = vpop.f32.mrf.mxu0
  %v8686 = vadd.f32 0.0, %v8685
  %v8687 = vpop.f32.mrf.mxu0
  %8688 = vmatprep.mubr.bf16.mxu0 0
  %8689 = vmatmul.mubr.bf16.gmra.mxu0 %v5522
  %v8690 = vpop.f32.mrf.mxu0
  %v8691 = vadd.f32 0.0, %v8690
  %v8692 = vpop.f32.mrf.mxu0
  %v8693 = vpop.f32.mrf.mxu0
  %v8694 = vadd.f32 0.0, %v8693
  %v8695 = vpop.f32.mrf.mxu0
  %8696 = vmatprep.mubr.bf16.mxu0 0
  %8697 = vmatmul.mubr.bf16.gmra.mxu0 %v5523
  %v8698 = vpop.f32.mrf.mxu0
  %v8699 = vadd.f32 0.0, %v8698
  %v8700 = vpop.f32.mrf.mxu0
  %v8701 = vpop.f32.mrf.mxu0
  %v8702 = vadd.f32 0.0, %v8701
  %v8703 = vpop.f32.mrf.mxu0
  %8704 = vmatprep.mubr.bf16.mxu0 0
  %8705 = vmatmul.mubr.bf16.gmra.mxu0 %v5524
  %v8706 = vpop.f32.mrf.mxu0
  %v8707 = vadd.f32 0.0, %v8706
  %v8708 = vpop.f32.mrf.mxu0
  %v8709 = vpop.f32.mrf.mxu0
  %v8710 = vadd.f32 0.0, %v8709
  %v8711 = vpop.f32.mrf.mxu0
  %8712 = vmatprep.mubr.bf16.mxu0 0
  %8713 = vmatmul.mubr.bf16.gmra.mxu0 %v5525
  %v8714 = vpop.f32.mrf.mxu0
  %v8715 = vadd.f32 0.0, %v8714
  %v8716 = vpop.f32.mrf.mxu0
  %v8717 = vpop.f32.mrf.mxu0
  %v8718 = vadd.f32 0.0, %v8717
  %v8719 = vpop.f32.mrf.mxu0
  %8720 = vmatprep.mubr.bf16.mxu0 0
  %8721 = vmatmul.mubr.bf16.gmra.mxu0 %v5526
  %v8722 = vpop.f32.mrf.mxu0
  %v8723 = vadd.f32 0.0, %v8722
  %v8724 = vpop.f32.mrf.mxu0
  %v8725 = vpop.f32.mrf.mxu0
  %v8726 = vadd.f32 0.0, %v8725
  %v8727 = vpop.f32.mrf.mxu0
  %8728 = vmatprep.mubr.bf16.mxu0 0
  %8729 = vmatmul.mubr.bf16.gmra.mxu0 %v5527
  %v8730 = vpop.f32.mrf.mxu0
  %v8731 = vadd.f32 0.0, %v8730
  %v8732 = vpop.f32.mrf.mxu0
  %v8733 = vpop.f32.mrf.mxu0
  %v8734 = vadd.f32 0.0, %v8733
  %v8735 = vpop.f32.mrf.mxu0
  %8736 = vmatprep.mubr.bf16.mxu0 0
  %8737 = vmatmul.mubr.bf16.gmra.mxu0 %v5528
  %v8738 = vpop.f32.mrf.mxu0
  %v8739 = vadd.f32 0.0, %v8738
  %v8740 = vpop.f32.mrf.mxu0
  %v8741 = vpop.f32.mrf.mxu0
  %v8742 = vadd.f32 0.0, %v8741
  %v8743 = vpop.f32.mrf.mxu0
  %8744 = vmatprep.mubr.bf16.mxu0 0
  %8745 = vmatmul.mubr.bf16.gmra.mxu0 %v5529
  %v8746 = vpop.f32.mrf.mxu0
  %v8747 = vadd.f32 0.0, %v8746
  %v8748 = vpop.f32.mrf.mxu0
  %v8749 = vpop.f32.mrf.mxu0
  %v8750 = vadd.f32 0.0, %v8749
  %v8751 = vpop.f32.mrf.mxu0
  %8752 = vmatprep.mubr.bf16.mxu0 0
  %8753 = vmatmul.mubr.bf16.gmra.mxu0 %v5530
  %v8754 = vpop.f32.mrf.mxu0
  %v8755 = vadd.f32 0.0, %v8754
  %v8756 = vpop.f32.mrf.mxu0
  %v8757 = vpop.f32.mrf.mxu0
  %v8758 = vadd.f32 0.0, %v8757
  %v8759 = vpop.f32.mrf.mxu0
  %8760 = vmatprep.mubr.bf16.mxu0 0
  %8761 = vmatmul.mubr.bf16.gmra.mxu0 %v5531
  %v8762 = vpop.f32.mrf.mxu0
  %v8763 = vadd.f32 0.0, %v8762
  %v8764 = vpop.f32.mrf.mxu0
  %v8765 = vpop.f32.mrf.mxu0
  %v8766 = vadd.f32 0.0, %v8765
  %v8767 = vpop.f32.mrf.mxu0
  %8768 = vmatprep.mubr.bf16.mxu0 0
  %8769 = vmatmul.mubr.bf16.gmra.mxu0 %v5532
  %v8770 = vpop.f32.mrf.mxu0
  %v8771 = vadd.f32 0.0, %v8770
  %v8772 = vpop.f32.mrf.mxu0
  %v8773 = vpop.f32.mrf.mxu0
  %v8774 = vadd.f32 0.0, %v8773
  %v8775 = vpop.f32.mrf.mxu0
  %8776 = vmatprep.mubr.bf16.mxu0 0
  %8777 = vmatmul.mubr.bf16.gmra.mxu0 %v5533
  %v8778 = vpop.f32.mrf.mxu0
  %v8779 = vadd.f32 0.0, %v8778
  %v8780 = vpop.f32.mrf.mxu0
  %v8781 = vpop.f32.mrf.mxu0
  %v8782 = vadd.f32 0.0, %v8781
  %v8783 = vpop.f32.mrf.mxu0
  %8784 = vmatprep.mubr.bf16.mxu0 0
  %8785 = vmatmul.mubr.bf16.gmra.mxu0 %v5534
  %v8786 = vpop.f32.mrf.mxu0
  %v8787 = vadd.f32 0.0, %v8786
  %v8788 = vpop.f32.mrf.mxu0
  %v8789 = vpop.f32.mrf.mxu0
  %v8790 = vadd.f32 0.0, %v8789
  %v8791 = vpop.f32.mrf.mxu0
  %8792 = vmatprep.mubr.bf16.mxu0 0
  %8793 = vmatmul.mubr.bf16.gmra.mxu0 %v5535
  %v8794 = vpop.f32.mrf.mxu0
  %v8795 = vadd.f32 0.0, %v8794
  %v8796 = vpop.f32.mrf.mxu0
  %v8797 = vpop.f32.mrf.mxu0
  %v8798 = vadd.f32 0.0, %v8797
  %v8799 = vpop.f32.mrf.mxu0
  %8800 = vmatprep.mubr.bf16.mxu0 0
  %8801 = vmatmul.mubr.bf16.gmra.mxu0 %v799
  %v8802 = vpop.f32.mrf.mxu0
  %v8803 = vadd.f32 0.0, %v8802
  %v8804 = vpop.f32.mrf.mxu0
  %v8805 = vpop.f32.mrf.mxu0
  %v8806 = vadd.f32 0.0, %v8805
  %v8807 = vpop.f32.mrf.mxu0
  %8808 = vmatprep.mubr.bf16.mxu0 0
  %8809 = vmatmul.mubr.bf16.gmra.mxu0 %v5537
  %v8810 = vpop.f32.mrf.mxu0
  %v8811 = vadd.f32 0.0, %v8810
  %v8812 = vpop.f32.mrf.mxu0
  %v8813 = vpop.f32.mrf.mxu0
  %v8814 = vadd.f32 0.0, %v8813
  %v8815 = vpop.f32.mrf.mxu0
  %8816 = vmatprep.mubr.bf16.mxu0 0
  %8817 = vmatmul.mubr.bf16.gmra.mxu0 %v5538
  %v8818 = vpop.f32.mrf.mxu0
  %v8819 = vadd.f32 0.0, %v8818
  %v8820 = vpop.f32.mrf.mxu0
  %v8821 = vpop.f32.mrf.mxu0
  %v8822 = vadd.f32 0.0, %v8821
  %v8823 = vpop.f32.mrf.mxu0
  %8824 = vmatprep.mubr.bf16.mxu0 0
  %8825 = vmatmul.mubr.bf16.gmra.mxu0 %v5539
  %v8826 = vpop.f32.mrf.mxu0
  %v8827 = vadd.f32 0.0, %v8826
  %v8828 = vpop.f32.mrf.mxu0
  %v8829 = vpop.f32.mrf.mxu0
  %v8830 = vadd.f32 0.0, %v8829
  %v8831 = vpop.f32.mrf.mxu0
  %8832 = vmatprep.mubr.bf16.mxu0 0
  %8833 = vmatmul.mubr.bf16.gmra.mxu0 %v5540
  %v8834 = vpop.f32.mrf.mxu0
  %v8835 = vadd.f32 0.0, %v8834
  %v8836 = vpop.f32.mrf.mxu0
  %v8837 = vpop.f32.mrf.mxu0
  %v8838 = vadd.f32 0.0, %v8837
  %v8839 = vpop.f32.mrf.mxu0
  %8840 = vmatprep.mubr.bf16.mxu0 0
  %8841 = vmatmul.mubr.bf16.gmra.mxu0 %v5541
  %v8842 = vpop.f32.mrf.mxu0
  %v8843 = vadd.f32 0.0, %v8842
  %v8844 = vpop.f32.mrf.mxu0
  %v8845 = vpop.f32.mrf.mxu0
  %v8846 = vadd.f32 0.0, %v8845
  %v8847 = vpop.f32.mrf.mxu0
  %8848 = vmatprep.mubr.bf16.mxu0 0
  %8849 = vmatmul.mubr.bf16.gmra.mxu0 %v5542
  %v8850 = vpop.f32.mrf.mxu0
  %v8851 = vadd.f32 0.0, %v8850
  %v8852 = vpop.f32.mrf.mxu0
  %v8853 = vpop.f32.mrf.mxu0
  %v8854 = vadd.f32 0.0, %v8853
  %v8855 = vpop.f32.mrf.mxu0
  %8856 = vmatprep.mubr.bf16.mxu0 0
  %8857 = vmatmul.mubr.bf16.gmra.mxu0 %v5543
  %v8858 = vpop.f32.mrf.mxu0
  %v8859 = vadd.f32 0.0, %v8858
  %v8860 = vpop.f32.mrf.mxu0
  %v8861 = vpop.f32.mrf.mxu0
  %v8862 = vadd.f32 0.0, %v8861
  %v8863 = vpop.f32.mrf.mxu0
  %8864 = vmatprep.mubr.bf16.mxu0 0
  %8865 = vmatmul.mubr.bf16.gmra.mxu0 %v5544
  %v8866 = vpop.f32.mrf.mxu0
  %v8867 = vadd.f32 0.0, %v8866
  %v8868 = vpop.f32.mrf.mxu0
  %v8869 = vpop.f32.mrf.mxu0
  %v8870 = vadd.f32 0.0, %v8869
  %v8871 = vpop.f32.mrf.mxu0
  %8872 = vmatprep.mubr.bf16.mxu0 0
  %8873 = vmatmul.mubr.bf16.gmra.mxu0 %v5545
  %v8874 = vpop.f32.mrf.mxu0
  %v8875 = vadd.f32 0.0, %v8874
  %v8876 = vpop.f32.mrf.mxu0
  %v8877 = vpop.f32.mrf.mxu0
  %v8878 = vadd.f32 0.0, %v8877
  %v8879 = vpop.f32.mrf.mxu0
  %8880 = vmatprep.mubr.bf16.mxu0 0
  %8881 = vmatmul.mubr.bf16.gmra.mxu0 %v5546
  %v8882 = vpop.f32.mrf.mxu0
  %v8883 = vadd.f32 0.0, %v8882
  %v8884 = vpop.f32.mrf.mxu0
  %v8885 = vpop.f32.mrf.mxu0
  %v8886 = vadd.f32 0.0, %v8885
  %v8887 = vpop.f32.mrf.mxu0
  %8888 = vmatprep.mubr.bf16.mxu0 0
  %8889 = vmatmul.mubr.bf16.gmra.mxu0 %v5547
  %v8890 = vpop.f32.mrf.mxu0
  %v8891 = vadd.f32 0.0, %v8890
  %v8892 = vpop.f32.mrf.mxu0
  %v8893 = vpop.f32.mrf.mxu0
  %v8894 = vadd.f32 0.0, %v8893
  %v8895 = vpop.f32.mrf.mxu0
  %8896 = vmatprep.mubr.bf16.mxu0 0
  %8897 = vmatmul.mubr.bf16.gmra.mxu0 %v5548
  %v8898 = vpop.f32.mrf.mxu0
  %v8899 = vadd.f32 0.0, %v8898
  %v8900 = vpop.f32.mrf.mxu0
  %v8901 = vpop.f32.mrf.mxu0
  %v8902 = vadd.f32 0.0, %v8901
  %v8903 = vpop.f32.mrf.mxu0
  %8904 = vmatprep.mubr.bf16.mxu0 0
  %8905 = vmatmul.mubr.bf16.gmra.mxu0 %v5549
  %v8906 = vpop.f32.mrf.mxu0
  %v8907 = vadd.f32 0.0, %v8906
  %v8908 = vpop.f32.mrf.mxu0
  %v8909 = vpop.f32.mrf.mxu0
  %v8910 = vadd.f32 0.0, %v8909
  %v8911 = vpop.f32.mrf.mxu0
  %8912 = vmatprep.mubr.bf16.mxu0 0
  %8913 = vmatmul.mubr.bf16.gmra.mxu0 %v5550
  %v8914 = vpop.f32.mrf.mxu0
  %v8915 = vadd.f32 0.0, %v8914
  %v8916 = vpop.f32.mrf.mxu0
  %v8917 = vpop.f32.mrf.mxu0
  %v8918 = vadd.f32 0.0, %v8917
  %v8919 = vpop.f32.mrf.mxu0
  %8920 = vmatprep.mubr.bf16.mxu0 0
  %8921 = vmatmul.mubr.bf16.gmra.mxu0 %v5551
  %v8922 = vpop.f32.mrf.mxu0
  %v8923 = vadd.f32 0.0, %v8922
  %v8924 = vpop.f32.mrf.mxu0
  %v8925 = vpop.f32.mrf.mxu0
  %v8926 = vadd.f32 0.0, %v8925
  %v8927 = vpop.f32.mrf.mxu0
  %8928 = vmatprep.mubr.bf16.mxu0 0
  %8929 = vmatmul.mubr.bf16.gmra.mxu0 %v799
  %v8930 = vpop.f32.mrf.mxu0
  %v8931 = vadd.f32 0.0, %v8930
  %v8932 = vpop.f32.mrf.mxu0
  %v8933 = vpop.f32.mrf.mxu0
  %v8934 = vadd.f32 0.0, %v8933
  %v8935 = vpop.f32.mrf.mxu0
  %8936 = vdwg.mxu0
  %v8937 = vadd.f32 %v8536, %v8683
  %v8938 = vadd.f32 %v8537, %v8686
  %v8939 = vadd.f32 %v8538, %v8691
  %v8940 = vadd.f32 %v8539, %v8694
  %v8941 = vadd.f32 %v8540, %v8699
  %v8942 = vadd.f32 %v8541, %v8702
  %v8943 = vadd.f32 %v8542, %v8707
  %v8944 = vadd.f32 %v8543, %v8710
  %v8945 = vadd.f32 %v8544, %v8715
  %v8946 = vadd.f32 %v8545, %v8718
  %v8947 = vadd.f32 %v8546, %v8723
  %v8948 = vadd.f32 %v8547, %v8726
  %v8949 = vadd.f32 %v8548, %v8731
  %v8950 = vadd.f32 %v8549, %v8734
  %v8951 = vadd.f32 %v8550, %v8739
  %v8952 = vadd.f32 %v8551, %v8742
  %v8953 = vadd.f32 %v8552, %v8747
  %v8954 = vadd.f32 %v8553, %v8750
  %v8955 = vadd.f32 %v8554, %v8755
  %v8956 = vadd.f32 %v8555, %v8758
  %v8957 = vadd.f32 %v8556, %v8763
  %v8958 = vadd.f32 %v8557, %v8766
  %v8959 = vadd.f32 %v8558, %v8771
  %v8960 = vadd.f32 %v8559, %v8774
  %v8961 = vadd.f32 %v8560, %v8779
  %v8962 = vadd.f32 %v8561, %v8782
  %v8963 = vadd.f32 %v8562, %v8787
  %v8964 = vadd.f32 %v8563, %v8790
  %v8965 = vadd.f32 %v8564, %v8795
  %v8966 = vadd.f32 %v8565, %v8798
  %v8967 = vadd.f32 %v8566, %v8803
  %v8968 = vadd.f32 %v8567, %v8806
  %v8969 = vadd.f32 %v8568, %v8811
  %v8970 = vadd.f32 %v8569, %v8814
  %v8971 = vadd.f32 %v8570, %v8819
  %v8972 = vadd.f32 %v8571, %v8822
  %v8973 = vadd.f32 %v8572, %v8827
  %v8974 = vadd.f32 %v8573, %v8830
  %v8975 = vadd.f32 %v8574, %v8835
  %v8976 = vadd.f32 %v8575, %v8838
  %v8977 = vadd.f32 %v8576, %v8843
  %v8978 = vadd.f32 %v8577, %v8846
  %v8979 = vadd.f32 %v8578, %v8851
  %v8980 = vadd.f32 %v8579, %v8854
  %v8981 = vadd.f32 %v8580, %v8859
  %v8982 = vadd.f32 %v8581, %v8862
  %v8983 = vadd.f32 %v8582, %v8867
  %v8984 = vadd.f32 %v8583, %v8870
  %v8985 = vadd.f32 %v8584, %v8875
  %v8986 = vadd.f32 %v8585, %v8878
  %v8987 = vadd.f32 %v8586, %v8883
  %v8988 = vadd.f32 %v8587, %v8886
  %v8989 = vadd.f32 %v8588, %v8891
  %v8990 = vadd.f32 %v8589, %v8894
  %v8991 = vadd.f32 %v8590, %v8899
  %v8992 = vadd.f32 %v8591, %v8902
  %v8993 = vadd.f32 %v8592, %v8907
  %v8994 = vadd.f32 %v8593, %v8910
  %v8995 = vadd.f32 %v8594, %v8915
  %v8996 = vadd.f32 %v8595, %v8918
  %v8997 = vadd.f32 %v8596, %v8923
  %v8998 = vadd.f32 %v8597, %v8926
  %v8999 = vadd.f32 %v8598, %v8931
  %v9000 = vadd.f32 %v8599, %v8934
  %v9017 = vunpack.c.l.b16 %v5905
  %v9018 = vunpack.c.l.b16 %v5906
  %v9019 = vunpack.c.l.b16 %v5907
  %v9020 = vunpack.c.l.b16 %v5908
  %v9021 = vunpack.c.l.b16 %v5909
  %v9022 = vunpack.c.l.b16 %v5910
  %v9023 = vunpack.c.l.b16 %v5911
  %v9024 = vunpack.c.l.b16 %v5912
  %v9025 = vunpack.c.l.b16 %v5913
  %v9026 = vunpack.c.l.b16 %v5914
  %v9027 = vunpack.c.l.b16 %v5915
  %v9028 = vunpack.c.l.b16 %v5916
  %v9029 = vunpack.c.l.b16 %v5917
  %v9030 = vunpack.c.l.b16 %v5918
  %v9031 = vunpack.c.l.b16 %v5919
  %v9032 = vunpack.c.l.b16 %v5920
  %v9033 = vpack.c.b16 %v9018, %v9017
  %v9034 = vpack.c.b16 %v9020, %v9019
  %v9035 = vpack.c.b16 %v9022, %v9021
  %v9036 = vpack.c.b16 %v9024, %v9023
  %v9037 = vpack.c.b16 %v9026, %v9025
  %v9038 = vpack.c.b16 %v9028, %v9027
  %v9039 = vpack.c.b16 %v9030, %v9029
  %v9040 = vpack.c.b16 %v9032, %v9031
  %9049 = vmatprep.subr.bf16.mxu0 0
  %9050 = vmatpush1.bf16.msra.mxu0 %v9040
  %9051 = vmatprep.subr.bf16.mxu0 0
  %9052 = vmatpush1.bf16.msra.mxu0 %v9039
  %9053 = vmatprep.subr.bf16.mxu0 0
  %9054 = vmatpush1.bf16.msra.mxu0 %v9038
  %9055 = vmatprep.subr.bf16.mxu0 0
  %9056 = vmatpush1.bf16.msra.mxu0 %v9037
  %9057 = vmatprep.subr.bf16.mxu0 0
  %9058 = vmatpush1.bf16.msra.mxu0 %v9036
  %9059 = vmatprep.subr.bf16.mxu0 0
  %9060 = vmatpush1.bf16.msra.mxu0 %v9035
  %9061 = vmatprep.subr.bf16.mxu0 0
  %9062 = vmatpush1.bf16.msra.mxu0 %v9034
  %9063 = vmatprep.subr.bf16.mxu0 0
  %9064 = vmatpush1.bf16.msra.mxu0 %v9033
  %9065 = vmatprep.subr.bf16.mxu0 0
  %9066 = vmatpush2.bf16.msra.mxu0 0
  %9067 = vmatprep.subr.bf16.mxu0 0
  %9068 = vmatpush2.bf16.msra.mxu0 0
  %9069 = vmatprep.subr.bf16.mxu0 0
  %9070 = vmatpush2.bf16.msra.mxu0 0
  %9071 = vmatprep.subr.bf16.mxu0 0
  %9072 = vmatpush2.bf16.msra.mxu0 0
  %9073 = vmatprep.subr.bf16.mxu0 0
  %9074 = vmatpush2.bf16.msra.mxu0 0
  %9075 = vmatprep.subr.bf16.mxu0 0
  %9076 = vmatpush2.bf16.msra.mxu0 0
  %9077 = vmatprep.subr.bf16.mxu0 0
  %9078 = vmatpush2.bf16.msra.mxu0 0
  %9079 = vmatprep.subr.bf16.mxu0 0
  %9080 = vmatpush2.bf16.msra.mxu0 0
  %9081 = vmatprep.mubr.bf16.mxu0 0
  %9082 = vmatmul.mubr.bf16.gmra.mxu0 %v5745
  %v9083 = vpop.f32.mrf.mxu0
  %v9084 = vadd.f32 0.0, %v9083
  %v9085 = vpop.f32.mrf.mxu0
  %v9086 = vpop.f32.mrf.mxu0
  %v9087 = vadd.f32 0.0, %v9086
  %v9088 = vpop.f32.mrf.mxu0
  %9089 = vmatprep.mubr.bf16.mxu0 0
  %9090 = vmatmul.mubr.bf16.gmra.mxu0 %v5746
  %v9091 = vpop.f32.mrf.mxu0
  %v9092 = vadd.f32 0.0, %v9091
  %v9093 = vpop.f32.mrf.mxu0
  %v9094 = vpop.f32.mrf.mxu0
  %v9095 = vadd.f32 0.0, %v9094
  %v9096 = vpop.f32.mrf.mxu0
  %9097 = vmatprep.mubr.bf16.mxu0 0
  %9098 = vmatmul.mubr.bf16.gmra.mxu0 %v5747
  %v9099 = vpop.f32.mrf.mxu0
  %v9100 = vadd.f32 0.0, %v9099
  %v9101 = vpop.f32.mrf.mxu0
  %v9102 = vpop.f32.mrf.mxu0
  %v9103 = vadd.f32 0.0, %v9102
  %v9104 = vpop.f32.mrf.mxu0
  %9105 = vmatprep.mubr.bf16.mxu0 0
  %9106 = vmatmul.mubr.bf16.gmra.mxu0 %v5748
  %v9107 = vpop.f32.mrf.mxu0
  %v9108 = vadd.f32 0.0, %v9107
  %v9109 = vpop.f32.mrf.mxu0
  %v9110 = vpop.f32.mrf.mxu0
  %v9111 = vadd.f32 0.0, %v9110
  %v9112 = vpop.f32.mrf.mxu0
  %9113 = vmatprep.mubr.bf16.mxu0 0
  %9114 = vmatmul.mubr.bf16.gmra.mxu0 %v5749
  %v9115 = vpop.f32.mrf.mxu0
  %v9116 = vadd.f32 0.0, %v9115
  %v9117 = vpop.f32.mrf.mxu0
  %v9118 = vpop.f32.mrf.mxu0
  %v9119 = vadd.f32 0.0, %v9118
  %v9120 = vpop.f32.mrf.mxu0
  %9121 = vmatprep.mubr.bf16.mxu0 0
  %9122 = vmatmul.mubr.bf16.gmra.mxu0 %v5750
  %v9123 = vpop.f32.mrf.mxu0
  %v9124 = vadd.f32 0.0, %v9123
  %v9125 = vpop.f32.mrf.mxu0
  %v9126 = vpop.f32.mrf.mxu0
  %v9127 = vadd.f32 0.0, %v9126
  %v9128 = vpop.f32.mrf.mxu0
  %9129 = vmatprep.mubr.bf16.mxu0 0
  %9130 = vmatmul.mubr.bf16.gmra.mxu0 %v5751
  %v9131 = vpop.f32.mrf.mxu0
  %v9132 = vadd.f32 0.0, %v9131
  %v9133 = vpop.f32.mrf.mxu0
  %v9134 = vpop.f32.mrf.mxu0
  %v9135 = vadd.f32 0.0, %v9134
  %v9136 = vpop.f32.mrf.mxu0
  %9137 = vmatprep.mubr.bf16.mxu0 0
  %9138 = vmatmul.mubr.bf16.gmra.mxu0 %v5752
  %v9139 = vpop.f32.mrf.mxu0
  %v9140 = vadd.f32 0.0, %v9139
  %v9141 = vpop.f32.mrf.mxu0
  %v9142 = vpop.f32.mrf.mxu0
  %v9143 = vadd.f32 0.0, %v9142
  %v9144 = vpop.f32.mrf.mxu0
  %9145 = vmatprep.mubr.bf16.mxu0 0
  %9146 = vmatmul.mubr.bf16.gmra.mxu0 %v5753
  %v9147 = vpop.f32.mrf.mxu0
  %v9148 = vadd.f32 0.0, %v9147
  %v9149 = vpop.f32.mrf.mxu0
  %v9150 = vpop.f32.mrf.mxu0
  %v9151 = vadd.f32 0.0, %v9150
  %v9152 = vpop.f32.mrf.mxu0
  %9153 = vmatprep.mubr.bf16.mxu0 0
  %9154 = vmatmul.mubr.bf16.gmra.mxu0 %v5754
  %v9155 = vpop.f32.mrf.mxu0
  %v9156 = vadd.f32 0.0, %v9155
  %v9157 = vpop.f32.mrf.mxu0
  %v9158 = vpop.f32.mrf.mxu0
  %v9159 = vadd.f32 0.0, %v9158
  %v9160 = vpop.f32.mrf.mxu0
  %9161 = vmatprep.mubr.bf16.mxu0 0
  %9162 = vmatmul.mubr.bf16.gmra.mxu0 %v5755
  %v9163 = vpop.f32.mrf.mxu0
  %v9164 = vadd.f32 0.0, %v9163
  %v9165 = vpop.f32.mrf.mxu0
  %v9166 = vpop.f32.mrf.mxu0
  %v9167 = vadd.f32 0.0, %v9166
  %v9168 = vpop.f32.mrf.mxu0
  %9169 = vmatprep.mubr.bf16.mxu0 0
  %9170 = vmatmul.mubr.bf16.gmra.mxu0 %v5756
  %v9171 = vpop.f32.mrf.mxu0
  %v9172 = vadd.f32 0.0, %v9171
  %v9173 = vpop.f32.mrf.mxu0
  %v9174 = vpop.f32.mrf.mxu0
  %v9175 = vadd.f32 0.0, %v9174
  %v9176 = vpop.f32.mrf.mxu0
  %9177 = vmatprep.mubr.bf16.mxu0 0
  %9178 = vmatmul.mubr.bf16.gmra.mxu0 %v5757
  %v9179 = vpop.f32.mrf.mxu0
  %v9180 = vadd.f32 0.0, %v9179
  %v9181 = vpop.f32.mrf.mxu0
  %v9182 = vpop.f32.mrf.mxu0
  %v9183 = vadd.f32 0.0, %v9182
  %v9184 = vpop.f32.mrf.mxu0
  %9185 = vmatprep.mubr.bf16.mxu0 0
  %9186 = vmatmul.mubr.bf16.gmra.mxu0 %v5758
  %v9187 = vpop.f32.mrf.mxu0
  %v9188 = vadd.f32 0.0, %v9187
  %v9189 = vpop.f32.mrf.mxu0
  %v9190 = vpop.f32.mrf.mxu0
  %v9191 = vadd.f32 0.0, %v9190
  %v9192 = vpop.f32.mrf.mxu0
  %9193 = vmatprep.mubr.bf16.mxu0 0
  %9194 = vmatmul.mubr.bf16.gmra.mxu0 %v5759
  %v9195 = vpop.f32.mrf.mxu0
  %v9196 = vadd.f32 0.0, %v9195
  %v9197 = vpop.f32.mrf.mxu0
  %v9198 = vpop.f32.mrf.mxu0
  %v9199 = vadd.f32 0.0, %v9198
  %v9200 = vpop.f32.mrf.mxu0
  %9201 = vmatprep.mubr.bf16.mxu0 0
  %9202 = vmatmul.mubr.bf16.gmra.mxu0 %v1033
  %v9203 = vpop.f32.mrf.mxu0
  %v9204 = vadd.f32 0.0, %v9203
  %v9205 = vpop.f32.mrf.mxu0
  %v9206 = vpop.f32.mrf.mxu0
  %v9207 = vadd.f32 0.0, %v9206
  %v9208 = vpop.f32.mrf.mxu0
  %9209 = vmatprep.mubr.bf16.mxu0 0
  %9210 = vmatmul.mubr.bf16.gmra.mxu0 %v5761
  %v9211 = vpop.f32.mrf.mxu0
  %v9212 = vadd.f32 0.0, %v9211
  %v9213 = vpop.f32.mrf.mxu0
  %v9214 = vpop.f32.mrf.mxu0
  %v9215 = vadd.f32 0.0, %v9214
  %v9216 = vpop.f32.mrf.mxu0
  %9217 = vmatprep.mubr.bf16.mxu0 0
  %9218 = vmatmul.mubr.bf16.gmra.mxu0 %v5762
  %v9219 = vpop.f32.mrf.mxu0
  %v9220 = vadd.f32 0.0, %v9219
  %v9221 = vpop.f32.mrf.mxu0
  %v9222 = vpop.f32.mrf.mxu0
  %v9223 = vadd.f32 0.0, %v9222
  %v9224 = vpop.f32.mrf.mxu0
  %9225 = vmatprep.mubr.bf16.mxu0 0
  %9226 = vmatmul.mubr.bf16.gmra.mxu0 %v5763
  %v9227 = vpop.f32.mrf.mxu0
  %v9228 = vadd.f32 0.0, %v9227
  %v9229 = vpop.f32.mrf.mxu0
  %v9230 = vpop.f32.mrf.mxu0
  %v9231 = vadd.f32 0.0, %v9230
  %v9232 = vpop.f32.mrf.mxu0
  %9233 = vmatprep.mubr.bf16.mxu0 0
  %9234 = vmatmul.mubr.bf16.gmra.mxu0 %v5764
  %v9235 = vpop.f32.mrf.mxu0
  %v9236 = vadd.f32 0.0, %v9235
  %v9237 = vpop.f32.mrf.mxu0
  %v9238 = vpop.f32.mrf.mxu0
  %v9239 = vadd.f32 0.0, %v9238
  %v9240 = vpop.f32.mrf.mxu0
  %9241 = vmatprep.mubr.bf16.mxu0 0
  %9242 = vmatmul.mubr.bf16.gmra.mxu0 %v5765
  %v9243 = vpop.f32.mrf.mxu0
  %v9244 = vadd.f32 0.0, %v9243
  %v9245 = vpop.f32.mrf.mxu0
  %v9246 = vpop.f32.mrf.mxu0
  %v9247 = vadd.f32 0.0, %v9246
  %v9248 = vpop.f32.mrf.mxu0
  %9249 = vmatprep.mubr.bf16.mxu0 0
  %9250 = vmatmul.mubr.bf16.gmra.mxu0 %v5766
  %v9251 = vpop.f32.mrf.mxu0
  %v9252 = vadd.f32 0.0, %v9251
  %v9253 = vpop.f32.mrf.mxu0
  %v9254 = vpop.f32.mrf.mxu0
  %v9255 = vadd.f32 0.0, %v9254
  %v9256 = vpop.f32.mrf.mxu0
  %9257 = vmatprep.mubr.bf16.mxu0 0
  %9258 = vmatmul.mubr.bf16.gmra.mxu0 %v5767
  %v9259 = vpop.f32.mrf.mxu0
  %v9260 = vadd.f32 0.0, %v9259
  %v9261 = vpop.f32.mrf.mxu0
  %v9262 = vpop.f32.mrf.mxu0
  %v9263 = vadd.f32 0.0, %v9262
  %v9264 = vpop.f32.mrf.mxu0
  %9265 = vmatprep.mubr.bf16.mxu0 0
  %9266 = vmatmul.mubr.bf16.gmra.mxu0 %v5768
  %v9267 = vpop.f32.mrf.mxu0
  %v9268 = vadd.f32 0.0, %v9267
  %v9269 = vpop.f32.mrf.mxu0
  %v9270 = vpop.f32.mrf.mxu0
  %v9271 = vadd.f32 0.0, %v9270
  %v9272 = vpop.f32.mrf.mxu0
  %9273 = vmatprep.mubr.bf16.mxu0 0
  %9274 = vmatmul.mubr.bf16.gmra.mxu0 %v5769
  %v9275 = vpop.f32.mrf.mxu0
  %v9276 = vadd.f32 0.0, %v9275
  %v9277 = vpop.f32.mrf.mxu0
  %v9278 = vpop.f32.mrf.mxu0
  %v9279 = vadd.f32 0.0, %v9278
  %v9280 = vpop.f32.mrf.mxu0
  %9281 = vmatprep.mubr.bf16.mxu0 0
  %9282 = vmatmul.mubr.bf16.gmra.mxu0 %v5770
  %v9283 = vpop.f32.mrf.mxu0
  %v9284 = vadd.f32 0.0, %v9283
  %v9285 = vpop.f32.mrf.mxu0
  %v9286 = vpop.f32.mrf.mxu0
  %v9287 = vadd.f32 0.0, %v9286
  %v9288 = vpop.f32.mrf.mxu0
  %9289 = vmatprep.mubr.bf16.mxu0 0
  %9290 = vmatmul.mubr.bf16.gmra.mxu0 %v5771
  %v9291 = vpop.f32.mrf.mxu0
  %v9292 = vadd.f32 0.0, %v9291
  %v9293 = vpop.f32.mrf.mxu0
  %v9294 = vpop.f32.mrf.mxu0
  %v9295 = vadd.f32 0.0, %v9294
  %v9296 = vpop.f32.mrf.mxu0
  %9297 = vmatprep.mubr.bf16.mxu0 0
  %9298 = vmatmul.mubr.bf16.gmra.mxu0 %v5772
  %v9299 = vpop.f32.mrf.mxu0
  %v9300 = vadd.f32 0.0, %v9299
  %v9301 = vpop.f32.mrf.mxu0
  %v9302 = vpop.f32.mrf.mxu0
  %v9303 = vadd.f32 0.0, %v9302
  %v9304 = vpop.f32.mrf.mxu0
  %9305 = vmatprep.mubr.bf16.mxu0 0
  %9306 = vmatmul.mubr.bf16.gmra.mxu0 %v5773
  %v9307 = vpop.f32.mrf.mxu0
  %v9308 = vadd.f32 0.0, %v9307
  %v9309 = vpop.f32.mrf.mxu0
  %v9310 = vpop.f32.mrf.mxu0
  %v9311 = vadd.f32 0.0, %v9310
  %v9312 = vpop.f32.mrf.mxu0
  %9313 = vmatprep.mubr.bf16.mxu0 0
  %9314 = vmatmul.mubr.bf16.gmra.mxu0 %v5774
  %v9315 = vpop.f32.mrf.mxu0
  %v9316 = vadd.f32 0.0, %v9315
  %v9317 = vpop.f32.mrf.mxu0
  %v9318 = vpop.f32.mrf.mxu0
  %v9319 = vadd.f32 0.0, %v9318
  %v9320 = vpop.f32.mrf.mxu0
  %9321 = vmatprep.mubr.bf16.mxu0 0
  %9322 = vmatmul.mubr.bf16.gmra.mxu0 %v5775
  %v9323 = vpop.f32.mrf.mxu0
  %v9324 = vadd.f32 0.0, %v9323
  %v9325 = vpop.f32.mrf.mxu0
  %v9326 = vpop.f32.mrf.mxu0
  %v9327 = vadd.f32 0.0, %v9326
  %v9328 = vpop.f32.mrf.mxu0
  %9329 = vmatprep.mubr.bf16.mxu0 0
  %9330 = vmatmul.mubr.bf16.gmra.mxu0 %v1033
  %v9331 = vpop.f32.mrf.mxu0
  %v9332 = vadd.f32 0.0, %v9331
  %v9333 = vpop.f32.mrf.mxu0
  %v9334 = vpop.f32.mrf.mxu0
  %v9335 = vadd.f32 0.0, %v9334
  %v9336 = vpop.f32.mrf.mxu0
  %9337 = vdwg.mxu0
  %v9338 = vadd.f32 %v8937, %v9084
  %v9339 = vadd.f32 %v8938, %v9087
  %v9340 = vadd.f32 %v8939, %v9092
  %v9341 = vadd.f32 %v8940, %v9095
  %v9342 = vadd.f32 %v8941, %v9100
  %v9343 = vadd.f32 %v8942, %v9103
  %v9344 = vadd.f32 %v8943, %v9108
  %v9345 = vadd.f32 %v8944, %v9111
  %v9346 = vadd.f32 %v8945, %v9116
  %v9347 = vadd.f32 %v8946, %v9119
  %v9348 = vadd.f32 %v8947, %v9124
  %v9349 = vadd.f32 %v8948, %v9127
  %v9350 = vadd.f32 %v8949, %v9132
  %v9351 = vadd.f32 %v8950, %v9135
  %v9352 = vadd.f32 %v8951, %v9140
  %v9353 = vadd.f32 %v8952, %v9143
  %v9354 = vadd.f32 %v8953, %v9148
  %v9355 = vadd.f32 %v8954, %v9151
  %v9356 = vadd.f32 %v8955, %v9156
  %v9357 = vadd.f32 %v8956, %v9159
  %v9358 = vadd.f32 %v8957, %v9164
  %v9359 = vadd.f32 %v8958, %v9167
  %v9360 = vadd.f32 %v8959, %v9172
  %v9361 = vadd.f32 %v8960, %v9175
  %v9362 = vadd.f32 %v8961, %v9180
  %v9363 = vadd.f32 %v8962, %v9183
  %v9364 = vadd.f32 %v8963, %v9188
  %v9365 = vadd.f32 %v8964, %v9191
  %v9366 = vadd.f32 %v8965, %v9196
  %v9367 = vadd.f32 %v8966, %v9199
  %v9368 = vadd.f32 %v8967, %v9204
  %v9369 = vadd.f32 %v8968, %v9207
  %v9370 = vadd.f32 %v8969, %v9212
  %v9371 = vadd.f32 %v8970, %v9215
  %v9372 = vadd.f32 %v8971, %v9220
  %v9373 = vadd.f32 %v8972, %v9223
  %v9374 = vadd.f32 %v8973, %v9228
  %v9375 = vadd.f32 %v8974, %v9231
  %v9376 = vadd.f32 %v8975, %v9236
  %v9377 = vadd.f32 %v8976, %v9239
  %v9378 = vadd.f32 %v8977, %v9244
  %v9379 = vadd.f32 %v8978, %v9247
  %v9380 = vadd.f32 %v8979, %v9252
  %v9381 = vadd.f32 %v8980, %v9255
  %v9382 = vadd.f32 %v8981, %v9260
  %v9383 = vadd.f32 %v8982, %v9263
  %v9384 = vadd.f32 %v8983, %v9268
  %v9385 = vadd.f32 %v8984, %v9271
  %v9386 = vadd.f32 %v8985, %v9276
  %v9387 = vadd.f32 %v8986, %v9279
  %v9388 = vadd.f32 %v8987, %v9284
  %v9389 = vadd.f32 %v8988, %v9287
  %v9390 = vadd.f32 %v8989, %v9292
  %v9391 = vadd.f32 %v8990, %v9295
  %v9392 = vadd.f32 %v8991, %v9300
  %v9393 = vadd.f32 %v8992, %v9303
  %v9394 = vadd.f32 %v8993, %v9308
  %v9395 = vadd.f32 %v8994, %v9311
  %v9396 = vadd.f32 %v8995, %v9316
  %v9397 = vadd.f32 %v8996, %v9319
  %v9398 = vadd.f32 %v8997, %v9324
  %v9399 = vadd.f32 %v8998, %v9327
  %v9400 = vadd.f32 %v8999, %v9332
  %v9401 = vadd.f32 %v9000, %v9335
  %v9402 = vadd.f32 %v4759, %v9338
  %v9403 = vadd.f32 %v4760, %v9339
  %v9404 = vadd.f32 %v4761, %v9340
  %v9405 = vadd.f32 %v4762, %v9341
  %v9406 = vadd.f32 %v4763, %v9342
  %v9407 = vadd.f32 %v4764, %v9343
  %v9408 = vadd.f32 %v4765, %v9344
  %v9409 = vadd.f32 %v4766, %v9345
  %v9410 = vadd.f32 %v4767, %v9346
  %v9411 = vadd.f32 %v4768, %v9347
  %v9412 = vadd.f32 %v4769, %v9348
  %v9413 = vadd.f32 %v4770, %v9349
  %v9414 = vadd.f32 %v4771, %v9350
  %v9415 = vadd.f32 %v4772, %v9351
  %v9416 = vadd.f32 %v4773, %v9352
  %v9417 = vadd.f32 %v4774, %v9353
  %v9418 = vadd.f32 %v4775, %v9354
  %v9419 = vadd.f32 %v4776, %v9355
  %v9420 = vadd.f32 %v4777, %v9356
  %v9421 = vadd.f32 %v4778, %v9357
  %v9422 = vadd.f32 %v4779, %v9358
  %v9423 = vadd.f32 %v4780, %v9359
  %v9424 = vadd.f32 %v4781, %v9360
  %v9425 = vadd.f32 %v4782, %v9361
  %v9426 = vadd.f32 %v4783, %v9362
  %v9427 = vadd.f32 %v4784, %v9363
  %v9428 = vadd.f32 %v4785, %v9364
  %v9429 = vadd.f32 %v4786, %v9365
  %v9430 = vadd.f32 %v4787, %v9366
  %v9431 = vadd.f32 %v4788, %v9367
  %v9432 = vadd.f32 %v4789, %v9368
  %v9433 = vadd.f32 %v4790, %v9369
  %v9434 = vadd.f32 %v4791, %v9370
  %v9435 = vadd.f32 %v4792, %v9371
  %v9436 = vadd.f32 %v4793, %v9372
  %v9437 = vadd.f32 %v4794, %v9373
  %v9438 = vadd.f32 %v4795, %v9374
  %v9439 = vadd.f32 %v4796, %v9375
  %v9440 = vadd.f32 %v4797, %v9376
  %v9441 = vadd.f32 %v4798, %v9377
  %v9442 = vadd.f32 %v4799, %v9378
  %v9443 = vadd.f32 %v4800, %v9379
  %v9444 = vadd.f32 %v4801, %v9380
  %v9445 = vadd.f32 %v4802, %v9381
  %v9446 = vadd.f32 %v4803, %v9382
  %v9447 = vadd.f32 %v4804, %v9383
  %v9448 = vadd.f32 %v4805, %v9384
  %v9449 = vadd.f32 %v4806, %v9385
  %v9450 = vadd.f32 %v4807, %v9386
  %v9451 = vadd.f32 %v4808, %v9387
  %v9452 = vadd.f32 %v4809, %v9388
  %v9453 = vadd.f32 %v4810, %v9389
  %v9454 = vadd.f32 %v4811, %v9390
  %v9455 = vadd.f32 %v4812, %v9391
  %v9456 = vadd.f32 %v4813, %v9392
  %v9457 = vadd.f32 %v4814, %v9393
  %v9458 = vadd.f32 %v4815, %v9394
  %v9459 = vadd.f32 %v4816, %v9395
  %v9460 = vadd.f32 %v4817, %v9396
  %v9461 = vadd.f32 %v4818, %v9397
  %v9462 = vadd.f32 %v4819, %v9398
  %v9463 = vadd.f32 %v4820, %v9399
  %v9464 = vadd.f32 %v4821, %v9400
  %v9465 = vadd.f32 %v4822, %v9401
  %v9466 = vlaneseq
  %v9467 = vshrl.u32 %v9466, 7
  %v9468 = vsub.s32 1, %v9467
  %v9469 = vrot.slane %v87, %v9468
  %v9470 = vadd.f32 %v9402, %v9469
  %v9471 = vadd.f32 %v9403, %v9469
  %v9472 = vadd.f32 %v9404, %v9469
  %v9473 = vadd.f32 %v9405, %v9469
  %v9474 = vadd.f32 %v9406, %v9469
  %v9475 = vadd.f32 %v9407, %v9469
  %v9476 = vadd.f32 %v9408, %v9469
  %v9477 = vadd.f32 %v9409, %v9469
  %v9478 = vadd.f32 %v9410, %v9469
  %v9479 = vadd.f32 %v9411, %v9469
  %v9480 = vadd.f32 %v9412, %v9469
  %v9481 = vadd.f32 %v9413, %v9469
  %v9482 = vadd.f32 %v9414, %v9469
  %v9483 = vadd.f32 %v9415, %v9469
  %v9484 = vadd.f32 %v9416, %v9469
  %v9485 = vadd.f32 %v9417, %v9469
  %v9486 = vadd.f32 %v9418, %v9469
  %v9487 = vadd.f32 %v9419, %v9469
  %v9488 = vadd.f32 %v9420, %v9469
  %v9489 = vadd.f32 %v9421, %v9469
  %v9490 = vadd.f32 %v9422, %v9469
  %v9491 = vadd.f32 %v9423, %v9469
  %v9492 = vadd.f32 %v9424, %v9469
  %v9493 = vadd.f32 %v9425, %v9469
  %v9494 = vadd.f32 %v9426, %v9469
  %v9495 = vadd.f32 %v9427, %v9469
  %v9496 = vadd.f32 %v9428, %v9469
  %v9497 = vadd.f32 %v9429, %v9469
  %v9498 = vadd.f32 %v9430, %v9469
  %v9499 = vadd.f32 %v9431, %v9469
  %v9500 = vadd.f32 %v9432, %v9469
  %v9501 = vadd.f32 %v9433, %v9469
  %v9502 = vadd.f32 %v9434, %v9469
  %v9503 = vadd.f32 %v9435, %v9469
  %v9504 = vadd.f32 %v9436, %v9469
  %v9505 = vadd.f32 %v9437, %v9469
  %v9506 = vadd.f32 %v9438, %v9469
  %v9507 = vadd.f32 %v9439, %v9469
  %v9508 = vadd.f32 %v9440, %v9469
  %v9509 = vadd.f32 %v9441, %v9469
  %v9510 = vadd.f32 %v9442, %v9469
  %v9511 = vadd.f32 %v9443, %v9469
  %v9512 = vadd.f32 %v9444, %v9469
  %v9513 = vadd.f32 %v9445, %v9469
  %v9514 = vadd.f32 %v9446, %v9469
  %v9515 = vadd.f32 %v9447, %v9469
  %v9516 = vadd.f32 %v9448, %v9469
  %v9517 = vadd.f32 %v9449, %v9469
  %v9518 = vadd.f32 %v9450, %v9469
  %v9519 = vadd.f32 %v9451, %v9469
  %v9520 = vadd.f32 %v9452, %v9469
  %v9521 = vadd.f32 %v9453, %v9469
  %v9522 = vadd.f32 %v9454, %v9469
  %v9523 = vadd.f32 %v9455, %v9469
  %v9524 = vadd.f32 %v9456, %v9469
  %v9525 = vadd.f32 %v9457, %v9469
  %v9526 = vadd.f32 %v9458, %v9469
  %v9527 = vadd.f32 %v9459, %v9469
  %v9528 = vadd.f32 %v9460, %v9469
  %v9529 = vadd.f32 %v9461, %v9469
  %v9530 = vadd.f32 %v9462, %v9469
  %v9531 = vadd.f32 %v9463, %v9469
  %v9532 = vadd.f32 %v9464, %v9469
  %v9533 = vadd.f32 %v9465, %v9469
  %9534 = vst [vmem:[%s5] sm:$0xff] %v9470
  %9535 = vst [vmem:[%s5 + $0x8] sm:$0xff] %v9471
  %9536 = vst [vmem:[%s5 + $0x10] sm:$0xff] %v9472
  %9537 = vst [vmem:[%s5 + $0x18] sm:$0xff] %v9473
  %9538 = vst [vmem:[%s5 + $0x20] sm:$0xff] %v9474
  %9539 = vst [vmem:[%s5 + $0x28] sm:$0xff] %v9475
  %9540 = vst [vmem:[%s5 + $0x30] sm:$0xff] %v9476
  %9541 = vst [vmem:[%s5 + $0x38] sm:$0xff] %v9477
  %9542 = vst [vmem:[%s5 + $0x40] sm:$0xff] %v9478
  %9543 = vst [vmem:[%s5 + $0x48] sm:$0xff] %v9479
  %9544 = vst [vmem:[%s5 + $0x50] sm:$0xff] %v9480
  %9545 = vst [vmem:[%s5 + $0x58] sm:$0xff] %v9481
  %9546 = vst [vmem:[%s5 + $0x60] sm:$0xff] %v9482
  %9547 = vst [vmem:[%s5 + $0x68] sm:$0xff] %v9483
  %9548 = vst [vmem:[%s5 + $0x70] sm:$0xff] %v9484
  %9549 = vst [vmem:[%s5 + $0x78] sm:$0xff] %v9485
  %9550 = vst [vmem:[%s5 + $0x80] sm:$0xff] %v9486
  %9551 = vst [vmem:[%s5 + $0x88] sm:$0xff] %v9487
  %9552 = vst [vmem:[%s5 + $0x90] sm:$0xff] %v9488
  %9553 = vst [vmem:[%s5 + $0x98] sm:$0xff] %v9489
  %9554 = vst [vmem:[%s5 + $0xa0] sm:$0xff] %v9490
  %9555 = vst [vmem:[%s5 + $0xa8] sm:$0xff] %v9491
  %9556 = vst [vmem:[%s5 + $0xb0] sm:$0xff] %v9492
  %9557 = vst [vmem:[%s5 + $0xb8] sm:$0xff] %v9493
  %9558 = vst [vmem:[%s5 + $0xc0] sm:$0xff] %v9494
  %9559 = vst [vmem:[%s5 + $0xc8] sm:$0xff] %v9495
  %9560 = vst [vmem:[%s5 + $0xd0] sm:$0xff] %v9496
  %9561 = vst [vmem:[%s5 + $0xd8] sm:$0xff] %v9497
  %9562 = vst [vmem:[%s5 + $0xe0] sm:$0xff] %v9498
  %9563 = vst [vmem:[%s5 + $0xe8] sm:$0xff] %v9499
  %9564 = vst [vmem:[%s5 + $0xf0] sm:$0xff] %v9500
  %9565 = vst [vmem:[%s5 + $0xf8] sm:$0xff] %v9501
  %9566 = vst [vmem:[%s5 + $0x100] sm:$0xff] %v9502
  %9567 = vst [vmem:[%s5 + $0x108] sm:$0xff] %v9503
  %9568 = vst [vmem:[%s5 + $0x110] sm:$0xff] %v9504
  %9569 = vst [vmem:[%s5 + $0x118] sm:$0xff] %v9505
  %9570 = vst [vmem:[%s5 + $0x120] sm:$0xff] %v9506
  %9571 = vst [vmem:[%s5 + $0x128] sm:$0xff] %v9507
  %9572 = vst [vmem:[%s5 + $0x130] sm:$0xff] %v9508
  %9573 = vst [vmem:[%s5 + $0x138] sm:$0xff] %v9509
  %9574 = vst [vmem:[%s5 + $0x140] sm:$0xff] %v9510
  %9575 = vst [vmem:[%s5 + $0x148] sm:$0xff] %v9511
  %9576 = vst [vmem:[%s5 + $0x150] sm:$0xff] %v9512
  %9577 = vst [vmem:[%s5 + $0x158] sm:$0xff] %v9513
  %9578 = vst [vmem:[%s5 + $0x160] sm:$0xff] %v9514
  %9579 = vst [vmem:[%s5 + $0x168] sm:$0xff] %v9515
  %9580 = vst [vmem:[%s5 + $0x170] sm:$0xff] %v9516
  %9581 = vst [vmem:[%s5 + $0x178] sm:$0xff] %v9517
  %9582 = vst [vmem:[%s5 + $0x180] sm:$0xff] %v9518
  %9583 = vst [vmem:[%s5 + $0x188] sm:$0xff] %v9519
  %9584 = vst [vmem:[%s5 + $0x190] sm:$0xff] %v9520
  %9585 = vst [vmem:[%s5 + $0x198] sm:$0xff] %v9521
  %9586 = vst [vmem:[%s5 + $0x1a0] sm:$0xff] %v9522
  %9587 = vst [vmem:[%s5 + $0x1a8] sm:$0xff] %v9523
  %9588 = vst [vmem:[%s5 + $0x1b0] sm:$0xff] %v9524
  %9589 = vst [vmem:[%s5 + $0x1b8] sm:$0xff] %v9525
  %9590 = vst [vmem:[%s5 + $0x1c0] sm:$0xff] %v9526
  %9591 = vst [vmem:[%s5 + $0x1c8] sm:$0xff] %v9527
  %9592 = vst [vmem:[%s5 + $0x1d0] sm:$0xff] %v9528
  %9593 = vst [vmem:[%s5 + $0x1d8] sm:$0xff] %v9529
  %9594 = vst [vmem:[%s5 + $0x1e0] sm:$0xff] %v9530
  %9595 = vst [vmem:[%s5 + $0x1e8] sm:$0xff] %v9531
  %9596 = vst [vmem:[%s5 + $0x1f0] sm:$0xff] %v9532
  %9597 = vst [vmem:[%s5 + $0x1f8] sm:$0xff] %v9533
  // Predicated region
  $region22: #{dense_block_forward.1} parent=0 // pred_check
    _
  $region23: #{dense_block_forward.1} parent=0 // pred_check_branch
    %9599 = sbr.rel (0) target = $region25
  $region24: #{dense_block_forward.1} parent=0 // pred_region
    _
  $region25: #{dense_block_forward.1} parent=0 // pred_fallthru
    _
  // Predicated region
  $region26: #{dense_block_forward.1} parent=0 // pred_check
    _
  $region27: #{dense_block_forward.1} parent=0 // pred_check_branch
    %9601 = sbr.rel (0) target = $region29
  $region28: #{dense_block_forward.1} parent=0 // pred_region
    _
  $region29: #{dense_block_forward.1} parent=0 // pred_fallthru
    _

</llo_original>
